<compile_context>
chip_gen: v5e
topology: v5e:2x2
jax: 0.10.0
libtpu: 0.0.40
codegen_flags: <defaults>
</compile_context>

<pallas_src>
import jax
import jax.numpy as jnp
from jax.experimental import pallas as pl
from jax.experimental.pallas import tpu as pltpu

F1A = 4096            # first backbone feature width
F1B = 1280            # second backbone feature width
F1_IN = F1A + F1B     # 5376
F1_OUT = 2048
F2_OUT = 12
N_SPLIT = 2           # column split of layer 1 (megacore on v7x; harmless elsewhere)
HALF = F1_OUT // N_SPLIT


def nima_kernel(x1_ref, x2_ref, w1a_ref, w1b_ref, b1_ref, w2_ref, out_ref, acc_ref):
    """relu(x) @ W1_half (+b1_half, relu) @ W2_half, K-tiled over the 4096 part."""
    k = pl.program_id(1)  # reduction axis only; the parallel split axis is axis 0

    @pl.when(k == 0)
    def _():
        acc_ref[...] = jnp.zeros_like(acc_ref)

    # Head ReLU on the x1 features; bf16 into the MXU, f32 accumulation.
    xr = jnp.maximum(x1_ref[...], 0.0).astype(jnp.bfloat16)
    acc_ref[...] += jnp.dot(xr, w1a_ref[...], preferred_element_type=jnp.float32)

    @pl.when(k == pl.num_programs(1) - 1)
    def _():
        # x2 (1280-wide tail) contribution, bias + ReLU, then the second Linear.
        x2r = jnp.maximum(x2_ref[...], 0.0).astype(jnp.bfloat16)
        acc = acc_ref[...] + jnp.dot(x2r, w1b_ref[...], preferred_element_type=jnp.float32)
        h = jnp.maximum(acc + b1_ref[...], 0.0)  # hidden1's leading ReLU is a no-op here
        out_ref[0] = jnp.dot(h, w2_ref[...], preferred_element_type=jnp.float32).astype(
            out_ref.dtype
        )


def nima_forward(x1, x2, w1a_bf16, w1b_bf16, b1, w2, b2, *, tk=2048):
    B = x1.shape[0]
    assert x1.shape == (B, F1A) and x2.shape == (B, F1B)
    assert F1A % tk == 0
    nk = F1A // tk

    cost = pl.CostEstimate(
        flops=2 * B * F1_IN * F1_OUT + 2 * B * F1_OUT * F2_OUT,
        transcendentals=0,
        bytes_accessed=(
            F1_IN * F1_OUT * 2          # W1 (bf16)
            + F1_OUT * F2_OUT * 4       # W2
            + F1_OUT * 4                # b1
            + B * F1_IN * 4             # x1 + x2
            + N_SPLIT * B * F2_OUT * 4  # partial outputs
        ),
    )

    parts = pl.pallas_call(
        nima_kernel,
        out_shape=jax.ShapeDtypeStruct((N_SPLIT, B, F2_OUT), jnp.float32),
        grid_spec=pltpu.PrefetchScalarGridSpec(
            num_scalar_prefetch=0,
            grid=(N_SPLIT, nk),
            in_specs=[
                pl.BlockSpec((B, tk), lambda j, k: (0, k)),          # x1 K-tile
                pl.BlockSpec((B, F1B), lambda j, k: (0, 0)),         # x2 (resident)
                pl.BlockSpec((tk, HALF), lambda j, k: (k, j)),       # W1[:4096] tile (bf16)
                pl.BlockSpec((F1B, HALF), lambda j, k: (0, j)),      # W1[4096:] half (bf16)
                pl.BlockSpec((1, HALF), lambda j, k: (0, j)),        # b1 half
                pl.BlockSpec((HALF, F2_OUT), lambda j, k: (j, 0)),   # W2 half (f32)
            ],
            out_specs=pl.BlockSpec((1, B, F2_OUT), lambda j, k: (j, 0, 0)),
            scratch_shapes=[pltpu.VMEM((B, HALF), jnp.float32)],
        ),
        compiler_params=pltpu.CompilerParams(
            dimension_semantics=("parallel", "arbitrary"),
            vmem_limit_bytes=32 * 1024 * 1024,
        ),
        cost_estimate=cost,
    )(x1, x2, w1a_bf16, w1b_bf16, b1, w2)

    # Column-split partials sum to the full second Linear; add its bias once here.
    return parts.sum(axis=0) + b2


def _reference(x1, x2, w1, b1, w2, b2):
    x = jnp.concatenate([x1, x2], axis=1)
    h = jnp.maximum(x, 0.0)
    h = jnp.maximum(h @ w1 + b1, 0.0)
    h = jnp.maximum(h, 0.0)
    return h @ w2 + b2


if __name__ == "__main__":
    key = jax.random.PRNGKey(0)
    k1, k2, k3, k4, k5, k6 = jax.random.split(key, 6)

    B = 2
    # Synthetic backbone features (cat_net outputs).
    x1 = jax.random.normal(k1, (B, F1A), dtype=jnp.float32)
    x2 = jax.random.normal(k2, (B, F1B), dtype=jnp.float32)

    # Deterministic parameter init (shapes from the module's __init__), stored (in, out).
    w1 = jax.random.normal(k3, (F1_IN, F1_OUT), dtype=jnp.float32) * 0.02
    b1 = jax.random.normal(k4, (1, F1_OUT), dtype=jnp.float32) * 0.02
    w2 = jax.random.normal(k5, (F1_OUT, F2_OUT), dtype=jnp.float32) * 0.02
    b2 = jax.random.normal(k6, (1, F2_OUT), dtype=jnp.float32) * 0.02

    # One-time (serving-style) parameter prep: split W1 at the 4096/1280 boundary
    # and cast the big weight to bf16 for the bandwidth-bound first matmul.
    w1a_bf16 = w1[:F1A].astype(jnp.bfloat16)
    w1b_bf16 = w1[F1A:].astype(jnp.bfloat16)

    out = nima_forward(x1, x2, w1a_bf16, w1b_bf16, b1, w2, b2)
    out = jax.block_until_ready(out)

    ref = _reference(x1, x2, w1, b1, w2, b2)
    assert out.shape == (B, F2_OUT)
    # bf16 weights on the first matmul -> loosened tolerance (f32 accumulation kept).
    assert jnp.allclose(out, ref, atol=5e-2, rtol=5e-2), float(jnp.max(jnp.abs(out - ref)))

    print("KERNEL_OK")
</pallas_src>

<mosaic_0001>
module attributes {stable_mosaic.version = 11 : i64} {
  func.func @nima_kernel(%arg0: i32, %arg1: i32, %arg2: memref<2x2048xf32, #tpu.memory_space<vmem>>, %arg3: memref<2x1280xf32, #tpu.memory_space<vmem>>, %arg4: memref<2048x1024xbf16, #tpu.memory_space<vmem>>, %arg5: memref<1280x1024xbf16, #tpu.memory_space<vmem>>, %arg6: memref<1x1024xf32, #tpu.memory_space<vmem>>, %arg7: memref<1024x12xf32, #tpu.memory_space<vmem>>, %arg8: memref<1x2x12xf32, #tpu.memory_space<vmem>>, %arg9: memref<2x1024xf32, #tpu.memory_space<vmem>>) attributes {dimension_semantics = [#tpu.dimension_semantics<parallel>, #tpu.dimension_semantics<arbitrary>], iteration_bounds = array<i64: 2, 2>, scalar_prefetch = 0 : i64, scratch_operands = 1 : i64, tpu.core_type = #tpu.core_type<tc>, window_params = [{transform_indices = @transform_0, window_bounds = array<i64: 2, 2048>}, {pipeline_mode = #tpu.pipeline_mode<synchronous>, transform_indices = @transform_1, window_bounds = array<i64: 2, 1280>}, {transform_indices = @transform_2, window_bounds = array<i64: 2048, 1024>}, {transform_indices = @transform_3, window_bounds = array<i64: 1280, 1024>}, {transform_indices = @transform_4, window_bounds = array<i64: 1, 1024>}, {transform_indices = @transform_5, window_bounds = array<i64: 1024, 12>}, {transform_indices = @transform_6, window_bounds = array<i64: 1, 2, 12>}]} {
    %c0_i32 = arith.constant 0 : i32
    %0 = arith.cmpi eq, %arg1, %c0_i32 : i32
    %1 = arith.extui %0 : i1 to i32
    %c0_i32_0 = arith.constant 0 : i32
    %2 = arith.cmpi ne, %1, %c0_i32_0 : i32
    scf.if %2 {
      %cst_10 = arith.constant 0.000000e+00 : f32
      %15 = vector.broadcast %cst_10 : f32 to vector<2x1024xf32>
      %c0_11 = arith.constant 0 : index
      %c0_12 = arith.constant 0 : index
      %16 = vector.load %arg9[%c0_11, %c0_12] : memref<2x1024xf32, #tpu.memory_space<vmem>>, vector<2x1024xf32>
      tpu.vector_store %arg9[%c0_11, %c0_12], %15 {strides = array<i32>} : memref<2x1024xf32, #tpu.memory_space<vmem>>, vector<2x1024xf32>,
    } else {
    }
    %c0 = arith.constant 0 : index
    %c0_1 = arith.constant 0 : index
    %3 = vector.load %arg2[%c0, %c0_1] : memref<2x2048xf32, #tpu.memory_space<vmem>>, vector<2x2048xf32>
    %cst = arith.constant 0.000000e+00 : f32
    %4 = vector.broadcast %cst : f32 to vector<2x2048xf32>
    %5 = arith.maximumf %3, %4 : vector<2x2048xf32>
    %6 = arith.truncf %5 : vector<2x2048xf32> to vector<2x2048xbf16>
    %c0_2 = arith.constant 0 : index
    %c0_3 = arith.constant 0 : index
    %7 = vector.load %arg9[%c0_2, %c0_3] : memref<2x1024xf32, #tpu.memory_space<vmem>>, vector<2x1024xf32>
    %c0_4 = arith.constant 0 : index
    %c0_5 = arith.constant 0 : index
    %8 = vector.load %arg4[%c0_4, %c0_5] : memref<2048x1024xbf16, #tpu.memory_space<vmem>>, vector<2048x1024xbf16>
    %cst_6 = arith.constant dense<0.000000e+00> : vector<2x1024xf32>
    %9 = tpu.matmul %6, %8, %cst_6 {dimension_numbers = #tpu.dot_dimension_numbers<[1], [0], [0], [1], [0, 0, 1, 1], [], []>} : vector<2x2048xbf16>, vector<2048x1024xbf16>, vector<2x1024xf32> -> vector<2x1024xf32>
    %10 = arith.addf %7, %9 : vector<2x1024xf32>
    %c0_7 = arith.constant 0 : index
    %c0_8 = arith.constant 0 : index
    %11 = vector.load %arg9[%c0_7, %c0_8] : memref<2x1024xf32, #tpu.memory_space<vmem>>, vector<2x1024xf32>
    tpu.vector_store %arg9[%c0_7, %c0_8], %10 {strides = array<i32>} : memref<2x1024xf32, #tpu.memory_space<vmem>>, vector<2x1024xf32>,
    %c1_i32 = arith.constant 1 : i32
    %12 = arith.cmpi eq, %arg1, %c1_i32 : i32
    %13 = arith.extui %12 : i1 to i32
    %c0_i32_9 = arith.constant 0 : i32
    %14 = arith.cmpi ne, %13, %c0_i32_9 : i32
    scf.if %14 {
      %c0_10 = arith.constant 0 : index
      %c0_11 = arith.constant 0 : index
      %15 = vector.load %arg3[%c0_10, %c0_11] : memref<2x1280xf32, #tpu.memory_space<vmem>>, vector<2x1280xf32>
      %cst_12 = arith.constant 0.000000e+00 : f32
      %16 = vector.broadcast %cst_12 : f32 to vector<2x1280xf32>
      %17 = arith.maximumf %15, %16 : vector<2x1280xf32>
      %18 = arith.truncf %17 : vector<2x1280xf32> to vector<2x1280xbf16>
      %c0_13 = arith.constant 0 : index
      %c0_14 = arith.constant 0 : index
      %19 = vector.load %arg9[%c0_13, %c0_14] : memref<2x1024xf32, #tpu.memory_space<vmem>>, vector<2x1024xf32>
      %c0_15 = arith.constant 0 : index
      %c0_16 = arith.constant 0 : index
      %20 = vector.load %arg5[%c0_15, %c0_16] : memref<1280x1024xbf16, #tpu.memory_space<vmem>>, vector<1280x1024xbf16>
      %cst_17 = arith.constant dense<0.000000e+00> : vector<2x1024xf32>
      %21 = tpu.matmul %18, %20, %cst_17 {dimension_numbers = #tpu.dot_dimension_numbers<[1], [0], [0], [1], [0, 0, 1, 1], [], []>} : vector<2x1280xbf16>, vector<1280x1024xbf16>, vector<2x1024xf32> -> vector<2x1024xf32>
      %22 = arith.addf %19, %21 : vector<2x1024xf32>
      %c0_18 = arith.constant 0 : index
      %c0_19 = arith.constant 0 : index
      %23 = vector.load %arg6[%c0_18, %c0_19] : memref<1x1024xf32, #tpu.memory_space<vmem>>, vector<1x1024xf32>
      %24 = vector.broadcast %23 : vector<1x1024xf32> to vector<2x1024xf32>
      %25 = arith.addf %22, %24 : vector<2x1024xf32>
      %cst_20 = arith.constant 0.000000e+00 : f32
      %26 = vector.broadcast %cst_20 : f32 to vector<2x1024xf32>
      %27 = arith.maximumf %25, %26 : vector<2x1024xf32>
      %c0_21 = arith.constant 0 : index
      %c0_22 = arith.constant 0 : index
      %28 = vector.load %arg7[%c0_21, %c0_22] : memref<1024x12xf32, #tpu.memory_space<vmem>>, vector<1024x12xf32>
      %cst_23 = arith.constant dense<0.000000e+00> : vector<2x12xf32>
      %29 = tpu.matmul %27, %28, %cst_23 {dimension_numbers = #tpu.dot_dimension_numbers<[1], [0], [0], [1], [0, 0, 1, 1], [], []>} : vector<2x1024xf32>, vector<1024x12xf32>, vector<2x12xf32> -> vector<2x12xf32>
      %c0_24 = arith.constant 0 : index
      %c0_25 = arith.constant 0 : index
      %c0_26 = arith.constant 0 : index
      %30 = vector.load %arg8[%c0_24, %c0_25, %c0_26] : memref<1x2x12xf32, #tpu.memory_space<vmem>>, vector<1x2x12xf32>
      %31 = vector.shape_cast %30 : vector<1x2x12xf32> to vector<2x12xf32>
      %32 = vector.shape_cast %29 : vector<2x12xf32> to vector<1x2x12xf32>
      tpu.vector_store %arg8[%c0_24, %c0_25, %c0_26], %32 {strides = array<i32>} : memref<1x2x12xf32, #tpu.memory_space<vmem>>, vector<1x2x12xf32>,
    } else {
    }
    return
  }
  func.func @transform_0(%arg0: i32, %arg1: i32) -> (i32, i32) {
    %c0_i32 = arith.constant 0 : i32
    %c0_i32_0 = arith.constant 0 : i32
    return %c0_i32, %arg1 : i32, i32
  }
  func.func @transform_1(%arg0: i32, %arg1: i32) -> (i32, i32) {
    %c0_i32 = arith.constant 0 : i32
    %c0_i32_0 = arith.constant 0 : i32
    %c0_i32_1 = arith.constant 0 : i32
    return %c0_i32, %c0_i32_0 : i32, i32
  }
  func.func @transform_2(%arg0: i32, %arg1: i32) -> (i32, i32) {
    %c0_i32 = arith.constant 0 : i32
    return %arg1, %arg0 : i32, i32
  }
  func.func @transform_3(%arg0: i32, %arg1: i32) -> (i32, i32) {
    %c0_i32 = arith.constant 0 : i32
    %c0_i32_0 = arith.constant 0 : i32
    return %c0_i32, %arg0 : i32, i32
  }
  func.func @transform_4(%arg0: i32, %arg1: i32) -> (i32, i32) {
    %c0_i32 = arith.constant 0 : i32
    %c0_i32_0 = arith.constant 0 : i32
    return %c0_i32, %arg0 : i32, i32
  }
  func.func @transform_5(%arg0: i32, %arg1: i32) -> (i32, i32) {
    %c0_i32 = arith.constant 0 : i32
    %c0_i32_0 = arith.constant 0 : i32
    return %arg0, %c0_i32 : i32, i32
  }
  func.func @transform_6(%arg0: i32, %arg1: i32) -> (i32, i32, i32) {
    %c0_i32 = arith.constant 0 : i32
    %c0_i32_0 = arith.constant 0 : i32
    %c0_i32_1 = arith.constant 0 : i32
    return %arg0, %c0_i32, %c0_i32_0 : i32, i32, i32
  }
}

</mosaic_0001>

<llo_original>
// kernel: tpu_custom_call.1
$region0: #{tpu_custom_call.1}
  #allocation0 [shape = 'u32[]', space=smem, size = 0x4, offset = 0x4, fixed_abs, tag = 'smem constant byte address 0x4 - core index']
  #allocation1 [shape = 'u32[72,128]{1,0:T(1,128)}', space=vmem, size = 0x9000, scoped, tag = 'internal scratch']
  #allocation2 [shape = 'f32[2,1024]{1,0:T(2,128)}', space=vmem, size = 0x2000, scoped, tag = 'scratch operand']
  %s0 = inlined_call_operand.hbm [shape: f32[2,4096], index: 0, kind: input, shape index: {}]
  %s1 = inlined_call_operand.hbm [shape: f32[2,1280], index: 1, kind: input, shape index: {}]
  %s2 = inlined_call_operand.hbm [shape: bf16[4096,2048], index: 2, kind: input, shape index: {}]
  %s3 = inlined_call_operand.hbm [shape: bf16[1280,2048], index: 3, kind: input, shape index: {}]
  %s4 = inlined_call_operand.hbm [shape: f32[1,2048], index: 4, kind: input, shape index: {}]
  %s5 = inlined_call_operand.vmem [shape: f32[2048,12], index: 5, kind: input, shape index: {}]
  %s6 = inlined_call_operand.hbm [shape: f32[2,2,12], index: 6, kind: output, shape index: {}]
  %s7 = sld [smem:[#allocation0]]
  $region85: #{tpu_custom_call.1} parent=0
    _
  %s9 = ssub.s32 1, %s7
  %s10 = scalar_select 0, %s9, %s7
  $region1: #{tpu_custom_call.1} parent=0
    #allocation3 [shape = 'u8[32768]{0}', space=vmem, size = 0x8000, scoped, tag = 'input window, operand 0']
    #allocation4 [shape = 's32[2]{0}', space=sflag, size = 0x8, scoped, tag = 'scoped memory for tpu_custom_call.1']
    #allocation5 [shape = 's32[2]{0}', space=sflag, size = 0x8, scoped, tag = 'scoped memory for tpu_custom_call.1']
    #allocation6 [shape = 'u8[10240]{0}', space=vmem, size = 0x2800, scoped, tag = 'input window, operand 1, single buffered']
    #allocation7 [shape = 's32[1]{0}', space=sflag, size = 0x4, scoped, tag = 'scoped memory for tpu_custom_call.1']
    #allocation8 [shape = 'u8[8388608]{0}', space=vmem, size = 0x800000, scoped, tag = 'input window, operand 2']
    #allocation9 [shape = 'u8[5242880]{0}', space=vmem, size = 0x500000, scoped, tag = 'input window, operand 3']
    #allocation10 [shape = 'u8[8192]{0}', space=vmem, size = 0x2000, scoped, tag = 'input window, operand 4']
    #allocation11 [shape = 'u8[2048]{0}', space=vmem, size = 0x800, scoped, tag = 'output window, operand 0']
    %11 = vsyncpa [#allocation4], 0
    %s12 = scalar_lea.sflag [#allocation4], 1
    %13 = vsyncpa %s12, 0
    %14 = vsyncpa [#allocation7], 0
    %15 = vsyncpa [#allocation5], 0
    %s16 = scalar_lea.sflag [#allocation5], 1
    %17 = vsyncpa %s16, 0
    loop: start=0, step=1, limit=6
    $region2: #{tpu_custom_call.1} parent=1 // loop_pre_header
      _
    $region3: #{tpu_custom_call.1} parent=1 // loop_header
      %s19 = sphi 0, %s23
      %p20 = scmp.ge.s32.totalorder %s19, 6
      %s26 = sphi 0, %s38
      %s27 = sphi 0, %s34
      %s28 = sphi 0, %s26
      %s29 = sphi 0, %s27
      %s30 = sphi 0, %s28
      %s31 = sphi 0, %s29
      %s41 = sphi 0, %s43
      %s44 = sphi 0, %s41
      %s45 = sphi 0, %s44
      %s61 = sphi 0, %s45
      %s65 = sphi 0, %s65
      %s67 = sphi 0, %s65
      %s68 = sphi 0, %s67
      %s82 = sphi 0, %s68
      %s90 = sphi 0, %s92
      %s93 = sphi 0, %s90
      %s94 = sphi 0, %s93
      %s110 = sphi 0, %s94
      %s116 = sphi 0, %s118
      %s119 = sphi 0, %s116
      %s120 = sphi 0, %s119
      %s136 = sphi 0, %s120
      %s142 = sphi 0, %s144
      %s145 = sphi 0, %s142
      %s146 = sphi 0, %s145
      %s162 = sphi 0, %s146
      %s168 = sphi 0, %s170
      %s171 = sphi 0, %s168
      %s172 = sphi 0, %s171
      %s188 = sphi 0, %s172
      %s194 = sphi 0, %s196
      %s197 = sphi 0, %s194
      %s198 = sphi 0, %s197
      %s214 = sphi 0, %s198
    $region4: #{tpu_custom_call.1} parent=1 // loop_header_branch
      %22 = sbr.rel (%p20) target = $region8
    $region5: #{tpu_custom_call.1} parent=1 // loop_body
      %s24 = ssub.s32 %s19, 1
      %s25 = ssub.s32 %s19, 2
      %s32 = sadd.s32 1, %s27
      %p33 = scmp.ge.s32.totalorder %s32, 2
      %s34 = scalar_select %p33, 0, %s32
      %s35 = sadd.s32 1, %s26
      %s36 = scalar_select %p33, %s35, %s26
      %p37 = scmp.ge.s32.totalorder %s36, 2
      %s38 = scalar_select %p37, 0, %s36
      %s39 = ssub.s32 %s27, %s34
      %p40 = scmp.eq.s32.totalorder %s39, 0
      %s42 = sadd.s32 %s41, 1
      %s43 = scalar_select %p40, %s41, %s42
      %p46 = pneg %p40
      %p47 = scmp.eq.s32.totalorder %s19, 3
      %p48 = por %p46, %p47
      %p49 = scmp.ne.s32.totalorder %s41, %s44
      %p50 = scmp.eq.s32.totalorder %s19, 0
      %p51 = por %p49, %p50
      %p52 = scmp.ne.s32.totalorder %s41, %s44
      %p53 = scmp.eq.s32.totalorder %s24, 3
      %p54 = por %p52, %p53
      %p55 = scmp.ne.s32.totalorder %s44, %s45
      %p56 = scmp.eq.s32.totalorder %s24, 0
      %p57 = por %p55, %p56
      %p58 = scmp.ne.s32.totalorder %s44, %s45
      %p59 = scmp.eq.s32.totalorder %s25, 3
      %p60 = por %p58, %p59
      %p62 = scmp.ne.s32.totalorder %s45, %s61
      %p63 = scmp.eq.s32.totalorder %s25, 0
      %p64 = por %p62, %p63
      %s66 = sadd.s32 %s65, 1
      %p69 = scmp.eq.s32.totalorder %s19, 3
      %p70 = scmp.ne.s32.totalorder %s65, %s67
      %p71 = scmp.eq.s32.totalorder %s19, 0
      %p72 = por %p70, %p71
      %p73 = scmp.ne.s32.totalorder %s65, %s67
      %p74 = scmp.eq.s32.totalorder %s24, 3
      %p75 = por %p73, %p74
      %p76 = scmp.ne.s32.totalorder %s67, %s68
      %p77 = scmp.eq.s32.totalorder %s24, 0
      %p78 = por %p76, %p77
      %p79 = scmp.ne.s32.totalorder %s67, %s68
      %p80 = scmp.eq.s32.totalorder %s25, 3
      %p81 = por %p79, %p80
      %p83 = scmp.ne.s32.totalorder %s68, %s82
      %p84 = scmp.eq.s32.totalorder %s25, 0
      %p85 = por %p83, %p84
      %s86 = ssub.s32 %s27, %s34
      %s87 = ssub.s32 %s26, %s38
      %s88 = sor.u32 %s86, %s87
      %p89 = scmp.eq.s32.totalorder %s88, 0
      %s91 = sadd.s32 %s90, 1
      %s92 = scalar_select %p89, %s90, %s91
      %p95 = pneg %p89
      %p96 = scmp.eq.s32.totalorder %s19, 3
      %p97 = por %p95, %p96
      %p98 = scmp.ne.s32.totalorder %s90, %s93
      %p99 = scmp.eq.s32.totalorder %s19, 0
      %p100 = por %p98, %p99
      %p101 = scmp.ne.s32.totalorder %s90, %s93
      %p102 = scmp.eq.s32.totalorder %s24, 3
      %p103 = por %p101, %p102
      %p104 = scmp.ne.s32.totalorder %s93, %s94
      %p105 = scmp.eq.s32.totalorder %s24, 0
      %p106 = por %p104, %p105
      %p107 = scmp.ne.s32.totalorder %s93, %s94
      %p108 = scmp.eq.s32.totalorder %s25, 3
      %p109 = por %p107, %p108
      %p111 = scmp.ne.s32.totalorder %s94, %s110
      %p112 = scmp.eq.s32.totalorder %s25, 0
      %p113 = por %p111, %p112
      %s114 = ssub.s32 %s26, %s38
      %p115 = scmp.eq.s32.totalorder %s114, 0
      %s117 = sadd.s32 %s116, 1
      %s118 = scalar_select %p115, %s116, %s117
      %p121 = pneg %p115
      %p122 = scmp.eq.s32.totalorder %s19, 3
      %p123 = por %p121, %p122
      %p124 = scmp.ne.s32.totalorder %s116, %s119
      %p125 = scmp.eq.s32.totalorder %s19, 0
      %p126 = por %p124, %p125
      %p127 = scmp.ne.s32.totalorder %s116, %s119
      %p128 = scmp.eq.s32.totalorder %s24, 3
      %p129 = por %p127, %p128
      %p130 = scmp.ne.s32.totalorder %s119, %s120
      %p131 = scmp.eq.s32.totalorder %s24, 0
      %p132 = por %p130, %p131
      %p133 = scmp.ne.s32.totalorder %s119, %s120
      %p134 = scmp.eq.s32.totalorder %s25, 3
      %p135 = por %p133, %p134
      %p137 = scmp.ne.s32.totalorder %s120, %s136
      %p138 = scmp.eq.s32.totalorder %s25, 0
      %p139 = por %p137, %p138
      %s140 = ssub.s32 %s26, %s38
      %p141 = scmp.eq.s32.totalorder %s140, 0
      %s143 = sadd.s32 %s142, 1
      %s144 = scalar_select %p141, %s142, %s143
      %p147 = pneg %p141
      %p148 = scmp.eq.s32.totalorder %s19, 3
      %p149 = por %p147, %p148
      %p150 = scmp.ne.s32.totalorder %s142, %s145
      %p151 = scmp.eq.s32.totalorder %s19, 0
      %p152 = por %p150, %p151
      %p153 = scmp.ne.s32.totalorder %s142, %s145
      %p154 = scmp.eq.s32.totalorder %s24, 3
      %p155 = por %p153, %p154
      %p156 = scmp.ne.s32.totalorder %s145, %s146
      %p157 = scmp.eq.s32.totalorder %s24, 0
      %p158 = por %p156, %p157
      %p159 = scmp.ne.s32.totalorder %s145, %s146
      %p160 = scmp.eq.s32.totalorder %s25, 3
      %p161 = por %p159, %p160
      %p163 = scmp.ne.s32.totalorder %s146, %s162
      %p164 = scmp.eq.s32.totalorder %s25, 0
      %p165 = por %p163, %p164
      %s166 = ssub.s32 %s26, %s38
      %p167 = scmp.eq.s32.totalorder %s166, 0
      %s169 = sadd.s32 %s168, 1
      %s170 = scalar_select %p167, %s168, %s169
      %p173 = pneg %p167
      %p174 = scmp.eq.s32.totalorder %s19, 3
      %p175 = por %p173, %p174
      %p176 = scmp.ne.s32.totalorder %s168, %s171
      %p177 = scmp.eq.s32.totalorder %s19, 0
      %p178 = por %p176, %p177
      %p179 = scmp.ne.s32.totalorder %s168, %s171
      %p180 = scmp.eq.s32.totalorder %s24, 3
      %p181 = por %p179, %p180
      %p182 = scmp.ne.s32.totalorder %s171, %s172
      %p183 = scmp.eq.s32.totalorder %s24, 0
      %p184 = por %p182, %p183
      %p185 = scmp.ne.s32.totalorder %s171, %s172
      %p186 = scmp.eq.s32.totalorder %s25, 3
      %p187 = por %p185, %p186
      %p189 = scmp.ne.s32.totalorder %s172, %s188
      %p190 = scmp.eq.s32.totalorder %s25, 0
      %p191 = por %p189, %p190
      %s192 = ssub.s32 %s26, %s38
      %p193 = scmp.eq.s32.totalorder %s192, 0
      %s195 = sadd.s32 %s194, 1
      %s196 = scalar_select %p193, %s194, %s195
      %p199 = pneg %p193
      %p200 = scmp.eq.s32.totalorder %s19, 3
      %p201 = por %p199, %p200
      %p202 = scmp.ne.s32.totalorder %s194, %s197
      %p203 = scmp.eq.s32.totalorder %s19, 0
      %p204 = por %p202, %p203
      %p205 = scmp.ne.s32.totalorder %s194, %s197
      %p206 = scmp.eq.s32.totalorder %s24, 3
      %p207 = por %p205, %p206
      %p208 = scmp.ne.s32.totalorder %s197, %s198
      %p209 = scmp.eq.s32.totalorder %s24, 0
      %p210 = por %p208, %p209
      %p211 = scmp.ne.s32.totalorder %s197, %s198
      %p212 = scmp.eq.s32.totalorder %s25, 3
      %p213 = por %p211, %p212
      %p215 = scmp.ne.s32.totalorder %s198, %s214
      %p216 = scmp.eq.s32.totalorder %s25, 0
      %p217 = por %p215, %p216
      %p218 = scmp.le.s32.totalorder 1, %s19
      %p219 = scmp.lt.s32.totalorder %s19, 5
      %p220 = pnand %p218, %p219
      %p221 = pneg %p220
      // Predicated region
      $region9: #{tpu_custom_call.1} parent=5 // pred_check
        _
      $region10: #{tpu_custom_call.1} parent=5 // pred_check_branch
        %223 = sbr.rel (%p220) target = $region12
      $region11: #{tpu_custom_call.1} parent=5 // pred_region
        %s224 = ssub.s32 %s19, 1
        // Predicated region
        $region13: #{tpu_custom_call.1} parent=11 // pred_check
          %p225 = pneg %p78
        $region14: #{tpu_custom_call.1} parent=11 // pred_check_branch
          %227 = sbr.rel (%p225) target = $region16
        $region15: #{tpu_custom_call.1} parent=11 // pred_region
          %229 = vsyncadd [#allocation7], 0
          %s231 = sshll.u32 %s1, 4
          %s232 = int_to_ptr.hbm [resolvable:$true] %s231
          %s233 = sshll.u32 [#allocation6], 4
          %s234 = int_to_ptr.vmem [resolvable:$true] %s233
          %236 = dma.hbm_to_vmem [thread:$0]  %s232, 320, %s234, [#allocation7]
        $region16: #{tpu_custom_call.1} parent=11 // pred_fallthru
          _
      $region12: #{tpu_custom_call.1} parent=5 // pred_fallthru
        _
      %p237 = scmp.lt.s32.totalorder %s19, 4
      // Predicated region
      $region17: #{tpu_custom_call.1} parent=5 // pred_check
        %p238 = pneg %p237
      $region18: #{tpu_custom_call.1} parent=5 // pred_check_branch
        %240 = sbr.rel (%p238) target = $region20
      $region19: #{tpu_custom_call.1} parent=5 // pred_region
        // Predicated region
        $region21: #{tpu_custom_call.1} parent=19 // pred_check
          %p241 = pneg %p51
        $region22: #{tpu_custom_call.1} parent=19 // pred_check_branch
          %243 = sbr.rel (%p241) target = $region24
        $region23: #{tpu_custom_call.1} parent=19 // pred_region
          %s244 = sand.u32 %s19, 1
          %s245 = scalar_lea.sflag [#allocation4], %s244
          %s246 = sand.u32 %s41, 1
          %s247 = smul.addr %s246, 32
          %s248 = scalar_lea.vmem [#allocation3], %s247
          %s249 = smul.u32 16, %s27
          %251 = vsyncadd %s245, 0
          %s252 = smul.addr %s249, 2
          %s253 = scalar_lea.hbm %s0, %s252
          %s255 = sshll.u32 %s253, 4
          %s256 = int_to_ptr.hbm [resolvable:$true] %s255
          %s257 = sshll.u32 %s248, 4
          %s258 = int_to_ptr.vmem [resolvable:$true] %s257
          %260 = dma.hbm_to_vmem [thread:$0]  %s256, 512, %s258, %s245
        $region24: #{tpu_custom_call.1} parent=19 // pred_fallthru
          _
        // Predicated region
        $region25: #{tpu_custom_call.1} parent=19 // pred_check
          %p261 = pneg %p100
        $region26: #{tpu_custom_call.1} parent=19 // pred_check_branch
          %263 = sbr.rel (%p261) target = $region28
        $region27: #{tpu_custom_call.1} parent=19 // pred_region
          %s264 = sand.u32 %s19, 1
          %s265 = scalar_lea.sflag [#allocation4], %s264
          %s266 = sand.u32 %s90, 1
          %s267 = smul.addr %s266, 8192
          %s268 = scalar_lea.vmem [#allocation8], %s267
          %s269 = smul.u32 256, %s27
          %s270 = smul.u32 8, %s26
          %272 = vsyncadd %s265, 0
          %s273 = smul.addr %s269, 16
          %s274 = sadd.s32 %s270, %s273
          %s275 = smul.addr %s274, 4
          %s276 = scalar_lea.hbm %s2, %s275
          %s277 = sshll.u32 %s276, 4
          %s278 = int_to_ptr.hbm [resolvable:$true] %s277
          %s279 = sshll.u32 %s268, 4
          %s280 = int_to_ptr.vmem [resolvable:$true] %s279
          %285 = dma.hbm_to_vmem [thread:$0]  %s278, 131072, %s280, %s265, 1024, 512, 32
        $region28: #{tpu_custom_call.1} parent=19 // pred_fallthru
          _
        // Predicated region
        $region29: #{tpu_custom_call.1} parent=19 // pred_check
          %p286 = pneg %p126
        $region30: #{tpu_custom_call.1} parent=19 // pred_check_branch
          %288 = sbr.rel (%p286) target = $region32
        $region31: #{tpu_custom_call.1} parent=19 // pred_region
          %s289 = sand.u32 %s19, 1
          %s290 = scalar_lea.sflag [#allocation4], %s289
          %s291 = sand.u32 %s116, 1
          %s292 = smul.addr %s291, 5120
          %s293 = scalar_lea.vmem [#allocation9], %s292
          %s294 = smul.u32 8, %s26
          %296 = vsyncadd %s290, 0
          %s297 = smul.addr %s294, 4
          %s298 = scalar_lea.hbm %s3, %s297
          %s299 = sshll.u32 %s298, 4
          %s300 = int_to_ptr.hbm [resolvable:$true] %s299
          %s301 = sshll.u32 %s293, 4
          %s302 = int_to_ptr.vmem [resolvable:$true] %s301
          %307 = dma.hbm_to_vmem [thread:$0]  %s300, 81920, %s302, %s290, 1024, 512, 32
        $region32: #{tpu_custom_call.1} parent=19 // pred_fallthru
          _
        // Predicated region
        $region33: #{tpu_custom_call.1} parent=19 // pred_check
          %p308 = pneg %p152
        $region34: #{tpu_custom_call.1} parent=19 // pred_check_branch
          %310 = sbr.rel (%p308) target = $region36
        $region35: #{tpu_custom_call.1} parent=19 // pred_region
          %s311 = sand.u32 %s19, 1
          %s312 = scalar_lea.sflag [#allocation4], %s311
          %s313 = sand.u32 %s142, 1
          %s314 = smul.addr %s313, 8
          %s315 = scalar_lea.vmem [#allocation10], %s314
          %s316 = smul.u32 8, %s26
          %318 = vsyncadd %s312, 0
          %s319 = scalar_lea.hbm %s4, %s316
          %s321 = sshll.u32 %s319, 4
          %s322 = int_to_ptr.hbm [resolvable:$true] %s321
          %s323 = sshll.u32 %s315, 4
          %s324 = int_to_ptr.vmem [resolvable:$true] %s323
          %326 = dma.hbm_to_vmem [thread:$0]  %s322, 128, %s324, %s312
        $region36: #{tpu_custom_call.1} parent=19 // pred_fallthru
          _
        // Predicated region
        $region37: #{tpu_custom_call.1} parent=19 // pred_check
          %p327 = pneg %p178
        $region38: #{tpu_custom_call.1} parent=19 // pred_check_branch
          %329 = sbr.rel (%p327) target = $region40
        $region39: #{tpu_custom_call.1} parent=19 // pred_region
          %s330 = smul.u32 128, %s26
          %p331 = scmp.lt.s32.totalorder %s330, 255
          %s332 = scalar_select %p331, %s330, 255
          %s333 = smul.addr %s332, 8
          %s334 = scalar_lea.vmem %s5, %s333
          %s335 = smul.u32 128, %s26
        $region40: #{tpu_custom_call.1} parent=19 // pred_fallthru
          _
      $region20: #{tpu_custom_call.1} parent=5 // pred_fallthru
        _
      %p336 = scmp.le.s32.totalorder 1, %s19
      %p337 = scmp.lt.s32.totalorder %s19, 5
      %p338 = pnand %p336, %p337
      %p339 = pneg %p338
      // Predicated region
      $region41: #{tpu_custom_call.1} parent=5 // pred_check
        _
      $region42: #{tpu_custom_call.1} parent=5 // pred_check_branch
        %341 = sbr.rel (%p338) target = $region44
      $region43: #{tpu_custom_call.1} parent=5 // pred_region
        %s342 = ssub.s32 %s19, 1
        %s343 = sand.u32 %s24, 1
        %s344 = scalar_lea.sflag [#allocation4], %s343
        %s345 = sand.u32 %s44, 1
        %s346 = smul.addr %s345, 32
        %s347 = scalar_lea.vmem [#allocation3], %s346
        // Predicated region
        $region45: #{tpu_custom_call.1} parent=43 // pred_check
          %p348 = pneg %p57
        $region46: #{tpu_custom_call.1} parent=43 // pred_check_branch
          %350 = sbr.rel (%p348) target = $region48
        $region47: #{tpu_custom_call.1} parent=43 // pred_region
          %352 = dma.done %s344, 512
        $region48: #{tpu_custom_call.1} parent=43 // pred_fallthru
          _
        // Predicated region
        $region49: #{tpu_custom_call.1} parent=43 // pred_check
          %p353 = pneg %p78
        $region50: #{tpu_custom_call.1} parent=43 // pred_check_branch
          %355 = sbr.rel (%p353) target = $region52
        $region51: #{tpu_custom_call.1} parent=43 // pred_region
          %357 = dma.done [#allocation7], 320
        $region52: #{tpu_custom_call.1} parent=43 // pred_fallthru
          _
        %s358 = sand.u32 %s24, 1
        %s359 = scalar_lea.sflag [#allocation4], %s358
        %s360 = sand.u32 %s93, 1
        %s361 = smul.addr %s360, 8192
        %s362 = scalar_lea.vmem [#allocation8], %s361
        // Predicated region
        $region53: #{tpu_custom_call.1} parent=43 // pred_check
          %p363 = pneg %p106
        $region54: #{tpu_custom_call.1} parent=43 // pred_check_branch
          %365 = sbr.rel (%p363) target = $region56
        $region55: #{tpu_custom_call.1} parent=43 // pred_region
          %367 = dma.done %s359, 131072
        $region56: #{tpu_custom_call.1} parent=43 // pred_fallthru
          _
        %s368 = sand.u32 %s24, 1
        %s369 = scalar_lea.sflag [#allocation4], %s368
        %s370 = sand.u32 %s119, 1
        %s371 = smul.addr %s370, 5120
        %s372 = scalar_lea.vmem [#allocation9], %s371
        // Predicated region
        $region57: #{tpu_custom_call.1} parent=43 // pred_check
          %p373 = pneg %p132
        $region58: #{tpu_custom_call.1} parent=43 // pred_check_branch
          %375 = sbr.rel (%p373) target = $region60
        $region59: #{tpu_custom_call.1} parent=43 // pred_region
          %377 = dma.done %s369, 81920
        $region60: #{tpu_custom_call.1} parent=43 // pred_fallthru
          _
        %s378 = sand.u32 %s24, 1
        %s379 = scalar_lea.sflag [#allocation4], %s378
        %s380 = sand.u32 %s145, 1
        %s381 = smul.addr %s380, 8
        %s382 = scalar_lea.vmem [#allocation10], %s381
        // Predicated region
        $region61: #{tpu_custom_call.1} parent=43 // pred_check
          %p383 = pneg %p158
        $region62: #{tpu_custom_call.1} parent=43 // pred_check_branch
          %385 = sbr.rel (%p383) target = $region64
        $region63: #{tpu_custom_call.1} parent=43 // pred_region
          %387 = dma.done %s379, 128
        $region64: #{tpu_custom_call.1} parent=43 // pred_fallthru
          _
        %s388 = sand.u32 %s24, 1
        %s389 = scalar_lea.sflag [#allocation4], %s388
        %s390 = sand.u32 %s44, 1
        %s391 = smul.addr %s390, 32
        %s392 = scalar_lea.vmem [#allocation3], %s391
        %p393 = pneg %p57
        %p394 = pneg %p54
        %p395 = pneg %p78
        %p396 = pneg %p75
        %s397 = sand.u32 %s24, 1
        %s398 = scalar_lea.sflag [#allocation4], %s397
        %s399 = sand.u32 %s93, 1
        %s400 = smul.addr %s399, 8192
        %s401 = scalar_lea.vmem [#allocation8], %s400
        %p402 = pneg %p106
        %p403 = pneg %p103
        %s404 = sand.u32 %s24, 1
        %s405 = scalar_lea.sflag [#allocation4], %s404
        %s406 = sand.u32 %s119, 1
        %s407 = smul.addr %s406, 5120
        %s408 = scalar_lea.vmem [#allocation9], %s407
        %p409 = pneg %p132
        %p410 = pneg %p129
        %s411 = sand.u32 %s24, 1
        %s412 = scalar_lea.sflag [#allocation4], %s411
        %s413 = sand.u32 %s145, 1
        %s414 = smul.addr %s413, 8
        %s415 = scalar_lea.vmem [#allocation10], %s414
        %p416 = pneg %p158
        %p417 = pneg %p155
        %s418 = smul.u32 128, %s28
        %p419 = scmp.lt.s32.totalorder %s418, 255
        %s420 = scalar_select %p419, %s418, 255
        %s421 = smul.addr %s420, 8
        %s422 = scalar_lea.vmem %s5, %s421
        %p423 = pneg %p184
        %p424 = pneg %p181
        %p425 = pneg %p210
        %p426 = pneg %p207
        %s427 = sand.u32 %s197, 1
        %s428 = scalar_lea.sflag [#allocation5], %s427
        %s429 = sand.u32 %s197, 1
        %s430 = smul.addr %s429, 2
        %s431 = scalar_lea.vmem [#allocation11], %s430
        %s432 = smul.u32 16, %s29
        %s433 = smul.u32 256, %s29
        %s434 = smul.u32 8, %s28
        %s435 = smul.u32 8, %s28
        %s436 = smul.u32 8, %s28
        %s437 = smul.u32 128, %s28
        %p438 = scmp.lt.s32.totalorder %s437, 255
        %s439 = scalar_select %p438, %s437, 255
        %s440 = smul.addr %s439, 8
        %s441 = scalar_lea.vmem %s5, %s440
        %s442 = smul.u32 128, %s28
        %p443 = scmp.eq.s32.totalorder %s29, 0
        // Predicated region
        $region65: #{tpu_custom_call.1} parent=43 // pred_check
          %p444 = pneg %p443
        $region66: #{tpu_custom_call.1} parent=43 // pred_check_branch
          %446 = sbr.rel (%p444) target = $region68
        $region67: #{tpu_custom_call.1} parent=43 // pred_region
          %447 = vst [vmem:[#allocation2] sm:$0xff] 0.0
          %448 = vst [vmem:[#allocation2 + $0x8] sm:$0xff] 0.0
        $region68: #{tpu_custom_call.1} parent=43 // pred_fallthru
          _
        %v449 = vld [vmem:[%s347] sm:$0xff]
        %v450 = vld [vmem:[%s347 + $0x8] sm:$0xff]
        %v451 = vld [vmem:[%s347 + $0x10] sm:$0xff]
        %v452 = vld [vmem:[%s347 + $0x18] sm:$0xff]
        %v453 = vmax.f32 %v449, 0.0
        %v454 = vmax.f32 %v450, 0.0
        %v455 = vmax.f32 %v451, 0.0
        %v456 = vmax.f32 %v452, 0.0
        %461 = vst [vmem:[#allocation1] ss:$4 sm:$0xff] %v453
        %s462 = scalar_lea.vmem [#allocation1], 32
        %463 = vst [vmem:[%s462] ss:$4 sm:$0xff] %v454
        %v464 = vld.sshfl [vmem:[#allocation1] sm:$0xff pattern:$0x73625140]
        %v465 = vld.sshfl [vmem:[#allocation1 + $0x8] sm:$0xff pattern:$0x73625140]
        %v466 = vld.sshfl [vmem:[#allocation1 + $0x10] sm:$0xff pattern:$0x73625140]
        %v467 = vld.sshfl [vmem:[#allocation1 + $0x18] sm:$0xff pattern:$0x73625140]
        %v468 = vld.sshfl [vmem:[#allocation1 + $0x20] sm:$0xff pattern:$0x73625140]
        %v469 = vld.sshfl [vmem:[#allocation1 + $0x28] sm:$0xff pattern:$0x73625140]
        %v470 = vld.sshfl [vmem:[#allocation1 + $0x30] sm:$0xff pattern:$0x73625140]
        %v471 = vld.sshfl [vmem:[#allocation1 + $0x38] sm:$0xff pattern:$0x73625140]
        %472 = vst [vmem:[#allocation1] ss:$4 sm:$0xff] %v455
        %473 = vst [vmem:[%s462] ss:$4 sm:$0xff] %v456
        %v474 = vld.sshfl [vmem:[#allocation1] sm:$0xff pattern:$0x73625140]
        %v475 = vld.sshfl [vmem:[#allocation1 + $0x8] sm:$0xff pattern:$0x73625140]
        %v476 = vld.sshfl [vmem:[#allocation1 + $0x10] sm:$0xff pattern:$0x73625140]
        %v477 = vld.sshfl [vmem:[#allocation1 + $0x18] sm:$0xff pattern:$0x73625140]
        %v478 = vld.sshfl [vmem:[#allocation1 + $0x20] sm:$0xff pattern:$0x73625140]
        %v479 = vld.sshfl [vmem:[#allocation1 + $0x28] sm:$0xff pattern:$0x73625140]
        %v480 = vld.sshfl [vmem:[#allocation1 + $0x30] sm:$0xff pattern:$0x73625140]
        %v481 = vld.sshfl [vmem:[#allocation1 + $0x38] sm:$0xff pattern:$0x73625140]
        %v498 = vpack.c.bf16 %v464, %v464
        %v499 = vpack.c.bf16 %v465, %v465
        %v500 = vpack.c.bf16 %v466, %v466
        %v501 = vpack.c.bf16 %v467, %v467
        %v502 = vpack.c.bf16 %v468, %v468
        %v503 = vpack.c.bf16 %v469, %v469
        %v504 = vpack.c.bf16 %v470, %v470
        %v505 = vpack.c.bf16 %v471, %v471
        %v506 = vpack.c.bf16 %v474, %v474
        %v507 = vpack.c.bf16 %v475, %v475
        %v508 = vpack.c.bf16 %v476, %v476
        %v509 = vpack.c.bf16 %v477, %v477
        %v510 = vpack.c.bf16 %v478, %v478
        %v511 = vpack.c.bf16 %v479, %v479
        %v512 = vpack.c.bf16 %v480, %v480
        %v513 = vpack.c.bf16 %v481, %v481
        %v514 = vld [vmem:[#allocation2] sm:$0xff]
        %v515 = vld [vmem:[#allocation2 + $0x8] sm:$0xff]
        %v516 = vld [vmem:[%s362] sm:$0xff]
        %v517 = vld [vmem:[%s362 + $0x8] sm:$0xff]
        %v518 = vld [vmem:[%s362 + $0x10] sm:$0xff]
        %v519 = vld [vmem:[%s362 + $0x18] sm:$0xff]
        %v520 = vld [vmem:[%s362 + $0x20] sm:$0xff]
        %v521 = vld [vmem:[%s362 + $0x28] sm:$0xff]
        %v522 = vld [vmem:[%s362 + $0x30] sm:$0xff]
        %v523 = vld [vmem:[%s362 + $0x38] sm:$0xff]
        %v524 = vld [vmem:[%s362 + $0x40] sm:$0xff]
        %v525 = vld [vmem:[%s362 + $0x48] sm:$0xff]
        %v526 = vld [vmem:[%s362 + $0x50] sm:$0xff]
        %v527 = vld [vmem:[%s362 + $0x58] sm:$0xff]
        %v528 = vld [vmem:[%s362 + $0x60] sm:$0xff]
        %v529 = vld [vmem:[%s362 + $0x68] sm:$0xff]
        %v530 = vld [vmem:[%s362 + $0x70] sm:$0xff]
        %v531 = vld [vmem:[%s362 + $0x78] sm:$0xff]
        %v532 = vld [vmem:[%s362 + $0x80] sm:$0xff]
        %v533 = vld [vmem:[%s362 + $0x88] sm:$0xff]
        %v534 = vld [vmem:[%s362 + $0x90] sm:$0xff]
        %v535 = vld [vmem:[%s362 + $0x98] sm:$0xff]
        %v536 = vld [vmem:[%s362 + $0xa0] sm:$0xff]
        %v537 = vld [vmem:[%s362 + $0xa8] sm:$0xff]
        %v538 = vld [vmem:[%s362 + $0xb0] sm:$0xff]
        %v539 = vld [vmem:[%s362 + $0xb8] sm:$0xff]
        %v540 = vld [vmem:[%s362 + $0xc0] sm:$0xff]
        %v541 = vld [vmem:[%s362 + $0xc8] sm:$0xff]
        %v542 = vld [vmem:[%s362 + $0xd0] sm:$0xff]
        %v543 = vld [vmem:[%s362 + $0xd8] sm:$0xff]
        %v544 = vld [vmem:[%s362 + $0xe0] sm:$0xff]
        %v545 = vld [vmem:[%s362 + $0xe8] sm:$0xff]
        %v546 = vld [vmem:[%s362 + $0xf0] sm:$0xff]
        %v547 = vld [vmem:[%s362 + $0xf8] sm:$0xff]
        %v548 = vld [vmem:[%s362 + $0x100] sm:$0xff]
        %v549 = vld [vmem:[%s362 + $0x108] sm:$0xff]
        %v550 = vld [vmem:[%s362 + $0x110] sm:$0xff]
        %v551 = vld [vmem:[%s362 + $0x118] sm:$0xff]
        %v552 = vld [vmem:[%s362 + $0x120] sm:$0xff]
        %v553 = vld [vmem:[%s362 + $0x128] sm:$0xff]
        %v554 = vld [vmem:[%s362 + $0x130] sm:$0xff]
        %v555 = vld [vmem:[%s362 + $0x138] sm:$0xff]
        %v556 = vld [vmem:[%s362 + $0x140] sm:$0xff]
        %v557 = vld [vmem:[%s362 + $0x148] sm:$0xff]
        %v558 = vld [vmem:[%s362 + $0x150] sm:$0xff]
        %v559 = vld [vmem:[%s362 + $0x158] sm:$0xff]
        %v560 = vld [vmem:[%s362 + $0x160] sm:$0xff]
        %v561 = vld [vmem:[%s362 + $0x168] sm:$0xff]
        %v562 = vld [vmem:[%s362 + $0x170] sm:$0xff]
        %v563 = vld [vmem:[%s362 + $0x178] sm:$0xff]
        %v564 = vld [vmem:[%s362 + $0x180] sm:$0xff]
        %v565 = vld [vmem:[%s362 + $0x188] sm:$0xff]
        %v566 = vld [vmem:[%s362 + $0x190] sm:$0xff]
        %v567 = vld [vmem:[%s362 + $0x198] sm:$0xff]
        %v568 = vld [vmem:[%s362 + $0x1a0] sm:$0xff]
        %v569 = vld [vmem:[%s362 + $0x1a8] sm:$0xff]
        %v570 = vld [vmem:[%s362 + $0x1b0] sm:$0xff]
        %v571 = vld [vmem:[%s362 + $0x1b8] sm:$0xff]
        %v572 = vld [vmem:[%s362 + $0x1c0] sm:$0xff]
        %v573 = vld [vmem:[%s362 + $0x1c8] sm:$0xff]
        %v574 = vld [vmem:[%s362 + $0x1d0] sm:$0xff]
        %v575 = vld [vmem:[%s362 + $0x1d8] sm:$0xff]
        %v576 = vld [vmem:[%s362 + $0x1e0] sm:$0xff]
        %v577 = vld [vmem:[%s362 + $0x1e8] sm:$0xff]
        %v578 = vld [vmem:[%s362 + $0x1f0] sm:$0xff]
        %v579 = vld [vmem:[%s362 + $0x1f8] sm:$0xff]
        %v580 = vld [vmem:[%s362 + $0x200] sm:$0xff]
        %v581 = vld [vmem:[%s362 + $0x208] sm:$0xff]
        %v582 = vld [vmem:[%s362 + $0x210] sm:$0xff]
        %v583 = vld [vmem:[%s362 + $0x218] sm:$0xff]
        %v584 = vld [vmem:[%s362 + $0x220] sm:$0xff]
        %v585 = vld [vmem:[%s362 + $0x228] sm:$0xff]
        %v586 = vld [vmem:[%s362 + $0x230] sm:$0xff]
        %v587 = vld [vmem:[%s362 + $0x238] sm:$0xff]
        %v588 = vld [vmem:[%s362 + $0x240] sm:$0xff]
        %v589 = vld [vmem:[%s362 + $0x248] sm:$0xff]
        %v590 = vld [vmem:[%s362 + $0x250] sm:$0xff]
        %v591 = vld [vmem:[%s362 + $0x258] sm:$0xff]
        %v592 = vld [vmem:[%s362 + $0x260] sm:$0xff]
        %v593 = vld [vmem:[%s362 + $0x268] sm:$0xff]
        %v594 = vld [vmem:[%s362 + $0x270] sm:$0xff]
        %v595 = vld [vmem:[%s362 + $0x278] sm:$0xff]
        %v596 = vld [vmem:[%s362 + $0x280] sm:$0xff]
        %v597 = vld [vmem:[%s362 + $0x288] sm:$0xff]
        %v598 = vld [vmem:[%s362 + $0x290] sm:$0xff]
        %v599 = vld [vmem:[%s362 + $0x298] sm:$0xff]
        %v600 = vld [vmem:[%s362 + $0x2a0] sm:$0xff]
        %v601 = vld [vmem:[%s362 + $0x2a8] sm:$0xff]
        %v602 = vld [vmem:[%s362 + $0x2b0] sm:$0xff]
        %v603 = vld [vmem:[%s362 + $0x2b8] sm:$0xff]
        %v604 = vld [vmem:[%s362 + $0x2c0] sm:$0xff]
        %v605 = vld [vmem:[%s362 + $0x2c8] sm:$0xff]
        %v606 = vld [vmem:[%s362 + $0x2d0] sm:$0xff]
        %v607 = vld [vmem:[%s362 + $0x2d8] sm:$0xff]
        %v608 = vld [vmem:[%s362 + $0x2e0] sm:$0xff]
        %v609 = vld [vmem:[%s362 + $0x2e8] sm:$0xff]
        %v610 = vld [vmem:[%s362 + $0x2f0] sm:$0xff]
        %v611 = vld [vmem:[%s362 + $0x2f8] sm:$0xff]
        %v612 = vld [vmem:[%s362 + $0x300] sm:$0xff]
        %v613 = vld [vmem:[%s362 + $0x308] sm:$0xff]
        %v614 = vld [vmem:[%s362 + $0x310] sm:$0xff]
        %v615 = vld [vmem:[%s362 + $0x318] sm:$0xff]
        %v616 = vld [vmem:[%s362 + $0x320] sm:$0xff]
        %v617 = vld [vmem:[%s362 + $0x328] sm:$0xff]
        %v618 = vld [vmem:[%s362 + $0x330] sm:$0xff]
        %v619 = vld [vmem:[%s362 + $0x338] sm:$0xff]
        %v620 = vld [vmem:[%s362 + $0x340] sm:$0xff]
        %v621 = vld [vmem:[%s362 + $0x348] sm:$0xff]
        %v622 = vld [vmem:[%s362 + $0x350] sm:$0xff]
        %v623 = vld [vmem:[%s362 + $0x358] sm:$0xff]
        %v624 = vld [vmem:[%s362 + $0x360] sm:$0xff]
        %v625 = vld [vmem:[%s362 + $0x368] sm:$0xff]
        %v626 = vld [vmem:[%s362 + $0x370] sm:$0xff]
        %v627 = vld [vmem:[%s362 + $0x378] sm:$0xff]
        %v628 = vld [vmem:[%s362 + $0x380] sm:$0xff]
        %v629 = vld [vmem:[%s362 + $0x388] sm:$0xff]
        %v630 = vld [vmem:[%s362 + $0x390] sm:$0xff]
        %v631 = vld [vmem:[%s362 + $0x398] sm:$0xff]
        %v632 = vld [vmem:[%s362 + $0x3a0] sm:$0xff]
        %v633 = vld [vmem:[%s362 + $0x3a8] sm:$0xff]
        %v634 = vld [vmem:[%s362 + $0x3b0] sm:$0xff]
        %v635 = vld [vmem:[%s362 + $0x3b8] sm:$0xff]
        %v636 = vld [vmem:[%s362 + $0x3c0] sm:$0xff]
        %v637 = vld [vmem:[%s362 + $0x3c8] sm:$0xff]
        %v638 = vld [vmem:[%s362 + $0x3d0] sm:$0xff]
        %v639 = vld [vmem:[%s362 + $0x3d8] sm:$0xff]
        %v640 = vld [vmem:[%s362 + $0x3e0] sm:$0xff]
        %v641 = vld [vmem:[%s362 + $0x3e8] sm:$0xff]
        %v642 = vld [vmem:[%s362 + $0x3f0] sm:$0xff]
        %v643 = vld [vmem:[%s362 + $0x3f8] sm:$0xff]
        %v644 = vld [vmem:[%s362 + $0x400] sm:$0xff]
        %v645 = vld [vmem:[%s362 + $0x408] sm:$0xff]
        %v646 = vld [vmem:[%s362 + $0x410] sm:$0xff]
        %v647 = vld [vmem:[%s362 + $0x418] sm:$0xff]
        %v648 = vld [vmem:[%s362 + $0x420] sm:$0xff]
        %v649 = vld [vmem:[%s362 + $0x428] sm:$0xff]
        %v650 = vld [vmem:[%s362 + $0x430] sm:$0xff]
        %v651 = vld [vmem:[%s362 + $0x438] sm:$0xff]
        %v652 = vld [vmem:[%s362 + $0x440] sm:$0xff]
        %v653 = vld [vmem:[%s362 + $0x448] sm:$0xff]
        %v654 = vld [vmem:[%s362 + $0x450] sm:$0xff]
        %v655 = vld [vmem:[%s362 + $0x458] sm:$0xff]
        %v656 = vld [vmem:[%s362 + $0x460] sm:$0xff]
        %v657 = vld [vmem:[%s362 + $0x468] sm:$0xff]
        %v658 = vld [vmem:[%s362 + $0x470] sm:$0xff]
        %v659 = vld [vmem:[%s362 + $0x478] sm:$0xff]
        %v660 = vld [vmem:[%s362 + $0x480] sm:$0xff]
        %v661 = vld [vmem:[%s362 + $0x488] sm:$0xff]
        %v662 = vld [vmem:[%s362 + $0x490] sm:$0xff]
        %v663 = vld [vmem:[%s362 + $0x498] sm:$0xff]
        %v664 = vld [vmem:[%s362 + $0x4a0] sm:$0xff]
        %v665 = vld [vmem:[%s362 + $0x4a8] sm:$0xff]
        %v666 = vld [vmem:[%s362 + $0x4b0] sm:$0xff]
        %v667 = vld [vmem:[%s362 + $0x4b8] sm:$0xff]
        %v668 = vld [vmem:[%s362 + $0x4c0] sm:$0xff]
        %v669 = vld [vmem:[%s362 + $0x4c8] sm:$0xff]
        %v670 = vld [vmem:[%s362 + $0x4d0] sm:$0xff]
        %v671 = vld [vmem:[%s362 + $0x4d8] sm:$0xff]
        %v672 = vld [vmem:[%s362 + $0x4e0] sm:$0xff]
        %v673 = vld [vmem:[%s362 + $0x4e8] sm:$0xff]
        %v674 = vld [vmem:[%s362 + $0x4f0] sm:$0xff]
        %v675 = vld [vmem:[%s362 + $0x4f8] sm:$0xff]
        %v676 = vld [vmem:[%s362 + $0x500] sm:$0xff]
        %v677 = vld [vmem:[%s362 + $0x508] sm:$0xff]
        %v678 = vld [vmem:[%s362 + $0x510] sm:$0xff]
        %v679 = vld [vmem:[%s362 + $0x518] sm:$0xff]
        %v680 = vld [vmem:[%s362 + $0x520] sm:$0xff]
        %v681 = vld [vmem:[%s362 + $0x528] sm:$0xff]
        %v682 = vld [vmem:[%s362 + $0x530] sm:$0xff]
        %v683 = vld [vmem:[%s362 + $0x538] sm:$0xff]
        %v684 = vld [vmem:[%s362 + $0x540] sm:$0xff]
        %v685 = vld [vmem:[%s362 + $0x548] sm:$0xff]
        %v686 = vld [vmem:[%s362 + $0x550] sm:$0xff]
        %v687 = vld [vmem:[%s362 + $0x558] sm:$0xff]
        %v688 = vld [vmem:[%s362 + $0x560] sm:$0xff]
        %v689 = vld [vmem:[%s362 + $0x568] sm:$0xff]
        %v690 = vld [vmem:[%s362 + $0x570] sm:$0xff]
        %v691 = vld [vmem:[%s362 + $0x578] sm:$0xff]
        %v692 = vld [vmem:[%s362 + $0x580] sm:$0xff]
        %v693 = vld [vmem:[%s362 + $0x588] sm:$0xff]
        %v694 = vld [vmem:[%s362 + $0x590] sm:$0xff]
        %v695 = vld [vmem:[%s362 + $0x598] sm:$0xff]
        %v696 = vld [vmem:[%s362 + $0x5a0] sm:$0xff]
        %v697 = vld [vmem:[%s362 + $0x5a8] sm:$0xff]
        %v698 = vld [vmem:[%s362 + $0x5b0] sm:$0xff]
        %v699 = vld [vmem:[%s362 + $0x5b8] sm:$0xff]
        %v700 = vld [vmem:[%s362 + $0x5c0] sm:$0xff]
        %v701 = vld [vmem:[%s362 + $0x5c8] sm:$0xff]
        %v702 = vld [vmem:[%s362 + $0x5d0] sm:$0xff]
        %v703 = vld [vmem:[%s362 + $0x5d8] sm:$0xff]
        %v704 = vld [vmem:[%s362 + $0x5e0] sm:$0xff]
        %v705 = vld [vmem:[%s362 + $0x5e8] sm:$0xff]
        %v706 = vld [vmem:[%s362 + $0x5f0] sm:$0xff]
        %v707 = vld [vmem:[%s362 + $0x5f8] sm:$0xff]
        %v708 = vld [vmem:[%s362 + $0x600] sm:$0xff]
        %v709 = vld [vmem:[%s362 + $0x608] sm:$0xff]
        %v710 = vld [vmem:[%s362 + $0x610] sm:$0xff]
        %v711 = vld [vmem:[%s362 + $0x618] sm:$0xff]
        %v712 = vld [vmem:[%s362 + $0x620] sm:$0xff]
        %v713 = vld [vmem:[%s362 + $0x628] sm:$0xff]
        %v714 = vld [vmem:[%s362 + $0x630] sm:$0xff]
        %v715 = vld [vmem:[%s362 + $0x638] sm:$0xff]
        %v716 = vld [vmem:[%s362 + $0x640] sm:$0xff]
        %v717 = vld [vmem:[%s362 + $0x648] sm:$0xff]
        %v718 = vld [vmem:[%s362 + $0x650] sm:$0xff]
        %v719 = vld [vmem:[%s362 + $0x658] sm:$0xff]
        %v720 = vld [vmem:[%s362 + $0x660] sm:$0xff]
        %v721 = vld [vmem:[%s362 + $0x668] sm:$0xff]
        %v722 = vld [vmem:[%s362 + $0x670] sm:$0xff]
        %v723 = vld [vmem:[%s362 + $0x678] sm:$0xff]
        %v724 = vld [vmem:[%s362 + $0x680] sm:$0xff]
        %v725 = vld [vmem:[%s362 + $0x688] sm:$0xff]
        %v726 = vld [vmem:[%s362 + $0x690] sm:$0xff]
        %v727 = vld [vmem:[%s362 + $0x698] sm:$0xff]
        %v728 = vld [vmem:[%s362 + $0x6a0] sm:$0xff]
        %v729 = vld [vmem:[%s362 + $0x6a8] sm:$0xff]
        %v730 = vld [vmem:[%s362 + $0x6b0] sm:$0xff]
        %v731 = vld [vmem:[%s362 + $0x6b8] sm:$0xff]
        %v732 = vld [vmem:[%s362 + $0x6c0] sm:$0xff]
        %v733 = vld [vmem:[%s362 + $0x6c8] sm:$0xff]
        %v734 = vld [vmem:[%s362 + $0x6d0] sm:$0xff]
        %v735 = vld [vmem:[%s362 + $0x6d8] sm:$0xff]
        %v736 = vld [vmem:[%s362 + $0x6e0] sm:$0xff]
        %v737 = vld [vmem:[%s362 + $0x6e8] sm:$0xff]
        %v738 = vld [vmem:[%s362 + $0x6f0] sm:$0xff]
        %v739 = vld [vmem:[%s362 + $0x6f8] sm:$0xff]
        %v740 = vld [vmem:[%s362 + $0x700] sm:$0xff]
        %v741 = vld [vmem:[%s362 + $0x708] sm:$0xff]
        %v742 = vld [vmem:[%s362 + $0x710] sm:$0xff]
        %v743 = vld [vmem:[%s362 + $0x718] sm:$0xff]
        %v744 = vld [vmem:[%s362 + $0x720] sm:$0xff]
        %v745 = vld [vmem:[%s362 + $0x728] sm:$0xff]
        %v746 = vld [vmem:[%s362 + $0x730] sm:$0xff]
        %v747 = vld [vmem:[%s362 + $0x738] sm:$0xff]
        %v748 = vld [vmem:[%s362 + $0x740] sm:$0xff]
        %v749 = vld [vmem:[%s362 + $0x748] sm:$0xff]
        %v750 = vld [vmem:[%s362 + $0x750] sm:$0xff]
        %v751 = vld [vmem:[%s362 + $0x758] sm:$0xff]
        %v752 = vld [vmem:[%s362 + $0x760] sm:$0xff]
        %v753 = vld [vmem:[%s362 + $0x768] sm:$0xff]
        %v754 = vld [vmem:[%s362 + $0x770] sm:$0xff]
        %v755 = vld [vmem:[%s362 + $0x778] sm:$0xff]
        %v756 = vld [vmem:[%s362 + $0x780] sm:$0xff]
        %v757 = vld [vmem:[%s362 + $0x788] sm:$0xff]
        %v758 = vld [vmem:[%s362 + $0x790] sm:$0xff]
        %v759 = vld [vmem:[%s362 + $0x798] sm:$0xff]
        %v760 = vld [vmem:[%s362 + $0x7a0] sm:$0xff]
        %v761 = vld [vmem:[%s362 + $0x7a8] sm:$0xff]
        %v762 = vld [vmem:[%s362 + $0x7b0] sm:$0xff]
        %v763 = vld [vmem:[%s362 + $0x7b8] sm:$0xff]
        %v764 = vld [vmem:[%s362 + $0x7c0] sm:$0xff]
        %v765 = vld [vmem:[%s362 + $0x7c8] sm:$0xff]
        %v766 = vld [vmem:[%s362 + $0x7d0] sm:$0xff]
        %v767 = vld [vmem:[%s362 + $0x7d8] sm:$0xff]
        %v768 = vld [vmem:[%s362 + $0x7e0] sm:$0xff]
        %v769 = vld [vmem:[%s362 + $0x7e8] sm:$0xff]
        %v770 = vld [vmem:[%s362 + $0x7f0] sm:$0xff]
        %v771 = vld [vmem:[%s362 + $0x7f8] sm:$0xff]
        %v772 = vld [vmem:[%s362 + $0x800] sm:$0xff]
        %v773 = vld [vmem:[%s362 + $0x808] sm:$0xff]
        %v774 = vld [vmem:[%s362 + $0x810] sm:$0xff]
        %v775 = vld [vmem:[%s362 + $0x818] sm:$0xff]
        %v776 = vld [vmem:[%s362 + $0x820] sm:$0xff]
        %v777 = vld [vmem:[%s362 + $0x828] sm:$0xff]
        %v778 = vld [vmem:[%s362 + $0x830] sm:$0xff]
        %v779 = vld [vmem:[%s362 + $0x838] sm:$0xff]
        %v780 = vld [vmem:[%s362 + $0x840] sm:$0xff]
        %v781 = vld [vmem:[%s362 + $0x848] sm:$0xff]
        %v782 = vld [vmem:[%s362 + $0x850] sm:$0xff]
        %v783 = vld [vmem:[%s362 + $0x858] sm:$0xff]
        %v784 = vld [vmem:[%s362 + $0x860] sm:$0xff]
        %v785 = vld [vmem:[%s362 + $0x868] sm:$0xff]
        %v786 = vld [vmem:[%s362 + $0x870] sm:$0xff]
        %v787 = vld [vmem:[%s362 + $0x878] sm:$0xff]
        %v788 = vld [vmem:[%s362 + $0x880] sm:$0xff]
        %v789 = vld [vmem:[%s362 + $0x888] sm:$0xff]
        %v790 = vld [vmem:[%s362 + $0x890] sm:$0xff]
        %v791 = vld [vmem:[%s362 + $0x898] sm:$0xff]
        %v792 = vld [vmem:[%s362 + $0x8a0] sm:$0xff]
        %v793 = vld [vmem:[%s362 + $0x8a8] sm:$0xff]
        %v794 = vld [vmem:[%s362 + $0x8b0] sm:$0xff]
        %v795 = vld [vmem:[%s362 + $0x8b8] sm:$0xff]
        %v796 = vld [vmem:[%s362 + $0x8c0] sm:$0xff]
        %v797 = vld [vmem:[%s362 + $0x8c8] sm:$0xff]
        %v798 = vld [vmem:[%s362 + $0x8d0] sm:$0xff]
        %v799 = vld [vmem:[%s362 + $0x8d8] sm:$0xff]
        %v800 = vld [vmem:[%s362 + $0x8e0] sm:$0xff]
        %v801 = vld [vmem:[%s362 + $0x8e8] sm:$0xff]
        %v802 = vld [vmem:[%s362 + $0x8f0] sm:$0xff]
        %v803 = vld [vmem:[%s362 + $0x8f8] sm:$0xff]
        %v804 = vld [vmem:[%s362 + $0x900] sm:$0xff]
        %v805 = vld [vmem:[%s362 + $0x908] sm:$0xff]
        %v806 = vld [vmem:[%s362 + $0x910] sm:$0xff]
        %v807 = vld [vmem:[%s362 + $0x918] sm:$0xff]
        %v808 = vld [vmem:[%s362 + $0x920] sm:$0xff]
        %v809 = vld [vmem:[%s362 + $0x928] sm:$0xff]
        %v810 = vld [vmem:[%s362 + $0x930] sm:$0xff]
        %v811 = vld [vmem:[%s362 + $0x938] sm:$0xff]
        %v812 = vld [vmem:[%s362 + $0x940] sm:$0xff]
        %v813 = vld [vmem:[%s362 + $0x948] sm:$0xff]
        %v814 = vld [vmem:[%s362 + $0x950] sm:$0xff]
        %v815 = vld [vmem:[%s362 + $0x958] sm:$0xff]
        %v816 = vld [vmem:[%s362 + $0x960] sm:$0xff]
        %v817 = vld [vmem:[%s362 + $0x968] sm:$0xff]
        %v818 = vld [vmem:[%s362 + $0x970] sm:$0xff]
        %v819 = vld [vmem:[%s362 + $0x978] sm:$0xff]
        %v820 = vld [vmem:[%s362 + $0x980] sm:$0xff]
        %v821 = vld [vmem:[%s362 + $0x988] sm:$0xff]
        %v822 = vld [vmem:[%s362 + $0x990] sm:$0xff]
        %v823 = vld [vmem:[%s362 + $0x998] sm:$0xff]
        %v824 = vld [vmem:[%s362 + $0x9a0] sm:$0xff]
        %v825 = vld [vmem:[%s362 + $0x9a8] sm:$0xff]
        %v826 = vld [vmem:[%s362 + $0x9b0] sm:$0xff]
        %v827 = vld [vmem:[%s362 + $0x9b8] sm:$0xff]
        %v828 = vld [vmem:[%s362 + $0x9c0] sm:$0xff]
        %v829 = vld [vmem:[%s362 + $0x9c8] sm:$0xff]
        %v830 = vld [vmem:[%s362 + $0x9d0] sm:$0xff]
        %v831 = vld [vmem:[%s362 + $0x9d8] sm:$0xff]
        %v832 = vld [vmem:[%s362 + $0x9e0] sm:$0xff]
        %v833 = vld [vmem:[%s362 + $0x9e8] sm:$0xff]
        %v834 = vld [vmem:[%s362 + $0x9f0] sm:$0xff]
        %v835 = vld [vmem:[%s362 + $0x9f8] sm:$0xff]
        %v836 = vld [vmem:[%s362 + $0xa00] sm:$0xff]
        %v837 = vld [vmem:[%s362 + $0xa08] sm:$0xff]
        %v838 = vld [vmem:[%s362 + $0xa10] sm:$0xff]
        %v839 = vld [vmem:[%s362 + $0xa18] sm:$0xff]
        %v840 = vld [vmem:[%s362 + $0xa20] sm:$0xff]
        %v841 = vld [vmem:[%s362 + $0xa28] sm:$0xff]
        %v842 = vld [vmem:[%s362 + $0xa30] sm:$0xff]
        %v843 = vld [vmem:[%s362 + $0xa38] sm:$0xff]
        %v844 = vld [vmem:[%s362 + $0xa40] sm:$0xff]
        %v845 = vld [vmem:[%s362 + $0xa48] sm:$0xff]
        %v846 = vld [vmem:[%s362 + $0xa50] sm:$0xff]
        %v847 = vld [vmem:[%s362 + $0xa58] sm:$0xff]
        %v848 = vld [vmem:[%s362 + $0xa60] sm:$0xff]
        %v849 = vld [vmem:[%s362 + $0xa68] sm:$0xff]
        %v850 = vld [vmem:[%s362 + $0xa70] sm:$0xff]
        %v851 = vld [vmem:[%s362 + $0xa78] sm:$0xff]
        %v852 = vld [vmem:[%s362 + $0xa80] sm:$0xff]
        %v853 = vld [vmem:[%s362 + $0xa88] sm:$0xff]
        %v854 = vld [vmem:[%s362 + $0xa90] sm:$0xff]
        %v855 = vld [vmem:[%s362 + $0xa98] sm:$0xff]
        %v856 = vld [vmem:[%s362 + $0xaa0] sm:$0xff]
        %v857 = vld [vmem:[%s362 + $0xaa8] sm:$0xff]
        %v858 = vld [vmem:[%s362 + $0xab0] sm:$0xff]
        %v859 = vld [vmem:[%s362 + $0xab8] sm:$0xff]
        %v860 = vld [vmem:[%s362 + $0xac0] sm:$0xff]
        %v861 = vld [vmem:[%s362 + $0xac8] sm:$0xff]
        %v862 = vld [vmem:[%s362 + $0xad0] sm:$0xff]
        %v863 = vld [vmem:[%s362 + $0xad8] sm:$0xff]
        %v864 = vld [vmem:[%s362 + $0xae0] sm:$0xff]
        %v865 = vld [vmem:[%s362 + $0xae8] sm:$0xff]
        %v866 = vld [vmem:[%s362 + $0xaf0] sm:$0xff]
        %v867 = vld [vmem:[%s362 + $0xaf8] sm:$0xff]
        %v868 = vld [vmem:[%s362 + $0xb00] sm:$0xff]
        %v869 = vld [vmem:[%s362 + $0xb08] sm:$0xff]
        %v870 = vld [vmem:[%s362 + $0xb10] sm:$0xff]
        %v871 = vld [vmem:[%s362 + $0xb18] sm:$0xff]
        %v872 = vld [vmem:[%s362 + $0xb20] sm:$0xff]
        %v873 = vld [vmem:[%s362 + $0xb28] sm:$0xff]
        %v874 = vld [vmem:[%s362 + $0xb30] sm:$0xff]
        %v875 = vld [vmem:[%s362 + $0xb38] sm:$0xff]
        %v876 = vld [vmem:[%s362 + $0xb40] sm:$0xff]
        %v877 = vld [vmem:[%s362 + $0xb48] sm:$0xff]
        %v878 = vld [vmem:[%s362 + $0xb50] sm:$0xff]
        %v879 = vld [vmem:[%s362 + $0xb58] sm:$0xff]
        %v880 = vld [vmem:[%s362 + $0xb60] sm:$0xff]
        %v881 = vld [vmem:[%s362 + $0xb68] sm:$0xff]
        %v882 = vld [vmem:[%s362 + $0xb70] sm:$0xff]
        %v883 = vld [vmem:[%s362 + $0xb78] sm:$0xff]
        %v884 = vld [vmem:[%s362 + $0xb80] sm:$0xff]
        %v885 = vld [vmem:[%s362 + $0xb88] sm:$0xff]
        %v886 = vld [vmem:[%s362 + $0xb90] sm:$0xff]
        %v887 = vld [vmem:[%s362 + $0xb98] sm:$0xff]
        %v888 = vld [vmem:[%s362 + $0xba0] sm:$0xff]
        %v889 = vld [vmem:[%s362 + $0xba8] sm:$0xff]
        %v890 = vld [vmem:[%s362 + $0xbb0] sm:$0xff]
        %v891 = vld [vmem:[%s362 + $0xbb8] sm:$0xff]
        %v892 = vld [vmem:[%s362 + $0xbc0] sm:$0xff]
        %v893 = vld [vmem:[%s362 + $0xbc8] sm:$0xff]
        %v894 = vld [vmem:[%s362 + $0xbd0] sm:$0xff]
        %v895 = vld [vmem:[%s362 + $0xbd8] sm:$0xff]
        %v896 = vld [vmem:[%s362 + $0xbe0] sm:$0xff]
        %v897 = vld [vmem:[%s362 + $0xbe8] sm:$0xff]
        %v898 = vld [vmem:[%s362 + $0xbf0] sm:$0xff]
        %v899 = vld [vmem:[%s362 + $0xbf8] sm:$0xff]
        %v900 = vld [vmem:[%s362 + $0xc00] sm:$0xff]
        %v901 = vld [vmem:[%s362 + $0xc08] sm:$0xff]
        %v902 = vld [vmem:[%s362 + $0xc10] sm:$0xff]
        %v903 = vld [vmem:[%s362 + $0xc18] sm:$0xff]
        %v904 = vld [vmem:[%s362 + $0xc20] sm:$0xff]
        %v905 = vld [vmem:[%s362 + $0xc28] sm:$0xff]
        %v906 = vld [vmem:[%s362 + $0xc30] sm:$0xff]
        %v907 = vld [vmem:[%s362 + $0xc38] sm:$0xff]
        %v908 = vld [vmem:[%s362 + $0xc40] sm:$0xff]
        %v909 = vld [vmem:[%s362 + $0xc48] sm:$0xff]
        %v910 = vld [vmem:[%s362 + $0xc50] sm:$0xff]
        %v911 = vld [vmem:[%s362 + $0xc58] sm:$0xff]
        %v912 = vld [vmem:[%s362 + $0xc60] sm:$0xff]
        %v913 = vld [vmem:[%s362 + $0xc68] sm:$0xff]
        %v914 = vld [vmem:[%s362 + $0xc70] sm:$0xff]
        %v915 = vld [vmem:[%s362 + $0xc78] sm:$0xff]
        %v916 = vld [vmem:[%s362 + $0xc80] sm:$0xff]
        %v917 = vld [vmem:[%s362 + $0xc88] sm:$0xff]
        %v918 = vld [vmem:[%s362 + $0xc90] sm:$0xff]
        %v919 = vld [vmem:[%s362 + $0xc98] sm:$0xff]
        %v920 = vld [vmem:[%s362 + $0xca0] sm:$0xff]
        %v921 = vld [vmem:[%s362 + $0xca8] sm:$0xff]
        %v922 = vld [vmem:[%s362 + $0xcb0] sm:$0xff]
        %v923 = vld [vmem:[%s362 + $0xcb8] sm:$0xff]
        %v924 = vld [vmem:[%s362 + $0xcc0] sm:$0xff]
        %v925 = vld [vmem:[%s362 + $0xcc8] sm:$0xff]
        %v926 = vld [vmem:[%s362 + $0xcd0] sm:$0xff]
        %v927 = vld [vmem:[%s362 + $0xcd8] sm:$0xff]
        %v928 = vld [vmem:[%s362 + $0xce0] sm:$0xff]
        %v929 = vld [vmem:[%s362 + $0xce8] sm:$0xff]
        %v930 = vld [vmem:[%s362 + $0xcf0] sm:$0xff]
        %v931 = vld [vmem:[%s362 + $0xcf8] sm:$0xff]
        %v932 = vld [vmem:[%s362 + $0xd00] sm:$0xff]
        %v933 = vld [vmem:[%s362 + $0xd08] sm:$0xff]
        %v934 = vld [vmem:[%s362 + $0xd10] sm:$0xff]
        %v935 = vld [vmem:[%s362 + $0xd18] sm:$0xff]
        %v936 = vld [vmem:[%s362 + $0xd20] sm:$0xff]
        %v937 = vld [vmem:[%s362 + $0xd28] sm:$0xff]
        %v938 = vld [vmem:[%s362 + $0xd30] sm:$0xff]
        %v939 = vld [vmem:[%s362 + $0xd38] sm:$0xff]
        %v940 = vld [vmem:[%s362 + $0xd40] sm:$0xff]
        %v941 = vld [vmem:[%s362 + $0xd48] sm:$0xff]
        %v942 = vld [vmem:[%s362 + $0xd50] sm:$0xff]
        %v943 = vld [vmem:[%s362 + $0xd58] sm:$0xff]
        %v944 = vld [vmem:[%s362 + $0xd60] sm:$0xff]
        %v945 = vld [vmem:[%s362 + $0xd68] sm:$0xff]
        %v946 = vld [vmem:[%s362 + $0xd70] sm:$0xff]
        %v947 = vld [vmem:[%s362 + $0xd78] sm:$0xff]
        %v948 = vld [vmem:[%s362 + $0xd80] sm:$0xff]
        %v949 = vld [vmem:[%s362 + $0xd88] sm:$0xff]
        %v950 = vld [vmem:[%s362 + $0xd90] sm:$0xff]
        %v951 = vld [vmem:[%s362 + $0xd98] sm:$0xff]
        %v952 = vld [vmem:[%s362 + $0xda0] sm:$0xff]
        %v953 = vld [vmem:[%s362 + $0xda8] sm:$0xff]
        %v954 = vld [vmem:[%s362 + $0xdb0] sm:$0xff]
        %v955 = vld [vmem:[%s362 + $0xdb8] sm:$0xff]
        %v956 = vld [vmem:[%s362 + $0xdc0] sm:$0xff]
        %v957 = vld [vmem:[%s362 + $0xdc8] sm:$0xff]
        %v958 = vld [vmem:[%s362 + $0xdd0] sm:$0xff]
        %v959 = vld [vmem:[%s362 + $0xdd8] sm:$0xff]
        %v960 = vld [vmem:[%s362 + $0xde0] sm:$0xff]
        %v961 = vld [vmem:[%s362 + $0xde8] sm:$0xff]
        %v962 = vld [vmem:[%s362 + $0xdf0] sm:$0xff]
        %v963 = vld [vmem:[%s362 + $0xdf8] sm:$0xff]
        %v964 = vld [vmem:[%s362 + $0xe00] sm:$0xff]
        %v965 = vld [vmem:[%s362 + $0xe08] sm:$0xff]
        %v966 = vld [vmem:[%s362 + $0xe10] sm:$0xff]
        %v967 = vld [vmem:[%s362 + $0xe18] sm:$0xff]
        %v968 = vld [vmem:[%s362 + $0xe20] sm:$0xff]
        %v969 = vld [vmem:[%s362 + $0xe28] sm:$0xff]
        %v970 = vld [vmem:[%s362 + $0xe30] sm:$0xff]
        %v971 = vld [vmem:[%s362 + $0xe38] sm:$0xff]
        %v972 = vld [vmem:[%s362 + $0xe40] sm:$0xff]
        %v973 = vld [vmem:[%s362 + $0xe48] sm:$0xff]
        %v974 = vld [vmem:[%s362 + $0xe50] sm:$0xff]
        %v975 = vld [vmem:[%s362 + $0xe58] sm:$0xff]
        %v976 = vld [vmem:[%s362 + $0xe60] sm:$0xff]
        %v977 = vld [vmem:[%s362 + $0xe68] sm:$0xff]
        %v978 = vld [vmem:[%s362 + $0xe70] sm:$0xff]
        %v979 = vld [vmem:[%s362 + $0xe78] sm:$0xff]
        %v980 = vld [vmem:[%s362 + $0xe80] sm:$0xff]
        %v981 = vld [vmem:[%s362 + $0xe88] sm:$0xff]
        %v982 = vld [vmem:[%s362 + $0xe90] sm:$0xff]
        %v983 = vld [vmem:[%s362 + $0xe98] sm:$0xff]
        %v984 = vld [vmem:[%s362 + $0xea0] sm:$0xff]
        %v985 = vld [vmem:[%s362 + $0xea8] sm:$0xff]
        %v986 = vld [vmem:[%s362 + $0xeb0] sm:$0xff]
        %v987 = vld [vmem:[%s362 + $0xeb8] sm:$0xff]
        %v988 = vld [vmem:[%s362 + $0xec0] sm:$0xff]
        %v989 = vld [vmem:[%s362 + $0xec8] sm:$0xff]
        %v990 = vld [vmem:[%s362 + $0xed0] sm:$0xff]
        %v991 = vld [vmem:[%s362 + $0xed8] sm:$0xff]
        %v992 = vld [vmem:[%s362 + $0xee0] sm:$0xff]
        %v993 = vld [vmem:[%s362 + $0xee8] sm:$0xff]
        %v994 = vld [vmem:[%s362 + $0xef0] sm:$0xff]
        %v995 = vld [vmem:[%s362 + $0xef8] sm:$0xff]
        %v996 = vld [vmem:[%s362 + $0xf00] sm:$0xff]
        %v997 = vld [vmem:[%s362 + $0xf08] sm:$0xff]
        %v998 = vld [vmem:[%s362 + $0xf10] sm:$0xff]
        %v999 = vld [vmem:[%s362 + $0xf18] sm:$0xff]
        %v1000 = vld [vmem:[%s362 + $0xf20] sm:$0xff]
        %v1001 = vld [vmem:[%s362 + $0xf28] sm:$0xff]
        %v1002 = vld [vmem:[%s362 + $0xf30] sm:$0xff]
        %v1003 = vld [vmem:[%s362 + $0xf38] sm:$0xff]
        %v1004 = vld [vmem:[%s362 + $0xf40] sm:$0xff]
        %v1005 = vld [vmem:[%s362 + $0xf48] sm:$0xff]
        %v1006 = vld [vmem:[%s362 + $0xf50] sm:$0xff]
        %v1007 = vld [vmem:[%s362 + $0xf58] sm:$0xff]
        %v1008 = vld [vmem:[%s362 + $0xf60] sm:$0xff]
        %v1009 = vld [vmem:[%s362 + $0xf68] sm:$0xff]
        %v1010 = vld [vmem:[%s362 + $0xf70] sm:$0xff]
        %v1011 = vld [vmem:[%s362 + $0xf78] sm:$0xff]
        %v1012 = vld [vmem:[%s362 + $0xf80] sm:$0xff]
        %v1013 = vld [vmem:[%s362 + $0xf88] sm:$0xff]
        %v1014 = vld [vmem:[%s362 + $0xf90] sm:$0xff]
        %v1015 = vld [vmem:[%s362 + $0xf98] sm:$0xff]
        %v1016 = vld [vmem:[%s362 + $0xfa0] sm:$0xff]
        %v1017 = vld [vmem:[%s362 + $0xfa8] sm:$0xff]
        %v1018 = vld [vmem:[%s362 + $0xfb0] sm:$0xff]
        %v1019 = vld [vmem:[%s362 + $0xfb8] sm:$0xff]
        %v1020 = vld [vmem:[%s362 + $0xfc0] sm:$0xff]
        %v1021 = vld [vmem:[%s362 + $0xfc8] sm:$0xff]
        %v1022 = vld [vmem:[%s362 + $0xfd0] sm:$0xff]
        %v1023 = vld [vmem:[%s362 + $0xfd8] sm:$0xff]
        %v1024 = vld [vmem:[%s362 + $0xfe0] sm:$0xff]
        %v1025 = vld [vmem:[%s362 + $0xfe8] sm:$0xff]
        %v1026 = vld [vmem:[%s362 + $0xff0] sm:$0xff]
        %v1027 = vld [vmem:[%s362 + $0xff8] sm:$0xff]
        %v1028 = vld [vmem:[%s362 + $0x1000] sm:$0xff]
        %v1029 = vld [vmem:[%s362 + $0x1008] sm:$0xff]
        %v1030 = vld [vmem:[%s362 + $0x1010] sm:$0xff]
        %v1031 = vld [vmem:[%s362 + $0x1018] sm:$0xff]
        %v1032 = vld [vmem:[%s362 + $0x1020] sm:$0xff]
        %v1033 = vld [vmem:[%s362 + $0x1028] sm:$0xff]
        %v1034 = vld [vmem:[%s362 + $0x1030] sm:$0xff]
        %v1035 = vld [vmem:[%s362 + $0x1038] sm:$0xff]
        %v1036 = vld [vmem:[%s362 + $0x1040] sm:$0xff]
        %v1037 = vld [vmem:[%s362 + $0x1048] sm:$0xff]
        %v1038 = vld [vmem:[%s362 + $0x1050] sm:$0xff]
        %v1039 = vld [vmem:[%s362 + $0x1058] sm:$0xff]
        %v1040 = vld [vmem:[%s362 + $0x1060] sm:$0xff]
        %v1041 = vld [vmem:[%s362 + $0x1068] sm:$0xff]
        %v1042 = vld [vmem:[%s362 + $0x1070] sm:$0xff]
        %v1043 = vld [vmem:[%s362 + $0x1078] sm:$0xff]
        %v1044 = vld [vmem:[%s362 + $0x1080] sm:$0xff]
        %v1045 = vld [vmem:[%s362 + $0x1088] sm:$0xff]
        %v1046 = vld [vmem:[%s362 + $0x1090] sm:$0xff]
        %v1047 = vld [vmem:[%s362 + $0x1098] sm:$0xff]
        %v1048 = vld [vmem:[%s362 + $0x10a0] sm:$0xff]
        %v1049 = vld [vmem:[%s362 + $0x10a8] sm:$0xff]
        %v1050 = vld [vmem:[%s362 + $0x10b0] sm:$0xff]
        %v1051 = vld [vmem:[%s362 + $0x10b8] sm:$0xff]
        %v1052 = vld [vmem:[%s362 + $0x10c0] sm:$0xff]
        %v1053 = vld [vmem:[%s362 + $0x10c8] sm:$0xff]
        %v1054 = vld [vmem:[%s362 + $0x10d0] sm:$0xff]
        %v1055 = vld [vmem:[%s362 + $0x10d8] sm:$0xff]
        %v1056 = vld [vmem:[%s362 + $0x10e0] sm:$0xff]
        %v1057 = vld [vmem:[%s362 + $0x10e8] sm:$0xff]
        %v1058 = vld [vmem:[%s362 + $0x10f0] sm:$0xff]
        %v1059 = vld [vmem:[%s362 + $0x10f8] sm:$0xff]
        %v1060 = vld [vmem:[%s362 + $0x1100] sm:$0xff]
        %v1061 = vld [vmem:[%s362 + $0x1108] sm:$0xff]
        %v1062 = vld [vmem:[%s362 + $0x1110] sm:$0xff]
        %v1063 = vld [vmem:[%s362 + $0x1118] sm:$0xff]
        %v1064 = vld [vmem:[%s362 + $0x1120] sm:$0xff]
        %v1065 = vld [vmem:[%s362 + $0x1128] sm:$0xff]
        %v1066 = vld [vmem:[%s362 + $0x1130] sm:$0xff]
        %v1067 = vld [vmem:[%s362 + $0x1138] sm:$0xff]
        %v1068 = vld [vmem:[%s362 + $0x1140] sm:$0xff]
        %v1069 = vld [vmem:[%s362 + $0x1148] sm:$0xff]
        %v1070 = vld [vmem:[%s362 + $0x1150] sm:$0xff]
        %v1071 = vld [vmem:[%s362 + $0x1158] sm:$0xff]
        %v1072 = vld [vmem:[%s362 + $0x1160] sm:$0xff]
        %v1073 = vld [vmem:[%s362 + $0x1168] sm:$0xff]
        %v1074 = vld [vmem:[%s362 + $0x1170] sm:$0xff]
        %v1075 = vld [vmem:[%s362 + $0x1178] sm:$0xff]
        %v1076 = vld [vmem:[%s362 + $0x1180] sm:$0xff]
        %v1077 = vld [vmem:[%s362 + $0x1188] sm:$0xff]
        %v1078 = vld [vmem:[%s362 + $0x1190] sm:$0xff]
        %v1079 = vld [vmem:[%s362 + $0x1198] sm:$0xff]
        %v1080 = vld [vmem:[%s362 + $0x11a0] sm:$0xff]
        %v1081 = vld [vmem:[%s362 + $0x11a8] sm:$0xff]
        %v1082 = vld [vmem:[%s362 + $0x11b0] sm:$0xff]
        %v1083 = vld [vmem:[%s362 + $0x11b8] sm:$0xff]
        %v1084 = vld [vmem:[%s362 + $0x11c0] sm:$0xff]
        %v1085 = vld [vmem:[%s362 + $0x11c8] sm:$0xff]
        %v1086 = vld [vmem:[%s362 + $0x11d0] sm:$0xff]
        %v1087 = vld [vmem:[%s362 + $0x11d8] sm:$0xff]
        %v1088 = vld [vmem:[%s362 + $0x11e0] sm:$0xff]
        %v1089 = vld [vmem:[%s362 + $0x11e8] sm:$0xff]
        %v1090 = vld [vmem:[%s362 + $0x11f0] sm:$0xff]
        %v1091 = vld [vmem:[%s362 + $0x11f8] sm:$0xff]
        %v1092 = vld [vmem:[%s362 + $0x1200] sm:$0xff]
        %v1093 = vld [vmem:[%s362 + $0x1208] sm:$0xff]
        %v1094 = vld [vmem:[%s362 + $0x1210] sm:$0xff]
        %v1095 = vld [vmem:[%s362 + $0x1218] sm:$0xff]
        %v1096 = vld [vmem:[%s362 + $0x1220] sm:$0xff]
        %v1097 = vld [vmem:[%s362 + $0x1228] sm:$0xff]
        %v1098 = vld [vmem:[%s362 + $0x1230] sm:$0xff]
        %v1099 = vld [vmem:[%s362 + $0x1238] sm:$0xff]
        %v1100 = vld [vmem:[%s362 + $0x1240] sm:$0xff]
        %v1101 = vld [vmem:[%s362 + $0x1248] sm:$0xff]
        %v1102 = vld [vmem:[%s362 + $0x1250] sm:$0xff]
        %v1103 = vld [vmem:[%s362 + $0x1258] sm:$0xff]
        %v1104 = vld [vmem:[%s362 + $0x1260] sm:$0xff]
        %v1105 = vld [vmem:[%s362 + $0x1268] sm:$0xff]
        %v1106 = vld [vmem:[%s362 + $0x1270] sm:$0xff]
        %v1107 = vld [vmem:[%s362 + $0x1278] sm:$0xff]
        %v1108 = vld [vmem:[%s362 + $0x1280] sm:$0xff]
        %v1109 = vld [vmem:[%s362 + $0x1288] sm:$0xff]
        %v1110 = vld [vmem:[%s362 + $0x1290] sm:$0xff]
        %v1111 = vld [vmem:[%s362 + $0x1298] sm:$0xff]
        %v1112 = vld [vmem:[%s362 + $0x12a0] sm:$0xff]
        %v1113 = vld [vmem:[%s362 + $0x12a8] sm:$0xff]
        %v1114 = vld [vmem:[%s362 + $0x12b0] sm:$0xff]
        %v1115 = vld [vmem:[%s362 + $0x12b8] sm:$0xff]
        %v1116 = vld [vmem:[%s362 + $0x12c0] sm:$0xff]
        %v1117 = vld [vmem:[%s362 + $0x12c8] sm:$0xff]
        %v1118 = vld [vmem:[%s362 + $0x12d0] sm:$0xff]
        %v1119 = vld [vmem:[%s362 + $0x12d8] sm:$0xff]
        %v1120 = vld [vmem:[%s362 + $0x12e0] sm:$0xff]
        %v1121 = vld [vmem:[%s362 + $0x12e8] sm:$0xff]
        %v1122 = vld [vmem:[%s362 + $0x12f0] sm:$0xff]
        %v1123 = vld [vmem:[%s362 + $0x12f8] sm:$0xff]
        %v1124 = vld [vmem:[%s362 + $0x1300] sm:$0xff]
        %v1125 = vld [vmem:[%s362 + $0x1308] sm:$0xff]
        %v1126 = vld [vmem:[%s362 + $0x1310] sm:$0xff]
        %v1127 = vld [vmem:[%s362 + $0x1318] sm:$0xff]
        %v1128 = vld [vmem:[%s362 + $0x1320] sm:$0xff]
        %v1129 = vld [vmem:[%s362 + $0x1328] sm:$0xff]
        %v1130 = vld [vmem:[%s362 + $0x1330] sm:$0xff]
        %v1131 = vld [vmem:[%s362 + $0x1338] sm:$0xff]
        %v1132 = vld [vmem:[%s362 + $0x1340] sm:$0xff]
        %v1133 = vld [vmem:[%s362 + $0x1348] sm:$0xff]
        %v1134 = vld [vmem:[%s362 + $0x1350] sm:$0xff]
        %v1135 = vld [vmem:[%s362 + $0x1358] sm:$0xff]
        %v1136 = vld [vmem:[%s362 + $0x1360] sm:$0xff]
        %v1137 = vld [vmem:[%s362 + $0x1368] sm:$0xff]
        %v1138 = vld [vmem:[%s362 + $0x1370] sm:$0xff]
        %v1139 = vld [vmem:[%s362 + $0x1378] sm:$0xff]
        %v1140 = vld [vmem:[%s362 + $0x1380] sm:$0xff]
        %v1141 = vld [vmem:[%s362 + $0x1388] sm:$0xff]
        %v1142 = vld [vmem:[%s362 + $0x1390] sm:$0xff]
        %v1143 = vld [vmem:[%s362 + $0x1398] sm:$0xff]
        %v1144 = vld [vmem:[%s362 + $0x13a0] sm:$0xff]
        %v1145 = vld [vmem:[%s362 + $0x13a8] sm:$0xff]
        %v1146 = vld [vmem:[%s362 + $0x13b0] sm:$0xff]
        %v1147 = vld [vmem:[%s362 + $0x13b8] sm:$0xff]
        %v1148 = vld [vmem:[%s362 + $0x13c0] sm:$0xff]
        %v1149 = vld [vmem:[%s362 + $0x13c8] sm:$0xff]
        %v1150 = vld [vmem:[%s362 + $0x13d0] sm:$0xff]
        %v1151 = vld [vmem:[%s362 + $0x13d8] sm:$0xff]
        %v1152 = vld [vmem:[%s362 + $0x13e0] sm:$0xff]
        %v1153 = vld [vmem:[%s362 + $0x13e8] sm:$0xff]
        %v1154 = vld [vmem:[%s362 + $0x13f0] sm:$0xff]
        %v1155 = vld [vmem:[%s362 + $0x13f8] sm:$0xff]
        %v1156 = vld [vmem:[%s362 + $0x1400] sm:$0xff]
        %v1157 = vld [vmem:[%s362 + $0x1408] sm:$0xff]
        %v1158 = vld [vmem:[%s362 + $0x1410] sm:$0xff]
        %v1159 = vld [vmem:[%s362 + $0x1418] sm:$0xff]
        %v1160 = vld [vmem:[%s362 + $0x1420] sm:$0xff]
        %v1161 = vld [vmem:[%s362 + $0x1428] sm:$0xff]
        %v1162 = vld [vmem:[%s362 + $0x1430] sm:$0xff]
        %v1163 = vld [vmem:[%s362 + $0x1438] sm:$0xff]
        %v1164 = vld [vmem:[%s362 + $0x1440] sm:$0xff]
        %v1165 = vld [vmem:[%s362 + $0x1448] sm:$0xff]
        %v1166 = vld [vmem:[%s362 + $0x1450] sm:$0xff]
        %v1167 = vld [vmem:[%s362 + $0x1458] sm:$0xff]
        %v1168 = vld [vmem:[%s362 + $0x1460] sm:$0xff]
        %v1169 = vld [vmem:[%s362 + $0x1468] sm:$0xff]
        %v1170 = vld [vmem:[%s362 + $0x1470] sm:$0xff]
        %v1171 = vld [vmem:[%s362 + $0x1478] sm:$0xff]
        %v1172 = vld [vmem:[%s362 + $0x1480] sm:$0xff]
        %v1173 = vld [vmem:[%s362 + $0x1488] sm:$0xff]
        %v1174 = vld [vmem:[%s362 + $0x1490] sm:$0xff]
        %v1175 = vld [vmem:[%s362 + $0x1498] sm:$0xff]
        %v1176 = vld [vmem:[%s362 + $0x14a0] sm:$0xff]
        %v1177 = vld [vmem:[%s362 + $0x14a8] sm:$0xff]
        %v1178 = vld [vmem:[%s362 + $0x14b0] sm:$0xff]
        %v1179 = vld [vmem:[%s362 + $0x14b8] sm:$0xff]
        %v1180 = vld [vmem:[%s362 + $0x14c0] sm:$0xff]
        %v1181 = vld [vmem:[%s362 + $0x14c8] sm:$0xff]
        %v1182 = vld [vmem:[%s362 + $0x14d0] sm:$0xff]
        %v1183 = vld [vmem:[%s362 + $0x14d8] sm:$0xff]
        %v1184 = vld [vmem:[%s362 + $0x14e0] sm:$0xff]
        %v1185 = vld [vmem:[%s362 + $0x14e8] sm:$0xff]
        %v1186 = vld [vmem:[%s362 + $0x14f0] sm:$0xff]
        %v1187 = vld [vmem:[%s362 + $0x14f8] sm:$0xff]
        %v1188 = vld [vmem:[%s362 + $0x1500] sm:$0xff]
        %v1189 = vld [vmem:[%s362 + $0x1508] sm:$0xff]
        %v1190 = vld [vmem:[%s362 + $0x1510] sm:$0xff]
        %v1191 = vld [vmem:[%s362 + $0x1518] sm:$0xff]
        %v1192 = vld [vmem:[%s362 + $0x1520] sm:$0xff]
        %v1193 = vld [vmem:[%s362 + $0x1528] sm:$0xff]
        %v1194 = vld [vmem:[%s362 + $0x1530] sm:$0xff]
        %v1195 = vld [vmem:[%s362 + $0x1538] sm:$0xff]
        %v1196 = vld [vmem:[%s362 + $0x1540] sm:$0xff]
        %v1197 = vld [vmem:[%s362 + $0x1548] sm:$0xff]
        %v1198 = vld [vmem:[%s362 + $0x1550] sm:$0xff]
        %v1199 = vld [vmem:[%s362 + $0x1558] sm:$0xff]
        %v1200 = vld [vmem:[%s362 + $0x1560] sm:$0xff]
        %v1201 = vld [vmem:[%s362 + $0x1568] sm:$0xff]
        %v1202 = vld [vmem:[%s362 + $0x1570] sm:$0xff]
        %v1203 = vld [vmem:[%s362 + $0x1578] sm:$0xff]
        %v1204 = vld [vmem:[%s362 + $0x1580] sm:$0xff]
        %v1205 = vld [vmem:[%s362 + $0x1588] sm:$0xff]
        %v1206 = vld [vmem:[%s362 + $0x1590] sm:$0xff]
        %v1207 = vld [vmem:[%s362 + $0x1598] sm:$0xff]
        %v1208 = vld [vmem:[%s362 + $0x15a0] sm:$0xff]
        %v1209 = vld [vmem:[%s362 + $0x15a8] sm:$0xff]
        %v1210 = vld [vmem:[%s362 + $0x15b0] sm:$0xff]
        %v1211 = vld [vmem:[%s362 + $0x15b8] sm:$0xff]
        %v1212 = vld [vmem:[%s362 + $0x15c0] sm:$0xff]
        %v1213 = vld [vmem:[%s362 + $0x15c8] sm:$0xff]
        %v1214 = vld [vmem:[%s362 + $0x15d0] sm:$0xff]
        %v1215 = vld [vmem:[%s362 + $0x15d8] sm:$0xff]
        %v1216 = vld [vmem:[%s362 + $0x15e0] sm:$0xff]
        %v1217 = vld [vmem:[%s362 + $0x15e8] sm:$0xff]
        %v1218 = vld [vmem:[%s362 + $0x15f0] sm:$0xff]
        %v1219 = vld [vmem:[%s362 + $0x15f8] sm:$0xff]
        %v1220 = vld [vmem:[%s362 + $0x1600] sm:$0xff]
        %v1221 = vld [vmem:[%s362 + $0x1608] sm:$0xff]
        %v1222 = vld [vmem:[%s362 + $0x1610] sm:$0xff]
        %v1223 = vld [vmem:[%s362 + $0x1618] sm:$0xff]
        %v1224 = vld [vmem:[%s362 + $0x1620] sm:$0xff]
        %v1225 = vld [vmem:[%s362 + $0x1628] sm:$0xff]
        %v1226 = vld [vmem:[%s362 + $0x1630] sm:$0xff]
        %v1227 = vld [vmem:[%s362 + $0x1638] sm:$0xff]
        %v1228 = vld [vmem:[%s362 + $0x1640] sm:$0xff]
        %v1229 = vld [vmem:[%s362 + $0x1648] sm:$0xff]
        %v1230 = vld [vmem:[%s362 + $0x1650] sm:$0xff]
        %v1231 = vld [vmem:[%s362 + $0x1658] sm:$0xff]
        %v1232 = vld [vmem:[%s362 + $0x1660] sm:$0xff]
        %v1233 = vld [vmem:[%s362 + $0x1668] sm:$0xff]
        %v1234 = vld [vmem:[%s362 + $0x1670] sm:$0xff]
        %v1235 = vld [vmem:[%s362 + $0x1678] sm:$0xff]
        %v1236 = vld [vmem:[%s362 + $0x1680] sm:$0xff]
        %v1237 = vld [vmem:[%s362 + $0x1688] sm:$0xff]
        %v1238 = vld [vmem:[%s362 + $0x1690] sm:$0xff]
        %v1239 = vld [vmem:[%s362 + $0x1698] sm:$0xff]
        %v1240 = vld [vmem:[%s362 + $0x16a0] sm:$0xff]
        %v1241 = vld [vmem:[%s362 + $0x16a8] sm:$0xff]
        %v1242 = vld [vmem:[%s362 + $0x16b0] sm:$0xff]
        %v1243 = vld [vmem:[%s362 + $0x16b8] sm:$0xff]
        %v1244 = vld [vmem:[%s362 + $0x16c0] sm:$0xff]
        %v1245 = vld [vmem:[%s362 + $0x16c8] sm:$0xff]
        %v1246 = vld [vmem:[%s362 + $0x16d0] sm:$0xff]
        %v1247 = vld [vmem:[%s362 + $0x16d8] sm:$0xff]
        %v1248 = vld [vmem:[%s362 + $0x16e0] sm:$0xff]
        %v1249 = vld [vmem:[%s362 + $0x16e8] sm:$0xff]
        %v1250 = vld [vmem:[%s362 + $0x16f0] sm:$0xff]
        %v1251 = vld [vmem:[%s362 + $0x16f8] sm:$0xff]
        %v1252 = vld [vmem:[%s362 + $0x1700] sm:$0xff]
        %v1253 = vld [vmem:[%s362 + $0x1708] sm:$0xff]
        %v1254 = vld [vmem:[%s362 + $0x1710] sm:$0xff]
        %v1255 = vld [vmem:[%s362 + $0x1718] sm:$0xff]
        %v1256 = vld [vmem:[%s362 + $0x1720] sm:$0xff]
        %v1257 = vld [vmem:[%s362 + $0x1728] sm:$0xff]
        %v1258 = vld [vmem:[%s362 + $0x1730] sm:$0xff]
        %v1259 = vld [vmem:[%s362 + $0x1738] sm:$0xff]
        %v1260 = vld [vmem:[%s362 + $0x1740] sm:$0xff]
        %v1261 = vld [vmem:[%s362 + $0x1748] sm:$0xff]
        %v1262 = vld [vmem:[%s362 + $0x1750] sm:$0xff]
        %v1263 = vld [vmem:[%s362 + $0x1758] sm:$0xff]
        %v1264 = vld [vmem:[%s362 + $0x1760] sm:$0xff]
        %v1265 = vld [vmem:[%s362 + $0x1768] sm:$0xff]
        %v1266 = vld [vmem:[%s362 + $0x1770] sm:$0xff]
        %v1267 = vld [vmem:[%s362 + $0x1778] sm:$0xff]
        %v1268 = vld [vmem:[%s362 + $0x1780] sm:$0xff]
        %v1269 = vld [vmem:[%s362 + $0x1788] sm:$0xff]
        %v1270 = vld [vmem:[%s362 + $0x1790] sm:$0xff]
        %v1271 = vld [vmem:[%s362 + $0x1798] sm:$0xff]
        %v1272 = vld [vmem:[%s362 + $0x17a0] sm:$0xff]
        %v1273 = vld [vmem:[%s362 + $0x17a8] sm:$0xff]
        %v1274 = vld [vmem:[%s362 + $0x17b0] sm:$0xff]
        %v1275 = vld [vmem:[%s362 + $0x17b8] sm:$0xff]
        %v1276 = vld [vmem:[%s362 + $0x17c0] sm:$0xff]
        %v1277 = vld [vmem:[%s362 + $0x17c8] sm:$0xff]
        %v1278 = vld [vmem:[%s362 + $0x17d0] sm:$0xff]
        %v1279 = vld [vmem:[%s362 + $0x17d8] sm:$0xff]
        %v1280 = vld [vmem:[%s362 + $0x17e0] sm:$0xff]
        %v1281 = vld [vmem:[%s362 + $0x17e8] sm:$0xff]
        %v1282 = vld [vmem:[%s362 + $0x17f0] sm:$0xff]
        %v1283 = vld [vmem:[%s362 + $0x17f8] sm:$0xff]
        %v1284 = vld [vmem:[%s362 + $0x1800] sm:$0xff]
        %v1285 = vld [vmem:[%s362 + $0x1808] sm:$0xff]
        %v1286 = vld [vmem:[%s362 + $0x1810] sm:$0xff]
        %v1287 = vld [vmem:[%s362 + $0x1818] sm:$0xff]
        %v1288 = vld [vmem:[%s362 + $0x1820] sm:$0xff]
        %v1289 = vld [vmem:[%s362 + $0x1828] sm:$0xff]
        %v1290 = vld [vmem:[%s362 + $0x1830] sm:$0xff]
        %v1291 = vld [vmem:[%s362 + $0x1838] sm:$0xff]
        %v1292 = vld [vmem:[%s362 + $0x1840] sm:$0xff]
        %v1293 = vld [vmem:[%s362 + $0x1848] sm:$0xff]
        %v1294 = vld [vmem:[%s362 + $0x1850] sm:$0xff]
        %v1295 = vld [vmem:[%s362 + $0x1858] sm:$0xff]
        %v1296 = vld [vmem:[%s362 + $0x1860] sm:$0xff]
        %v1297 = vld [vmem:[%s362 + $0x1868] sm:$0xff]
        %v1298 = vld [vmem:[%s362 + $0x1870] sm:$0xff]
        %v1299 = vld [vmem:[%s362 + $0x1878] sm:$0xff]
        %v1300 = vld [vmem:[%s362 + $0x1880] sm:$0xff]
        %v1301 = vld [vmem:[%s362 + $0x1888] sm:$0xff]
        %v1302 = vld [vmem:[%s362 + $0x1890] sm:$0xff]
        %v1303 = vld [vmem:[%s362 + $0x1898] sm:$0xff]
        %v1304 = vld [vmem:[%s362 + $0x18a0] sm:$0xff]
        %v1305 = vld [vmem:[%s362 + $0x18a8] sm:$0xff]
        %v1306 = vld [vmem:[%s362 + $0x18b0] sm:$0xff]
        %v1307 = vld [vmem:[%s362 + $0x18b8] sm:$0xff]
        %v1308 = vld [vmem:[%s362 + $0x18c0] sm:$0xff]
        %v1309 = vld [vmem:[%s362 + $0x18c8] sm:$0xff]
        %v1310 = vld [vmem:[%s362 + $0x18d0] sm:$0xff]
        %v1311 = vld [vmem:[%s362 + $0x18d8] sm:$0xff]
        %v1312 = vld [vmem:[%s362 + $0x18e0] sm:$0xff]
        %v1313 = vld [vmem:[%s362 + $0x18e8] sm:$0xff]
        %v1314 = vld [vmem:[%s362 + $0x18f0] sm:$0xff]
        %v1315 = vld [vmem:[%s362 + $0x18f8] sm:$0xff]
        %v1316 = vld [vmem:[%s362 + $0x1900] sm:$0xff]
        %v1317 = vld [vmem:[%s362 + $0x1908] sm:$0xff]
        %v1318 = vld [vmem:[%s362 + $0x1910] sm:$0xff]
        %v1319 = vld [vmem:[%s362 + $0x1918] sm:$0xff]
        %v1320 = vld [vmem:[%s362 + $0x1920] sm:$0xff]
        %v1321 = vld [vmem:[%s362 + $0x1928] sm:$0xff]
        %v1322 = vld [vmem:[%s362 + $0x1930] sm:$0xff]
        %v1323 = vld [vmem:[%s362 + $0x1938] sm:$0xff]
        %v1324 = vld [vmem:[%s362 + $0x1940] sm:$0xff]
        %v1325 = vld [vmem:[%s362 + $0x1948] sm:$0xff]
        %v1326 = vld [vmem:[%s362 + $0x1950] sm:$0xff]
        %v1327 = vld [vmem:[%s362 + $0x1958] sm:$0xff]
        %v1328 = vld [vmem:[%s362 + $0x1960] sm:$0xff]
        %v1329 = vld [vmem:[%s362 + $0x1968] sm:$0xff]
        %v1330 = vld [vmem:[%s362 + $0x1970] sm:$0xff]
        %v1331 = vld [vmem:[%s362 + $0x1978] sm:$0xff]
        %v1332 = vld [vmem:[%s362 + $0x1980] sm:$0xff]
        %v1333 = vld [vmem:[%s362 + $0x1988] sm:$0xff]
        %v1334 = vld [vmem:[%s362 + $0x1990] sm:$0xff]
        %v1335 = vld [vmem:[%s362 + $0x1998] sm:$0xff]
        %v1336 = vld [vmem:[%s362 + $0x19a0] sm:$0xff]
        %v1337 = vld [vmem:[%s362 + $0x19a8] sm:$0xff]
        %v1338 = vld [vmem:[%s362 + $0x19b0] sm:$0xff]
        %v1339 = vld [vmem:[%s362 + $0x19b8] sm:$0xff]
        %v1340 = vld [vmem:[%s362 + $0x19c0] sm:$0xff]
        %v1341 = vld [vmem:[%s362 + $0x19c8] sm:$0xff]
        %v1342 = vld [vmem:[%s362 + $0x19d0] sm:$0xff]
        %v1343 = vld [vmem:[%s362 + $0x19d8] sm:$0xff]
        %v1344 = vld [vmem:[%s362 + $0x19e0] sm:$0xff]
        %v1345 = vld [vmem:[%s362 + $0x19e8] sm:$0xff]
        %v1346 = vld [vmem:[%s362 + $0x19f0] sm:$0xff]
        %v1347 = vld [vmem:[%s362 + $0x19f8] sm:$0xff]
        %v1348 = vld [vmem:[%s362 + $0x1a00] sm:$0xff]
        %v1349 = vld [vmem:[%s362 + $0x1a08] sm:$0xff]
        %v1350 = vld [vmem:[%s362 + $0x1a10] sm:$0xff]
        %v1351 = vld [vmem:[%s362 + $0x1a18] sm:$0xff]
        %v1352 = vld [vmem:[%s362 + $0x1a20] sm:$0xff]
        %v1353 = vld [vmem:[%s362 + $0x1a28] sm:$0xff]
        %v1354 = vld [vmem:[%s362 + $0x1a30] sm:$0xff]
        %v1355 = vld [vmem:[%s362 + $0x1a38] sm:$0xff]
        %v1356 = vld [vmem:[%s362 + $0x1a40] sm:$0xff]
        %v1357 = vld [vmem:[%s362 + $0x1a48] sm:$0xff]
        %v1358 = vld [vmem:[%s362 + $0x1a50] sm:$0xff]
        %v1359 = vld [vmem:[%s362 + $0x1a58] sm:$0xff]
        %v1360 = vld [vmem:[%s362 + $0x1a60] sm:$0xff]
        %v1361 = vld [vmem:[%s362 + $0x1a68] sm:$0xff]
        %v1362 = vld [vmem:[%s362 + $0x1a70] sm:$0xff]
        %v1363 = vld [vmem:[%s362 + $0x1a78] sm:$0xff]
        %v1364 = vld [vmem:[%s362 + $0x1a80] sm:$0xff]
        %v1365 = vld [vmem:[%s362 + $0x1a88] sm:$0xff]
        %v1366 = vld [vmem:[%s362 + $0x1a90] sm:$0xff]
        %v1367 = vld [vmem:[%s362 + $0x1a98] sm:$0xff]
        %v1368 = vld [vmem:[%s362 + $0x1aa0] sm:$0xff]
        %v1369 = vld [vmem:[%s362 + $0x1aa8] sm:$0xff]
        %v1370 = vld [vmem:[%s362 + $0x1ab0] sm:$0xff]
        %v1371 = vld [vmem:[%s362 + $0x1ab8] sm:$0xff]
        %v1372 = vld [vmem:[%s362 + $0x1ac0] sm:$0xff]
        %v1373 = vld [vmem:[%s362 + $0x1ac8] sm:$0xff]
        %v1374 = vld [vmem:[%s362 + $0x1ad0] sm:$0xff]
        %v1375 = vld [vmem:[%s362 + $0x1ad8] sm:$0xff]
        %v1376 = vld [vmem:[%s362 + $0x1ae0] sm:$0xff]
        %v1377 = vld [vmem:[%s362 + $0x1ae8] sm:$0xff]
        %v1378 = vld [vmem:[%s362 + $0x1af0] sm:$0xff]
        %v1379 = vld [vmem:[%s362 + $0x1af8] sm:$0xff]
        %v1380 = vld [vmem:[%s362 + $0x1b00] sm:$0xff]
        %v1381 = vld [vmem:[%s362 + $0x1b08] sm:$0xff]
        %v1382 = vld [vmem:[%s362 + $0x1b10] sm:$0xff]
        %v1383 = vld [vmem:[%s362 + $0x1b18] sm:$0xff]
        %v1384 = vld [vmem:[%s362 + $0x1b20] sm:$0xff]
        %v1385 = vld [vmem:[%s362 + $0x1b28] sm:$0xff]
        %v1386 = vld [vmem:[%s362 + $0x1b30] sm:$0xff]
        %v1387 = vld [vmem:[%s362 + $0x1b38] sm:$0xff]
        %v1388 = vld [vmem:[%s362 + $0x1b40] sm:$0xff]
        %v1389 = vld [vmem:[%s362 + $0x1b48] sm:$0xff]
        %v1390 = vld [vmem:[%s362 + $0x1b50] sm:$0xff]
        %v1391 = vld [vmem:[%s362 + $0x1b58] sm:$0xff]
        %v1392 = vld [vmem:[%s362 + $0x1b60] sm:$0xff]
        %v1393 = vld [vmem:[%s362 + $0x1b68] sm:$0xff]
        %v1394 = vld [vmem:[%s362 + $0x1b70] sm:$0xff]
        %v1395 = vld [vmem:[%s362 + $0x1b78] sm:$0xff]
        %v1396 = vld [vmem:[%s362 + $0x1b80] sm:$0xff]
        %v1397 = vld [vmem:[%s362 + $0x1b88] sm:$0xff]
        %v1398 = vld [vmem:[%s362 + $0x1b90] sm:$0xff]
        %v1399 = vld [vmem:[%s362 + $0x1b98] sm:$0xff]
        %v1400 = vld [vmem:[%s362 + $0x1ba0] sm:$0xff]
        %v1401 = vld [vmem:[%s362 + $0x1ba8] sm:$0xff]
        %v1402 = vld [vmem:[%s362 + $0x1bb0] sm:$0xff]
        %v1403 = vld [vmem:[%s362 + $0x1bb8] sm:$0xff]
        %v1404 = vld [vmem:[%s362 + $0x1bc0] sm:$0xff]
        %v1405 = vld [vmem:[%s362 + $0x1bc8] sm:$0xff]
        %v1406 = vld [vmem:[%s362 + $0x1bd0] sm:$0xff]
        %v1407 = vld [vmem:[%s362 + $0x1bd8] sm:$0xff]
        %v1408 = vld [vmem:[%s362 + $0x1be0] sm:$0xff]
        %v1409 = vld [vmem:[%s362 + $0x1be8] sm:$0xff]
        %v1410 = vld [vmem:[%s362 + $0x1bf0] sm:$0xff]
        %v1411 = vld [vmem:[%s362 + $0x1bf8] sm:$0xff]
        %v1412 = vld [vmem:[%s362 + $0x1c00] sm:$0xff]
        %v1413 = vld [vmem:[%s362 + $0x1c08] sm:$0xff]
        %v1414 = vld [vmem:[%s362 + $0x1c10] sm:$0xff]
        %v1415 = vld [vmem:[%s362 + $0x1c18] sm:$0xff]
        %v1416 = vld [vmem:[%s362 + $0x1c20] sm:$0xff]
        %v1417 = vld [vmem:[%s362 + $0x1c28] sm:$0xff]
        %v1418 = vld [vmem:[%s362 + $0x1c30] sm:$0xff]
        %v1419 = vld [vmem:[%s362 + $0x1c38] sm:$0xff]
        %v1420 = vld [vmem:[%s362 + $0x1c40] sm:$0xff]
        %v1421 = vld [vmem:[%s362 + $0x1c48] sm:$0xff]
        %v1422 = vld [vmem:[%s362 + $0x1c50] sm:$0xff]
        %v1423 = vld [vmem:[%s362 + $0x1c58] sm:$0xff]
        %v1424 = vld [vmem:[%s362 + $0x1c60] sm:$0xff]
        %v1425 = vld [vmem:[%s362 + $0x1c68] sm:$0xff]
        %v1426 = vld [vmem:[%s362 + $0x1c70] sm:$0xff]
        %v1427 = vld [vmem:[%s362 + $0x1c78] sm:$0xff]
        %v1428 = vld [vmem:[%s362 + $0x1c80] sm:$0xff]
        %v1429 = vld [vmem:[%s362 + $0x1c88] sm:$0xff]
        %v1430 = vld [vmem:[%s362 + $0x1c90] sm:$0xff]
        %v1431 = vld [vmem:[%s362 + $0x1c98] sm:$0xff]
        %v1432 = vld [vmem:[%s362 + $0x1ca0] sm:$0xff]
        %v1433 = vld [vmem:[%s362 + $0x1ca8] sm:$0xff]
        %v1434 = vld [vmem:[%s362 + $0x1cb0] sm:$0xff]
        %v1435 = vld [vmem:[%s362 + $0x1cb8] sm:$0xff]
        %v1436 = vld [vmem:[%s362 + $0x1cc0] sm:$0xff]
        %v1437 = vld [vmem:[%s362 + $0x1cc8] sm:$0xff]
        %v1438 = vld [vmem:[%s362 + $0x1cd0] sm:$0xff]
        %v1439 = vld [vmem:[%s362 + $0x1cd8] sm:$0xff]
        %v1440 = vld [vmem:[%s362 + $0x1ce0] sm:$0xff]
        %v1441 = vld [vmem:[%s362 + $0x1ce8] sm:$0xff]
        %v1442 = vld [vmem:[%s362 + $0x1cf0] sm:$0xff]
        %v1443 = vld [vmem:[%s362 + $0x1cf8] sm:$0xff]
        %v1444 = vld [vmem:[%s362 + $0x1d00] sm:$0xff]
        %v1445 = vld [vmem:[%s362 + $0x1d08] sm:$0xff]
        %v1446 = vld [vmem:[%s362 + $0x1d10] sm:$0xff]
        %v1447 = vld [vmem:[%s362 + $0x1d18] sm:$0xff]
        %v1448 = vld [vmem:[%s362 + $0x1d20] sm:$0xff]
        %v1449 = vld [vmem:[%s362 + $0x1d28] sm:$0xff]
        %v1450 = vld [vmem:[%s362 + $0x1d30] sm:$0xff]
        %v1451 = vld [vmem:[%s362 + $0x1d38] sm:$0xff]
        %v1452 = vld [vmem:[%s362 + $0x1d40] sm:$0xff]
        %v1453 = vld [vmem:[%s362 + $0x1d48] sm:$0xff]
        %v1454 = vld [vmem:[%s362 + $0x1d50] sm:$0xff]
        %v1455 = vld [vmem:[%s362 + $0x1d58] sm:$0xff]
        %v1456 = vld [vmem:[%s362 + $0x1d60] sm:$0xff]
        %v1457 = vld [vmem:[%s362 + $0x1d68] sm:$0xff]
        %v1458 = vld [vmem:[%s362 + $0x1d70] sm:$0xff]
        %v1459 = vld [vmem:[%s362 + $0x1d78] sm:$0xff]
        %v1460 = vld [vmem:[%s362 + $0x1d80] sm:$0xff]
        %v1461 = vld [vmem:[%s362 + $0x1d88] sm:$0xff]
        %v1462 = vld [vmem:[%s362 + $0x1d90] sm:$0xff]
        %v1463 = vld [vmem:[%s362 + $0x1d98] sm:$0xff]
        %v1464 = vld [vmem:[%s362 + $0x1da0] sm:$0xff]
        %v1465 = vld [vmem:[%s362 + $0x1da8] sm:$0xff]
        %v1466 = vld [vmem:[%s362 + $0x1db0] sm:$0xff]
        %v1467 = vld [vmem:[%s362 + $0x1db8] sm:$0xff]
        %v1468 = vld [vmem:[%s362 + $0x1dc0] sm:$0xff]
        %v1469 = vld [vmem:[%s362 + $0x1dc8] sm:$0xff]
        %v1470 = vld [vmem:[%s362 + $0x1dd0] sm:$0xff]
        %v1471 = vld [vmem:[%s362 + $0x1dd8] sm:$0xff]
        %v1472 = vld [vmem:[%s362 + $0x1de0] sm:$0xff]
        %v1473 = vld [vmem:[%s362 + $0x1de8] sm:$0xff]
        %v1474 = vld [vmem:[%s362 + $0x1df0] sm:$0xff]
        %v1475 = vld [vmem:[%s362 + $0x1df8] sm:$0xff]
        %v1476 = vld [vmem:[%s362 + $0x1e00] sm:$0xff]
        %v1477 = vld [vmem:[%s362 + $0x1e08] sm:$0xff]
        %v1478 = vld [vmem:[%s362 + $0x1e10] sm:$0xff]
        %v1479 = vld [vmem:[%s362 + $0x1e18] sm:$0xff]
        %v1480 = vld [vmem:[%s362 + $0x1e20] sm:$0xff]
        %v1481 = vld [vmem:[%s362 + $0x1e28] sm:$0xff]
        %v1482 = vld [vmem:[%s362 + $0x1e30] sm:$0xff]
        %v1483 = vld [vmem:[%s362 + $0x1e38] sm:$0xff]
        %v1484 = vld [vmem:[%s362 + $0x1e40] sm:$0xff]
        %v1485 = vld [vmem:[%s362 + $0x1e48] sm:$0xff]
        %v1486 = vld [vmem:[%s362 + $0x1e50] sm:$0xff]
        %v1487 = vld [vmem:[%s362 + $0x1e58] sm:$0xff]
        %v1488 = vld [vmem:[%s362 + $0x1e60] sm:$0xff]
        %v1489 = vld [vmem:[%s362 + $0x1e68] sm:$0xff]
        %v1490 = vld [vmem:[%s362 + $0x1e70] sm:$0xff]
        %v1491 = vld [vmem:[%s362 + $0x1e78] sm:$0xff]
        %v1492 = vld [vmem:[%s362 + $0x1e80] sm:$0xff]
        %v1493 = vld [vmem:[%s362 + $0x1e88] sm:$0xff]
        %v1494 = vld [vmem:[%s362 + $0x1e90] sm:$0xff]
        %v1495 = vld [vmem:[%s362 + $0x1e98] sm:$0xff]
        %v1496 = vld [vmem:[%s362 + $0x1ea0] sm:$0xff]
        %v1497 = vld [vmem:[%s362 + $0x1ea8] sm:$0xff]
        %v1498 = vld [vmem:[%s362 + $0x1eb0] sm:$0xff]
        %v1499 = vld [vmem:[%s362 + $0x1eb8] sm:$0xff]
        %v1500 = vld [vmem:[%s362 + $0x1ec0] sm:$0xff]
        %v1501 = vld [vmem:[%s362 + $0x1ec8] sm:$0xff]
        %v1502 = vld [vmem:[%s362 + $0x1ed0] sm:$0xff]
        %v1503 = vld [vmem:[%s362 + $0x1ed8] sm:$0xff]
        %v1504 = vld [vmem:[%s362 + $0x1ee0] sm:$0xff]
        %v1505 = vld [vmem:[%s362 + $0x1ee8] sm:$0xff]
        %v1506 = vld [vmem:[%s362 + $0x1ef0] sm:$0xff]
        %v1507 = vld [vmem:[%s362 + $0x1ef8] sm:$0xff]
        %v1508 = vld [vmem:[%s362 + $0x1f00] sm:$0xff]
        %v1509 = vld [vmem:[%s362 + $0x1f08] sm:$0xff]
        %v1510 = vld [vmem:[%s362 + $0x1f10] sm:$0xff]
        %v1511 = vld [vmem:[%s362 + $0x1f18] sm:$0xff]
        %v1512 = vld [vmem:[%s362 + $0x1f20] sm:$0xff]
        %v1513 = vld [vmem:[%s362 + $0x1f28] sm:$0xff]
        %v1514 = vld [vmem:[%s362 + $0x1f30] sm:$0xff]
        %v1515 = vld [vmem:[%s362 + $0x1f38] sm:$0xff]
        %v1516 = vld [vmem:[%s362 + $0x1f40] sm:$0xff]
        %v1517 = vld [vmem:[%s362 + $0x1f48] sm:$0xff]
        %v1518 = vld [vmem:[%s362 + $0x1f50] sm:$0xff]
        %v1519 = vld [vmem:[%s362 + $0x1f58] sm:$0xff]
        %v1520 = vld [vmem:[%s362 + $0x1f60] sm:$0xff]
        %v1521 = vld [vmem:[%s362 + $0x1f68] sm:$0xff]
        %v1522 = vld [vmem:[%s362 + $0x1f70] sm:$0xff]
        %v1523 = vld [vmem:[%s362 + $0x1f78] sm:$0xff]
        %v1524 = vld [vmem:[%s362 + $0x1f80] sm:$0xff]
        %v1525 = vld [vmem:[%s362 + $0x1f88] sm:$0xff]
        %v1526 = vld [vmem:[%s362 + $0x1f90] sm:$0xff]
        %v1527 = vld [vmem:[%s362 + $0x1f98] sm:$0xff]
        %v1528 = vld [vmem:[%s362 + $0x1fa0] sm:$0xff]
        %v1529 = vld [vmem:[%s362 + $0x1fa8] sm:$0xff]
        %v1530 = vld [vmem:[%s362 + $0x1fb0] sm:$0xff]
        %v1531 = vld [vmem:[%s362 + $0x1fb8] sm:$0xff]
        %v1532 = vld [vmem:[%s362 + $0x1fc0] sm:$0xff]
        %v1533 = vld [vmem:[%s362 + $0x1fc8] sm:$0xff]
        %v1534 = vld [vmem:[%s362 + $0x1fd0] sm:$0xff]
        %v1535 = vld [vmem:[%s362 + $0x1fd8] sm:$0xff]
        %v1536 = vld [vmem:[%s362 + $0x1fe0] sm:$0xff]
        %v1537 = vld [vmem:[%s362 + $0x1fe8] sm:$0xff]
        %v1538 = vld [vmem:[%s362 + $0x1ff0] sm:$0xff]
        %v1539 = vld [vmem:[%s362 + $0x1ff8] sm:$0xff]
        %v2564 = vunpack.c.l.b16 %v516
        %v2565 = vunpack.c.h.b16 %v516
        %v2566 = vunpack.c.l.b16 %v517
        %v2567 = vunpack.c.h.b16 %v517
        %v2568 = vunpack.c.l.b16 %v518
        %v2569 = vunpack.c.h.b16 %v518
        %v2570 = vunpack.c.l.b16 %v519
        %v2571 = vunpack.c.h.b16 %v519
        %v2572 = vunpack.c.l.b16 %v520
        %v2573 = vunpack.c.h.b16 %v520
        %v2574 = vunpack.c.l.b16 %v521
        %v2575 = vunpack.c.h.b16 %v521
        %v2576 = vunpack.c.l.b16 %v522
        %v2577 = vunpack.c.h.b16 %v522
        %v2578 = vunpack.c.l.b16 %v523
        %v2579 = vunpack.c.h.b16 %v523
        %v2580 = vunpack.c.l.b16 %v524
        %v2581 = vunpack.c.h.b16 %v524
        %v2582 = vunpack.c.l.b16 %v525
        %v2583 = vunpack.c.h.b16 %v525
        %v2584 = vunpack.c.l.b16 %v526
        %v2585 = vunpack.c.h.b16 %v526
        %v2586 = vunpack.c.l.b16 %v527
        %v2587 = vunpack.c.h.b16 %v527
        %v2588 = vunpack.c.l.b16 %v528
        %v2589 = vunpack.c.h.b16 %v528
        %v2590 = vunpack.c.l.b16 %v529
        %v2591 = vunpack.c.h.b16 %v529
        %v2592 = vunpack.c.l.b16 %v530
        %v2593 = vunpack.c.h.b16 %v530
        %v2594 = vunpack.c.l.b16 %v531
        %v2595 = vunpack.c.h.b16 %v531
        %v2596 = vunpack.c.l.b16 %v532
        %v2597 = vunpack.c.h.b16 %v532
        %v2598 = vunpack.c.l.b16 %v533
        %v2599 = vunpack.c.h.b16 %v533
        %v2600 = vunpack.c.l.b16 %v534
        %v2601 = vunpack.c.h.b16 %v534
        %v2602 = vunpack.c.l.b16 %v535
        %v2603 = vunpack.c.h.b16 %v535
        %v2604 = vunpack.c.l.b16 %v536
        %v2605 = vunpack.c.h.b16 %v536
        %v2606 = vunpack.c.l.b16 %v537
        %v2607 = vunpack.c.h.b16 %v537
        %v2608 = vunpack.c.l.b16 %v538
        %v2609 = vunpack.c.h.b16 %v538
        %v2610 = vunpack.c.l.b16 %v539
        %v2611 = vunpack.c.h.b16 %v539
        %v2612 = vunpack.c.l.b16 %v540
        %v2613 = vunpack.c.h.b16 %v540
        %v2614 = vunpack.c.l.b16 %v541
        %v2615 = vunpack.c.h.b16 %v541
        %v2616 = vunpack.c.l.b16 %v542
        %v2617 = vunpack.c.h.b16 %v542
        %v2618 = vunpack.c.l.b16 %v543
        %v2619 = vunpack.c.h.b16 %v543
        %v2620 = vunpack.c.l.b16 %v544
        %v2621 = vunpack.c.h.b16 %v544
        %v2622 = vunpack.c.l.b16 %v545
        %v2623 = vunpack.c.h.b16 %v545
        %v2624 = vunpack.c.l.b16 %v546
        %v2625 = vunpack.c.h.b16 %v546
        %v2626 = vunpack.c.l.b16 %v547
        %v2627 = vunpack.c.h.b16 %v547
        %v2628 = vunpack.c.l.b16 %v548
        %v2629 = vunpack.c.h.b16 %v548
        %v2630 = vunpack.c.l.b16 %v549
        %v2631 = vunpack.c.h.b16 %v549
        %v2632 = vunpack.c.l.b16 %v550
        %v2633 = vunpack.c.h.b16 %v550
        %v2634 = vunpack.c.l.b16 %v551
        %v2635 = vunpack.c.h.b16 %v551
        %v2636 = vunpack.c.l.b16 %v552
        %v2637 = vunpack.c.h.b16 %v552
        %v2638 = vunpack.c.l.b16 %v553
        %v2639 = vunpack.c.h.b16 %v553
        %v2640 = vunpack.c.l.b16 %v554
        %v2641 = vunpack.c.h.b16 %v554
        %v2642 = vunpack.c.l.b16 %v555
        %v2643 = vunpack.c.h.b16 %v555
        %v2644 = vunpack.c.l.b16 %v556
        %v2645 = vunpack.c.h.b16 %v556
        %v2646 = vunpack.c.l.b16 %v557
        %v2647 = vunpack.c.h.b16 %v557
        %v2648 = vunpack.c.l.b16 %v558
        %v2649 = vunpack.c.h.b16 %v558
        %v2650 = vunpack.c.l.b16 %v559
        %v2651 = vunpack.c.h.b16 %v559
        %v2652 = vunpack.c.l.b16 %v560
        %v2653 = vunpack.c.h.b16 %v560
        %v2654 = vunpack.c.l.b16 %v561
        %v2655 = vunpack.c.h.b16 %v561
        %v2656 = vunpack.c.l.b16 %v562
        %v2657 = vunpack.c.h.b16 %v562
        %v2658 = vunpack.c.l.b16 %v563
        %v2659 = vunpack.c.h.b16 %v563
        %v2660 = vunpack.c.l.b16 %v564
        %v2661 = vunpack.c.h.b16 %v564
        %v2662 = vunpack.c.l.b16 %v565
        %v2663 = vunpack.c.h.b16 %v565
        %v2664 = vunpack.c.l.b16 %v566
        %v2665 = vunpack.c.h.b16 %v566
        %v2666 = vunpack.c.l.b16 %v567
        %v2667 = vunpack.c.h.b16 %v567
        %v2668 = vunpack.c.l.b16 %v568
        %v2669 = vunpack.c.h.b16 %v568
        %v2670 = vunpack.c.l.b16 %v569
        %v2671 = vunpack.c.h.b16 %v569
        %v2672 = vunpack.c.l.b16 %v570
        %v2673 = vunpack.c.h.b16 %v570
        %v2674 = vunpack.c.l.b16 %v571
        %v2675 = vunpack.c.h.b16 %v571
        %v2676 = vunpack.c.l.b16 %v572
        %v2677 = vunpack.c.h.b16 %v572
        %v2678 = vunpack.c.l.b16 %v573
        %v2679 = vunpack.c.h.b16 %v573
        %v2680 = vunpack.c.l.b16 %v574
        %v2681 = vunpack.c.h.b16 %v574
        %v2682 = vunpack.c.l.b16 %v575
        %v2683 = vunpack.c.h.b16 %v575
        %v2684 = vunpack.c.l.b16 %v576
        %v2685 = vunpack.c.h.b16 %v576
        %v2686 = vunpack.c.l.b16 %v577
        %v2687 = vunpack.c.h.b16 %v577
        %v2688 = vunpack.c.l.b16 %v578
        %v2689 = vunpack.c.h.b16 %v578
        %v2690 = vunpack.c.l.b16 %v579
        %v2691 = vunpack.c.h.b16 %v579
        %v2692 = vunpack.c.l.b16 %v580
        %v2693 = vunpack.c.h.b16 %v580
        %v2694 = vunpack.c.l.b16 %v581
        %v2695 = vunpack.c.h.b16 %v581
        %v2696 = vunpack.c.l.b16 %v582
        %v2697 = vunpack.c.h.b16 %v582
        %v2698 = vunpack.c.l.b16 %v583
        %v2699 = vunpack.c.h.b16 %v583
        %v2700 = vunpack.c.l.b16 %v584
        %v2701 = vunpack.c.h.b16 %v584
        %v2702 = vunpack.c.l.b16 %v585
        %v2703 = vunpack.c.h.b16 %v585
        %v2704 = vunpack.c.l.b16 %v586
        %v2705 = vunpack.c.h.b16 %v586
        %v2706 = vunpack.c.l.b16 %v587
        %v2707 = vunpack.c.h.b16 %v587
        %v2708 = vunpack.c.l.b16 %v588
        %v2709 = vunpack.c.h.b16 %v588
        %v2710 = vunpack.c.l.b16 %v589
        %v2711 = vunpack.c.h.b16 %v589
        %v2712 = vunpack.c.l.b16 %v590
        %v2713 = vunpack.c.h.b16 %v590
        %v2714 = vunpack.c.l.b16 %v591
        %v2715 = vunpack.c.h.b16 %v591
        %v2716 = vunpack.c.l.b16 %v592
        %v2717 = vunpack.c.h.b16 %v592
        %v2718 = vunpack.c.l.b16 %v593
        %v2719 = vunpack.c.h.b16 %v593
        %v2720 = vunpack.c.l.b16 %v594
        %v2721 = vunpack.c.h.b16 %v594
        %v2722 = vunpack.c.l.b16 %v595
        %v2723 = vunpack.c.h.b16 %v595
        %v2724 = vunpack.c.l.b16 %v596
        %v2725 = vunpack.c.h.b16 %v596
        %v2726 = vunpack.c.l.b16 %v597
        %v2727 = vunpack.c.h.b16 %v597
        %v2728 = vunpack.c.l.b16 %v598
        %v2729 = vunpack.c.h.b16 %v598
        %v2730 = vunpack.c.l.b16 %v599
        %v2731 = vunpack.c.h.b16 %v599
        %v2732 = vunpack.c.l.b16 %v600
        %v2733 = vunpack.c.h.b16 %v600
        %v2734 = vunpack.c.l.b16 %v601
        %v2735 = vunpack.c.h.b16 %v601
        %v2736 = vunpack.c.l.b16 %v602
        %v2737 = vunpack.c.h.b16 %v602
        %v2738 = vunpack.c.l.b16 %v603
        %v2739 = vunpack.c.h.b16 %v603
        %v2740 = vunpack.c.l.b16 %v604
        %v2741 = vunpack.c.h.b16 %v604
        %v2742 = vunpack.c.l.b16 %v605
        %v2743 = vunpack.c.h.b16 %v605
        %v2744 = vunpack.c.l.b16 %v606
        %v2745 = vunpack.c.h.b16 %v606
        %v2746 = vunpack.c.l.b16 %v607
        %v2747 = vunpack.c.h.b16 %v607
        %v2748 = vunpack.c.l.b16 %v608
        %v2749 = vunpack.c.h.b16 %v608
        %v2750 = vunpack.c.l.b16 %v609
        %v2751 = vunpack.c.h.b16 %v609
        %v2752 = vunpack.c.l.b16 %v610
        %v2753 = vunpack.c.h.b16 %v610
        %v2754 = vunpack.c.l.b16 %v611
        %v2755 = vunpack.c.h.b16 %v611
        %v2756 = vunpack.c.l.b16 %v612
        %v2757 = vunpack.c.h.b16 %v612
        %v2758 = vunpack.c.l.b16 %v613
        %v2759 = vunpack.c.h.b16 %v613
        %v2760 = vunpack.c.l.b16 %v614
        %v2761 = vunpack.c.h.b16 %v614
        %v2762 = vunpack.c.l.b16 %v615
        %v2763 = vunpack.c.h.b16 %v615
        %v2764 = vunpack.c.l.b16 %v616
        %v2765 = vunpack.c.h.b16 %v616
        %v2766 = vunpack.c.l.b16 %v617
        %v2767 = vunpack.c.h.b16 %v617
        %v2768 = vunpack.c.l.b16 %v618
        %v2769 = vunpack.c.h.b16 %v618
        %v2770 = vunpack.c.l.b16 %v619
        %v2771 = vunpack.c.h.b16 %v619
        %v2772 = vunpack.c.l.b16 %v620
        %v2773 = vunpack.c.h.b16 %v620
        %v2774 = vunpack.c.l.b16 %v621
        %v2775 = vunpack.c.h.b16 %v621
        %v2776 = vunpack.c.l.b16 %v622
        %v2777 = vunpack.c.h.b16 %v622
        %v2778 = vunpack.c.l.b16 %v623
        %v2779 = vunpack.c.h.b16 %v623
        %v2780 = vunpack.c.l.b16 %v624
        %v2781 = vunpack.c.h.b16 %v624
        %v2782 = vunpack.c.l.b16 %v625
        %v2783 = vunpack.c.h.b16 %v625
        %v2784 = vunpack.c.l.b16 %v626
        %v2785 = vunpack.c.h.b16 %v626
        %v2786 = vunpack.c.l.b16 %v627
        %v2787 = vunpack.c.h.b16 %v627
        %v2788 = vunpack.c.l.b16 %v628
        %v2789 = vunpack.c.h.b16 %v628
        %v2790 = vunpack.c.l.b16 %v629
        %v2791 = vunpack.c.h.b16 %v629
        %v2792 = vunpack.c.l.b16 %v630
        %v2793 = vunpack.c.h.b16 %v630
        %v2794 = vunpack.c.l.b16 %v631
        %v2795 = vunpack.c.h.b16 %v631
        %v2796 = vunpack.c.l.b16 %v632
        %v2797 = vunpack.c.h.b16 %v632
        %v2798 = vunpack.c.l.b16 %v633
        %v2799 = vunpack.c.h.b16 %v633
        %v2800 = vunpack.c.l.b16 %v634
        %v2801 = vunpack.c.h.b16 %v634
        %v2802 = vunpack.c.l.b16 %v635
        %v2803 = vunpack.c.h.b16 %v635
        %v2804 = vunpack.c.l.b16 %v636
        %v2805 = vunpack.c.h.b16 %v636
        %v2806 = vunpack.c.l.b16 %v637
        %v2807 = vunpack.c.h.b16 %v637
        %v2808 = vunpack.c.l.b16 %v638
        %v2809 = vunpack.c.h.b16 %v638
        %v2810 = vunpack.c.l.b16 %v639
        %v2811 = vunpack.c.h.b16 %v639
        %v2812 = vunpack.c.l.b16 %v640
        %v2813 = vunpack.c.h.b16 %v640
        %v2814 = vunpack.c.l.b16 %v641
        %v2815 = vunpack.c.h.b16 %v641
        %v2816 = vunpack.c.l.b16 %v642
        %v2817 = vunpack.c.h.b16 %v642
        %v2818 = vunpack.c.l.b16 %v643
        %v2819 = vunpack.c.h.b16 %v643
        %v2820 = vunpack.c.l.b16 %v644
        %v2821 = vunpack.c.h.b16 %v644
        %v2822 = vunpack.c.l.b16 %v645
        %v2823 = vunpack.c.h.b16 %v645
        %v2824 = vunpack.c.l.b16 %v646
        %v2825 = vunpack.c.h.b16 %v646
        %v2826 = vunpack.c.l.b16 %v647
        %v2827 = vunpack.c.h.b16 %v647
        %v2828 = vunpack.c.l.b16 %v648
        %v2829 = vunpack.c.h.b16 %v648
        %v2830 = vunpack.c.l.b16 %v649
        %v2831 = vunpack.c.h.b16 %v649
        %v2832 = vunpack.c.l.b16 %v650
        %v2833 = vunpack.c.h.b16 %v650
        %v2834 = vunpack.c.l.b16 %v651
        %v2835 = vunpack.c.h.b16 %v651
        %v2836 = vunpack.c.l.b16 %v652
        %v2837 = vunpack.c.h.b16 %v652
        %v2838 = vunpack.c.l.b16 %v653
        %v2839 = vunpack.c.h.b16 %v653
        %v2840 = vunpack.c.l.b16 %v654
        %v2841 = vunpack.c.h.b16 %v654
        %v2842 = vunpack.c.l.b16 %v655
        %v2843 = vunpack.c.h.b16 %v655
        %v2844 = vunpack.c.l.b16 %v656
        %v2845 = vunpack.c.h.b16 %v656
        %v2846 = vunpack.c.l.b16 %v657
        %v2847 = vunpack.c.h.b16 %v657
        %v2848 = vunpack.c.l.b16 %v658
        %v2849 = vunpack.c.h.b16 %v658
        %v2850 = vunpack.c.l.b16 %v659
        %v2851 = vunpack.c.h.b16 %v659
        %v2852 = vunpack.c.l.b16 %v660
        %v2853 = vunpack.c.h.b16 %v660
        %v2854 = vunpack.c.l.b16 %v661
        %v2855 = vunpack.c.h.b16 %v661
        %v2856 = vunpack.c.l.b16 %v662
        %v2857 = vunpack.c.h.b16 %v662
        %v2858 = vunpack.c.l.b16 %v663
        %v2859 = vunpack.c.h.b16 %v663
        %v2860 = vunpack.c.l.b16 %v664
        %v2861 = vunpack.c.h.b16 %v664
        %v2862 = vunpack.c.l.b16 %v665
        %v2863 = vunpack.c.h.b16 %v665
        %v2864 = vunpack.c.l.b16 %v666
        %v2865 = vunpack.c.h.b16 %v666
        %v2866 = vunpack.c.l.b16 %v667
        %v2867 = vunpack.c.h.b16 %v667
        %v2868 = vunpack.c.l.b16 %v668
        %v2869 = vunpack.c.h.b16 %v668
        %v2870 = vunpack.c.l.b16 %v669
        %v2871 = vunpack.c.h.b16 %v669
        %v2872 = vunpack.c.l.b16 %v670
        %v2873 = vunpack.c.h.b16 %v670
        %v2874 = vunpack.c.l.b16 %v671
        %v2875 = vunpack.c.h.b16 %v671
        %v2876 = vunpack.c.l.b16 %v672
        %v2877 = vunpack.c.h.b16 %v672
        %v2878 = vunpack.c.l.b16 %v673
        %v2879 = vunpack.c.h.b16 %v673
        %v2880 = vunpack.c.l.b16 %v674
        %v2881 = vunpack.c.h.b16 %v674
        %v2882 = vunpack.c.l.b16 %v675
        %v2883 = vunpack.c.h.b16 %v675
        %v2884 = vunpack.c.l.b16 %v676
        %v2885 = vunpack.c.h.b16 %v676
        %v2886 = vunpack.c.l.b16 %v677
        %v2887 = vunpack.c.h.b16 %v677
        %v2888 = vunpack.c.l.b16 %v678
        %v2889 = vunpack.c.h.b16 %v678
        %v2890 = vunpack.c.l.b16 %v679
        %v2891 = vunpack.c.h.b16 %v679
        %v2892 = vunpack.c.l.b16 %v680
        %v2893 = vunpack.c.h.b16 %v680
        %v2894 = vunpack.c.l.b16 %v681
        %v2895 = vunpack.c.h.b16 %v681
        %v2896 = vunpack.c.l.b16 %v682
        %v2897 = vunpack.c.h.b16 %v682
        %v2898 = vunpack.c.l.b16 %v683
        %v2899 = vunpack.c.h.b16 %v683
        %v2900 = vunpack.c.l.b16 %v684
        %v2901 = vunpack.c.h.b16 %v684
        %v2902 = vunpack.c.l.b16 %v685
        %v2903 = vunpack.c.h.b16 %v685
        %v2904 = vunpack.c.l.b16 %v686
        %v2905 = vunpack.c.h.b16 %v686
        %v2906 = vunpack.c.l.b16 %v687
        %v2907 = vunpack.c.h.b16 %v687
        %v2908 = vunpack.c.l.b16 %v688
        %v2909 = vunpack.c.h.b16 %v688
        %v2910 = vunpack.c.l.b16 %v689
        %v2911 = vunpack.c.h.b16 %v689
        %v2912 = vunpack.c.l.b16 %v690
        %v2913 = vunpack.c.h.b16 %v690
        %v2914 = vunpack.c.l.b16 %v691
        %v2915 = vunpack.c.h.b16 %v691
        %v2916 = vunpack.c.l.b16 %v692
        %v2917 = vunpack.c.h.b16 %v692
        %v2918 = vunpack.c.l.b16 %v693
        %v2919 = vunpack.c.h.b16 %v693
        %v2920 = vunpack.c.l.b16 %v694
        %v2921 = vunpack.c.h.b16 %v694
        %v2922 = vunpack.c.l.b16 %v695
        %v2923 = vunpack.c.h.b16 %v695
        %v2924 = vunpack.c.l.b16 %v696
        %v2925 = vunpack.c.h.b16 %v696
        %v2926 = vunpack.c.l.b16 %v697
        %v2927 = vunpack.c.h.b16 %v697
        %v2928 = vunpack.c.l.b16 %v698
        %v2929 = vunpack.c.h.b16 %v698
        %v2930 = vunpack.c.l.b16 %v699
        %v2931 = vunpack.c.h.b16 %v699
        %v2932 = vunpack.c.l.b16 %v700
        %v2933 = vunpack.c.h.b16 %v700
        %v2934 = vunpack.c.l.b16 %v701
        %v2935 = vunpack.c.h.b16 %v701
        %v2936 = vunpack.c.l.b16 %v702
        %v2937 = vunpack.c.h.b16 %v702
        %v2938 = vunpack.c.l.b16 %v703
        %v2939 = vunpack.c.h.b16 %v703
        %v2940 = vunpack.c.l.b16 %v704
        %v2941 = vunpack.c.h.b16 %v704
        %v2942 = vunpack.c.l.b16 %v705
        %v2943 = vunpack.c.h.b16 %v705
        %v2944 = vunpack.c.l.b16 %v706
        %v2945 = vunpack.c.h.b16 %v706
        %v2946 = vunpack.c.l.b16 %v707
        %v2947 = vunpack.c.h.b16 %v707
        %v2948 = vunpack.c.l.b16 %v708
        %v2949 = vunpack.c.h.b16 %v708
        %v2950 = vunpack.c.l.b16 %v709
        %v2951 = vunpack.c.h.b16 %v709
        %v2952 = vunpack.c.l.b16 %v710
        %v2953 = vunpack.c.h.b16 %v710
        %v2954 = vunpack.c.l.b16 %v711
        %v2955 = vunpack.c.h.b16 %v711
        %v2956 = vunpack.c.l.b16 %v712
        %v2957 = vunpack.c.h.b16 %v712
        %v2958 = vunpack.c.l.b16 %v713
        %v2959 = vunpack.c.h.b16 %v713
        %v2960 = vunpack.c.l.b16 %v714
        %v2961 = vunpack.c.h.b16 %v714
        %v2962 = vunpack.c.l.b16 %v715
        %v2963 = vunpack.c.h.b16 %v715
        %v2964 = vunpack.c.l.b16 %v716
        %v2965 = vunpack.c.h.b16 %v716
        %v2966 = vunpack.c.l.b16 %v717
        %v2967 = vunpack.c.h.b16 %v717
        %v2968 = vunpack.c.l.b16 %v718
        %v2969 = vunpack.c.h.b16 %v718
        %v2970 = vunpack.c.l.b16 %v719
        %v2971 = vunpack.c.h.b16 %v719
        %v2972 = vunpack.c.l.b16 %v720
        %v2973 = vunpack.c.h.b16 %v720
        %v2974 = vunpack.c.l.b16 %v721
        %v2975 = vunpack.c.h.b16 %v721
        %v2976 = vunpack.c.l.b16 %v722
        %v2977 = vunpack.c.h.b16 %v722
        %v2978 = vunpack.c.l.b16 %v723
        %v2979 = vunpack.c.h.b16 %v723
        %v2980 = vunpack.c.l.b16 %v724
        %v2981 = vunpack.c.h.b16 %v724
        %v2982 = vunpack.c.l.b16 %v725
        %v2983 = vunpack.c.h.b16 %v725
        %v2984 = vunpack.c.l.b16 %v726
        %v2985 = vunpack.c.h.b16 %v726
        %v2986 = vunpack.c.l.b16 %v727
        %v2987 = vunpack.c.h.b16 %v727
        %v2988 = vunpack.c.l.b16 %v728
        %v2989 = vunpack.c.h.b16 %v728
        %v2990 = vunpack.c.l.b16 %v729
        %v2991 = vunpack.c.h.b16 %v729
        %v2992 = vunpack.c.l.b16 %v730
        %v2993 = vunpack.c.h.b16 %v730
        %v2994 = vunpack.c.l.b16 %v731
        %v2995 = vunpack.c.h.b16 %v731
        %v2996 = vunpack.c.l.b16 %v732
        %v2997 = vunpack.c.h.b16 %v732
        %v2998 = vunpack.c.l.b16 %v733
        %v2999 = vunpack.c.h.b16 %v733
        %v3000 = vunpack.c.l.b16 %v734
        %v3001 = vunpack.c.h.b16 %v734
        %v3002 = vunpack.c.l.b16 %v735
        %v3003 = vunpack.c.h.b16 %v735
        %v3004 = vunpack.c.l.b16 %v736
        %v3005 = vunpack.c.h.b16 %v736
        %v3006 = vunpack.c.l.b16 %v737
        %v3007 = vunpack.c.h.b16 %v737
        %v3008 = vunpack.c.l.b16 %v738
        %v3009 = vunpack.c.h.b16 %v738
        %v3010 = vunpack.c.l.b16 %v739
        %v3011 = vunpack.c.h.b16 %v739
        %v3012 = vunpack.c.l.b16 %v740
        %v3013 = vunpack.c.h.b16 %v740
        %v3014 = vunpack.c.l.b16 %v741
        %v3015 = vunpack.c.h.b16 %v741
        %v3016 = vunpack.c.l.b16 %v742
        %v3017 = vunpack.c.h.b16 %v742
        %v3018 = vunpack.c.l.b16 %v743
        %v3019 = vunpack.c.h.b16 %v743
        %v3020 = vunpack.c.l.b16 %v744
        %v3021 = vunpack.c.h.b16 %v744
        %v3022 = vunpack.c.l.b16 %v745
        %v3023 = vunpack.c.h.b16 %v745
        %v3024 = vunpack.c.l.b16 %v746
        %v3025 = vunpack.c.h.b16 %v746
        %v3026 = vunpack.c.l.b16 %v747
        %v3027 = vunpack.c.h.b16 %v747
        %v3028 = vunpack.c.l.b16 %v748
        %v3029 = vunpack.c.h.b16 %v748
        %v3030 = vunpack.c.l.b16 %v749
        %v3031 = vunpack.c.h.b16 %v749
        %v3032 = vunpack.c.l.b16 %v750
        %v3033 = vunpack.c.h.b16 %v750
        %v3034 = vunpack.c.l.b16 %v751
        %v3035 = vunpack.c.h.b16 %v751
        %v3036 = vunpack.c.l.b16 %v752
        %v3037 = vunpack.c.h.b16 %v752
        %v3038 = vunpack.c.l.b16 %v753
        %v3039 = vunpack.c.h.b16 %v753
        %v3040 = vunpack.c.l.b16 %v754
        %v3041 = vunpack.c.h.b16 %v754
        %v3042 = vunpack.c.l.b16 %v755
        %v3043 = vunpack.c.h.b16 %v755
        %v3044 = vunpack.c.l.b16 %v756
        %v3045 = vunpack.c.h.b16 %v756
        %v3046 = vunpack.c.l.b16 %v757
        %v3047 = vunpack.c.h.b16 %v757
        %v3048 = vunpack.c.l.b16 %v758
        %v3049 = vunpack.c.h.b16 %v758
        %v3050 = vunpack.c.l.b16 %v759
        %v3051 = vunpack.c.h.b16 %v759
        %v3052 = vunpack.c.l.b16 %v760
        %v3053 = vunpack.c.h.b16 %v760
        %v3054 = vunpack.c.l.b16 %v761
        %v3055 = vunpack.c.h.b16 %v761
        %v3056 = vunpack.c.l.b16 %v762
        %v3057 = vunpack.c.h.b16 %v762
        %v3058 = vunpack.c.l.b16 %v763
        %v3059 = vunpack.c.h.b16 %v763
        %v3060 = vunpack.c.l.b16 %v764
        %v3061 = vunpack.c.h.b16 %v764
        %v3062 = vunpack.c.l.b16 %v765
        %v3063 = vunpack.c.h.b16 %v765
        %v3064 = vunpack.c.l.b16 %v766
        %v3065 = vunpack.c.h.b16 %v766
        %v3066 = vunpack.c.l.b16 %v767
        %v3067 = vunpack.c.h.b16 %v767
        %v3068 = vunpack.c.l.b16 %v768
        %v3069 = vunpack.c.h.b16 %v768
        %v3070 = vunpack.c.l.b16 %v769
        %v3071 = vunpack.c.h.b16 %v769
        %v3072 = vunpack.c.l.b16 %v770
        %v3073 = vunpack.c.h.b16 %v770
        %v3074 = vunpack.c.l.b16 %v771
        %v3075 = vunpack.c.h.b16 %v771
        %v3076 = vunpack.c.l.b16 %v772
        %v3077 = vunpack.c.h.b16 %v772
        %v3078 = vunpack.c.l.b16 %v773
        %v3079 = vunpack.c.h.b16 %v773
        %v3080 = vunpack.c.l.b16 %v774
        %v3081 = vunpack.c.h.b16 %v774
        %v3082 = vunpack.c.l.b16 %v775
        %v3083 = vunpack.c.h.b16 %v775
        %v3084 = vunpack.c.l.b16 %v776
        %v3085 = vunpack.c.h.b16 %v776
        %v3086 = vunpack.c.l.b16 %v777
        %v3087 = vunpack.c.h.b16 %v777
        %v3088 = vunpack.c.l.b16 %v778
        %v3089 = vunpack.c.h.b16 %v778
        %v3090 = vunpack.c.l.b16 %v779
        %v3091 = vunpack.c.h.b16 %v779
        %v3092 = vunpack.c.l.b16 %v780
        %v3093 = vunpack.c.h.b16 %v780
        %v3094 = vunpack.c.l.b16 %v781
        %v3095 = vunpack.c.h.b16 %v781
        %v3096 = vunpack.c.l.b16 %v782
        %v3097 = vunpack.c.h.b16 %v782
        %v3098 = vunpack.c.l.b16 %v783
        %v3099 = vunpack.c.h.b16 %v783
        %v3100 = vunpack.c.l.b16 %v784
        %v3101 = vunpack.c.h.b16 %v784
        %v3102 = vunpack.c.l.b16 %v785
        %v3103 = vunpack.c.h.b16 %v785
        %v3104 = vunpack.c.l.b16 %v786
        %v3105 = vunpack.c.h.b16 %v786
        %v3106 = vunpack.c.l.b16 %v787
        %v3107 = vunpack.c.h.b16 %v787
        %v3108 = vunpack.c.l.b16 %v788
        %v3109 = vunpack.c.h.b16 %v788
        %v3110 = vunpack.c.l.b16 %v789
        %v3111 = vunpack.c.h.b16 %v789
        %v3112 = vunpack.c.l.b16 %v790
        %v3113 = vunpack.c.h.b16 %v790
        %v3114 = vunpack.c.l.b16 %v791
        %v3115 = vunpack.c.h.b16 %v791
        %v3116 = vunpack.c.l.b16 %v792
        %v3117 = vunpack.c.h.b16 %v792
        %v3118 = vunpack.c.l.b16 %v793
        %v3119 = vunpack.c.h.b16 %v793
        %v3120 = vunpack.c.l.b16 %v794
        %v3121 = vunpack.c.h.b16 %v794
        %v3122 = vunpack.c.l.b16 %v795
        %v3123 = vunpack.c.h.b16 %v795
        %v3124 = vunpack.c.l.b16 %v796
        %v3125 = vunpack.c.h.b16 %v796
        %v3126 = vunpack.c.l.b16 %v797
        %v3127 = vunpack.c.h.b16 %v797
        %v3128 = vunpack.c.l.b16 %v798
        %v3129 = vunpack.c.h.b16 %v798
        %v3130 = vunpack.c.l.b16 %v799
        %v3131 = vunpack.c.h.b16 %v799
        %v3132 = vunpack.c.l.b16 %v800
        %v3133 = vunpack.c.h.b16 %v800
        %v3134 = vunpack.c.l.b16 %v801
        %v3135 = vunpack.c.h.b16 %v801
        %v3136 = vunpack.c.l.b16 %v802
        %v3137 = vunpack.c.h.b16 %v802
        %v3138 = vunpack.c.l.b16 %v803
        %v3139 = vunpack.c.h.b16 %v803
        %v3140 = vunpack.c.l.b16 %v804
        %v3141 = vunpack.c.h.b16 %v804
        %v3142 = vunpack.c.l.b16 %v805
        %v3143 = vunpack.c.h.b16 %v805
        %v3144 = vunpack.c.l.b16 %v806
        %v3145 = vunpack.c.h.b16 %v806
        %v3146 = vunpack.c.l.b16 %v807
        %v3147 = vunpack.c.h.b16 %v807
        %v3148 = vunpack.c.l.b16 %v808
        %v3149 = vunpack.c.h.b16 %v808
        %v3150 = vunpack.c.l.b16 %v809
        %v3151 = vunpack.c.h.b16 %v809
        %v3152 = vunpack.c.l.b16 %v810
        %v3153 = vunpack.c.h.b16 %v810
        %v3154 = vunpack.c.l.b16 %v811
        %v3155 = vunpack.c.h.b16 %v811
        %v3156 = vunpack.c.l.b16 %v812
        %v3157 = vunpack.c.h.b16 %v812
        %v3158 = vunpack.c.l.b16 %v813
        %v3159 = vunpack.c.h.b16 %v813
        %v3160 = vunpack.c.l.b16 %v814
        %v3161 = vunpack.c.h.b16 %v814
        %v3162 = vunpack.c.l.b16 %v815
        %v3163 = vunpack.c.h.b16 %v815
        %v3164 = vunpack.c.l.b16 %v816
        %v3165 = vunpack.c.h.b16 %v816
        %v3166 = vunpack.c.l.b16 %v817
        %v3167 = vunpack.c.h.b16 %v817
        %v3168 = vunpack.c.l.b16 %v818
        %v3169 = vunpack.c.h.b16 %v818
        %v3170 = vunpack.c.l.b16 %v819
        %v3171 = vunpack.c.h.b16 %v819
        %v3172 = vunpack.c.l.b16 %v820
        %v3173 = vunpack.c.h.b16 %v820
        %v3174 = vunpack.c.l.b16 %v821
        %v3175 = vunpack.c.h.b16 %v821
        %v3176 = vunpack.c.l.b16 %v822
        %v3177 = vunpack.c.h.b16 %v822
        %v3178 = vunpack.c.l.b16 %v823
        %v3179 = vunpack.c.h.b16 %v823
        %v3180 = vunpack.c.l.b16 %v824
        %v3181 = vunpack.c.h.b16 %v824
        %v3182 = vunpack.c.l.b16 %v825
        %v3183 = vunpack.c.h.b16 %v825
        %v3184 = vunpack.c.l.b16 %v826
        %v3185 = vunpack.c.h.b16 %v826
        %v3186 = vunpack.c.l.b16 %v827
        %v3187 = vunpack.c.h.b16 %v827
        %v3188 = vunpack.c.l.b16 %v828
        %v3189 = vunpack.c.h.b16 %v828
        %v3190 = vunpack.c.l.b16 %v829
        %v3191 = vunpack.c.h.b16 %v829
        %v3192 = vunpack.c.l.b16 %v830
        %v3193 = vunpack.c.h.b16 %v830
        %v3194 = vunpack.c.l.b16 %v831
        %v3195 = vunpack.c.h.b16 %v831
        %v3196 = vunpack.c.l.b16 %v832
        %v3197 = vunpack.c.h.b16 %v832
        %v3198 = vunpack.c.l.b16 %v833
        %v3199 = vunpack.c.h.b16 %v833
        %v3200 = vunpack.c.l.b16 %v834
        %v3201 = vunpack.c.h.b16 %v834
        %v3202 = vunpack.c.l.b16 %v835
        %v3203 = vunpack.c.h.b16 %v835
        %v3204 = vunpack.c.l.b16 %v836
        %v3205 = vunpack.c.h.b16 %v836
        %v3206 = vunpack.c.l.b16 %v837
        %v3207 = vunpack.c.h.b16 %v837
        %v3208 = vunpack.c.l.b16 %v838
        %v3209 = vunpack.c.h.b16 %v838
        %v3210 = vunpack.c.l.b16 %v839
        %v3211 = vunpack.c.h.b16 %v839
        %v3212 = vunpack.c.l.b16 %v840
        %v3213 = vunpack.c.h.b16 %v840
        %v3214 = vunpack.c.l.b16 %v841
        %v3215 = vunpack.c.h.b16 %v841
        %v3216 = vunpack.c.l.b16 %v842
        %v3217 = vunpack.c.h.b16 %v842
        %v3218 = vunpack.c.l.b16 %v843
        %v3219 = vunpack.c.h.b16 %v843
        %v3220 = vunpack.c.l.b16 %v844
        %v3221 = vunpack.c.h.b16 %v844
        %v3222 = vunpack.c.l.b16 %v845
        %v3223 = vunpack.c.h.b16 %v845
        %v3224 = vunpack.c.l.b16 %v846
        %v3225 = vunpack.c.h.b16 %v846
        %v3226 = vunpack.c.l.b16 %v847
        %v3227 = vunpack.c.h.b16 %v847
        %v3228 = vunpack.c.l.b16 %v848
        %v3229 = vunpack.c.h.b16 %v848
        %v3230 = vunpack.c.l.b16 %v849
        %v3231 = vunpack.c.h.b16 %v849
        %v3232 = vunpack.c.l.b16 %v850
        %v3233 = vunpack.c.h.b16 %v850
        %v3234 = vunpack.c.l.b16 %v851
        %v3235 = vunpack.c.h.b16 %v851
        %v3236 = vunpack.c.l.b16 %v852
        %v3237 = vunpack.c.h.b16 %v852
        %v3238 = vunpack.c.l.b16 %v853
        %v3239 = vunpack.c.h.b16 %v853
        %v3240 = vunpack.c.l.b16 %v854
        %v3241 = vunpack.c.h.b16 %v854
        %v3242 = vunpack.c.l.b16 %v855
        %v3243 = vunpack.c.h.b16 %v855
        %v3244 = vunpack.c.l.b16 %v856
        %v3245 = vunpack.c.h.b16 %v856
        %v3246 = vunpack.c.l.b16 %v857
        %v3247 = vunpack.c.h.b16 %v857
        %v3248 = vunpack.c.l.b16 %v858
        %v3249 = vunpack.c.h.b16 %v858
        %v3250 = vunpack.c.l.b16 %v859
        %v3251 = vunpack.c.h.b16 %v859
        %v3252 = vunpack.c.l.b16 %v860
        %v3253 = vunpack.c.h.b16 %v860
        %v3254 = vunpack.c.l.b16 %v861
        %v3255 = vunpack.c.h.b16 %v861
        %v3256 = vunpack.c.l.b16 %v862
        %v3257 = vunpack.c.h.b16 %v862
        %v3258 = vunpack.c.l.b16 %v863
        %v3259 = vunpack.c.h.b16 %v863
        %v3260 = vunpack.c.l.b16 %v864
        %v3261 = vunpack.c.h.b16 %v864
        %v3262 = vunpack.c.l.b16 %v865
        %v3263 = vunpack.c.h.b16 %v865
        %v3264 = vunpack.c.l.b16 %v866
        %v3265 = vunpack.c.h.b16 %v866
        %v3266 = vunpack.c.l.b16 %v867
        %v3267 = vunpack.c.h.b16 %v867
        %v3268 = vunpack.c.l.b16 %v868
        %v3269 = vunpack.c.h.b16 %v868
        %v3270 = vunpack.c.l.b16 %v869
        %v3271 = vunpack.c.h.b16 %v869
        %v3272 = vunpack.c.l.b16 %v870
        %v3273 = vunpack.c.h.b16 %v870
        %v3274 = vunpack.c.l.b16 %v871
        %v3275 = vunpack.c.h.b16 %v871
        %v3276 = vunpack.c.l.b16 %v872
        %v3277 = vunpack.c.h.b16 %v872
        %v3278 = vunpack.c.l.b16 %v873
        %v3279 = vunpack.c.h.b16 %v873
        %v3280 = vunpack.c.l.b16 %v874
        %v3281 = vunpack.c.h.b16 %v874
        %v3282 = vunpack.c.l.b16 %v875
        %v3283 = vunpack.c.h.b16 %v875
        %v3284 = vunpack.c.l.b16 %v876
        %v3285 = vunpack.c.h.b16 %v876
        %v3286 = vunpack.c.l.b16 %v877
        %v3287 = vunpack.c.h.b16 %v877
        %v3288 = vunpack.c.l.b16 %v878
        %v3289 = vunpack.c.h.b16 %v878
        %v3290 = vunpack.c.l.b16 %v879
        %v3291 = vunpack.c.h.b16 %v879
        %v3292 = vunpack.c.l.b16 %v880
        %v3293 = vunpack.c.h.b16 %v880
        %v3294 = vunpack.c.l.b16 %v881
        %v3295 = vunpack.c.h.b16 %v881
        %v3296 = vunpack.c.l.b16 %v882
        %v3297 = vunpack.c.h.b16 %v882
        %v3298 = vunpack.c.l.b16 %v883
        %v3299 = vunpack.c.h.b16 %v883
        %v3300 = vunpack.c.l.b16 %v884
        %v3301 = vunpack.c.h.b16 %v884
        %v3302 = vunpack.c.l.b16 %v885
        %v3303 = vunpack.c.h.b16 %v885
        %v3304 = vunpack.c.l.b16 %v886
        %v3305 = vunpack.c.h.b16 %v886
        %v3306 = vunpack.c.l.b16 %v887
        %v3307 = vunpack.c.h.b16 %v887
        %v3308 = vunpack.c.l.b16 %v888
        %v3309 = vunpack.c.h.b16 %v888
        %v3310 = vunpack.c.l.b16 %v889
        %v3311 = vunpack.c.h.b16 %v889
        %v3312 = vunpack.c.l.b16 %v890
        %v3313 = vunpack.c.h.b16 %v890
        %v3314 = vunpack.c.l.b16 %v891
        %v3315 = vunpack.c.h.b16 %v891
        %v3316 = vunpack.c.l.b16 %v892
        %v3317 = vunpack.c.h.b16 %v892
        %v3318 = vunpack.c.l.b16 %v893
        %v3319 = vunpack.c.h.b16 %v893
        %v3320 = vunpack.c.l.b16 %v894
        %v3321 = vunpack.c.h.b16 %v894
        %v3322 = vunpack.c.l.b16 %v895
        %v3323 = vunpack.c.h.b16 %v895
        %v3324 = vunpack.c.l.b16 %v896
        %v3325 = vunpack.c.h.b16 %v896
        %v3326 = vunpack.c.l.b16 %v897
        %v3327 = vunpack.c.h.b16 %v897
        %v3328 = vunpack.c.l.b16 %v898
        %v3329 = vunpack.c.h.b16 %v898
        %v3330 = vunpack.c.l.b16 %v899
        %v3331 = vunpack.c.h.b16 %v899
        %v3332 = vunpack.c.l.b16 %v900
        %v3333 = vunpack.c.h.b16 %v900
        %v3334 = vunpack.c.l.b16 %v901
        %v3335 = vunpack.c.h.b16 %v901
        %v3336 = vunpack.c.l.b16 %v902
        %v3337 = vunpack.c.h.b16 %v902
        %v3338 = vunpack.c.l.b16 %v903
        %v3339 = vunpack.c.h.b16 %v903
        %v3340 = vunpack.c.l.b16 %v904
        %v3341 = vunpack.c.h.b16 %v904
        %v3342 = vunpack.c.l.b16 %v905
        %v3343 = vunpack.c.h.b16 %v905
        %v3344 = vunpack.c.l.b16 %v906
        %v3345 = vunpack.c.h.b16 %v906
        %v3346 = vunpack.c.l.b16 %v907
        %v3347 = vunpack.c.h.b16 %v907
        %v3348 = vunpack.c.l.b16 %v908
        %v3349 = vunpack.c.h.b16 %v908
        %v3350 = vunpack.c.l.b16 %v909
        %v3351 = vunpack.c.h.b16 %v909
        %v3352 = vunpack.c.l.b16 %v910
        %v3353 = vunpack.c.h.b16 %v910
        %v3354 = vunpack.c.l.b16 %v911
        %v3355 = vunpack.c.h.b16 %v911
        %v3356 = vunpack.c.l.b16 %v912
        %v3357 = vunpack.c.h.b16 %v912
        %v3358 = vunpack.c.l.b16 %v913
        %v3359 = vunpack.c.h.b16 %v913
        %v3360 = vunpack.c.l.b16 %v914
        %v3361 = vunpack.c.h.b16 %v914
        %v3362 = vunpack.c.l.b16 %v915
        %v3363 = vunpack.c.h.b16 %v915
        %v3364 = vunpack.c.l.b16 %v916
        %v3365 = vunpack.c.h.b16 %v916
        %v3366 = vunpack.c.l.b16 %v917
        %v3367 = vunpack.c.h.b16 %v917
        %v3368 = vunpack.c.l.b16 %v918
        %v3369 = vunpack.c.h.b16 %v918
        %v3370 = vunpack.c.l.b16 %v919
        %v3371 = vunpack.c.h.b16 %v919
        %v3372 = vunpack.c.l.b16 %v920
        %v3373 = vunpack.c.h.b16 %v920
        %v3374 = vunpack.c.l.b16 %v921
        %v3375 = vunpack.c.h.b16 %v921
        %v3376 = vunpack.c.l.b16 %v922
        %v3377 = vunpack.c.h.b16 %v922
        %v3378 = vunpack.c.l.b16 %v923
        %v3379 = vunpack.c.h.b16 %v923
        %v3380 = vunpack.c.l.b16 %v924
        %v3381 = vunpack.c.h.b16 %v924
        %v3382 = vunpack.c.l.b16 %v925
        %v3383 = vunpack.c.h.b16 %v925
        %v3384 = vunpack.c.l.b16 %v926
        %v3385 = vunpack.c.h.b16 %v926
        %v3386 = vunpack.c.l.b16 %v927
        %v3387 = vunpack.c.h.b16 %v927
        %v3388 = vunpack.c.l.b16 %v928
        %v3389 = vunpack.c.h.b16 %v928
        %v3390 = vunpack.c.l.b16 %v929
        %v3391 = vunpack.c.h.b16 %v929
        %v3392 = vunpack.c.l.b16 %v930
        %v3393 = vunpack.c.h.b16 %v930
        %v3394 = vunpack.c.l.b16 %v931
        %v3395 = vunpack.c.h.b16 %v931
        %v3396 = vunpack.c.l.b16 %v932
        %v3397 = vunpack.c.h.b16 %v932
        %v3398 = vunpack.c.l.b16 %v933
        %v3399 = vunpack.c.h.b16 %v933
        %v3400 = vunpack.c.l.b16 %v934
        %v3401 = vunpack.c.h.b16 %v934
        %v3402 = vunpack.c.l.b16 %v935
        %v3403 = vunpack.c.h.b16 %v935
        %v3404 = vunpack.c.l.b16 %v936
        %v3405 = vunpack.c.h.b16 %v936
        %v3406 = vunpack.c.l.b16 %v937
        %v3407 = vunpack.c.h.b16 %v937
        %v3408 = vunpack.c.l.b16 %v938
        %v3409 = vunpack.c.h.b16 %v938
        %v3410 = vunpack.c.l.b16 %v939
        %v3411 = vunpack.c.h.b16 %v939
        %v3412 = vunpack.c.l.b16 %v940
        %v3413 = vunpack.c.h.b16 %v940
        %v3414 = vunpack.c.l.b16 %v941
        %v3415 = vunpack.c.h.b16 %v941
        %v3416 = vunpack.c.l.b16 %v942
        %v3417 = vunpack.c.h.b16 %v942
        %v3418 = vunpack.c.l.b16 %v943
        %v3419 = vunpack.c.h.b16 %v943
        %v3420 = vunpack.c.l.b16 %v944
        %v3421 = vunpack.c.h.b16 %v944
        %v3422 = vunpack.c.l.b16 %v945
        %v3423 = vunpack.c.h.b16 %v945
        %v3424 = vunpack.c.l.b16 %v946
        %v3425 = vunpack.c.h.b16 %v946
        %v3426 = vunpack.c.l.b16 %v947
        %v3427 = vunpack.c.h.b16 %v947
        %v3428 = vunpack.c.l.b16 %v948
        %v3429 = vunpack.c.h.b16 %v948
        %v3430 = vunpack.c.l.b16 %v949
        %v3431 = vunpack.c.h.b16 %v949
        %v3432 = vunpack.c.l.b16 %v950
        %v3433 = vunpack.c.h.b16 %v950
        %v3434 = vunpack.c.l.b16 %v951
        %v3435 = vunpack.c.h.b16 %v951
        %v3436 = vunpack.c.l.b16 %v952
        %v3437 = vunpack.c.h.b16 %v952
        %v3438 = vunpack.c.l.b16 %v953
        %v3439 = vunpack.c.h.b16 %v953
        %v3440 = vunpack.c.l.b16 %v954
        %v3441 = vunpack.c.h.b16 %v954
        %v3442 = vunpack.c.l.b16 %v955
        %v3443 = vunpack.c.h.b16 %v955
        %v3444 = vunpack.c.l.b16 %v956
        %v3445 = vunpack.c.h.b16 %v956
        %v3446 = vunpack.c.l.b16 %v957
        %v3447 = vunpack.c.h.b16 %v957
        %v3448 = vunpack.c.l.b16 %v958
        %v3449 = vunpack.c.h.b16 %v958
        %v3450 = vunpack.c.l.b16 %v959
        %v3451 = vunpack.c.h.b16 %v959
        %v3452 = vunpack.c.l.b16 %v960
        %v3453 = vunpack.c.h.b16 %v960
        %v3454 = vunpack.c.l.b16 %v961
        %v3455 = vunpack.c.h.b16 %v961
        %v3456 = vunpack.c.l.b16 %v962
        %v3457 = vunpack.c.h.b16 %v962
        %v3458 = vunpack.c.l.b16 %v963
        %v3459 = vunpack.c.h.b16 %v963
        %v3460 = vunpack.c.l.b16 %v964
        %v3461 = vunpack.c.h.b16 %v964
        %v3462 = vunpack.c.l.b16 %v965
        %v3463 = vunpack.c.h.b16 %v965
        %v3464 = vunpack.c.l.b16 %v966
        %v3465 = vunpack.c.h.b16 %v966
        %v3466 = vunpack.c.l.b16 %v967
        %v3467 = vunpack.c.h.b16 %v967
        %v3468 = vunpack.c.l.b16 %v968
        %v3469 = vunpack.c.h.b16 %v968
        %v3470 = vunpack.c.l.b16 %v969
        %v3471 = vunpack.c.h.b16 %v969
        %v3472 = vunpack.c.l.b16 %v970
        %v3473 = vunpack.c.h.b16 %v970
        %v3474 = vunpack.c.l.b16 %v971
        %v3475 = vunpack.c.h.b16 %v971
        %v3476 = vunpack.c.l.b16 %v972
        %v3477 = vunpack.c.h.b16 %v972
        %v3478 = vunpack.c.l.b16 %v973
        %v3479 = vunpack.c.h.b16 %v973
        %v3480 = vunpack.c.l.b16 %v974
        %v3481 = vunpack.c.h.b16 %v974
        %v3482 = vunpack.c.l.b16 %v975
        %v3483 = vunpack.c.h.b16 %v975
        %v3484 = vunpack.c.l.b16 %v976
        %v3485 = vunpack.c.h.b16 %v976
        %v3486 = vunpack.c.l.b16 %v977
        %v3487 = vunpack.c.h.b16 %v977
        %v3488 = vunpack.c.l.b16 %v978
        %v3489 = vunpack.c.h.b16 %v978
        %v3490 = vunpack.c.l.b16 %v979
        %v3491 = vunpack.c.h.b16 %v979
        %v3492 = vunpack.c.l.b16 %v980
        %v3493 = vunpack.c.h.b16 %v980
        %v3494 = vunpack.c.l.b16 %v981
        %v3495 = vunpack.c.h.b16 %v981
        %v3496 = vunpack.c.l.b16 %v982
        %v3497 = vunpack.c.h.b16 %v982
        %v3498 = vunpack.c.l.b16 %v983
        %v3499 = vunpack.c.h.b16 %v983
        %v3500 = vunpack.c.l.b16 %v984
        %v3501 = vunpack.c.h.b16 %v984
        %v3502 = vunpack.c.l.b16 %v985
        %v3503 = vunpack.c.h.b16 %v985
        %v3504 = vunpack.c.l.b16 %v986
        %v3505 = vunpack.c.h.b16 %v986
        %v3506 = vunpack.c.l.b16 %v987
        %v3507 = vunpack.c.h.b16 %v987
        %v3508 = vunpack.c.l.b16 %v988
        %v3509 = vunpack.c.h.b16 %v988
        %v3510 = vunpack.c.l.b16 %v989
        %v3511 = vunpack.c.h.b16 %v989
        %v3512 = vunpack.c.l.b16 %v990
        %v3513 = vunpack.c.h.b16 %v990
        %v3514 = vunpack.c.l.b16 %v991
        %v3515 = vunpack.c.h.b16 %v991
        %v3516 = vunpack.c.l.b16 %v992
        %v3517 = vunpack.c.h.b16 %v992
        %v3518 = vunpack.c.l.b16 %v993
        %v3519 = vunpack.c.h.b16 %v993
        %v3520 = vunpack.c.l.b16 %v994
        %v3521 = vunpack.c.h.b16 %v994
        %v3522 = vunpack.c.l.b16 %v995
        %v3523 = vunpack.c.h.b16 %v995
        %v3524 = vunpack.c.l.b16 %v996
        %v3525 = vunpack.c.h.b16 %v996
        %v3526 = vunpack.c.l.b16 %v997
        %v3527 = vunpack.c.h.b16 %v997
        %v3528 = vunpack.c.l.b16 %v998
        %v3529 = vunpack.c.h.b16 %v998
        %v3530 = vunpack.c.l.b16 %v999
        %v3531 = vunpack.c.h.b16 %v999
        %v3532 = vunpack.c.l.b16 %v1000
        %v3533 = vunpack.c.h.b16 %v1000
        %v3534 = vunpack.c.l.b16 %v1001
        %v3535 = vunpack.c.h.b16 %v1001
        %v3536 = vunpack.c.l.b16 %v1002
        %v3537 = vunpack.c.h.b16 %v1002
        %v3538 = vunpack.c.l.b16 %v1003
        %v3539 = vunpack.c.h.b16 %v1003
        %v3540 = vunpack.c.l.b16 %v1004
        %v3541 = vunpack.c.h.b16 %v1004
        %v3542 = vunpack.c.l.b16 %v1005
        %v3543 = vunpack.c.h.b16 %v1005
        %v3544 = vunpack.c.l.b16 %v1006
        %v3545 = vunpack.c.h.b16 %v1006
        %v3546 = vunpack.c.l.b16 %v1007
        %v3547 = vunpack.c.h.b16 %v1007
        %v3548 = vunpack.c.l.b16 %v1008
        %v3549 = vunpack.c.h.b16 %v1008
        %v3550 = vunpack.c.l.b16 %v1009
        %v3551 = vunpack.c.h.b16 %v1009
        %v3552 = vunpack.c.l.b16 %v1010
        %v3553 = vunpack.c.h.b16 %v1010
        %v3554 = vunpack.c.l.b16 %v1011
        %v3555 = vunpack.c.h.b16 %v1011
        %v3556 = vunpack.c.l.b16 %v1012
        %v3557 = vunpack.c.h.b16 %v1012
        %v3558 = vunpack.c.l.b16 %v1013
        %v3559 = vunpack.c.h.b16 %v1013
        %v3560 = vunpack.c.l.b16 %v1014
        %v3561 = vunpack.c.h.b16 %v1014
        %v3562 = vunpack.c.l.b16 %v1015
        %v3563 = vunpack.c.h.b16 %v1015
        %v3564 = vunpack.c.l.b16 %v1016
        %v3565 = vunpack.c.h.b16 %v1016
        %v3566 = vunpack.c.l.b16 %v1017
        %v3567 = vunpack.c.h.b16 %v1017
        %v3568 = vunpack.c.l.b16 %v1018
        %v3569 = vunpack.c.h.b16 %v1018
        %v3570 = vunpack.c.l.b16 %v1019
        %v3571 = vunpack.c.h.b16 %v1019
        %v3572 = vunpack.c.l.b16 %v1020
        %v3573 = vunpack.c.h.b16 %v1020
        %v3574 = vunpack.c.l.b16 %v1021
        %v3575 = vunpack.c.h.b16 %v1021
        %v3576 = vunpack.c.l.b16 %v1022
        %v3577 = vunpack.c.h.b16 %v1022
        %v3578 = vunpack.c.l.b16 %v1023
        %v3579 = vunpack.c.h.b16 %v1023
        %v3580 = vunpack.c.l.b16 %v1024
        %v3581 = vunpack.c.h.b16 %v1024
        %v3582 = vunpack.c.l.b16 %v1025
        %v3583 = vunpack.c.h.b16 %v1025
        %v3584 = vunpack.c.l.b16 %v1026
        %v3585 = vunpack.c.h.b16 %v1026
        %v3586 = vunpack.c.l.b16 %v1027
        %v3587 = vunpack.c.h.b16 %v1027
        %v3588 = vunpack.c.l.b16 %v1028
        %v3589 = vunpack.c.h.b16 %v1028
        %v3590 = vunpack.c.l.b16 %v1029
        %v3591 = vunpack.c.h.b16 %v1029
        %v3592 = vunpack.c.l.b16 %v1030
        %v3593 = vunpack.c.h.b16 %v1030
        %v3594 = vunpack.c.l.b16 %v1031
        %v3595 = vunpack.c.h.b16 %v1031
        %v3596 = vunpack.c.l.b16 %v1032
        %v3597 = vunpack.c.h.b16 %v1032
        %v3598 = vunpack.c.l.b16 %v1033
        %v3599 = vunpack.c.h.b16 %v1033
        %v3600 = vunpack.c.l.b16 %v1034
        %v3601 = vunpack.c.h.b16 %v1034
        %v3602 = vunpack.c.l.b16 %v1035
        %v3603 = vunpack.c.h.b16 %v1035
        %v3604 = vunpack.c.l.b16 %v1036
        %v3605 = vunpack.c.h.b16 %v1036
        %v3606 = vunpack.c.l.b16 %v1037
        %v3607 = vunpack.c.h.b16 %v1037
        %v3608 = vunpack.c.l.b16 %v1038
        %v3609 = vunpack.c.h.b16 %v1038
        %v3610 = vunpack.c.l.b16 %v1039
        %v3611 = vunpack.c.h.b16 %v1039
        %v3612 = vunpack.c.l.b16 %v1040
        %v3613 = vunpack.c.h.b16 %v1040
        %v3614 = vunpack.c.l.b16 %v1041
        %v3615 = vunpack.c.h.b16 %v1041
        %v3616 = vunpack.c.l.b16 %v1042
        %v3617 = vunpack.c.h.b16 %v1042
        %v3618 = vunpack.c.l.b16 %v1043
        %v3619 = vunpack.c.h.b16 %v1043
        %v3620 = vunpack.c.l.b16 %v1044
        %v3621 = vunpack.c.h.b16 %v1044
        %v3622 = vunpack.c.l.b16 %v1045
        %v3623 = vunpack.c.h.b16 %v1045
        %v3624 = vunpack.c.l.b16 %v1046
        %v3625 = vunpack.c.h.b16 %v1046
        %v3626 = vunpack.c.l.b16 %v1047
        %v3627 = vunpack.c.h.b16 %v1047
        %v3628 = vunpack.c.l.b16 %v1048
        %v3629 = vunpack.c.h.b16 %v1048
        %v3630 = vunpack.c.l.b16 %v1049
        %v3631 = vunpack.c.h.b16 %v1049
        %v3632 = vunpack.c.l.b16 %v1050
        %v3633 = vunpack.c.h.b16 %v1050
        %v3634 = vunpack.c.l.b16 %v1051
        %v3635 = vunpack.c.h.b16 %v1051
        %v3636 = vunpack.c.l.b16 %v1052
        %v3637 = vunpack.c.h.b16 %v1052
        %v3638 = vunpack.c.l.b16 %v1053
        %v3639 = vunpack.c.h.b16 %v1053
        %v3640 = vunpack.c.l.b16 %v1054
        %v3641 = vunpack.c.h.b16 %v1054
        %v3642 = vunpack.c.l.b16 %v1055
        %v3643 = vunpack.c.h.b16 %v1055
        %v3644 = vunpack.c.l.b16 %v1056
        %v3645 = vunpack.c.h.b16 %v1056
        %v3646 = vunpack.c.l.b16 %v1057
        %v3647 = vunpack.c.h.b16 %v1057
        %v3648 = vunpack.c.l.b16 %v1058
        %v3649 = vunpack.c.h.b16 %v1058
        %v3650 = vunpack.c.l.b16 %v1059
        %v3651 = vunpack.c.h.b16 %v1059
        %v3652 = vunpack.c.l.b16 %v1060
        %v3653 = vunpack.c.h.b16 %v1060
        %v3654 = vunpack.c.l.b16 %v1061
        %v3655 = vunpack.c.h.b16 %v1061
        %v3656 = vunpack.c.l.b16 %v1062
        %v3657 = vunpack.c.h.b16 %v1062
        %v3658 = vunpack.c.l.b16 %v1063
        %v3659 = vunpack.c.h.b16 %v1063
        %v3660 = vunpack.c.l.b16 %v1064
        %v3661 = vunpack.c.h.b16 %v1064
        %v3662 = vunpack.c.l.b16 %v1065
        %v3663 = vunpack.c.h.b16 %v1065
        %v3664 = vunpack.c.l.b16 %v1066
        %v3665 = vunpack.c.h.b16 %v1066
        %v3666 = vunpack.c.l.b16 %v1067
        %v3667 = vunpack.c.h.b16 %v1067
        %v3668 = vunpack.c.l.b16 %v1068
        %v3669 = vunpack.c.h.b16 %v1068
        %v3670 = vunpack.c.l.b16 %v1069
        %v3671 = vunpack.c.h.b16 %v1069
        %v3672 = vunpack.c.l.b16 %v1070
        %v3673 = vunpack.c.h.b16 %v1070
        %v3674 = vunpack.c.l.b16 %v1071
        %v3675 = vunpack.c.h.b16 %v1071
        %v3676 = vunpack.c.l.b16 %v1072
        %v3677 = vunpack.c.h.b16 %v1072
        %v3678 = vunpack.c.l.b16 %v1073
        %v3679 = vunpack.c.h.b16 %v1073
        %v3680 = vunpack.c.l.b16 %v1074
        %v3681 = vunpack.c.h.b16 %v1074
        %v3682 = vunpack.c.l.b16 %v1075
        %v3683 = vunpack.c.h.b16 %v1075
        %v3684 = vunpack.c.l.b16 %v1076
        %v3685 = vunpack.c.h.b16 %v1076
        %v3686 = vunpack.c.l.b16 %v1077
        %v3687 = vunpack.c.h.b16 %v1077
        %v3688 = vunpack.c.l.b16 %v1078
        %v3689 = vunpack.c.h.b16 %v1078
        %v3690 = vunpack.c.l.b16 %v1079
        %v3691 = vunpack.c.h.b16 %v1079
        %v3692 = vunpack.c.l.b16 %v1080
        %v3693 = vunpack.c.h.b16 %v1080
        %v3694 = vunpack.c.l.b16 %v1081
        %v3695 = vunpack.c.h.b16 %v1081
        %v3696 = vunpack.c.l.b16 %v1082
        %v3697 = vunpack.c.h.b16 %v1082
        %v3698 = vunpack.c.l.b16 %v1083
        %v3699 = vunpack.c.h.b16 %v1083
        %v3700 = vunpack.c.l.b16 %v1084
        %v3701 = vunpack.c.h.b16 %v1084
        %v3702 = vunpack.c.l.b16 %v1085
        %v3703 = vunpack.c.h.b16 %v1085
        %v3704 = vunpack.c.l.b16 %v1086
        %v3705 = vunpack.c.h.b16 %v1086
        %v3706 = vunpack.c.l.b16 %v1087
        %v3707 = vunpack.c.h.b16 %v1087
        %v3708 = vunpack.c.l.b16 %v1088
        %v3709 = vunpack.c.h.b16 %v1088
        %v3710 = vunpack.c.l.b16 %v1089
        %v3711 = vunpack.c.h.b16 %v1089
        %v3712 = vunpack.c.l.b16 %v1090
        %v3713 = vunpack.c.h.b16 %v1090
        %v3714 = vunpack.c.l.b16 %v1091
        %v3715 = vunpack.c.h.b16 %v1091
        %v3716 = vunpack.c.l.b16 %v1092
        %v3717 = vunpack.c.h.b16 %v1092
        %v3718 = vunpack.c.l.b16 %v1093
        %v3719 = vunpack.c.h.b16 %v1093
        %v3720 = vunpack.c.l.b16 %v1094
        %v3721 = vunpack.c.h.b16 %v1094
        %v3722 = vunpack.c.l.b16 %v1095
        %v3723 = vunpack.c.h.b16 %v1095
        %v3724 = vunpack.c.l.b16 %v1096
        %v3725 = vunpack.c.h.b16 %v1096
        %v3726 = vunpack.c.l.b16 %v1097
        %v3727 = vunpack.c.h.b16 %v1097
        %v3728 = vunpack.c.l.b16 %v1098
        %v3729 = vunpack.c.h.b16 %v1098
        %v3730 = vunpack.c.l.b16 %v1099
        %v3731 = vunpack.c.h.b16 %v1099
        %v3732 = vunpack.c.l.b16 %v1100
        %v3733 = vunpack.c.h.b16 %v1100
        %v3734 = vunpack.c.l.b16 %v1101
        %v3735 = vunpack.c.h.b16 %v1101
        %v3736 = vunpack.c.l.b16 %v1102
        %v3737 = vunpack.c.h.b16 %v1102
        %v3738 = vunpack.c.l.b16 %v1103
        %v3739 = vunpack.c.h.b16 %v1103
        %v3740 = vunpack.c.l.b16 %v1104
        %v3741 = vunpack.c.h.b16 %v1104
        %v3742 = vunpack.c.l.b16 %v1105
        %v3743 = vunpack.c.h.b16 %v1105
        %v3744 = vunpack.c.l.b16 %v1106
        %v3745 = vunpack.c.h.b16 %v1106
        %v3746 = vunpack.c.l.b16 %v1107
        %v3747 = vunpack.c.h.b16 %v1107
        %v3748 = vunpack.c.l.b16 %v1108
        %v3749 = vunpack.c.h.b16 %v1108
        %v3750 = vunpack.c.l.b16 %v1109
        %v3751 = vunpack.c.h.b16 %v1109
        %v3752 = vunpack.c.l.b16 %v1110
        %v3753 = vunpack.c.h.b16 %v1110
        %v3754 = vunpack.c.l.b16 %v1111
        %v3755 = vunpack.c.h.b16 %v1111
        %v3756 = vunpack.c.l.b16 %v1112
        %v3757 = vunpack.c.h.b16 %v1112
        %v3758 = vunpack.c.l.b16 %v1113
        %v3759 = vunpack.c.h.b16 %v1113
        %v3760 = vunpack.c.l.b16 %v1114
        %v3761 = vunpack.c.h.b16 %v1114
        %v3762 = vunpack.c.l.b16 %v1115
        %v3763 = vunpack.c.h.b16 %v1115
        %v3764 = vunpack.c.l.b16 %v1116
        %v3765 = vunpack.c.h.b16 %v1116
        %v3766 = vunpack.c.l.b16 %v1117
        %v3767 = vunpack.c.h.b16 %v1117
        %v3768 = vunpack.c.l.b16 %v1118
        %v3769 = vunpack.c.h.b16 %v1118
        %v3770 = vunpack.c.l.b16 %v1119
        %v3771 = vunpack.c.h.b16 %v1119
        %v3772 = vunpack.c.l.b16 %v1120
        %v3773 = vunpack.c.h.b16 %v1120
        %v3774 = vunpack.c.l.b16 %v1121
        %v3775 = vunpack.c.h.b16 %v1121
        %v3776 = vunpack.c.l.b16 %v1122
        %v3777 = vunpack.c.h.b16 %v1122
        %v3778 = vunpack.c.l.b16 %v1123
        %v3779 = vunpack.c.h.b16 %v1123
        %v3780 = vunpack.c.l.b16 %v1124
        %v3781 = vunpack.c.h.b16 %v1124
        %v3782 = vunpack.c.l.b16 %v1125
        %v3783 = vunpack.c.h.b16 %v1125
        %v3784 = vunpack.c.l.b16 %v1126
        %v3785 = vunpack.c.h.b16 %v1126
        %v3786 = vunpack.c.l.b16 %v1127
        %v3787 = vunpack.c.h.b16 %v1127
        %v3788 = vunpack.c.l.b16 %v1128
        %v3789 = vunpack.c.h.b16 %v1128
        %v3790 = vunpack.c.l.b16 %v1129
        %v3791 = vunpack.c.h.b16 %v1129
        %v3792 = vunpack.c.l.b16 %v1130
        %v3793 = vunpack.c.h.b16 %v1130
        %v3794 = vunpack.c.l.b16 %v1131
        %v3795 = vunpack.c.h.b16 %v1131
        %v3796 = vunpack.c.l.b16 %v1132
        %v3797 = vunpack.c.h.b16 %v1132
        %v3798 = vunpack.c.l.b16 %v1133
        %v3799 = vunpack.c.h.b16 %v1133
        %v3800 = vunpack.c.l.b16 %v1134
        %v3801 = vunpack.c.h.b16 %v1134
        %v3802 = vunpack.c.l.b16 %v1135
        %v3803 = vunpack.c.h.b16 %v1135
        %v3804 = vunpack.c.l.b16 %v1136
        %v3805 = vunpack.c.h.b16 %v1136
        %v3806 = vunpack.c.l.b16 %v1137
        %v3807 = vunpack.c.h.b16 %v1137
        %v3808 = vunpack.c.l.b16 %v1138
        %v3809 = vunpack.c.h.b16 %v1138
        %v3810 = vunpack.c.l.b16 %v1139
        %v3811 = vunpack.c.h.b16 %v1139
        %v3812 = vunpack.c.l.b16 %v1140
        %v3813 = vunpack.c.h.b16 %v1140
        %v3814 = vunpack.c.l.b16 %v1141
        %v3815 = vunpack.c.h.b16 %v1141
        %v3816 = vunpack.c.l.b16 %v1142
        %v3817 = vunpack.c.h.b16 %v1142
        %v3818 = vunpack.c.l.b16 %v1143
        %v3819 = vunpack.c.h.b16 %v1143
        %v3820 = vunpack.c.l.b16 %v1144
        %v3821 = vunpack.c.h.b16 %v1144
        %v3822 = vunpack.c.l.b16 %v1145
        %v3823 = vunpack.c.h.b16 %v1145
        %v3824 = vunpack.c.l.b16 %v1146
        %v3825 = vunpack.c.h.b16 %v1146
        %v3826 = vunpack.c.l.b16 %v1147
        %v3827 = vunpack.c.h.b16 %v1147
        %v3828 = vunpack.c.l.b16 %v1148
        %v3829 = vunpack.c.h.b16 %v1148
        %v3830 = vunpack.c.l.b16 %v1149
        %v3831 = vunpack.c.h.b16 %v1149
        %v3832 = vunpack.c.l.b16 %v1150
        %v3833 = vunpack.c.h.b16 %v1150
        %v3834 = vunpack.c.l.b16 %v1151
        %v3835 = vunpack.c.h.b16 %v1151
        %v3836 = vunpack.c.l.b16 %v1152
        %v3837 = vunpack.c.h.b16 %v1152
        %v3838 = vunpack.c.l.b16 %v1153
        %v3839 = vunpack.c.h.b16 %v1153
        %v3840 = vunpack.c.l.b16 %v1154
        %v3841 = vunpack.c.h.b16 %v1154
        %v3842 = vunpack.c.l.b16 %v1155
        %v3843 = vunpack.c.h.b16 %v1155
        %v3844 = vunpack.c.l.b16 %v1156
        %v3845 = vunpack.c.h.b16 %v1156
        %v3846 = vunpack.c.l.b16 %v1157
        %v3847 = vunpack.c.h.b16 %v1157
        %v3848 = vunpack.c.l.b16 %v1158
        %v3849 = vunpack.c.h.b16 %v1158
        %v3850 = vunpack.c.l.b16 %v1159
        %v3851 = vunpack.c.h.b16 %v1159
        %v3852 = vunpack.c.l.b16 %v1160
        %v3853 = vunpack.c.h.b16 %v1160
        %v3854 = vunpack.c.l.b16 %v1161
        %v3855 = vunpack.c.h.b16 %v1161
        %v3856 = vunpack.c.l.b16 %v1162
        %v3857 = vunpack.c.h.b16 %v1162
        %v3858 = vunpack.c.l.b16 %v1163
        %v3859 = vunpack.c.h.b16 %v1163
        %v3860 = vunpack.c.l.b16 %v1164
        %v3861 = vunpack.c.h.b16 %v1164
        %v3862 = vunpack.c.l.b16 %v1165
        %v3863 = vunpack.c.h.b16 %v1165
        %v3864 = vunpack.c.l.b16 %v1166
        %v3865 = vunpack.c.h.b16 %v1166
        %v3866 = vunpack.c.l.b16 %v1167
        %v3867 = vunpack.c.h.b16 %v1167
        %v3868 = vunpack.c.l.b16 %v1168
        %v3869 = vunpack.c.h.b16 %v1168
        %v3870 = vunpack.c.l.b16 %v1169
        %v3871 = vunpack.c.h.b16 %v1169
        %v3872 = vunpack.c.l.b16 %v1170
        %v3873 = vunpack.c.h.b16 %v1170
        %v3874 = vunpack.c.l.b16 %v1171
        %v3875 = vunpack.c.h.b16 %v1171
        %v3876 = vunpack.c.l.b16 %v1172
        %v3877 = vunpack.c.h.b16 %v1172
        %v3878 = vunpack.c.l.b16 %v1173
        %v3879 = vunpack.c.h.b16 %v1173
        %v3880 = vunpack.c.l.b16 %v1174
        %v3881 = vunpack.c.h.b16 %v1174
        %v3882 = vunpack.c.l.b16 %v1175
        %v3883 = vunpack.c.h.b16 %v1175
        %v3884 = vunpack.c.l.b16 %v1176
        %v3885 = vunpack.c.h.b16 %v1176
        %v3886 = vunpack.c.l.b16 %v1177
        %v3887 = vunpack.c.h.b16 %v1177
        %v3888 = vunpack.c.l.b16 %v1178
        %v3889 = vunpack.c.h.b16 %v1178
        %v3890 = vunpack.c.l.b16 %v1179
        %v3891 = vunpack.c.h.b16 %v1179
        %v3892 = vunpack.c.l.b16 %v1180
        %v3893 = vunpack.c.h.b16 %v1180
        %v3894 = vunpack.c.l.b16 %v1181
        %v3895 = vunpack.c.h.b16 %v1181
        %v3896 = vunpack.c.l.b16 %v1182
        %v3897 = vunpack.c.h.b16 %v1182
        %v3898 = vunpack.c.l.b16 %v1183
        %v3899 = vunpack.c.h.b16 %v1183
        %v3900 = vunpack.c.l.b16 %v1184
        %v3901 = vunpack.c.h.b16 %v1184
        %v3902 = vunpack.c.l.b16 %v1185
        %v3903 = vunpack.c.h.b16 %v1185
        %v3904 = vunpack.c.l.b16 %v1186
        %v3905 = vunpack.c.h.b16 %v1186
        %v3906 = vunpack.c.l.b16 %v1187
        %v3907 = vunpack.c.h.b16 %v1187
        %v3908 = vunpack.c.l.b16 %v1188
        %v3909 = vunpack.c.h.b16 %v1188
        %v3910 = vunpack.c.l.b16 %v1189
        %v3911 = vunpack.c.h.b16 %v1189
        %v3912 = vunpack.c.l.b16 %v1190
        %v3913 = vunpack.c.h.b16 %v1190
        %v3914 = vunpack.c.l.b16 %v1191
        %v3915 = vunpack.c.h.b16 %v1191
        %v3916 = vunpack.c.l.b16 %v1192
        %v3917 = vunpack.c.h.b16 %v1192
        %v3918 = vunpack.c.l.b16 %v1193
        %v3919 = vunpack.c.h.b16 %v1193
        %v3920 = vunpack.c.l.b16 %v1194
        %v3921 = vunpack.c.h.b16 %v1194
        %v3922 = vunpack.c.l.b16 %v1195
        %v3923 = vunpack.c.h.b16 %v1195
        %v3924 = vunpack.c.l.b16 %v1196
        %v3925 = vunpack.c.h.b16 %v1196
        %v3926 = vunpack.c.l.b16 %v1197
        %v3927 = vunpack.c.h.b16 %v1197
        %v3928 = vunpack.c.l.b16 %v1198
        %v3929 = vunpack.c.h.b16 %v1198
        %v3930 = vunpack.c.l.b16 %v1199
        %v3931 = vunpack.c.h.b16 %v1199
        %v3932 = vunpack.c.l.b16 %v1200
        %v3933 = vunpack.c.h.b16 %v1200
        %v3934 = vunpack.c.l.b16 %v1201
        %v3935 = vunpack.c.h.b16 %v1201
        %v3936 = vunpack.c.l.b16 %v1202
        %v3937 = vunpack.c.h.b16 %v1202
        %v3938 = vunpack.c.l.b16 %v1203
        %v3939 = vunpack.c.h.b16 %v1203
        %v3940 = vunpack.c.l.b16 %v1204
        %v3941 = vunpack.c.h.b16 %v1204
        %v3942 = vunpack.c.l.b16 %v1205
        %v3943 = vunpack.c.h.b16 %v1205
        %v3944 = vunpack.c.l.b16 %v1206
        %v3945 = vunpack.c.h.b16 %v1206
        %v3946 = vunpack.c.l.b16 %v1207
        %v3947 = vunpack.c.h.b16 %v1207
        %v3948 = vunpack.c.l.b16 %v1208
        %v3949 = vunpack.c.h.b16 %v1208
        %v3950 = vunpack.c.l.b16 %v1209
        %v3951 = vunpack.c.h.b16 %v1209
        %v3952 = vunpack.c.l.b16 %v1210
        %v3953 = vunpack.c.h.b16 %v1210
        %v3954 = vunpack.c.l.b16 %v1211
        %v3955 = vunpack.c.h.b16 %v1211
        %v3956 = vunpack.c.l.b16 %v1212
        %v3957 = vunpack.c.h.b16 %v1212
        %v3958 = vunpack.c.l.b16 %v1213
        %v3959 = vunpack.c.h.b16 %v1213
        %v3960 = vunpack.c.l.b16 %v1214
        %v3961 = vunpack.c.h.b16 %v1214
        %v3962 = vunpack.c.l.b16 %v1215
        %v3963 = vunpack.c.h.b16 %v1215
        %v3964 = vunpack.c.l.b16 %v1216
        %v3965 = vunpack.c.h.b16 %v1216
        %v3966 = vunpack.c.l.b16 %v1217
        %v3967 = vunpack.c.h.b16 %v1217
        %v3968 = vunpack.c.l.b16 %v1218
        %v3969 = vunpack.c.h.b16 %v1218
        %v3970 = vunpack.c.l.b16 %v1219
        %v3971 = vunpack.c.h.b16 %v1219
        %v3972 = vunpack.c.l.b16 %v1220
        %v3973 = vunpack.c.h.b16 %v1220
        %v3974 = vunpack.c.l.b16 %v1221
        %v3975 = vunpack.c.h.b16 %v1221
        %v3976 = vunpack.c.l.b16 %v1222
        %v3977 = vunpack.c.h.b16 %v1222
        %v3978 = vunpack.c.l.b16 %v1223
        %v3979 = vunpack.c.h.b16 %v1223
        %v3980 = vunpack.c.l.b16 %v1224
        %v3981 = vunpack.c.h.b16 %v1224
        %v3982 = vunpack.c.l.b16 %v1225
        %v3983 = vunpack.c.h.b16 %v1225
        %v3984 = vunpack.c.l.b16 %v1226
        %v3985 = vunpack.c.h.b16 %v1226
        %v3986 = vunpack.c.l.b16 %v1227
        %v3987 = vunpack.c.h.b16 %v1227
        %v3988 = vunpack.c.l.b16 %v1228
        %v3989 = vunpack.c.h.b16 %v1228
        %v3990 = vunpack.c.l.b16 %v1229
        %v3991 = vunpack.c.h.b16 %v1229
        %v3992 = vunpack.c.l.b16 %v1230
        %v3993 = vunpack.c.h.b16 %v1230
        %v3994 = vunpack.c.l.b16 %v1231
        %v3995 = vunpack.c.h.b16 %v1231
        %v3996 = vunpack.c.l.b16 %v1232
        %v3997 = vunpack.c.h.b16 %v1232
        %v3998 = vunpack.c.l.b16 %v1233
        %v3999 = vunpack.c.h.b16 %v1233
        %v4000 = vunpack.c.l.b16 %v1234
        %v4001 = vunpack.c.h.b16 %v1234
        %v4002 = vunpack.c.l.b16 %v1235
        %v4003 = vunpack.c.h.b16 %v1235
        %v4004 = vunpack.c.l.b16 %v1236
        %v4005 = vunpack.c.h.b16 %v1236
        %v4006 = vunpack.c.l.b16 %v1237
        %v4007 = vunpack.c.h.b16 %v1237
        %v4008 = vunpack.c.l.b16 %v1238
        %v4009 = vunpack.c.h.b16 %v1238
        %v4010 = vunpack.c.l.b16 %v1239
        %v4011 = vunpack.c.h.b16 %v1239
        %v4012 = vunpack.c.l.b16 %v1240
        %v4013 = vunpack.c.h.b16 %v1240
        %v4014 = vunpack.c.l.b16 %v1241
        %v4015 = vunpack.c.h.b16 %v1241
        %v4016 = vunpack.c.l.b16 %v1242
        %v4017 = vunpack.c.h.b16 %v1242
        %v4018 = vunpack.c.l.b16 %v1243
        %v4019 = vunpack.c.h.b16 %v1243
        %v4020 = vunpack.c.l.b16 %v1244
        %v4021 = vunpack.c.h.b16 %v1244
        %v4022 = vunpack.c.l.b16 %v1245
        %v4023 = vunpack.c.h.b16 %v1245
        %v4024 = vunpack.c.l.b16 %v1246
        %v4025 = vunpack.c.h.b16 %v1246
        %v4026 = vunpack.c.l.b16 %v1247
        %v4027 = vunpack.c.h.b16 %v1247
        %v4028 = vunpack.c.l.b16 %v1248
        %v4029 = vunpack.c.h.b16 %v1248
        %v4030 = vunpack.c.l.b16 %v1249
        %v4031 = vunpack.c.h.b16 %v1249
        %v4032 = vunpack.c.l.b16 %v1250
        %v4033 = vunpack.c.h.b16 %v1250
        %v4034 = vunpack.c.l.b16 %v1251
        %v4035 = vunpack.c.h.b16 %v1251
        %v4036 = vunpack.c.l.b16 %v1252
        %v4037 = vunpack.c.h.b16 %v1252
        %v4038 = vunpack.c.l.b16 %v1253
        %v4039 = vunpack.c.h.b16 %v1253
        %v4040 = vunpack.c.l.b16 %v1254
        %v4041 = vunpack.c.h.b16 %v1254
        %v4042 = vunpack.c.l.b16 %v1255
        %v4043 = vunpack.c.h.b16 %v1255
        %v4044 = vunpack.c.l.b16 %v1256
        %v4045 = vunpack.c.h.b16 %v1256
        %v4046 = vunpack.c.l.b16 %v1257
        %v4047 = vunpack.c.h.b16 %v1257
        %v4048 = vunpack.c.l.b16 %v1258
        %v4049 = vunpack.c.h.b16 %v1258
        %v4050 = vunpack.c.l.b16 %v1259
        %v4051 = vunpack.c.h.b16 %v1259
        %v4052 = vunpack.c.l.b16 %v1260
        %v4053 = vunpack.c.h.b16 %v1260
        %v4054 = vunpack.c.l.b16 %v1261
        %v4055 = vunpack.c.h.b16 %v1261
        %v4056 = vunpack.c.l.b16 %v1262
        %v4057 = vunpack.c.h.b16 %v1262
        %v4058 = vunpack.c.l.b16 %v1263
        %v4059 = vunpack.c.h.b16 %v1263
        %v4060 = vunpack.c.l.b16 %v1264
        %v4061 = vunpack.c.h.b16 %v1264
        %v4062 = vunpack.c.l.b16 %v1265
        %v4063 = vunpack.c.h.b16 %v1265
        %v4064 = vunpack.c.l.b16 %v1266
        %v4065 = vunpack.c.h.b16 %v1266
        %v4066 = vunpack.c.l.b16 %v1267
        %v4067 = vunpack.c.h.b16 %v1267
        %v4068 = vunpack.c.l.b16 %v1268
        %v4069 = vunpack.c.h.b16 %v1268
        %v4070 = vunpack.c.l.b16 %v1269
        %v4071 = vunpack.c.h.b16 %v1269
        %v4072 = vunpack.c.l.b16 %v1270
        %v4073 = vunpack.c.h.b16 %v1270
        %v4074 = vunpack.c.l.b16 %v1271
        %v4075 = vunpack.c.h.b16 %v1271
        %v4076 = vunpack.c.l.b16 %v1272
        %v4077 = vunpack.c.h.b16 %v1272
        %v4078 = vunpack.c.l.b16 %v1273
        %v4079 = vunpack.c.h.b16 %v1273
        %v4080 = vunpack.c.l.b16 %v1274
        %v4081 = vunpack.c.h.b16 %v1274
        %v4082 = vunpack.c.l.b16 %v1275
        %v4083 = vunpack.c.h.b16 %v1275
        %v4084 = vunpack.c.l.b16 %v1276
        %v4085 = vunpack.c.h.b16 %v1276
        %v4086 = vunpack.c.l.b16 %v1277
        %v4087 = vunpack.c.h.b16 %v1277
        %v4088 = vunpack.c.l.b16 %v1278
        %v4089 = vunpack.c.h.b16 %v1278
        %v4090 = vunpack.c.l.b16 %v1279
        %v4091 = vunpack.c.h.b16 %v1279
        %v4092 = vunpack.c.l.b16 %v1280
        %v4093 = vunpack.c.h.b16 %v1280
        %v4094 = vunpack.c.l.b16 %v1281
        %v4095 = vunpack.c.h.b16 %v1281
        %v4096 = vunpack.c.l.b16 %v1282
        %v4097 = vunpack.c.h.b16 %v1282
        %v4098 = vunpack.c.l.b16 %v1283
        %v4099 = vunpack.c.h.b16 %v1283
        %v4100 = vunpack.c.l.b16 %v1284
        %v4101 = vunpack.c.h.b16 %v1284
        %v4102 = vunpack.c.l.b16 %v1285
        %v4103 = vunpack.c.h.b16 %v1285
        %v4104 = vunpack.c.l.b16 %v1286
        %v4105 = vunpack.c.h.b16 %v1286
        %v4106 = vunpack.c.l.b16 %v1287
        %v4107 = vunpack.c.h.b16 %v1287
        %v4108 = vunpack.c.l.b16 %v1288
        %v4109 = vunpack.c.h.b16 %v1288
        %v4110 = vunpack.c.l.b16 %v1289
        %v4111 = vunpack.c.h.b16 %v1289
        %v4112 = vunpack.c.l.b16 %v1290
        %v4113 = vunpack.c.h.b16 %v1290
        %v4114 = vunpack.c.l.b16 %v1291
        %v4115 = vunpack.c.h.b16 %v1291
        %v4116 = vunpack.c.l.b16 %v1292
        %v4117 = vunpack.c.h.b16 %v1292
        %v4118 = vunpack.c.l.b16 %v1293
        %v4119 = vunpack.c.h.b16 %v1293
        %v4120 = vunpack.c.l.b16 %v1294
        %v4121 = vunpack.c.h.b16 %v1294
        %v4122 = vunpack.c.l.b16 %v1295
        %v4123 = vunpack.c.h.b16 %v1295
        %v4124 = vunpack.c.l.b16 %v1296
        %v4125 = vunpack.c.h.b16 %v1296
        %v4126 = vunpack.c.l.b16 %v1297
        %v4127 = vunpack.c.h.b16 %v1297
        %v4128 = vunpack.c.l.b16 %v1298
        %v4129 = vunpack.c.h.b16 %v1298
        %v4130 = vunpack.c.l.b16 %v1299
        %v4131 = vunpack.c.h.b16 %v1299
        %v4132 = vunpack.c.l.b16 %v1300
        %v4133 = vunpack.c.h.b16 %v1300
        %v4134 = vunpack.c.l.b16 %v1301
        %v4135 = vunpack.c.h.b16 %v1301
        %v4136 = vunpack.c.l.b16 %v1302
        %v4137 = vunpack.c.h.b16 %v1302
        %v4138 = vunpack.c.l.b16 %v1303
        %v4139 = vunpack.c.h.b16 %v1303
        %v4140 = vunpack.c.l.b16 %v1304
        %v4141 = vunpack.c.h.b16 %v1304
        %v4142 = vunpack.c.l.b16 %v1305
        %v4143 = vunpack.c.h.b16 %v1305
        %v4144 = vunpack.c.l.b16 %v1306
        %v4145 = vunpack.c.h.b16 %v1306
        %v4146 = vunpack.c.l.b16 %v1307
        %v4147 = vunpack.c.h.b16 %v1307
        %v4148 = vunpack.c.l.b16 %v1308
        %v4149 = vunpack.c.h.b16 %v1308
        %v4150 = vunpack.c.l.b16 %v1309
        %v4151 = vunpack.c.h.b16 %v1309
        %v4152 = vunpack.c.l.b16 %v1310
        %v4153 = vunpack.c.h.b16 %v1310
        %v4154 = vunpack.c.l.b16 %v1311
        %v4155 = vunpack.c.h.b16 %v1311
        %v4156 = vunpack.c.l.b16 %v1312
        %v4157 = vunpack.c.h.b16 %v1312
        %v4158 = vunpack.c.l.b16 %v1313
        %v4159 = vunpack.c.h.b16 %v1313
        %v4160 = vunpack.c.l.b16 %v1314
        %v4161 = vunpack.c.h.b16 %v1314
        %v4162 = vunpack.c.l.b16 %v1315
        %v4163 = vunpack.c.h.b16 %v1315
        %v4164 = vunpack.c.l.b16 %v1316
        %v4165 = vunpack.c.h.b16 %v1316
        %v4166 = vunpack.c.l.b16 %v1317
        %v4167 = vunpack.c.h.b16 %v1317
        %v4168 = vunpack.c.l.b16 %v1318
        %v4169 = vunpack.c.h.b16 %v1318
        %v4170 = vunpack.c.l.b16 %v1319
        %v4171 = vunpack.c.h.b16 %v1319
        %v4172 = vunpack.c.l.b16 %v1320
        %v4173 = vunpack.c.h.b16 %v1320
        %v4174 = vunpack.c.l.b16 %v1321
        %v4175 = vunpack.c.h.b16 %v1321
        %v4176 = vunpack.c.l.b16 %v1322
        %v4177 = vunpack.c.h.b16 %v1322
        %v4178 = vunpack.c.l.b16 %v1323
        %v4179 = vunpack.c.h.b16 %v1323
        %v4180 = vunpack.c.l.b16 %v1324
        %v4181 = vunpack.c.h.b16 %v1324
        %v4182 = vunpack.c.l.b16 %v1325
        %v4183 = vunpack.c.h.b16 %v1325
        %v4184 = vunpack.c.l.b16 %v1326
        %v4185 = vunpack.c.h.b16 %v1326
        %v4186 = vunpack.c.l.b16 %v1327
        %v4187 = vunpack.c.h.b16 %v1327
        %v4188 = vunpack.c.l.b16 %v1328
        %v4189 = vunpack.c.h.b16 %v1328
        %v4190 = vunpack.c.l.b16 %v1329
        %v4191 = vunpack.c.h.b16 %v1329
        %v4192 = vunpack.c.l.b16 %v1330
        %v4193 = vunpack.c.h.b16 %v1330
        %v4194 = vunpack.c.l.b16 %v1331
        %v4195 = vunpack.c.h.b16 %v1331
        %v4196 = vunpack.c.l.b16 %v1332
        %v4197 = vunpack.c.h.b16 %v1332
        %v4198 = vunpack.c.l.b16 %v1333
        %v4199 = vunpack.c.h.b16 %v1333
        %v4200 = vunpack.c.l.b16 %v1334
        %v4201 = vunpack.c.h.b16 %v1334
        %v4202 = vunpack.c.l.b16 %v1335
        %v4203 = vunpack.c.h.b16 %v1335
        %v4204 = vunpack.c.l.b16 %v1336
        %v4205 = vunpack.c.h.b16 %v1336
        %v4206 = vunpack.c.l.b16 %v1337
        %v4207 = vunpack.c.h.b16 %v1337
        %v4208 = vunpack.c.l.b16 %v1338
        %v4209 = vunpack.c.h.b16 %v1338
        %v4210 = vunpack.c.l.b16 %v1339
        %v4211 = vunpack.c.h.b16 %v1339
        %v4212 = vunpack.c.l.b16 %v1340
        %v4213 = vunpack.c.h.b16 %v1340
        %v4214 = vunpack.c.l.b16 %v1341
        %v4215 = vunpack.c.h.b16 %v1341
        %v4216 = vunpack.c.l.b16 %v1342
        %v4217 = vunpack.c.h.b16 %v1342
        %v4218 = vunpack.c.l.b16 %v1343
        %v4219 = vunpack.c.h.b16 %v1343
        %v4220 = vunpack.c.l.b16 %v1344
        %v4221 = vunpack.c.h.b16 %v1344
        %v4222 = vunpack.c.l.b16 %v1345
        %v4223 = vunpack.c.h.b16 %v1345
        %v4224 = vunpack.c.l.b16 %v1346
        %v4225 = vunpack.c.h.b16 %v1346
        %v4226 = vunpack.c.l.b16 %v1347
        %v4227 = vunpack.c.h.b16 %v1347
        %v4228 = vunpack.c.l.b16 %v1348
        %v4229 = vunpack.c.h.b16 %v1348
        %v4230 = vunpack.c.l.b16 %v1349
        %v4231 = vunpack.c.h.b16 %v1349
        %v4232 = vunpack.c.l.b16 %v1350
        %v4233 = vunpack.c.h.b16 %v1350
        %v4234 = vunpack.c.l.b16 %v1351
        %v4235 = vunpack.c.h.b16 %v1351
        %v4236 = vunpack.c.l.b16 %v1352
        %v4237 = vunpack.c.h.b16 %v1352
        %v4238 = vunpack.c.l.b16 %v1353
        %v4239 = vunpack.c.h.b16 %v1353
        %v4240 = vunpack.c.l.b16 %v1354
        %v4241 = vunpack.c.h.b16 %v1354
        %v4242 = vunpack.c.l.b16 %v1355
        %v4243 = vunpack.c.h.b16 %v1355
        %v4244 = vunpack.c.l.b16 %v1356
        %v4245 = vunpack.c.h.b16 %v1356
        %v4246 = vunpack.c.l.b16 %v1357
        %v4247 = vunpack.c.h.b16 %v1357
        %v4248 = vunpack.c.l.b16 %v1358
        %v4249 = vunpack.c.h.b16 %v1358
        %v4250 = vunpack.c.l.b16 %v1359
        %v4251 = vunpack.c.h.b16 %v1359
        %v4252 = vunpack.c.l.b16 %v1360
        %v4253 = vunpack.c.h.b16 %v1360
        %v4254 = vunpack.c.l.b16 %v1361
        %v4255 = vunpack.c.h.b16 %v1361
        %v4256 = vunpack.c.l.b16 %v1362
        %v4257 = vunpack.c.h.b16 %v1362
        %v4258 = vunpack.c.l.b16 %v1363
        %v4259 = vunpack.c.h.b16 %v1363
        %v4260 = vunpack.c.l.b16 %v1364
        %v4261 = vunpack.c.h.b16 %v1364
        %v4262 = vunpack.c.l.b16 %v1365
        %v4263 = vunpack.c.h.b16 %v1365
        %v4264 = vunpack.c.l.b16 %v1366
        %v4265 = vunpack.c.h.b16 %v1366
        %v4266 = vunpack.c.l.b16 %v1367
        %v4267 = vunpack.c.h.b16 %v1367
        %v4268 = vunpack.c.l.b16 %v1368
        %v4269 = vunpack.c.h.b16 %v1368
        %v4270 = vunpack.c.l.b16 %v1369
        %v4271 = vunpack.c.h.b16 %v1369
        %v4272 = vunpack.c.l.b16 %v1370
        %v4273 = vunpack.c.h.b16 %v1370
        %v4274 = vunpack.c.l.b16 %v1371
        %v4275 = vunpack.c.h.b16 %v1371
        %v4276 = vunpack.c.l.b16 %v1372
        %v4277 = vunpack.c.h.b16 %v1372
        %v4278 = vunpack.c.l.b16 %v1373
        %v4279 = vunpack.c.h.b16 %v1373
        %v4280 = vunpack.c.l.b16 %v1374
        %v4281 = vunpack.c.h.b16 %v1374
        %v4282 = vunpack.c.l.b16 %v1375
        %v4283 = vunpack.c.h.b16 %v1375
        %v4284 = vunpack.c.l.b16 %v1376
        %v4285 = vunpack.c.h.b16 %v1376
        %v4286 = vunpack.c.l.b16 %v1377
        %v4287 = vunpack.c.h.b16 %v1377
        %v4288 = vunpack.c.l.b16 %v1378
        %v4289 = vunpack.c.h.b16 %v1378
        %v4290 = vunpack.c.l.b16 %v1379
        %v4291 = vunpack.c.h.b16 %v1379
        %v4292 = vunpack.c.l.b16 %v1380
        %v4293 = vunpack.c.h.b16 %v1380
        %v4294 = vunpack.c.l.b16 %v1381
        %v4295 = vunpack.c.h.b16 %v1381
        %v4296 = vunpack.c.l.b16 %v1382
        %v4297 = vunpack.c.h.b16 %v1382
        %v4298 = vunpack.c.l.b16 %v1383
        %v4299 = vunpack.c.h.b16 %v1383
        %v4300 = vunpack.c.l.b16 %v1384
        %v4301 = vunpack.c.h.b16 %v1384
        %v4302 = vunpack.c.l.b16 %v1385
        %v4303 = vunpack.c.h.b16 %v1385
        %v4304 = vunpack.c.l.b16 %v1386
        %v4305 = vunpack.c.h.b16 %v1386
        %v4306 = vunpack.c.l.b16 %v1387
        %v4307 = vunpack.c.h.b16 %v1387
        %v4308 = vunpack.c.l.b16 %v1388
        %v4309 = vunpack.c.h.b16 %v1388
        %v4310 = vunpack.c.l.b16 %v1389
        %v4311 = vunpack.c.h.b16 %v1389
        %v4312 = vunpack.c.l.b16 %v1390
        %v4313 = vunpack.c.h.b16 %v1390
        %v4314 = vunpack.c.l.b16 %v1391
        %v4315 = vunpack.c.h.b16 %v1391
        %v4316 = vunpack.c.l.b16 %v1392
        %v4317 = vunpack.c.h.b16 %v1392
        %v4318 = vunpack.c.l.b16 %v1393
        %v4319 = vunpack.c.h.b16 %v1393
        %v4320 = vunpack.c.l.b16 %v1394
        %v4321 = vunpack.c.h.b16 %v1394
        %v4322 = vunpack.c.l.b16 %v1395
        %v4323 = vunpack.c.h.b16 %v1395
        %v4324 = vunpack.c.l.b16 %v1396
        %v4325 = vunpack.c.h.b16 %v1396
        %v4326 = vunpack.c.l.b16 %v1397
        %v4327 = vunpack.c.h.b16 %v1397
        %v4328 = vunpack.c.l.b16 %v1398
        %v4329 = vunpack.c.h.b16 %v1398
        %v4330 = vunpack.c.l.b16 %v1399
        %v4331 = vunpack.c.h.b16 %v1399
        %v4332 = vunpack.c.l.b16 %v1400
        %v4333 = vunpack.c.h.b16 %v1400
        %v4334 = vunpack.c.l.b16 %v1401
        %v4335 = vunpack.c.h.b16 %v1401
        %v4336 = vunpack.c.l.b16 %v1402
        %v4337 = vunpack.c.h.b16 %v1402
        %v4338 = vunpack.c.l.b16 %v1403
        %v4339 = vunpack.c.h.b16 %v1403
        %v4340 = vunpack.c.l.b16 %v1404
        %v4341 = vunpack.c.h.b16 %v1404
        %v4342 = vunpack.c.l.b16 %v1405
        %v4343 = vunpack.c.h.b16 %v1405
        %v4344 = vunpack.c.l.b16 %v1406
        %v4345 = vunpack.c.h.b16 %v1406
        %v4346 = vunpack.c.l.b16 %v1407
        %v4347 = vunpack.c.h.b16 %v1407
        %v4348 = vunpack.c.l.b16 %v1408
        %v4349 = vunpack.c.h.b16 %v1408
        %v4350 = vunpack.c.l.b16 %v1409
        %v4351 = vunpack.c.h.b16 %v1409
        %v4352 = vunpack.c.l.b16 %v1410
        %v4353 = vunpack.c.h.b16 %v1410
        %v4354 = vunpack.c.l.b16 %v1411
        %v4355 = vunpack.c.h.b16 %v1411
        %v4356 = vunpack.c.l.b16 %v1412
        %v4357 = vunpack.c.h.b16 %v1412
        %v4358 = vunpack.c.l.b16 %v1413
        %v4359 = vunpack.c.h.b16 %v1413
        %v4360 = vunpack.c.l.b16 %v1414
        %v4361 = vunpack.c.h.b16 %v1414
        %v4362 = vunpack.c.l.b16 %v1415
        %v4363 = vunpack.c.h.b16 %v1415
        %v4364 = vunpack.c.l.b16 %v1416
        %v4365 = vunpack.c.h.b16 %v1416
        %v4366 = vunpack.c.l.b16 %v1417
        %v4367 = vunpack.c.h.b16 %v1417
        %v4368 = vunpack.c.l.b16 %v1418
        %v4369 = vunpack.c.h.b16 %v1418
        %v4370 = vunpack.c.l.b16 %v1419
        %v4371 = vunpack.c.h.b16 %v1419
        %v4372 = vunpack.c.l.b16 %v1420
        %v4373 = vunpack.c.h.b16 %v1420
        %v4374 = vunpack.c.l.b16 %v1421
        %v4375 = vunpack.c.h.b16 %v1421
        %v4376 = vunpack.c.l.b16 %v1422
        %v4377 = vunpack.c.h.b16 %v1422
        %v4378 = vunpack.c.l.b16 %v1423
        %v4379 = vunpack.c.h.b16 %v1423
        %v4380 = vunpack.c.l.b16 %v1424
        %v4381 = vunpack.c.h.b16 %v1424
        %v4382 = vunpack.c.l.b16 %v1425
        %v4383 = vunpack.c.h.b16 %v1425
        %v4384 = vunpack.c.l.b16 %v1426
        %v4385 = vunpack.c.h.b16 %v1426
        %v4386 = vunpack.c.l.b16 %v1427
        %v4387 = vunpack.c.h.b16 %v1427
        %v4388 = vunpack.c.l.b16 %v1428
        %v4389 = vunpack.c.h.b16 %v1428
        %v4390 = vunpack.c.l.b16 %v1429
        %v4391 = vunpack.c.h.b16 %v1429
        %v4392 = vunpack.c.l.b16 %v1430
        %v4393 = vunpack.c.h.b16 %v1430
        %v4394 = vunpack.c.l.b16 %v1431
        %v4395 = vunpack.c.h.b16 %v1431
        %v4396 = vunpack.c.l.b16 %v1432
        %v4397 = vunpack.c.h.b16 %v1432
        %v4398 = vunpack.c.l.b16 %v1433
        %v4399 = vunpack.c.h.b16 %v1433
        %v4400 = vunpack.c.l.b16 %v1434
        %v4401 = vunpack.c.h.b16 %v1434
        %v4402 = vunpack.c.l.b16 %v1435
        %v4403 = vunpack.c.h.b16 %v1435
        %v4404 = vunpack.c.l.b16 %v1436
        %v4405 = vunpack.c.h.b16 %v1436
        %v4406 = vunpack.c.l.b16 %v1437
        %v4407 = vunpack.c.h.b16 %v1437
        %v4408 = vunpack.c.l.b16 %v1438
        %v4409 = vunpack.c.h.b16 %v1438
        %v4410 = vunpack.c.l.b16 %v1439
        %v4411 = vunpack.c.h.b16 %v1439
        %v4412 = vunpack.c.l.b16 %v1440
        %v4413 = vunpack.c.h.b16 %v1440
        %v4414 = vunpack.c.l.b16 %v1441
        %v4415 = vunpack.c.h.b16 %v1441
        %v4416 = vunpack.c.l.b16 %v1442
        %v4417 = vunpack.c.h.b16 %v1442
        %v4418 = vunpack.c.l.b16 %v1443
        %v4419 = vunpack.c.h.b16 %v1443
        %v4420 = vunpack.c.l.b16 %v1444
        %v4421 = vunpack.c.h.b16 %v1444
        %v4422 = vunpack.c.l.b16 %v1445
        %v4423 = vunpack.c.h.b16 %v1445
        %v4424 = vunpack.c.l.b16 %v1446
        %v4425 = vunpack.c.h.b16 %v1446
        %v4426 = vunpack.c.l.b16 %v1447
        %v4427 = vunpack.c.h.b16 %v1447
        %v4428 = vunpack.c.l.b16 %v1448
        %v4429 = vunpack.c.h.b16 %v1448
        %v4430 = vunpack.c.l.b16 %v1449
        %v4431 = vunpack.c.h.b16 %v1449
        %v4432 = vunpack.c.l.b16 %v1450
        %v4433 = vunpack.c.h.b16 %v1450
        %v4434 = vunpack.c.l.b16 %v1451
        %v4435 = vunpack.c.h.b16 %v1451
        %v4436 = vunpack.c.l.b16 %v1452
        %v4437 = vunpack.c.h.b16 %v1452
        %v4438 = vunpack.c.l.b16 %v1453
        %v4439 = vunpack.c.h.b16 %v1453
        %v4440 = vunpack.c.l.b16 %v1454
        %v4441 = vunpack.c.h.b16 %v1454
        %v4442 = vunpack.c.l.b16 %v1455
        %v4443 = vunpack.c.h.b16 %v1455
        %v4444 = vunpack.c.l.b16 %v1456
        %v4445 = vunpack.c.h.b16 %v1456
        %v4446 = vunpack.c.l.b16 %v1457
        %v4447 = vunpack.c.h.b16 %v1457
        %v4448 = vunpack.c.l.b16 %v1458
        %v4449 = vunpack.c.h.b16 %v1458
        %v4450 = vunpack.c.l.b16 %v1459
        %v4451 = vunpack.c.h.b16 %v1459
        %v4452 = vunpack.c.l.b16 %v1460
        %v4453 = vunpack.c.h.b16 %v1460
        %v4454 = vunpack.c.l.b16 %v1461
        %v4455 = vunpack.c.h.b16 %v1461
        %v4456 = vunpack.c.l.b16 %v1462
        %v4457 = vunpack.c.h.b16 %v1462
        %v4458 = vunpack.c.l.b16 %v1463
        %v4459 = vunpack.c.h.b16 %v1463
        %v4460 = vunpack.c.l.b16 %v1464
        %v4461 = vunpack.c.h.b16 %v1464
        %v4462 = vunpack.c.l.b16 %v1465
        %v4463 = vunpack.c.h.b16 %v1465
        %v4464 = vunpack.c.l.b16 %v1466
        %v4465 = vunpack.c.h.b16 %v1466
        %v4466 = vunpack.c.l.b16 %v1467
        %v4467 = vunpack.c.h.b16 %v1467
        %v4468 = vunpack.c.l.b16 %v1468
        %v4469 = vunpack.c.h.b16 %v1468
        %v4470 = vunpack.c.l.b16 %v1469
        %v4471 = vunpack.c.h.b16 %v1469
        %v4472 = vunpack.c.l.b16 %v1470
        %v4473 = vunpack.c.h.b16 %v1470
        %v4474 = vunpack.c.l.b16 %v1471
        %v4475 = vunpack.c.h.b16 %v1471
        %v4476 = vunpack.c.l.b16 %v1472
        %v4477 = vunpack.c.h.b16 %v1472
        %v4478 = vunpack.c.l.b16 %v1473
        %v4479 = vunpack.c.h.b16 %v1473
        %v4480 = vunpack.c.l.b16 %v1474
        %v4481 = vunpack.c.h.b16 %v1474
        %v4482 = vunpack.c.l.b16 %v1475
        %v4483 = vunpack.c.h.b16 %v1475
        %v4484 = vunpack.c.l.b16 %v1476
        %v4485 = vunpack.c.h.b16 %v1476
        %v4486 = vunpack.c.l.b16 %v1477
        %v4487 = vunpack.c.h.b16 %v1477
        %v4488 = vunpack.c.l.b16 %v1478
        %v4489 = vunpack.c.h.b16 %v1478
        %v4490 = vunpack.c.l.b16 %v1479
        %v4491 = vunpack.c.h.b16 %v1479
        %v4492 = vunpack.c.l.b16 %v1480
        %v4493 = vunpack.c.h.b16 %v1480
        %v4494 = vunpack.c.l.b16 %v1481
        %v4495 = vunpack.c.h.b16 %v1481
        %v4496 = vunpack.c.l.b16 %v1482
        %v4497 = vunpack.c.h.b16 %v1482
        %v4498 = vunpack.c.l.b16 %v1483
        %v4499 = vunpack.c.h.b16 %v1483
        %v4500 = vunpack.c.l.b16 %v1484
        %v4501 = vunpack.c.h.b16 %v1484
        %v4502 = vunpack.c.l.b16 %v1485
        %v4503 = vunpack.c.h.b16 %v1485
        %v4504 = vunpack.c.l.b16 %v1486
        %v4505 = vunpack.c.h.b16 %v1486
        %v4506 = vunpack.c.l.b16 %v1487
        %v4507 = vunpack.c.h.b16 %v1487
        %v4508 = vunpack.c.l.b16 %v1488
        %v4509 = vunpack.c.h.b16 %v1488
        %v4510 = vunpack.c.l.b16 %v1489
        %v4511 = vunpack.c.h.b16 %v1489
        %v4512 = vunpack.c.l.b16 %v1490
        %v4513 = vunpack.c.h.b16 %v1490
        %v4514 = vunpack.c.l.b16 %v1491
        %v4515 = vunpack.c.h.b16 %v1491
        %v4516 = vunpack.c.l.b16 %v1492
        %v4517 = vunpack.c.h.b16 %v1492
        %v4518 = vunpack.c.l.b16 %v1493
        %v4519 = vunpack.c.h.b16 %v1493
        %v4520 = vunpack.c.l.b16 %v1494
        %v4521 = vunpack.c.h.b16 %v1494
        %v4522 = vunpack.c.l.b16 %v1495
        %v4523 = vunpack.c.h.b16 %v1495
        %v4524 = vunpack.c.l.b16 %v1496
        %v4525 = vunpack.c.h.b16 %v1496
        %v4526 = vunpack.c.l.b16 %v1497
        %v4527 = vunpack.c.h.b16 %v1497
        %v4528 = vunpack.c.l.b16 %v1498
        %v4529 = vunpack.c.h.b16 %v1498
        %v4530 = vunpack.c.l.b16 %v1499
        %v4531 = vunpack.c.h.b16 %v1499
        %v4532 = vunpack.c.l.b16 %v1500
        %v4533 = vunpack.c.h.b16 %v1500
        %v4534 = vunpack.c.l.b16 %v1501
        %v4535 = vunpack.c.h.b16 %v1501
        %v4536 = vunpack.c.l.b16 %v1502
        %v4537 = vunpack.c.h.b16 %v1502
        %v4538 = vunpack.c.l.b16 %v1503
        %v4539 = vunpack.c.h.b16 %v1503
        %v4540 = vunpack.c.l.b16 %v1504
        %v4541 = vunpack.c.h.b16 %v1504
        %v4542 = vunpack.c.l.b16 %v1505
        %v4543 = vunpack.c.h.b16 %v1505
        %v4544 = vunpack.c.l.b16 %v1506
        %v4545 = vunpack.c.h.b16 %v1506
        %v4546 = vunpack.c.l.b16 %v1507
        %v4547 = vunpack.c.h.b16 %v1507
        %v4548 = vunpack.c.l.b16 %v1508
        %v4549 = vunpack.c.h.b16 %v1508
        %v4550 = vunpack.c.l.b16 %v1509
        %v4551 = vunpack.c.h.b16 %v1509
        %v4552 = vunpack.c.l.b16 %v1510
        %v4553 = vunpack.c.h.b16 %v1510
        %v4554 = vunpack.c.l.b16 %v1511
        %v4555 = vunpack.c.h.b16 %v1511
        %v4556 = vunpack.c.l.b16 %v1512
        %v4557 = vunpack.c.h.b16 %v1512
        %v4558 = vunpack.c.l.b16 %v1513
        %v4559 = vunpack.c.h.b16 %v1513
        %v4560 = vunpack.c.l.b16 %v1514
        %v4561 = vunpack.c.h.b16 %v1514
        %v4562 = vunpack.c.l.b16 %v1515
        %v4563 = vunpack.c.h.b16 %v1515
        %v4564 = vunpack.c.l.b16 %v1516
        %v4565 = vunpack.c.h.b16 %v1516
        %v4566 = vunpack.c.l.b16 %v1517
        %v4567 = vunpack.c.h.b16 %v1517
        %v4568 = vunpack.c.l.b16 %v1518
        %v4569 = vunpack.c.h.b16 %v1518
        %v4570 = vunpack.c.l.b16 %v1519
        %v4571 = vunpack.c.h.b16 %v1519
        %v4572 = vunpack.c.l.b16 %v1520
        %v4573 = vunpack.c.h.b16 %v1520
        %v4574 = vunpack.c.l.b16 %v1521
        %v4575 = vunpack.c.h.b16 %v1521
        %v4576 = vunpack.c.l.b16 %v1522
        %v4577 = vunpack.c.h.b16 %v1522
        %v4578 = vunpack.c.l.b16 %v1523
        %v4579 = vunpack.c.h.b16 %v1523
        %v4580 = vunpack.c.l.b16 %v1524
        %v4581 = vunpack.c.h.b16 %v1524
        %v4582 = vunpack.c.l.b16 %v1525
        %v4583 = vunpack.c.h.b16 %v1525
        %v4584 = vunpack.c.l.b16 %v1526
        %v4585 = vunpack.c.h.b16 %v1526
        %v4586 = vunpack.c.l.b16 %v1527
        %v4587 = vunpack.c.h.b16 %v1527
        %v4588 = vunpack.c.l.b16 %v1528
        %v4589 = vunpack.c.h.b16 %v1528
        %v4590 = vunpack.c.l.b16 %v1529
        %v4591 = vunpack.c.h.b16 %v1529
        %v4592 = vunpack.c.l.b16 %v1530
        %v4593 = vunpack.c.h.b16 %v1530
        %v4594 = vunpack.c.l.b16 %v1531
        %v4595 = vunpack.c.h.b16 %v1531
        %v4596 = vunpack.c.l.b16 %v1532
        %v4597 = vunpack.c.h.b16 %v1532
        %v4598 = vunpack.c.l.b16 %v1533
        %v4599 = vunpack.c.h.b16 %v1533
        %v4600 = vunpack.c.l.b16 %v1534
        %v4601 = vunpack.c.h.b16 %v1534
        %v4602 = vunpack.c.l.b16 %v1535
        %v4603 = vunpack.c.h.b16 %v1535
        %v4604 = vunpack.c.l.b16 %v1536
        %v4605 = vunpack.c.h.b16 %v1536
        %v4606 = vunpack.c.l.b16 %v1537
        %v4607 = vunpack.c.h.b16 %v1537
        %v4608 = vunpack.c.l.b16 %v1538
        %v4609 = vunpack.c.h.b16 %v1538
        %v4610 = vunpack.c.l.b16 %v1539
        %v4611 = vunpack.c.h.b16 %v1539
        %v4612 = vpack.c.b16 %v2572, %v2564
        %v4613 = vpack.c.b16 %v2573, %v2565
        %v4614 = vpack.c.b16 %v2574, %v2566
        %v4615 = vpack.c.b16 %v2575, %v2567
        %v4616 = vpack.c.b16 %v2576, %v2568
        %v4617 = vpack.c.b16 %v2577, %v2569
        %v4618 = vpack.c.b16 %v2578, %v2570
        %v4619 = vpack.c.b16 %v2579, %v2571
        %v4620 = vpack.c.b16 %v2588, %v2580
        %v4621 = vpack.c.b16 %v2589, %v2581
        %v4622 = vpack.c.b16 %v2590, %v2582
        %v4623 = vpack.c.b16 %v2591, %v2583
        %v4624 = vpack.c.b16 %v2592, %v2584
        %v4625 = vpack.c.b16 %v2593, %v2585
        %v4626 = vpack.c.b16 %v2594, %v2586
        %v4627 = vpack.c.b16 %v2595, %v2587
        %v4628 = vpack.c.b16 %v2604, %v2596
        %v4629 = vpack.c.b16 %v2605, %v2597
        %v4630 = vpack.c.b16 %v2606, %v2598
        %v4631 = vpack.c.b16 %v2607, %v2599
        %v4632 = vpack.c.b16 %v2608, %v2600
        %v4633 = vpack.c.b16 %v2609, %v2601
        %v4634 = vpack.c.b16 %v2610, %v2602
        %v4635 = vpack.c.b16 %v2611, %v2603
        %v4636 = vpack.c.b16 %v2620, %v2612
        %v4637 = vpack.c.b16 %v2621, %v2613
        %v4638 = vpack.c.b16 %v2622, %v2614
        %v4639 = vpack.c.b16 %v2623, %v2615
        %v4640 = vpack.c.b16 %v2624, %v2616
        %v4641 = vpack.c.b16 %v2625, %v2617
        %v4642 = vpack.c.b16 %v2626, %v2618
        %v4643 = vpack.c.b16 %v2627, %v2619
        %v4644 = vpack.c.b16 %v2636, %v2628
        %v4645 = vpack.c.b16 %v2637, %v2629
        %v4646 = vpack.c.b16 %v2638, %v2630
        %v4647 = vpack.c.b16 %v2639, %v2631
        %v4648 = vpack.c.b16 %v2640, %v2632
        %v4649 = vpack.c.b16 %v2641, %v2633
        %v4650 = vpack.c.b16 %v2642, %v2634
        %v4651 = vpack.c.b16 %v2643, %v2635
        %v4652 = vpack.c.b16 %v2652, %v2644
        %v4653 = vpack.c.b16 %v2653, %v2645
        %v4654 = vpack.c.b16 %v2654, %v2646
        %v4655 = vpack.c.b16 %v2655, %v2647
        %v4656 = vpack.c.b16 %v2656, %v2648
        %v4657 = vpack.c.b16 %v2657, %v2649
        %v4658 = vpack.c.b16 %v2658, %v2650
        %v4659 = vpack.c.b16 %v2659, %v2651
        %v4660 = vpack.c.b16 %v2668, %v2660
        %v4661 = vpack.c.b16 %v2669, %v2661
        %v4662 = vpack.c.b16 %v2670, %v2662
        %v4663 = vpack.c.b16 %v2671, %v2663
        %v4664 = vpack.c.b16 %v2672, %v2664
        %v4665 = vpack.c.b16 %v2673, %v2665
        %v4666 = vpack.c.b16 %v2674, %v2666
        %v4667 = vpack.c.b16 %v2675, %v2667
        %v4668 = vpack.c.b16 %v2684, %v2676
        %v4669 = vpack.c.b16 %v2685, %v2677
        %v4670 = vpack.c.b16 %v2686, %v2678
        %v4671 = vpack.c.b16 %v2687, %v2679
        %v4672 = vpack.c.b16 %v2688, %v2680
        %v4673 = vpack.c.b16 %v2689, %v2681
        %v4674 = vpack.c.b16 %v2690, %v2682
        %v4675 = vpack.c.b16 %v2691, %v2683
        %v4676 = vpack.c.b16 %v2700, %v2692
        %v4677 = vpack.c.b16 %v2701, %v2693
        %v4678 = vpack.c.b16 %v2702, %v2694
        %v4679 = vpack.c.b16 %v2703, %v2695
        %v4680 = vpack.c.b16 %v2704, %v2696
        %v4681 = vpack.c.b16 %v2705, %v2697
        %v4682 = vpack.c.b16 %v2706, %v2698
        %v4683 = vpack.c.b16 %v2707, %v2699
        %v4684 = vpack.c.b16 %v2716, %v2708
        %v4685 = vpack.c.b16 %v2717, %v2709
        %v4686 = vpack.c.b16 %v2718, %v2710
        %v4687 = vpack.c.b16 %v2719, %v2711
        %v4688 = vpack.c.b16 %v2720, %v2712
        %v4689 = vpack.c.b16 %v2721, %v2713
        %v4690 = vpack.c.b16 %v2722, %v2714
        %v4691 = vpack.c.b16 %v2723, %v2715
        %v4692 = vpack.c.b16 %v2732, %v2724
        %v4693 = vpack.c.b16 %v2733, %v2725
        %v4694 = vpack.c.b16 %v2734, %v2726
        %v4695 = vpack.c.b16 %v2735, %v2727
        %v4696 = vpack.c.b16 %v2736, %v2728
        %v4697 = vpack.c.b16 %v2737, %v2729
        %v4698 = vpack.c.b16 %v2738, %v2730
        %v4699 = vpack.c.b16 %v2739, %v2731
        %v4700 = vpack.c.b16 %v2748, %v2740
        %v4701 = vpack.c.b16 %v2749, %v2741
        %v4702 = vpack.c.b16 %v2750, %v2742
        %v4703 = vpack.c.b16 %v2751, %v2743
        %v4704 = vpack.c.b16 %v2752, %v2744
        %v4705 = vpack.c.b16 %v2753, %v2745
        %v4706 = vpack.c.b16 %v2754, %v2746
        %v4707 = vpack.c.b16 %v2755, %v2747
        %v4708 = vpack.c.b16 %v2764, %v2756
        %v4709 = vpack.c.b16 %v2765, %v2757
        %v4710 = vpack.c.b16 %v2766, %v2758
        %v4711 = vpack.c.b16 %v2767, %v2759
        %v4712 = vpack.c.b16 %v2768, %v2760
        %v4713 = vpack.c.b16 %v2769, %v2761
        %v4714 = vpack.c.b16 %v2770, %v2762
        %v4715 = vpack.c.b16 %v2771, %v2763
        %v4716 = vpack.c.b16 %v2780, %v2772
        %v4717 = vpack.c.b16 %v2781, %v2773
        %v4718 = vpack.c.b16 %v2782, %v2774
        %v4719 = vpack.c.b16 %v2783, %v2775
        %v4720 = vpack.c.b16 %v2784, %v2776
        %v4721 = vpack.c.b16 %v2785, %v2777
        %v4722 = vpack.c.b16 %v2786, %v2778
        %v4723 = vpack.c.b16 %v2787, %v2779
        %v4724 = vpack.c.b16 %v2796, %v2788
        %v4725 = vpack.c.b16 %v2797, %v2789
        %v4726 = vpack.c.b16 %v2798, %v2790
        %v4727 = vpack.c.b16 %v2799, %v2791
        %v4728 = vpack.c.b16 %v2800, %v2792
        %v4729 = vpack.c.b16 %v2801, %v2793
        %v4730 = vpack.c.b16 %v2802, %v2794
        %v4731 = vpack.c.b16 %v2803, %v2795
        %v4732 = vpack.c.b16 %v2812, %v2804
        %v4733 = vpack.c.b16 %v2813, %v2805
        %v4734 = vpack.c.b16 %v2814, %v2806
        %v4735 = vpack.c.b16 %v2815, %v2807
        %v4736 = vpack.c.b16 %v2816, %v2808
        %v4737 = vpack.c.b16 %v2817, %v2809
        %v4738 = vpack.c.b16 %v2818, %v2810
        %v4739 = vpack.c.b16 %v2819, %v2811
        %v4740 = vpack.c.b16 %v2828, %v2820
        %v4741 = vpack.c.b16 %v2829, %v2821
        %v4742 = vpack.c.b16 %v2830, %v2822
        %v4743 = vpack.c.b16 %v2831, %v2823
        %v4744 = vpack.c.b16 %v2832, %v2824
        %v4745 = vpack.c.b16 %v2833, %v2825
        %v4746 = vpack.c.b16 %v2834, %v2826
        %v4747 = vpack.c.b16 %v2835, %v2827
        %v4748 = vpack.c.b16 %v2844, %v2836
        %v4749 = vpack.c.b16 %v2845, %v2837
        %v4750 = vpack.c.b16 %v2846, %v2838
        %v4751 = vpack.c.b16 %v2847, %v2839
        %v4752 = vpack.c.b16 %v2848, %v2840
        %v4753 = vpack.c.b16 %v2849, %v2841
        %v4754 = vpack.c.b16 %v2850, %v2842
        %v4755 = vpack.c.b16 %v2851, %v2843
        %v4756 = vpack.c.b16 %v2860, %v2852
        %v4757 = vpack.c.b16 %v2861, %v2853
        %v4758 = vpack.c.b16 %v2862, %v2854
        %v4759 = vpack.c.b16 %v2863, %v2855
        %v4760 = vpack.c.b16 %v2864, %v2856
        %v4761 = vpack.c.b16 %v2865, %v2857
        %v4762 = vpack.c.b16 %v2866, %v2858
        %v4763 = vpack.c.b16 %v2867, %v2859
        %v4764 = vpack.c.b16 %v2876, %v2868
        %v4765 = vpack.c.b16 %v2877, %v2869
        %v4766 = vpack.c.b16 %v2878, %v2870
        %v4767 = vpack.c.b16 %v2879, %v2871
        %v4768 = vpack.c.b16 %v2880, %v2872
        %v4769 = vpack.c.b16 %v2881, %v2873
        %v4770 = vpack.c.b16 %v2882, %v2874
        %v4771 = vpack.c.b16 %v2883, %v2875
        %v4772 = vpack.c.b16 %v2892, %v2884
        %v4773 = vpack.c.b16 %v2893, %v2885
        %v4774 = vpack.c.b16 %v2894, %v2886
        %v4775 = vpack.c.b16 %v2895, %v2887
        %v4776 = vpack.c.b16 %v2896, %v2888
        %v4777 = vpack.c.b16 %v2897, %v2889
        %v4778 = vpack.c.b16 %v2898, %v2890
        %v4779 = vpack.c.b16 %v2899, %v2891
        %v4780 = vpack.c.b16 %v2908, %v2900
        %v4781 = vpack.c.b16 %v2909, %v2901
        %v4782 = vpack.c.b16 %v2910, %v2902
        %v4783 = vpack.c.b16 %v2911, %v2903
        %v4784 = vpack.c.b16 %v2912, %v2904
        %v4785 = vpack.c.b16 %v2913, %v2905
        %v4786 = vpack.c.b16 %v2914, %v2906
        %v4787 = vpack.c.b16 %v2915, %v2907
        %v4788 = vpack.c.b16 %v2924, %v2916
        %v4789 = vpack.c.b16 %v2925, %v2917
        %v4790 = vpack.c.b16 %v2926, %v2918
        %v4791 = vpack.c.b16 %v2927, %v2919
        %v4792 = vpack.c.b16 %v2928, %v2920
        %v4793 = vpack.c.b16 %v2929, %v2921
        %v4794 = vpack.c.b16 %v2930, %v2922
        %v4795 = vpack.c.b16 %v2931, %v2923
        %v4796 = vpack.c.b16 %v2940, %v2932
        %v4797 = vpack.c.b16 %v2941, %v2933
        %v4798 = vpack.c.b16 %v2942, %v2934
        %v4799 = vpack.c.b16 %v2943, %v2935
        %v4800 = vpack.c.b16 %v2944, %v2936
        %v4801 = vpack.c.b16 %v2945, %v2937
        %v4802 = vpack.c.b16 %v2946, %v2938
        %v4803 = vpack.c.b16 %v2947, %v2939
        %v4804 = vpack.c.b16 %v2956, %v2948
        %v4805 = vpack.c.b16 %v2957, %v2949
        %v4806 = vpack.c.b16 %v2958, %v2950
        %v4807 = vpack.c.b16 %v2959, %v2951
        %v4808 = vpack.c.b16 %v2960, %v2952
        %v4809 = vpack.c.b16 %v2961, %v2953
        %v4810 = vpack.c.b16 %v2962, %v2954
        %v4811 = vpack.c.b16 %v2963, %v2955
        %v4812 = vpack.c.b16 %v2972, %v2964
        %v4813 = vpack.c.b16 %v2973, %v2965
        %v4814 = vpack.c.b16 %v2974, %v2966
        %v4815 = vpack.c.b16 %v2975, %v2967
        %v4816 = vpack.c.b16 %v2976, %v2968
        %v4817 = vpack.c.b16 %v2977, %v2969
        %v4818 = vpack.c.b16 %v2978, %v2970
        %v4819 = vpack.c.b16 %v2979, %v2971
        %v4820 = vpack.c.b16 %v2988, %v2980
        %v4821 = vpack.c.b16 %v2989, %v2981
        %v4822 = vpack.c.b16 %v2990, %v2982
        %v4823 = vpack.c.b16 %v2991, %v2983
        %v4824 = vpack.c.b16 %v2992, %v2984
        %v4825 = vpack.c.b16 %v2993, %v2985
        %v4826 = vpack.c.b16 %v2994, %v2986
        %v4827 = vpack.c.b16 %v2995, %v2987
        %v4828 = vpack.c.b16 %v3004, %v2996
        %v4829 = vpack.c.b16 %v3005, %v2997
        %v4830 = vpack.c.b16 %v3006, %v2998
        %v4831 = vpack.c.b16 %v3007, %v2999
        %v4832 = vpack.c.b16 %v3008, %v3000
        %v4833 = vpack.c.b16 %v3009, %v3001
        %v4834 = vpack.c.b16 %v3010, %v3002
        %v4835 = vpack.c.b16 %v3011, %v3003
        %v4836 = vpack.c.b16 %v3020, %v3012
        %v4837 = vpack.c.b16 %v3021, %v3013
        %v4838 = vpack.c.b16 %v3022, %v3014
        %v4839 = vpack.c.b16 %v3023, %v3015
        %v4840 = vpack.c.b16 %v3024, %v3016
        %v4841 = vpack.c.b16 %v3025, %v3017
        %v4842 = vpack.c.b16 %v3026, %v3018
        %v4843 = vpack.c.b16 %v3027, %v3019
        %v4844 = vpack.c.b16 %v3036, %v3028
        %v4845 = vpack.c.b16 %v3037, %v3029
        %v4846 = vpack.c.b16 %v3038, %v3030
        %v4847 = vpack.c.b16 %v3039, %v3031
        %v4848 = vpack.c.b16 %v3040, %v3032
        %v4849 = vpack.c.b16 %v3041, %v3033
        %v4850 = vpack.c.b16 %v3042, %v3034
        %v4851 = vpack.c.b16 %v3043, %v3035
        %v4852 = vpack.c.b16 %v3052, %v3044
        %v4853 = vpack.c.b16 %v3053, %v3045
        %v4854 = vpack.c.b16 %v3054, %v3046
        %v4855 = vpack.c.b16 %v3055, %v3047
        %v4856 = vpack.c.b16 %v3056, %v3048
        %v4857 = vpack.c.b16 %v3057, %v3049
        %v4858 = vpack.c.b16 %v3058, %v3050
        %v4859 = vpack.c.b16 %v3059, %v3051
        %v4860 = vpack.c.b16 %v3068, %v3060
        %v4861 = vpack.c.b16 %v3069, %v3061
        %v4862 = vpack.c.b16 %v3070, %v3062
        %v4863 = vpack.c.b16 %v3071, %v3063
        %v4864 = vpack.c.b16 %v3072, %v3064
        %v4865 = vpack.c.b16 %v3073, %v3065
        %v4866 = vpack.c.b16 %v3074, %v3066
        %v4867 = vpack.c.b16 %v3075, %v3067
        %v4868 = vpack.c.b16 %v3084, %v3076
        %v4869 = vpack.c.b16 %v3085, %v3077
        %v4870 = vpack.c.b16 %v3086, %v3078
        %v4871 = vpack.c.b16 %v3087, %v3079
        %v4872 = vpack.c.b16 %v3088, %v3080
        %v4873 = vpack.c.b16 %v3089, %v3081
        %v4874 = vpack.c.b16 %v3090, %v3082
        %v4875 = vpack.c.b16 %v3091, %v3083
        %v4876 = vpack.c.b16 %v3100, %v3092
        %v4877 = vpack.c.b16 %v3101, %v3093
        %v4878 = vpack.c.b16 %v3102, %v3094
        %v4879 = vpack.c.b16 %v3103, %v3095
        %v4880 = vpack.c.b16 %v3104, %v3096
        %v4881 = vpack.c.b16 %v3105, %v3097
        %v4882 = vpack.c.b16 %v3106, %v3098
        %v4883 = vpack.c.b16 %v3107, %v3099
        %v4884 = vpack.c.b16 %v3116, %v3108
        %v4885 = vpack.c.b16 %v3117, %v3109
        %v4886 = vpack.c.b16 %v3118, %v3110
        %v4887 = vpack.c.b16 %v3119, %v3111
        %v4888 = vpack.c.b16 %v3120, %v3112
        %v4889 = vpack.c.b16 %v3121, %v3113
        %v4890 = vpack.c.b16 %v3122, %v3114
        %v4891 = vpack.c.b16 %v3123, %v3115
        %v4892 = vpack.c.b16 %v3132, %v3124
        %v4893 = vpack.c.b16 %v3133, %v3125
        %v4894 = vpack.c.b16 %v3134, %v3126
        %v4895 = vpack.c.b16 %v3135, %v3127
        %v4896 = vpack.c.b16 %v3136, %v3128
        %v4897 = vpack.c.b16 %v3137, %v3129
        %v4898 = vpack.c.b16 %v3138, %v3130
        %v4899 = vpack.c.b16 %v3139, %v3131
        %v4900 = vpack.c.b16 %v3148, %v3140
        %v4901 = vpack.c.b16 %v3149, %v3141
        %v4902 = vpack.c.b16 %v3150, %v3142
        %v4903 = vpack.c.b16 %v3151, %v3143
        %v4904 = vpack.c.b16 %v3152, %v3144
        %v4905 = vpack.c.b16 %v3153, %v3145
        %v4906 = vpack.c.b16 %v3154, %v3146
        %v4907 = vpack.c.b16 %v3155, %v3147
        %v4908 = vpack.c.b16 %v3164, %v3156
        %v4909 = vpack.c.b16 %v3165, %v3157
        %v4910 = vpack.c.b16 %v3166, %v3158
        %v4911 = vpack.c.b16 %v3167, %v3159
        %v4912 = vpack.c.b16 %v3168, %v3160
        %v4913 = vpack.c.b16 %v3169, %v3161
        %v4914 = vpack.c.b16 %v3170, %v3162
        %v4915 = vpack.c.b16 %v3171, %v3163
        %v4916 = vpack.c.b16 %v3180, %v3172
        %v4917 = vpack.c.b16 %v3181, %v3173
        %v4918 = vpack.c.b16 %v3182, %v3174
        %v4919 = vpack.c.b16 %v3183, %v3175
        %v4920 = vpack.c.b16 %v3184, %v3176
        %v4921 = vpack.c.b16 %v3185, %v3177
        %v4922 = vpack.c.b16 %v3186, %v3178
        %v4923 = vpack.c.b16 %v3187, %v3179
        %v4924 = vpack.c.b16 %v3196, %v3188
        %v4925 = vpack.c.b16 %v3197, %v3189
        %v4926 = vpack.c.b16 %v3198, %v3190
        %v4927 = vpack.c.b16 %v3199, %v3191
        %v4928 = vpack.c.b16 %v3200, %v3192
        %v4929 = vpack.c.b16 %v3201, %v3193
        %v4930 = vpack.c.b16 %v3202, %v3194
        %v4931 = vpack.c.b16 %v3203, %v3195
        %v4932 = vpack.c.b16 %v3212, %v3204
        %v4933 = vpack.c.b16 %v3213, %v3205
        %v4934 = vpack.c.b16 %v3214, %v3206
        %v4935 = vpack.c.b16 %v3215, %v3207
        %v4936 = vpack.c.b16 %v3216, %v3208
        %v4937 = vpack.c.b16 %v3217, %v3209
        %v4938 = vpack.c.b16 %v3218, %v3210
        %v4939 = vpack.c.b16 %v3219, %v3211
        %v4940 = vpack.c.b16 %v3228, %v3220
        %v4941 = vpack.c.b16 %v3229, %v3221
        %v4942 = vpack.c.b16 %v3230, %v3222
        %v4943 = vpack.c.b16 %v3231, %v3223
        %v4944 = vpack.c.b16 %v3232, %v3224
        %v4945 = vpack.c.b16 %v3233, %v3225
        %v4946 = vpack.c.b16 %v3234, %v3226
        %v4947 = vpack.c.b16 %v3235, %v3227
        %v4948 = vpack.c.b16 %v3244, %v3236
        %v4949 = vpack.c.b16 %v3245, %v3237
        %v4950 = vpack.c.b16 %v3246, %v3238
        %v4951 = vpack.c.b16 %v3247, %v3239
        %v4952 = vpack.c.b16 %v3248, %v3240
        %v4953 = vpack.c.b16 %v3249, %v3241
        %v4954 = vpack.c.b16 %v3250, %v3242
        %v4955 = vpack.c.b16 %v3251, %v3243
        %v4956 = vpack.c.b16 %v3260, %v3252
        %v4957 = vpack.c.b16 %v3261, %v3253
        %v4958 = vpack.c.b16 %v3262, %v3254
        %v4959 = vpack.c.b16 %v3263, %v3255
        %v4960 = vpack.c.b16 %v3264, %v3256
        %v4961 = vpack.c.b16 %v3265, %v3257
        %v4962 = vpack.c.b16 %v3266, %v3258
        %v4963 = vpack.c.b16 %v3267, %v3259
        %v4964 = vpack.c.b16 %v3276, %v3268
        %v4965 = vpack.c.b16 %v3277, %v3269
        %v4966 = vpack.c.b16 %v3278, %v3270
        %v4967 = vpack.c.b16 %v3279, %v3271
        %v4968 = vpack.c.b16 %v3280, %v3272
        %v4969 = vpack.c.b16 %v3281, %v3273
        %v4970 = vpack.c.b16 %v3282, %v3274
        %v4971 = vpack.c.b16 %v3283, %v3275
        %v4972 = vpack.c.b16 %v3292, %v3284
        %v4973 = vpack.c.b16 %v3293, %v3285
        %v4974 = vpack.c.b16 %v3294, %v3286
        %v4975 = vpack.c.b16 %v3295, %v3287
        %v4976 = vpack.c.b16 %v3296, %v3288
        %v4977 = vpack.c.b16 %v3297, %v3289
        %v4978 = vpack.c.b16 %v3298, %v3290
        %v4979 = vpack.c.b16 %v3299, %v3291
        %v4980 = vpack.c.b16 %v3308, %v3300
        %v4981 = vpack.c.b16 %v3309, %v3301
        %v4982 = vpack.c.b16 %v3310, %v3302
        %v4983 = vpack.c.b16 %v3311, %v3303
        %v4984 = vpack.c.b16 %v3312, %v3304
        %v4985 = vpack.c.b16 %v3313, %v3305
        %v4986 = vpack.c.b16 %v3314, %v3306
        %v4987 = vpack.c.b16 %v3315, %v3307
        %v4988 = vpack.c.b16 %v3324, %v3316
        %v4989 = vpack.c.b16 %v3325, %v3317
        %v4990 = vpack.c.b16 %v3326, %v3318
        %v4991 = vpack.c.b16 %v3327, %v3319
        %v4992 = vpack.c.b16 %v3328, %v3320
        %v4993 = vpack.c.b16 %v3329, %v3321
        %v4994 = vpack.c.b16 %v3330, %v3322
        %v4995 = vpack.c.b16 %v3331, %v3323
        %v4996 = vpack.c.b16 %v3340, %v3332
        %v4997 = vpack.c.b16 %v3341, %v3333
        %v4998 = vpack.c.b16 %v3342, %v3334
        %v4999 = vpack.c.b16 %v3343, %v3335
        %v5000 = vpack.c.b16 %v3344, %v3336
        %v5001 = vpack.c.b16 %v3345, %v3337
        %v5002 = vpack.c.b16 %v3346, %v3338
        %v5003 = vpack.c.b16 %v3347, %v3339
        %v5004 = vpack.c.b16 %v3356, %v3348
        %v5005 = vpack.c.b16 %v3357, %v3349
        %v5006 = vpack.c.b16 %v3358, %v3350
        %v5007 = vpack.c.b16 %v3359, %v3351
        %v5008 = vpack.c.b16 %v3360, %v3352
        %v5009 = vpack.c.b16 %v3361, %v3353
        %v5010 = vpack.c.b16 %v3362, %v3354
        %v5011 = vpack.c.b16 %v3363, %v3355
        %v5012 = vpack.c.b16 %v3372, %v3364
        %v5013 = vpack.c.b16 %v3373, %v3365
        %v5014 = vpack.c.b16 %v3374, %v3366
        %v5015 = vpack.c.b16 %v3375, %v3367
        %v5016 = vpack.c.b16 %v3376, %v3368
        %v5017 = vpack.c.b16 %v3377, %v3369
        %v5018 = vpack.c.b16 %v3378, %v3370
        %v5019 = vpack.c.b16 %v3379, %v3371
        %v5020 = vpack.c.b16 %v3388, %v3380
        %v5021 = vpack.c.b16 %v3389, %v3381
        %v5022 = vpack.c.b16 %v3390, %v3382
        %v5023 = vpack.c.b16 %v3391, %v3383
        %v5024 = vpack.c.b16 %v3392, %v3384
        %v5025 = vpack.c.b16 %v3393, %v3385
        %v5026 = vpack.c.b16 %v3394, %v3386
        %v5027 = vpack.c.b16 %v3395, %v3387
        %v5028 = vpack.c.b16 %v3404, %v3396
        %v5029 = vpack.c.b16 %v3405, %v3397
        %v5030 = vpack.c.b16 %v3406, %v3398
        %v5031 = vpack.c.b16 %v3407, %v3399
        %v5032 = vpack.c.b16 %v3408, %v3400
        %v5033 = vpack.c.b16 %v3409, %v3401
        %v5034 = vpack.c.b16 %v3410, %v3402
        %v5035 = vpack.c.b16 %v3411, %v3403
        %v5036 = vpack.c.b16 %v3420, %v3412
        %v5037 = vpack.c.b16 %v3421, %v3413
        %v5038 = vpack.c.b16 %v3422, %v3414
        %v5039 = vpack.c.b16 %v3423, %v3415
        %v5040 = vpack.c.b16 %v3424, %v3416
        %v5041 = vpack.c.b16 %v3425, %v3417
        %v5042 = vpack.c.b16 %v3426, %v3418
        %v5043 = vpack.c.b16 %v3427, %v3419
        %v5044 = vpack.c.b16 %v3436, %v3428
        %v5045 = vpack.c.b16 %v3437, %v3429
        %v5046 = vpack.c.b16 %v3438, %v3430
        %v5047 = vpack.c.b16 %v3439, %v3431
        %v5048 = vpack.c.b16 %v3440, %v3432
        %v5049 = vpack.c.b16 %v3441, %v3433
        %v5050 = vpack.c.b16 %v3442, %v3434
        %v5051 = vpack.c.b16 %v3443, %v3435
        %v5052 = vpack.c.b16 %v3452, %v3444
        %v5053 = vpack.c.b16 %v3453, %v3445
        %v5054 = vpack.c.b16 %v3454, %v3446
        %v5055 = vpack.c.b16 %v3455, %v3447
        %v5056 = vpack.c.b16 %v3456, %v3448
        %v5057 = vpack.c.b16 %v3457, %v3449
        %v5058 = vpack.c.b16 %v3458, %v3450
        %v5059 = vpack.c.b16 %v3459, %v3451
        %v5060 = vpack.c.b16 %v3468, %v3460
        %v5061 = vpack.c.b16 %v3469, %v3461
        %v5062 = vpack.c.b16 %v3470, %v3462
        %v5063 = vpack.c.b16 %v3471, %v3463
        %v5064 = vpack.c.b16 %v3472, %v3464
        %v5065 = vpack.c.b16 %v3473, %v3465
        %v5066 = vpack.c.b16 %v3474, %v3466
        %v5067 = vpack.c.b16 %v3475, %v3467
        %v5068 = vpack.c.b16 %v3484, %v3476
        %v5069 = vpack.c.b16 %v3485, %v3477
        %v5070 = vpack.c.b16 %v3486, %v3478
        %v5071 = vpack.c.b16 %v3487, %v3479
        %v5072 = vpack.c.b16 %v3488, %v3480
        %v5073 = vpack.c.b16 %v3489, %v3481
        %v5074 = vpack.c.b16 %v3490, %v3482
        %v5075 = vpack.c.b16 %v3491, %v3483
        %v5076 = vpack.c.b16 %v3500, %v3492
        %v5077 = vpack.c.b16 %v3501, %v3493
        %v5078 = vpack.c.b16 %v3502, %v3494
        %v5079 = vpack.c.b16 %v3503, %v3495
        %v5080 = vpack.c.b16 %v3504, %v3496
        %v5081 = vpack.c.b16 %v3505, %v3497
        %v5082 = vpack.c.b16 %v3506, %v3498
        %v5083 = vpack.c.b16 %v3507, %v3499
        %v5084 = vpack.c.b16 %v3516, %v3508
        %v5085 = vpack.c.b16 %v3517, %v3509
        %v5086 = vpack.c.b16 %v3518, %v3510
        %v5087 = vpack.c.b16 %v3519, %v3511
        %v5088 = vpack.c.b16 %v3520, %v3512
        %v5089 = vpack.c.b16 %v3521, %v3513
        %v5090 = vpack.c.b16 %v3522, %v3514
        %v5091 = vpack.c.b16 %v3523, %v3515
        %v5092 = vpack.c.b16 %v3532, %v3524
        %v5093 = vpack.c.b16 %v3533, %v3525
        %v5094 = vpack.c.b16 %v3534, %v3526
        %v5095 = vpack.c.b16 %v3535, %v3527
        %v5096 = vpack.c.b16 %v3536, %v3528
        %v5097 = vpack.c.b16 %v3537, %v3529
        %v5098 = vpack.c.b16 %v3538, %v3530
        %v5099 = vpack.c.b16 %v3539, %v3531
        %v5100 = vpack.c.b16 %v3548, %v3540
        %v5101 = vpack.c.b16 %v3549, %v3541
        %v5102 = vpack.c.b16 %v3550, %v3542
        %v5103 = vpack.c.b16 %v3551, %v3543
        %v5104 = vpack.c.b16 %v3552, %v3544
        %v5105 = vpack.c.b16 %v3553, %v3545
        %v5106 = vpack.c.b16 %v3554, %v3546
        %v5107 = vpack.c.b16 %v3555, %v3547
        %v5108 = vpack.c.b16 %v3564, %v3556
        %v5109 = vpack.c.b16 %v3565, %v3557
        %v5110 = vpack.c.b16 %v3566, %v3558
        %v5111 = vpack.c.b16 %v3567, %v3559
        %v5112 = vpack.c.b16 %v3568, %v3560
        %v5113 = vpack.c.b16 %v3569, %v3561
        %v5114 = vpack.c.b16 %v3570, %v3562
        %v5115 = vpack.c.b16 %v3571, %v3563
        %v5116 = vpack.c.b16 %v3580, %v3572
        %v5117 = vpack.c.b16 %v3581, %v3573
        %v5118 = vpack.c.b16 %v3582, %v3574
        %v5119 = vpack.c.b16 %v3583, %v3575
        %v5120 = vpack.c.b16 %v3584, %v3576
        %v5121 = vpack.c.b16 %v3585, %v3577
        %v5122 = vpack.c.b16 %v3586, %v3578
        %v5123 = vpack.c.b16 %v3587, %v3579
        %v5124 = vpack.c.b16 %v3596, %v3588
        %v5125 = vpack.c.b16 %v3597, %v3589
        %v5126 = vpack.c.b16 %v3598, %v3590
        %v5127 = vpack.c.b16 %v3599, %v3591
        %v5128 = vpack.c.b16 %v3600, %v3592
        %v5129 = vpack.c.b16 %v3601, %v3593
        %v5130 = vpack.c.b16 %v3602, %v3594
        %v5131 = vpack.c.b16 %v3603, %v3595
        %v5132 = vpack.c.b16 %v3612, %v3604
        %v5133 = vpack.c.b16 %v3613, %v3605
        %v5134 = vpack.c.b16 %v3614, %v3606
        %v5135 = vpack.c.b16 %v3615, %v3607
        %v5136 = vpack.c.b16 %v3616, %v3608
        %v5137 = vpack.c.b16 %v3617, %v3609
        %v5138 = vpack.c.b16 %v3618, %v3610
        %v5139 = vpack.c.b16 %v3619, %v3611
        %v5140 = vpack.c.b16 %v3628, %v3620
        %v5141 = vpack.c.b16 %v3629, %v3621
        %v5142 = vpack.c.b16 %v3630, %v3622
        %v5143 = vpack.c.b16 %v3631, %v3623
        %v5144 = vpack.c.b16 %v3632, %v3624
        %v5145 = vpack.c.b16 %v3633, %v3625
        %v5146 = vpack.c.b16 %v3634, %v3626
        %v5147 = vpack.c.b16 %v3635, %v3627
        %v5148 = vpack.c.b16 %v3644, %v3636
        %v5149 = vpack.c.b16 %v3645, %v3637
        %v5150 = vpack.c.b16 %v3646, %v3638
        %v5151 = vpack.c.b16 %v3647, %v3639
        %v5152 = vpack.c.b16 %v3648, %v3640
        %v5153 = vpack.c.b16 %v3649, %v3641
        %v5154 = vpack.c.b16 %v3650, %v3642
        %v5155 = vpack.c.b16 %v3651, %v3643
        %v5156 = vpack.c.b16 %v3660, %v3652
        %v5157 = vpack.c.b16 %v3661, %v3653
        %v5158 = vpack.c.b16 %v3662, %v3654
        %v5159 = vpack.c.b16 %v3663, %v3655
        %v5160 = vpack.c.b16 %v3664, %v3656
        %v5161 = vpack.c.b16 %v3665, %v3657
        %v5162 = vpack.c.b16 %v3666, %v3658
        %v5163 = vpack.c.b16 %v3667, %v3659
        %v5164 = vpack.c.b16 %v3676, %v3668
        %v5165 = vpack.c.b16 %v3677, %v3669
        %v5166 = vpack.c.b16 %v3678, %v3670
        %v5167 = vpack.c.b16 %v3679, %v3671
        %v5168 = vpack.c.b16 %v3680, %v3672
        %v5169 = vpack.c.b16 %v3681, %v3673
        %v5170 = vpack.c.b16 %v3682, %v3674
        %v5171 = vpack.c.b16 %v3683, %v3675
        %v5172 = vpack.c.b16 %v3692, %v3684
        %v5173 = vpack.c.b16 %v3693, %v3685
        %v5174 = vpack.c.b16 %v3694, %v3686
        %v5175 = vpack.c.b16 %v3695, %v3687
        %v5176 = vpack.c.b16 %v3696, %v3688
        %v5177 = vpack.c.b16 %v3697, %v3689
        %v5178 = vpack.c.b16 %v3698, %v3690
        %v5179 = vpack.c.b16 %v3699, %v3691
        %v5180 = vpack.c.b16 %v3708, %v3700
        %v5181 = vpack.c.b16 %v3709, %v3701
        %v5182 = vpack.c.b16 %v3710, %v3702
        %v5183 = vpack.c.b16 %v3711, %v3703
        %v5184 = vpack.c.b16 %v3712, %v3704
        %v5185 = vpack.c.b16 %v3713, %v3705
        %v5186 = vpack.c.b16 %v3714, %v3706
        %v5187 = vpack.c.b16 %v3715, %v3707
        %v5188 = vpack.c.b16 %v3724, %v3716
        %v5189 = vpack.c.b16 %v3725, %v3717
        %v5190 = vpack.c.b16 %v3726, %v3718
        %v5191 = vpack.c.b16 %v3727, %v3719
        %v5192 = vpack.c.b16 %v3728, %v3720
        %v5193 = vpack.c.b16 %v3729, %v3721
        %v5194 = vpack.c.b16 %v3730, %v3722
        %v5195 = vpack.c.b16 %v3731, %v3723
        %v5196 = vpack.c.b16 %v3740, %v3732
        %v5197 = vpack.c.b16 %v3741, %v3733
        %v5198 = vpack.c.b16 %v3742, %v3734
        %v5199 = vpack.c.b16 %v3743, %v3735
        %v5200 = vpack.c.b16 %v3744, %v3736
        %v5201 = vpack.c.b16 %v3745, %v3737
        %v5202 = vpack.c.b16 %v3746, %v3738
        %v5203 = vpack.c.b16 %v3747, %v3739
        %v5204 = vpack.c.b16 %v3756, %v3748
        %v5205 = vpack.c.b16 %v3757, %v3749
        %v5206 = vpack.c.b16 %v3758, %v3750
        %v5207 = vpack.c.b16 %v3759, %v3751
        %v5208 = vpack.c.b16 %v3760, %v3752
        %v5209 = vpack.c.b16 %v3761, %v3753
        %v5210 = vpack.c.b16 %v3762, %v3754
        %v5211 = vpack.c.b16 %v3763, %v3755
        %v5212 = vpack.c.b16 %v3772, %v3764
        %v5213 = vpack.c.b16 %v3773, %v3765
        %v5214 = vpack.c.b16 %v3774, %v3766
        %v5215 = vpack.c.b16 %v3775, %v3767
        %v5216 = vpack.c.b16 %v3776, %v3768
        %v5217 = vpack.c.b16 %v3777, %v3769
        %v5218 = vpack.c.b16 %v3778, %v3770
        %v5219 = vpack.c.b16 %v3779, %v3771
        %v5220 = vpack.c.b16 %v3788, %v3780
        %v5221 = vpack.c.b16 %v3789, %v3781
        %v5222 = vpack.c.b16 %v3790, %v3782
        %v5223 = vpack.c.b16 %v3791, %v3783
        %v5224 = vpack.c.b16 %v3792, %v3784
        %v5225 = vpack.c.b16 %v3793, %v3785
        %v5226 = vpack.c.b16 %v3794, %v3786
        %v5227 = vpack.c.b16 %v3795, %v3787
        %v5228 = vpack.c.b16 %v3804, %v3796
        %v5229 = vpack.c.b16 %v3805, %v3797
        %v5230 = vpack.c.b16 %v3806, %v3798
        %v5231 = vpack.c.b16 %v3807, %v3799
        %v5232 = vpack.c.b16 %v3808, %v3800
        %v5233 = vpack.c.b16 %v3809, %v3801
        %v5234 = vpack.c.b16 %v3810, %v3802
        %v5235 = vpack.c.b16 %v3811, %v3803
        %v5236 = vpack.c.b16 %v3820, %v3812
        %v5237 = vpack.c.b16 %v3821, %v3813
        %v5238 = vpack.c.b16 %v3822, %v3814
        %v5239 = vpack.c.b16 %v3823, %v3815
        %v5240 = vpack.c.b16 %v3824, %v3816
        %v5241 = vpack.c.b16 %v3825, %v3817
        %v5242 = vpack.c.b16 %v3826, %v3818
        %v5243 = vpack.c.b16 %v3827, %v3819
        %v5244 = vpack.c.b16 %v3836, %v3828
        %v5245 = vpack.c.b16 %v3837, %v3829
        %v5246 = vpack.c.b16 %v3838, %v3830
        %v5247 = vpack.c.b16 %v3839, %v3831
        %v5248 = vpack.c.b16 %v3840, %v3832
        %v5249 = vpack.c.b16 %v3841, %v3833
        %v5250 = vpack.c.b16 %v3842, %v3834
        %v5251 = vpack.c.b16 %v3843, %v3835
        %v5252 = vpack.c.b16 %v3852, %v3844
        %v5253 = vpack.c.b16 %v3853, %v3845
        %v5254 = vpack.c.b16 %v3854, %v3846
        %v5255 = vpack.c.b16 %v3855, %v3847
        %v5256 = vpack.c.b16 %v3856, %v3848
        %v5257 = vpack.c.b16 %v3857, %v3849
        %v5258 = vpack.c.b16 %v3858, %v3850
        %v5259 = vpack.c.b16 %v3859, %v3851
        %v5260 = vpack.c.b16 %v3868, %v3860
        %v5261 = vpack.c.b16 %v3869, %v3861
        %v5262 = vpack.c.b16 %v3870, %v3862
        %v5263 = vpack.c.b16 %v3871, %v3863
        %v5264 = vpack.c.b16 %v3872, %v3864
        %v5265 = vpack.c.b16 %v3873, %v3865
        %v5266 = vpack.c.b16 %v3874, %v3866
        %v5267 = vpack.c.b16 %v3875, %v3867
        %v5268 = vpack.c.b16 %v3884, %v3876
        %v5269 = vpack.c.b16 %v3885, %v3877
        %v5270 = vpack.c.b16 %v3886, %v3878
        %v5271 = vpack.c.b16 %v3887, %v3879
        %v5272 = vpack.c.b16 %v3888, %v3880
        %v5273 = vpack.c.b16 %v3889, %v3881
        %v5274 = vpack.c.b16 %v3890, %v3882
        %v5275 = vpack.c.b16 %v3891, %v3883
        %v5276 = vpack.c.b16 %v3900, %v3892
        %v5277 = vpack.c.b16 %v3901, %v3893
        %v5278 = vpack.c.b16 %v3902, %v3894
        %v5279 = vpack.c.b16 %v3903, %v3895
        %v5280 = vpack.c.b16 %v3904, %v3896
        %v5281 = vpack.c.b16 %v3905, %v3897
        %v5282 = vpack.c.b16 %v3906, %v3898
        %v5283 = vpack.c.b16 %v3907, %v3899
        %v5284 = vpack.c.b16 %v3916, %v3908
        %v5285 = vpack.c.b16 %v3917, %v3909
        %v5286 = vpack.c.b16 %v3918, %v3910
        %v5287 = vpack.c.b16 %v3919, %v3911
        %v5288 = vpack.c.b16 %v3920, %v3912
        %v5289 = vpack.c.b16 %v3921, %v3913
        %v5290 = vpack.c.b16 %v3922, %v3914
        %v5291 = vpack.c.b16 %v3923, %v3915
        %v5292 = vpack.c.b16 %v3932, %v3924
        %v5293 = vpack.c.b16 %v3933, %v3925
        %v5294 = vpack.c.b16 %v3934, %v3926
        %v5295 = vpack.c.b16 %v3935, %v3927
        %v5296 = vpack.c.b16 %v3936, %v3928
        %v5297 = vpack.c.b16 %v3937, %v3929
        %v5298 = vpack.c.b16 %v3938, %v3930
        %v5299 = vpack.c.b16 %v3939, %v3931
        %v5300 = vpack.c.b16 %v3948, %v3940
        %v5301 = vpack.c.b16 %v3949, %v3941
        %v5302 = vpack.c.b16 %v3950, %v3942
        %v5303 = vpack.c.b16 %v3951, %v3943
        %v5304 = vpack.c.b16 %v3952, %v3944
        %v5305 = vpack.c.b16 %v3953, %v3945
        %v5306 = vpack.c.b16 %v3954, %v3946
        %v5307 = vpack.c.b16 %v3955, %v3947
        %v5308 = vpack.c.b16 %v3964, %v3956
        %v5309 = vpack.c.b16 %v3965, %v3957
        %v5310 = vpack.c.b16 %v3966, %v3958
        %v5311 = vpack.c.b16 %v3967, %v3959
        %v5312 = vpack.c.b16 %v3968, %v3960
        %v5313 = vpack.c.b16 %v3969, %v3961
        %v5314 = vpack.c.b16 %v3970, %v3962
        %v5315 = vpack.c.b16 %v3971, %v3963
        %v5316 = vpack.c.b16 %v3980, %v3972
        %v5317 = vpack.c.b16 %v3981, %v3973
        %v5318 = vpack.c.b16 %v3982, %v3974
        %v5319 = vpack.c.b16 %v3983, %v3975
        %v5320 = vpack.c.b16 %v3984, %v3976
        %v5321 = vpack.c.b16 %v3985, %v3977
        %v5322 = vpack.c.b16 %v3986, %v3978
        %v5323 = vpack.c.b16 %v3987, %v3979
        %v5324 = vpack.c.b16 %v3996, %v3988
        %v5325 = vpack.c.b16 %v3997, %v3989
        %v5326 = vpack.c.b16 %v3998, %v3990
        %v5327 = vpack.c.b16 %v3999, %v3991
        %v5328 = vpack.c.b16 %v4000, %v3992
        %v5329 = vpack.c.b16 %v4001, %v3993
        %v5330 = vpack.c.b16 %v4002, %v3994
        %v5331 = vpack.c.b16 %v4003, %v3995
        %v5332 = vpack.c.b16 %v4012, %v4004
        %v5333 = vpack.c.b16 %v4013, %v4005
        %v5334 = vpack.c.b16 %v4014, %v4006
        %v5335 = vpack.c.b16 %v4015, %v4007
        %v5336 = vpack.c.b16 %v4016, %v4008
        %v5337 = vpack.c.b16 %v4017, %v4009
        %v5338 = vpack.c.b16 %v4018, %v4010
        %v5339 = vpack.c.b16 %v4019, %v4011
        %v5340 = vpack.c.b16 %v4028, %v4020
        %v5341 = vpack.c.b16 %v4029, %v4021
        %v5342 = vpack.c.b16 %v4030, %v4022
        %v5343 = vpack.c.b16 %v4031, %v4023
        %v5344 = vpack.c.b16 %v4032, %v4024
        %v5345 = vpack.c.b16 %v4033, %v4025
        %v5346 = vpack.c.b16 %v4034, %v4026
        %v5347 = vpack.c.b16 %v4035, %v4027
        %v5348 = vpack.c.b16 %v4044, %v4036
        %v5349 = vpack.c.b16 %v4045, %v4037
        %v5350 = vpack.c.b16 %v4046, %v4038
        %v5351 = vpack.c.b16 %v4047, %v4039
        %v5352 = vpack.c.b16 %v4048, %v4040
        %v5353 = vpack.c.b16 %v4049, %v4041
        %v5354 = vpack.c.b16 %v4050, %v4042
        %v5355 = vpack.c.b16 %v4051, %v4043
        %v5356 = vpack.c.b16 %v4060, %v4052
        %v5357 = vpack.c.b16 %v4061, %v4053
        %v5358 = vpack.c.b16 %v4062, %v4054
        %v5359 = vpack.c.b16 %v4063, %v4055
        %v5360 = vpack.c.b16 %v4064, %v4056
        %v5361 = vpack.c.b16 %v4065, %v4057
        %v5362 = vpack.c.b16 %v4066, %v4058
        %v5363 = vpack.c.b16 %v4067, %v4059
        %v5364 = vpack.c.b16 %v4076, %v4068
        %v5365 = vpack.c.b16 %v4077, %v4069
        %v5366 = vpack.c.b16 %v4078, %v4070
        %v5367 = vpack.c.b16 %v4079, %v4071
        %v5368 = vpack.c.b16 %v4080, %v4072
        %v5369 = vpack.c.b16 %v4081, %v4073
        %v5370 = vpack.c.b16 %v4082, %v4074
        %v5371 = vpack.c.b16 %v4083, %v4075
        %v5372 = vpack.c.b16 %v4092, %v4084
        %v5373 = vpack.c.b16 %v4093, %v4085
        %v5374 = vpack.c.b16 %v4094, %v4086
        %v5375 = vpack.c.b16 %v4095, %v4087
        %v5376 = vpack.c.b16 %v4096, %v4088
        %v5377 = vpack.c.b16 %v4097, %v4089
        %v5378 = vpack.c.b16 %v4098, %v4090
        %v5379 = vpack.c.b16 %v4099, %v4091
        %v5380 = vpack.c.b16 %v4108, %v4100
        %v5381 = vpack.c.b16 %v4109, %v4101
        %v5382 = vpack.c.b16 %v4110, %v4102
        %v5383 = vpack.c.b16 %v4111, %v4103
        %v5384 = vpack.c.b16 %v4112, %v4104
        %v5385 = vpack.c.b16 %v4113, %v4105
        %v5386 = vpack.c.b16 %v4114, %v4106
        %v5387 = vpack.c.b16 %v4115, %v4107
        %v5388 = vpack.c.b16 %v4124, %v4116
        %v5389 = vpack.c.b16 %v4125, %v4117
        %v5390 = vpack.c.b16 %v4126, %v4118
        %v5391 = vpack.c.b16 %v4127, %v4119
        %v5392 = vpack.c.b16 %v4128, %v4120
        %v5393 = vpack.c.b16 %v4129, %v4121
        %v5394 = vpack.c.b16 %v4130, %v4122
        %v5395 = vpack.c.b16 %v4131, %v4123
        %v5396 = vpack.c.b16 %v4140, %v4132
        %v5397 = vpack.c.b16 %v4141, %v4133
        %v5398 = vpack.c.b16 %v4142, %v4134
        %v5399 = vpack.c.b16 %v4143, %v4135
        %v5400 = vpack.c.b16 %v4144, %v4136
        %v5401 = vpack.c.b16 %v4145, %v4137
        %v5402 = vpack.c.b16 %v4146, %v4138
        %v5403 = vpack.c.b16 %v4147, %v4139
        %v5404 = vpack.c.b16 %v4156, %v4148
        %v5405 = vpack.c.b16 %v4157, %v4149
        %v5406 = vpack.c.b16 %v4158, %v4150
        %v5407 = vpack.c.b16 %v4159, %v4151
        %v5408 = vpack.c.b16 %v4160, %v4152
        %v5409 = vpack.c.b16 %v4161, %v4153
        %v5410 = vpack.c.b16 %v4162, %v4154
        %v5411 = vpack.c.b16 %v4163, %v4155
        %v5412 = vpack.c.b16 %v4172, %v4164
        %v5413 = vpack.c.b16 %v4173, %v4165
        %v5414 = vpack.c.b16 %v4174, %v4166
        %v5415 = vpack.c.b16 %v4175, %v4167
        %v5416 = vpack.c.b16 %v4176, %v4168
        %v5417 = vpack.c.b16 %v4177, %v4169
        %v5418 = vpack.c.b16 %v4178, %v4170
        %v5419 = vpack.c.b16 %v4179, %v4171
        %v5420 = vpack.c.b16 %v4188, %v4180
        %v5421 = vpack.c.b16 %v4189, %v4181
        %v5422 = vpack.c.b16 %v4190, %v4182
        %v5423 = vpack.c.b16 %v4191, %v4183
        %v5424 = vpack.c.b16 %v4192, %v4184
        %v5425 = vpack.c.b16 %v4193, %v4185
        %v5426 = vpack.c.b16 %v4194, %v4186
        %v5427 = vpack.c.b16 %v4195, %v4187
        %v5428 = vpack.c.b16 %v4204, %v4196
        %v5429 = vpack.c.b16 %v4205, %v4197
        %v5430 = vpack.c.b16 %v4206, %v4198
        %v5431 = vpack.c.b16 %v4207, %v4199
        %v5432 = vpack.c.b16 %v4208, %v4200
        %v5433 = vpack.c.b16 %v4209, %v4201
        %v5434 = vpack.c.b16 %v4210, %v4202
        %v5435 = vpack.c.b16 %v4211, %v4203
        %v5436 = vpack.c.b16 %v4220, %v4212
        %v5437 = vpack.c.b16 %v4221, %v4213
        %v5438 = vpack.c.b16 %v4222, %v4214
        %v5439 = vpack.c.b16 %v4223, %v4215
        %v5440 = vpack.c.b16 %v4224, %v4216
        %v5441 = vpack.c.b16 %v4225, %v4217
        %v5442 = vpack.c.b16 %v4226, %v4218
        %v5443 = vpack.c.b16 %v4227, %v4219
        %v5444 = vpack.c.b16 %v4236, %v4228
        %v5445 = vpack.c.b16 %v4237, %v4229
        %v5446 = vpack.c.b16 %v4238, %v4230
        %v5447 = vpack.c.b16 %v4239, %v4231
        %v5448 = vpack.c.b16 %v4240, %v4232
        %v5449 = vpack.c.b16 %v4241, %v4233
        %v5450 = vpack.c.b16 %v4242, %v4234
        %v5451 = vpack.c.b16 %v4243, %v4235
        %v5452 = vpack.c.b16 %v4252, %v4244
        %v5453 = vpack.c.b16 %v4253, %v4245
        %v5454 = vpack.c.b16 %v4254, %v4246
        %v5455 = vpack.c.b16 %v4255, %v4247
        %v5456 = vpack.c.b16 %v4256, %v4248
        %v5457 = vpack.c.b16 %v4257, %v4249
        %v5458 = vpack.c.b16 %v4258, %v4250
        %v5459 = vpack.c.b16 %v4259, %v4251
        %v5460 = vpack.c.b16 %v4268, %v4260
        %v5461 = vpack.c.b16 %v4269, %v4261
        %v5462 = vpack.c.b16 %v4270, %v4262
        %v5463 = vpack.c.b16 %v4271, %v4263
        %v5464 = vpack.c.b16 %v4272, %v4264
        %v5465 = vpack.c.b16 %v4273, %v4265
        %v5466 = vpack.c.b16 %v4274, %v4266
        %v5467 = vpack.c.b16 %v4275, %v4267
        %v5468 = vpack.c.b16 %v4284, %v4276
        %v5469 = vpack.c.b16 %v4285, %v4277
        %v5470 = vpack.c.b16 %v4286, %v4278
        %v5471 = vpack.c.b16 %v4287, %v4279
        %v5472 = vpack.c.b16 %v4288, %v4280
        %v5473 = vpack.c.b16 %v4289, %v4281
        %v5474 = vpack.c.b16 %v4290, %v4282
        %v5475 = vpack.c.b16 %v4291, %v4283
        %v5476 = vpack.c.b16 %v4300, %v4292
        %v5477 = vpack.c.b16 %v4301, %v4293
        %v5478 = vpack.c.b16 %v4302, %v4294
        %v5479 = vpack.c.b16 %v4303, %v4295
        %v5480 = vpack.c.b16 %v4304, %v4296
        %v5481 = vpack.c.b16 %v4305, %v4297
        %v5482 = vpack.c.b16 %v4306, %v4298
        %v5483 = vpack.c.b16 %v4307, %v4299
        %v5484 = vpack.c.b16 %v4316, %v4308
        %v5485 = vpack.c.b16 %v4317, %v4309
        %v5486 = vpack.c.b16 %v4318, %v4310
        %v5487 = vpack.c.b16 %v4319, %v4311
        %v5488 = vpack.c.b16 %v4320, %v4312
        %v5489 = vpack.c.b16 %v4321, %v4313
        %v5490 = vpack.c.b16 %v4322, %v4314
        %v5491 = vpack.c.b16 %v4323, %v4315
        %v5492 = vpack.c.b16 %v4332, %v4324
        %v5493 = vpack.c.b16 %v4333, %v4325
        %v5494 = vpack.c.b16 %v4334, %v4326
        %v5495 = vpack.c.b16 %v4335, %v4327
        %v5496 = vpack.c.b16 %v4336, %v4328
        %v5497 = vpack.c.b16 %v4337, %v4329
        %v5498 = vpack.c.b16 %v4338, %v4330
        %v5499 = vpack.c.b16 %v4339, %v4331
        %v5500 = vpack.c.b16 %v4348, %v4340
        %v5501 = vpack.c.b16 %v4349, %v4341
        %v5502 = vpack.c.b16 %v4350, %v4342
        %v5503 = vpack.c.b16 %v4351, %v4343
        %v5504 = vpack.c.b16 %v4352, %v4344
        %v5505 = vpack.c.b16 %v4353, %v4345
        %v5506 = vpack.c.b16 %v4354, %v4346
        %v5507 = vpack.c.b16 %v4355, %v4347
        %v5508 = vpack.c.b16 %v4364, %v4356
        %v5509 = vpack.c.b16 %v4365, %v4357
        %v5510 = vpack.c.b16 %v4366, %v4358
        %v5511 = vpack.c.b16 %v4367, %v4359
        %v5512 = vpack.c.b16 %v4368, %v4360
        %v5513 = vpack.c.b16 %v4369, %v4361
        %v5514 = vpack.c.b16 %v4370, %v4362
        %v5515 = vpack.c.b16 %v4371, %v4363
        %v5516 = vpack.c.b16 %v4380, %v4372
        %v5517 = vpack.c.b16 %v4381, %v4373
        %v5518 = vpack.c.b16 %v4382, %v4374
        %v5519 = vpack.c.b16 %v4383, %v4375
        %v5520 = vpack.c.b16 %v4384, %v4376
        %v5521 = vpack.c.b16 %v4385, %v4377
        %v5522 = vpack.c.b16 %v4386, %v4378
        %v5523 = vpack.c.b16 %v4387, %v4379
        %v5524 = vpack.c.b16 %v4396, %v4388
        %v5525 = vpack.c.b16 %v4397, %v4389
        %v5526 = vpack.c.b16 %v4398, %v4390
        %v5527 = vpack.c.b16 %v4399, %v4391
        %v5528 = vpack.c.b16 %v4400, %v4392
        %v5529 = vpack.c.b16 %v4401, %v4393
        %v5530 = vpack.c.b16 %v4402, %v4394
        %v5531 = vpack.c.b16 %v4403, %v4395
        %v5532 = vpack.c.b16 %v4412, %v4404
        %v5533 = vpack.c.b16 %v4413, %v4405
        %v5534 = vpack.c.b16 %v4414, %v4406
        %v5535 = vpack.c.b16 %v4415, %v4407
        %v5536 = vpack.c.b16 %v4416, %v4408
        %v5537 = vpack.c.b16 %v4417, %v4409
        %v5538 = vpack.c.b16 %v4418, %v4410
        %v5539 = vpack.c.b16 %v4419, %v4411
        %v5540 = vpack.c.b16 %v4428, %v4420
        %v5541 = vpack.c.b16 %v4429, %v4421
        %v5542 = vpack.c.b16 %v4430, %v4422
        %v5543 = vpack.c.b16 %v4431, %v4423
        %v5544 = vpack.c.b16 %v4432, %v4424
        %v5545 = vpack.c.b16 %v4433, %v4425
        %v5546 = vpack.c.b16 %v4434, %v4426
        %v5547 = vpack.c.b16 %v4435, %v4427
        %v5548 = vpack.c.b16 %v4444, %v4436
        %v5549 = vpack.c.b16 %v4445, %v4437
        %v5550 = vpack.c.b16 %v4446, %v4438
        %v5551 = vpack.c.b16 %v4447, %v4439
        %v5552 = vpack.c.b16 %v4448, %v4440
        %v5553 = vpack.c.b16 %v4449, %v4441
        %v5554 = vpack.c.b16 %v4450, %v4442
        %v5555 = vpack.c.b16 %v4451, %v4443
        %v5556 = vpack.c.b16 %v4460, %v4452
        %v5557 = vpack.c.b16 %v4461, %v4453
        %v5558 = vpack.c.b16 %v4462, %v4454
        %v5559 = vpack.c.b16 %v4463, %v4455
        %v5560 = vpack.c.b16 %v4464, %v4456
        %v5561 = vpack.c.b16 %v4465, %v4457
        %v5562 = vpack.c.b16 %v4466, %v4458
        %v5563 = vpack.c.b16 %v4467, %v4459
        %v5564 = vpack.c.b16 %v4476, %v4468
        %v5565 = vpack.c.b16 %v4477, %v4469
        %v5566 = vpack.c.b16 %v4478, %v4470
        %v5567 = vpack.c.b16 %v4479, %v4471
        %v5568 = vpack.c.b16 %v4480, %v4472
        %v5569 = vpack.c.b16 %v4481, %v4473
        %v5570 = vpack.c.b16 %v4482, %v4474
        %v5571 = vpack.c.b16 %v4483, %v4475
        %v5572 = vpack.c.b16 %v4492, %v4484
        %v5573 = vpack.c.b16 %v4493, %v4485
        %v5574 = vpack.c.b16 %v4494, %v4486
        %v5575 = vpack.c.b16 %v4495, %v4487
        %v5576 = vpack.c.b16 %v4496, %v4488
        %v5577 = vpack.c.b16 %v4497, %v4489
        %v5578 = vpack.c.b16 %v4498, %v4490
        %v5579 = vpack.c.b16 %v4499, %v4491
        %v5580 = vpack.c.b16 %v4508, %v4500
        %v5581 = vpack.c.b16 %v4509, %v4501
        %v5582 = vpack.c.b16 %v4510, %v4502
        %v5583 = vpack.c.b16 %v4511, %v4503
        %v5584 = vpack.c.b16 %v4512, %v4504
        %v5585 = vpack.c.b16 %v4513, %v4505
        %v5586 = vpack.c.b16 %v4514, %v4506
        %v5587 = vpack.c.b16 %v4515, %v4507
        %v5588 = vpack.c.b16 %v4524, %v4516
        %v5589 = vpack.c.b16 %v4525, %v4517
        %v5590 = vpack.c.b16 %v4526, %v4518
        %v5591 = vpack.c.b16 %v4527, %v4519
        %v5592 = vpack.c.b16 %v4528, %v4520
        %v5593 = vpack.c.b16 %v4529, %v4521
        %v5594 = vpack.c.b16 %v4530, %v4522
        %v5595 = vpack.c.b16 %v4531, %v4523
        %v5596 = vpack.c.b16 %v4540, %v4532
        %v5597 = vpack.c.b16 %v4541, %v4533
        %v5598 = vpack.c.b16 %v4542, %v4534
        %v5599 = vpack.c.b16 %v4543, %v4535
        %v5600 = vpack.c.b16 %v4544, %v4536
        %v5601 = vpack.c.b16 %v4545, %v4537
        %v5602 = vpack.c.b16 %v4546, %v4538
        %v5603 = vpack.c.b16 %v4547, %v4539
        %v5604 = vpack.c.b16 %v4556, %v4548
        %v5605 = vpack.c.b16 %v4557, %v4549
        %v5606 = vpack.c.b16 %v4558, %v4550
        %v5607 = vpack.c.b16 %v4559, %v4551
        %v5608 = vpack.c.b16 %v4560, %v4552
        %v5609 = vpack.c.b16 %v4561, %v4553
        %v5610 = vpack.c.b16 %v4562, %v4554
        %v5611 = vpack.c.b16 %v4563, %v4555
        %v5612 = vpack.c.b16 %v4572, %v4564
        %v5613 = vpack.c.b16 %v4573, %v4565
        %v5614 = vpack.c.b16 %v4574, %v4566
        %v5615 = vpack.c.b16 %v4575, %v4567
        %v5616 = vpack.c.b16 %v4576, %v4568
        %v5617 = vpack.c.b16 %v4577, %v4569
        %v5618 = vpack.c.b16 %v4578, %v4570
        %v5619 = vpack.c.b16 %v4579, %v4571
        %v5620 = vpack.c.b16 %v4588, %v4580
        %v5621 = vpack.c.b16 %v4589, %v4581
        %v5622 = vpack.c.b16 %v4590, %v4582
        %v5623 = vpack.c.b16 %v4591, %v4583
        %v5624 = vpack.c.b16 %v4592, %v4584
        %v5625 = vpack.c.b16 %v4593, %v4585
        %v5626 = vpack.c.b16 %v4594, %v4586
        %v5627 = vpack.c.b16 %v4595, %v4587
        %v5628 = vpack.c.b16 %v4604, %v4596
        %v5629 = vpack.c.b16 %v4605, %v4597
        %v5630 = vpack.c.b16 %v4606, %v4598
        %v5631 = vpack.c.b16 %v4607, %v4599
        %v5632 = vpack.c.b16 %v4608, %v4600
        %v5633 = vpack.c.b16 %v4609, %v4601
        %v5634 = vpack.c.b16 %v4610, %v4602
        %v5635 = vpack.c.b16 %v4611, %v4603
        %6660 = vmatpush.bf16.msra.mxu0 %v4668
        %6661 = vmatpush.bf16.msra.mxu0 %v4660
        %6662 = vmatpush.bf16.msra.mxu0 %v4652
        %6663 = vmatpush.bf16.msra.mxu0 %v4644
        %6664 = vmatpush.bf16.msra.mxu0 %v4636
        %6665 = vmatpush.bf16.msra.mxu0 %v4628
        %6666 = vmatpush.bf16.msra.mxu0 %v4620
        %6667 = vmatpush.bf16.msra.mxu0 %v4612
        %6668 = vmatmul.bf16.gmra.mxu0 %v498
        %v6669 = vpop.f32.mrf.mxu0
        %v6670 = vadd.f32 0.0, %v6669
        %v6671 = vpop.f32.mrf.mxu0
        %6672 = vdwg.mxu0
        %6673 = vmatpush.bf16.msra.mxu0 %v4732
        %6674 = vmatpush.bf16.msra.mxu0 %v4724
        %6675 = vmatpush.bf16.msra.mxu0 %v4716
        %6676 = vmatpush.bf16.msra.mxu0 %v4708
        %6677 = vmatpush.bf16.msra.mxu0 %v4700
        %6678 = vmatpush.bf16.msra.mxu0 %v4692
        %6679 = vmatpush.bf16.msra.mxu0 %v4684
        %6680 = vmatpush.bf16.msra.mxu0 %v4676
        %6681 = vmatmul.bf16.gmra.mxu0 %v499
        %v6682 = vpop.f32.mrf.mxu0
        %v6683 = vadd.f32 %v6670, %v6682
        %v6684 = vpop.f32.mrf.mxu0
        %6685 = vdwg.mxu0
        %6686 = vmatpush.bf16.msra.mxu0 %v4796
        %6687 = vmatpush.bf16.msra.mxu0 %v4788
        %6688 = vmatpush.bf16.msra.mxu0 %v4780
        %6689 = vmatpush.bf16.msra.mxu0 %v4772
        %6690 = vmatpush.bf16.msra.mxu0 %v4764
        %6691 = vmatpush.bf16.msra.mxu0 %v4756
        %6692 = vmatpush.bf16.msra.mxu0 %v4748
        %6693 = vmatpush.bf16.msra.mxu0 %v4740
        %6694 = vmatmul.bf16.gmra.mxu0 %v500
        %v6695 = vpop.f32.mrf.mxu0
        %v6696 = vadd.f32 %v6683, %v6695
        %v6697 = vpop.f32.mrf.mxu0
        %6698 = vdwg.mxu0
        %6699 = vmatpush.bf16.msra.mxu0 %v4860
        %6700 = vmatpush.bf16.msra.mxu0 %v4852
        %6701 = vmatpush.bf16.msra.mxu0 %v4844
        %6702 = vmatpush.bf16.msra.mxu0 %v4836
        %6703 = vmatpush.bf16.msra.mxu0 %v4828
        %6704 = vmatpush.bf16.msra.mxu0 %v4820
        %6705 = vmatpush.bf16.msra.mxu0 %v4812
        %6706 = vmatpush.bf16.msra.mxu0 %v4804
        %6707 = vmatmul.bf16.gmra.mxu0 %v501
        %v6708 = vpop.f32.mrf.mxu0
        %v6709 = vadd.f32 %v6696, %v6708
        %v6710 = vpop.f32.mrf.mxu0
        %6711 = vdwg.mxu0
        %6712 = vmatpush.bf16.msra.mxu0 %v4924
        %6713 = vmatpush.bf16.msra.mxu0 %v4916
        %6714 = vmatpush.bf16.msra.mxu0 %v4908
        %6715 = vmatpush.bf16.msra.mxu0 %v4900
        %6716 = vmatpush.bf16.msra.mxu0 %v4892
        %6717 = vmatpush.bf16.msra.mxu0 %v4884
        %6718 = vmatpush.bf16.msra.mxu0 %v4876
        %6719 = vmatpush.bf16.msra.mxu0 %v4868
        %6720 = vmatmul.bf16.gmra.mxu0 %v502
        %v6721 = vpop.f32.mrf.mxu0
        %v6722 = vadd.f32 %v6709, %v6721
        %v6723 = vpop.f32.mrf.mxu0
        %6724 = vdwg.mxu0
        %6725 = vmatpush.bf16.msra.mxu0 %v4988
        %6726 = vmatpush.bf16.msra.mxu0 %v4980
        %6727 = vmatpush.bf16.msra.mxu0 %v4972
        %6728 = vmatpush.bf16.msra.mxu0 %v4964
        %6729 = vmatpush.bf16.msra.mxu0 %v4956
        %6730 = vmatpush.bf16.msra.mxu0 %v4948
        %6731 = vmatpush.bf16.msra.mxu0 %v4940
        %6732 = vmatpush.bf16.msra.mxu0 %v4932
        %6733 = vmatmul.bf16.gmra.mxu0 %v503
        %v6734 = vpop.f32.mrf.mxu0
        %v6735 = vadd.f32 %v6722, %v6734
        %v6736 = vpop.f32.mrf.mxu0
        %6737 = vdwg.mxu0
        %6738 = vmatpush.bf16.msra.mxu0 %v5052
        %6739 = vmatpush.bf16.msra.mxu0 %v5044
        %6740 = vmatpush.bf16.msra.mxu0 %v5036
        %6741 = vmatpush.bf16.msra.mxu0 %v5028
        %6742 = vmatpush.bf16.msra.mxu0 %v5020
        %6743 = vmatpush.bf16.msra.mxu0 %v5012
        %6744 = vmatpush.bf16.msra.mxu0 %v5004
        %6745 = vmatpush.bf16.msra.mxu0 %v4996
        %6746 = vmatmul.bf16.gmra.mxu0 %v504
        %v6747 = vpop.f32.mrf.mxu0
        %v6748 = vadd.f32 %v6735, %v6747
        %v6749 = vpop.f32.mrf.mxu0
        %6750 = vdwg.mxu0
        %6751 = vmatpush.bf16.msra.mxu0 %v5116
        %6752 = vmatpush.bf16.msra.mxu0 %v5108
        %6753 = vmatpush.bf16.msra.mxu0 %v5100
        %6754 = vmatpush.bf16.msra.mxu0 %v5092
        %6755 = vmatpush.bf16.msra.mxu0 %v5084
        %6756 = vmatpush.bf16.msra.mxu0 %v5076
        %6757 = vmatpush.bf16.msra.mxu0 %v5068
        %6758 = vmatpush.bf16.msra.mxu0 %v5060
        %6759 = vmatmul.bf16.gmra.mxu0 %v505
        %v6760 = vpop.f32.mrf.mxu0
        %v6761 = vadd.f32 %v6748, %v6760
        %v6762 = vpop.f32.mrf.mxu0
        %6763 = vdwg.mxu0
        %6764 = vmatpush.bf16.msra.mxu0 %v5180
        %6765 = vmatpush.bf16.msra.mxu0 %v5172
        %6766 = vmatpush.bf16.msra.mxu0 %v5164
        %6767 = vmatpush.bf16.msra.mxu0 %v5156
        %6768 = vmatpush.bf16.msra.mxu0 %v5148
        %6769 = vmatpush.bf16.msra.mxu0 %v5140
        %6770 = vmatpush.bf16.msra.mxu0 %v5132
        %6771 = vmatpush.bf16.msra.mxu0 %v5124
        %6772 = vmatmul.bf16.gmra.mxu0 %v506
        %v6773 = vpop.f32.mrf.mxu0
        %v6774 = vadd.f32 %v6761, %v6773
        %v6775 = vpop.f32.mrf.mxu0
        %6776 = vdwg.mxu0
        %6777 = vmatpush.bf16.msra.mxu0 %v5244
        %6778 = vmatpush.bf16.msra.mxu0 %v5236
        %6779 = vmatpush.bf16.msra.mxu0 %v5228
        %6780 = vmatpush.bf16.msra.mxu0 %v5220
        %6781 = vmatpush.bf16.msra.mxu0 %v5212
        %6782 = vmatpush.bf16.msra.mxu0 %v5204
        %6783 = vmatpush.bf16.msra.mxu0 %v5196
        %6784 = vmatpush.bf16.msra.mxu0 %v5188
        %6785 = vmatmul.bf16.gmra.mxu0 %v507
        %v6786 = vpop.f32.mrf.mxu0
        %v6787 = vadd.f32 %v6774, %v6786
        %v6788 = vpop.f32.mrf.mxu0
        %6789 = vdwg.mxu0
        %6790 = vmatpush.bf16.msra.mxu0 %v5308
        %6791 = vmatpush.bf16.msra.mxu0 %v5300
        %6792 = vmatpush.bf16.msra.mxu0 %v5292
        %6793 = vmatpush.bf16.msra.mxu0 %v5284
        %6794 = vmatpush.bf16.msra.mxu0 %v5276
        %6795 = vmatpush.bf16.msra.mxu0 %v5268
        %6796 = vmatpush.bf16.msra.mxu0 %v5260
        %6797 = vmatpush.bf16.msra.mxu0 %v5252
        %6798 = vmatmul.bf16.gmra.mxu0 %v508
        %v6799 = vpop.f32.mrf.mxu0
        %v6800 = vadd.f32 %v6787, %v6799
        %v6801 = vpop.f32.mrf.mxu0
        %6802 = vdwg.mxu0
        %6803 = vmatpush.bf16.msra.mxu0 %v5372
        %6804 = vmatpush.bf16.msra.mxu0 %v5364
        %6805 = vmatpush.bf16.msra.mxu0 %v5356
        %6806 = vmatpush.bf16.msra.mxu0 %v5348
        %6807 = vmatpush.bf16.msra.mxu0 %v5340
        %6808 = vmatpush.bf16.msra.mxu0 %v5332
        %6809 = vmatpush.bf16.msra.mxu0 %v5324
        %6810 = vmatpush.bf16.msra.mxu0 %v5316
        %6811 = vmatmul.bf16.gmra.mxu0 %v509
        %v6812 = vpop.f32.mrf.mxu0
        %v6813 = vadd.f32 %v6800, %v6812
        %v6814 = vpop.f32.mrf.mxu0
        %6815 = vdwg.mxu0
        %6816 = vmatpush.bf16.msra.mxu0 %v5436
        %6817 = vmatpush.bf16.msra.mxu0 %v5428
        %6818 = vmatpush.bf16.msra.mxu0 %v5420
        %6819 = vmatpush.bf16.msra.mxu0 %v5412
        %6820 = vmatpush.bf16.msra.mxu0 %v5404
        %6821 = vmatpush.bf16.msra.mxu0 %v5396
        %6822 = vmatpush.bf16.msra.mxu0 %v5388
        %6823 = vmatpush.bf16.msra.mxu0 %v5380
        %6824 = vmatmul.bf16.gmra.mxu0 %v510
        %v6825 = vpop.f32.mrf.mxu0
        %v6826 = vadd.f32 %v6813, %v6825
        %v6827 = vpop.f32.mrf.mxu0
        %6828 = vdwg.mxu0
        %6829 = vmatpush.bf16.msra.mxu0 %v5500
        %6830 = vmatpush.bf16.msra.mxu0 %v5492
        %6831 = vmatpush.bf16.msra.mxu0 %v5484
        %6832 = vmatpush.bf16.msra.mxu0 %v5476
        %6833 = vmatpush.bf16.msra.mxu0 %v5468
        %6834 = vmatpush.bf16.msra.mxu0 %v5460
        %6835 = vmatpush.bf16.msra.mxu0 %v5452
        %6836 = vmatpush.bf16.msra.mxu0 %v5444
        %6837 = vmatmul.bf16.gmra.mxu0 %v511
        %v6838 = vpop.f32.mrf.mxu0
        %v6839 = vadd.f32 %v6826, %v6838
        %v6840 = vpop.f32.mrf.mxu0
        %6841 = vdwg.mxu0
        %6842 = vmatpush.bf16.msra.mxu0 %v5564
        %6843 = vmatpush.bf16.msra.mxu0 %v5556
        %6844 = vmatpush.bf16.msra.mxu0 %v5548
        %6845 = vmatpush.bf16.msra.mxu0 %v5540
        %6846 = vmatpush.bf16.msra.mxu0 %v5532
        %6847 = vmatpush.bf16.msra.mxu0 %v5524
        %6848 = vmatpush.bf16.msra.mxu0 %v5516
        %6849 = vmatpush.bf16.msra.mxu0 %v5508
        %6850 = vmatmul.bf16.gmra.mxu0 %v512
        %v6851 = vpop.f32.mrf.mxu0
        %v6852 = vadd.f32 %v6839, %v6851
        %v6853 = vpop.f32.mrf.mxu0
        %6854 = vdwg.mxu0
        %6855 = vmatpush.bf16.msra.mxu0 %v5628
        %6856 = vmatpush.bf16.msra.mxu0 %v5620
        %6857 = vmatpush.bf16.msra.mxu0 %v5612
        %6858 = vmatpush.bf16.msra.mxu0 %v5604
        %6859 = vmatpush.bf16.msra.mxu0 %v5596
        %6860 = vmatpush.bf16.msra.mxu0 %v5588
        %6861 = vmatpush.bf16.msra.mxu0 %v5580
        %6862 = vmatpush.bf16.msra.mxu0 %v5572
        %6863 = vmatmul.bf16.gmra.mxu0 %v513
        %v6864 = vpop.f32.mrf.mxu0
        %v6865 = vadd.f32 %v6852, %v6864
        %v6866 = vpop.f32.mrf.mxu0
        %6867 = vdwg.mxu0
        %6868 = vmatpush.bf16.msra.mxu0 %v4669
        %6869 = vmatpush.bf16.msra.mxu0 %v4661
        %6870 = vmatpush.bf16.msra.mxu0 %v4653
        %6871 = vmatpush.bf16.msra.mxu0 %v4645
        %6872 = vmatpush.bf16.msra.mxu0 %v4637
        %6873 = vmatpush.bf16.msra.mxu0 %v4629
        %6874 = vmatpush.bf16.msra.mxu0 %v4621
        %6875 = vmatpush.bf16.msra.mxu0 %v4613
        %6876 = vmatmul.bf16.gmra.mxu0 %v498
        %v6877 = vpop.f32.mrf.mxu0
        %v6878 = vadd.f32 0.0, %v6877
        %v6879 = vpop.f32.mrf.mxu0
        %6880 = vdwg.mxu0
        %6881 = vmatpush.bf16.msra.mxu0 %v4733
        %6882 = vmatpush.bf16.msra.mxu0 %v4725
        %6883 = vmatpush.bf16.msra.mxu0 %v4717
        %6884 = vmatpush.bf16.msra.mxu0 %v4709
        %6885 = vmatpush.bf16.msra.mxu0 %v4701
        %6886 = vmatpush.bf16.msra.mxu0 %v4693
        %6887 = vmatpush.bf16.msra.mxu0 %v4685
        %6888 = vmatpush.bf16.msra.mxu0 %v4677
        %6889 = vmatmul.bf16.gmra.mxu0 %v499
        %v6890 = vpop.f32.mrf.mxu0
        %v6891 = vadd.f32 %v6878, %v6890
        %v6892 = vpop.f32.mrf.mxu0
        %6893 = vdwg.mxu0
        %6894 = vmatpush.bf16.msra.mxu0 %v4797
        %6895 = vmatpush.bf16.msra.mxu0 %v4789
        %6896 = vmatpush.bf16.msra.mxu0 %v4781
        %6897 = vmatpush.bf16.msra.mxu0 %v4773
        %6898 = vmatpush.bf16.msra.mxu0 %v4765
        %6899 = vmatpush.bf16.msra.mxu0 %v4757
        %6900 = vmatpush.bf16.msra.mxu0 %v4749
        %6901 = vmatpush.bf16.msra.mxu0 %v4741
        %6902 = vmatmul.bf16.gmra.mxu0 %v500
        %v6903 = vpop.f32.mrf.mxu0
        %v6904 = vadd.f32 %v6891, %v6903
        %v6905 = vpop.f32.mrf.mxu0
        %6906 = vdwg.mxu0
        %6907 = vmatpush.bf16.msra.mxu0 %v4861
        %6908 = vmatpush.bf16.msra.mxu0 %v4853
        %6909 = vmatpush.bf16.msra.mxu0 %v4845
        %6910 = vmatpush.bf16.msra.mxu0 %v4837
        %6911 = vmatpush.bf16.msra.mxu0 %v4829
        %6912 = vmatpush.bf16.msra.mxu0 %v4821
        %6913 = vmatpush.bf16.msra.mxu0 %v4813
        %6914 = vmatpush.bf16.msra.mxu0 %v4805
        %6915 = vmatmul.bf16.gmra.mxu0 %v501
        %v6916 = vpop.f32.mrf.mxu0
        %v6917 = vadd.f32 %v6904, %v6916
        %v6918 = vpop.f32.mrf.mxu0
        %6919 = vdwg.mxu0
        %6920 = vmatpush.bf16.msra.mxu0 %v4925
        %6921 = vmatpush.bf16.msra.mxu0 %v4917
        %6922 = vmatpush.bf16.msra.mxu0 %v4909
        %6923 = vmatpush.bf16.msra.mxu0 %v4901
        %6924 = vmatpush.bf16.msra.mxu0 %v4893
        %6925 = vmatpush.bf16.msra.mxu0 %v4885
        %6926 = vmatpush.bf16.msra.mxu0 %v4877
        %6927 = vmatpush.bf16.msra.mxu0 %v4869
        %6928 = vmatmul.bf16.gmra.mxu0 %v502
        %v6929 = vpop.f32.mrf.mxu0
        %v6930 = vadd.f32 %v6917, %v6929
        %v6931 = vpop.f32.mrf.mxu0
        %6932 = vdwg.mxu0
        %6933 = vmatpush.bf16.msra.mxu0 %v4989
        %6934 = vmatpush.bf16.msra.mxu0 %v4981
        %6935 = vmatpush.bf16.msra.mxu0 %v4973
        %6936 = vmatpush.bf16.msra.mxu0 %v4965
        %6937 = vmatpush.bf16.msra.mxu0 %v4957
        %6938 = vmatpush.bf16.msra.mxu0 %v4949
        %6939 = vmatpush.bf16.msra.mxu0 %v4941
        %6940 = vmatpush.bf16.msra.mxu0 %v4933
        %6941 = vmatmul.bf16.gmra.mxu0 %v503
        %v6942 = vpop.f32.mrf.mxu0
        %v6943 = vadd.f32 %v6930, %v6942
        %v6944 = vpop.f32.mrf.mxu0
        %6945 = vdwg.mxu0
        %6946 = vmatpush.bf16.msra.mxu0 %v5053
        %6947 = vmatpush.bf16.msra.mxu0 %v5045
        %6948 = vmatpush.bf16.msra.mxu0 %v5037
        %6949 = vmatpush.bf16.msra.mxu0 %v5029
        %6950 = vmatpush.bf16.msra.mxu0 %v5021
        %6951 = vmatpush.bf16.msra.mxu0 %v5013
        %6952 = vmatpush.bf16.msra.mxu0 %v5005
        %6953 = vmatpush.bf16.msra.mxu0 %v4997
        %6954 = vmatmul.bf16.gmra.mxu0 %v504
        %v6955 = vpop.f32.mrf.mxu0
        %v6956 = vadd.f32 %v6943, %v6955
        %v6957 = vpop.f32.mrf.mxu0
        %6958 = vdwg.mxu0
        %6959 = vmatpush.bf16.msra.mxu0 %v5117
        %6960 = vmatpush.bf16.msra.mxu0 %v5109
        %6961 = vmatpush.bf16.msra.mxu0 %v5101
        %6962 = vmatpush.bf16.msra.mxu0 %v5093
        %6963 = vmatpush.bf16.msra.mxu0 %v5085
        %6964 = vmatpush.bf16.msra.mxu0 %v5077
        %6965 = vmatpush.bf16.msra.mxu0 %v5069
        %6966 = vmatpush.bf16.msra.mxu0 %v5061
        %6967 = vmatmul.bf16.gmra.mxu0 %v505
        %v6968 = vpop.f32.mrf.mxu0
        %v6969 = vadd.f32 %v6956, %v6968
        %v6970 = vpop.f32.mrf.mxu0
        %6971 = vdwg.mxu0
        %6972 = vmatpush.bf16.msra.mxu0 %v5181
        %6973 = vmatpush.bf16.msra.mxu0 %v5173
        %6974 = vmatpush.bf16.msra.mxu0 %v5165
        %6975 = vmatpush.bf16.msra.mxu0 %v5157
        %6976 = vmatpush.bf16.msra.mxu0 %v5149
        %6977 = vmatpush.bf16.msra.mxu0 %v5141
        %6978 = vmatpush.bf16.msra.mxu0 %v5133
        %6979 = vmatpush.bf16.msra.mxu0 %v5125
        %6980 = vmatmul.bf16.gmra.mxu0 %v506
        %v6981 = vpop.f32.mrf.mxu0
        %v6982 = vadd.f32 %v6969, %v6981
        %v6983 = vpop.f32.mrf.mxu0
        %6984 = vdwg.mxu0
        %6985 = vmatpush.bf16.msra.mxu0 %v5245
        %6986 = vmatpush.bf16.msra.mxu0 %v5237
        %6987 = vmatpush.bf16.msra.mxu0 %v5229
        %6988 = vmatpush.bf16.msra.mxu0 %v5221
        %6989 = vmatpush.bf16.msra.mxu0 %v5213
        %6990 = vmatpush.bf16.msra.mxu0 %v5205
        %6991 = vmatpush.bf16.msra.mxu0 %v5197
        %6992 = vmatpush.bf16.msra.mxu0 %v5189
        %6993 = vmatmul.bf16.gmra.mxu0 %v507
        %v6994 = vpop.f32.mrf.mxu0
        %v6995 = vadd.f32 %v6982, %v6994
        %v6996 = vpop.f32.mrf.mxu0
        %6997 = vdwg.mxu0
        %6998 = vmatpush.bf16.msra.mxu0 %v5309
        %6999 = vmatpush.bf16.msra.mxu0 %v5301
        %7000 = vmatpush.bf16.msra.mxu0 %v5293
        %7001 = vmatpush.bf16.msra.mxu0 %v5285
        %7002 = vmatpush.bf16.msra.mxu0 %v5277
        %7003 = vmatpush.bf16.msra.mxu0 %v5269
        %7004 = vmatpush.bf16.msra.mxu0 %v5261
        %7005 = vmatpush.bf16.msra.mxu0 %v5253
        %7006 = vmatmul.bf16.gmra.mxu0 %v508
        %v7007 = vpop.f32.mrf.mxu0
        %v7008 = vadd.f32 %v6995, %v7007
        %v7009 = vpop.f32.mrf.mxu0
        %7010 = vdwg.mxu0
        %7011 = vmatpush.bf16.msra.mxu0 %v5373
        %7012 = vmatpush.bf16.msra.mxu0 %v5365
        %7013 = vmatpush.bf16.msra.mxu0 %v5357
        %7014 = vmatpush.bf16.msra.mxu0 %v5349
        %7015 = vmatpush.bf16.msra.mxu0 %v5341
        %7016 = vmatpush.bf16.msra.mxu0 %v5333
        %7017 = vmatpush.bf16.msra.mxu0 %v5325
        %7018 = vmatpush.bf16.msra.mxu0 %v5317
        %7019 = vmatmul.bf16.gmra.mxu0 %v509
        %v7020 = vpop.f32.mrf.mxu0
        %v7021 = vadd.f32 %v7008, %v7020
        %v7022 = vpop.f32.mrf.mxu0
        %7023 = vdwg.mxu0
        %7024 = vmatpush.bf16.msra.mxu0 %v5437
        %7025 = vmatpush.bf16.msra.mxu0 %v5429
        %7026 = vmatpush.bf16.msra.mxu0 %v5421
        %7027 = vmatpush.bf16.msra.mxu0 %v5413
        %7028 = vmatpush.bf16.msra.mxu0 %v5405
        %7029 = vmatpush.bf16.msra.mxu0 %v5397
        %7030 = vmatpush.bf16.msra.mxu0 %v5389
        %7031 = vmatpush.bf16.msra.mxu0 %v5381
        %7032 = vmatmul.bf16.gmra.mxu0 %v510
        %v7033 = vpop.f32.mrf.mxu0
        %v7034 = vadd.f32 %v7021, %v7033
        %v7035 = vpop.f32.mrf.mxu0
        %7036 = vdwg.mxu0
        %7037 = vmatpush.bf16.msra.mxu0 %v5501
        %7038 = vmatpush.bf16.msra.mxu0 %v5493
        %7039 = vmatpush.bf16.msra.mxu0 %v5485
        %7040 = vmatpush.bf16.msra.mxu0 %v5477
        %7041 = vmatpush.bf16.msra.mxu0 %v5469
        %7042 = vmatpush.bf16.msra.mxu0 %v5461
        %7043 = vmatpush.bf16.msra.mxu0 %v5453
        %7044 = vmatpush.bf16.msra.mxu0 %v5445
        %7045 = vmatmul.bf16.gmra.mxu0 %v511
        %v7046 = vpop.f32.mrf.mxu0
        %v7047 = vadd.f32 %v7034, %v7046
        %v7048 = vpop.f32.mrf.mxu0
        %7049 = vdwg.mxu0
        %7050 = vmatpush.bf16.msra.mxu0 %v5565
        %7051 = vmatpush.bf16.msra.mxu0 %v5557
        %7052 = vmatpush.bf16.msra.mxu0 %v5549
        %7053 = vmatpush.bf16.msra.mxu0 %v5541
        %7054 = vmatpush.bf16.msra.mxu0 %v5533
        %7055 = vmatpush.bf16.msra.mxu0 %v5525
        %7056 = vmatpush.bf16.msra.mxu0 %v5517
        %7057 = vmatpush.bf16.msra.mxu0 %v5509
        %7058 = vmatmul.bf16.gmra.mxu0 %v512
        %v7059 = vpop.f32.mrf.mxu0
        %v7060 = vadd.f32 %v7047, %v7059
        %v7061 = vpop.f32.mrf.mxu0
        %7062 = vdwg.mxu0
        %7063 = vmatpush.bf16.msra.mxu0 %v5629
        %7064 = vmatpush.bf16.msra.mxu0 %v5621
        %7065 = vmatpush.bf16.msra.mxu0 %v5613
        %7066 = vmatpush.bf16.msra.mxu0 %v5605
        %7067 = vmatpush.bf16.msra.mxu0 %v5597
        %7068 = vmatpush.bf16.msra.mxu0 %v5589
        %7069 = vmatpush.bf16.msra.mxu0 %v5581
        %7070 = vmatpush.bf16.msra.mxu0 %v5573
        %7071 = vmatmul.bf16.gmra.mxu0 %v513
        %v7072 = vpop.f32.mrf.mxu0
        %v7073 = vadd.f32 %v7060, %v7072
        %v7074 = vpop.f32.mrf.mxu0
        %7075 = vdwg.mxu0
        %7076 = vmatpush.bf16.msra.mxu0 %v4670
        %7077 = vmatpush.bf16.msra.mxu0 %v4662
        %7078 = vmatpush.bf16.msra.mxu0 %v4654
        %7079 = vmatpush.bf16.msra.mxu0 %v4646
        %7080 = vmatpush.bf16.msra.mxu0 %v4638
        %7081 = vmatpush.bf16.msra.mxu0 %v4630
        %7082 = vmatpush.bf16.msra.mxu0 %v4622
        %7083 = vmatpush.bf16.msra.mxu0 %v4614
        %7084 = vmatmul.bf16.gmra.mxu0 %v498
        %v7085 = vpop.f32.mrf.mxu0
        %v7086 = vadd.f32 0.0, %v7085
        %v7087 = vpop.f32.mrf.mxu0
        %7088 = vdwg.mxu0
        %7089 = vmatpush.bf16.msra.mxu0 %v4734
        %7090 = vmatpush.bf16.msra.mxu0 %v4726
        %7091 = vmatpush.bf16.msra.mxu0 %v4718
        %7092 = vmatpush.bf16.msra.mxu0 %v4710
        %7093 = vmatpush.bf16.msra.mxu0 %v4702
        %7094 = vmatpush.bf16.msra.mxu0 %v4694
        %7095 = vmatpush.bf16.msra.mxu0 %v4686
        %7096 = vmatpush.bf16.msra.mxu0 %v4678
        %7097 = vmatmul.bf16.gmra.mxu0 %v499
        %v7098 = vpop.f32.mrf.mxu0
        %v7099 = vadd.f32 %v7086, %v7098
        %v7100 = vpop.f32.mrf.mxu0
        %7101 = vdwg.mxu0
        %7102 = vmatpush.bf16.msra.mxu0 %v4798
        %7103 = vmatpush.bf16.msra.mxu0 %v4790
        %7104 = vmatpush.bf16.msra.mxu0 %v4782
        %7105 = vmatpush.bf16.msra.mxu0 %v4774
        %7106 = vmatpush.bf16.msra.mxu0 %v4766
        %7107 = vmatpush.bf16.msra.mxu0 %v4758
        %7108 = vmatpush.bf16.msra.mxu0 %v4750
        %7109 = vmatpush.bf16.msra.mxu0 %v4742
        %7110 = vmatmul.bf16.gmra.mxu0 %v500
        %v7111 = vpop.f32.mrf.mxu0
        %v7112 = vadd.f32 %v7099, %v7111
        %v7113 = vpop.f32.mrf.mxu0
        %7114 = vdwg.mxu0
        %7115 = vmatpush.bf16.msra.mxu0 %v4862
        %7116 = vmatpush.bf16.msra.mxu0 %v4854
        %7117 = vmatpush.bf16.msra.mxu0 %v4846
        %7118 = vmatpush.bf16.msra.mxu0 %v4838
        %7119 = vmatpush.bf16.msra.mxu0 %v4830
        %7120 = vmatpush.bf16.msra.mxu0 %v4822
        %7121 = vmatpush.bf16.msra.mxu0 %v4814
        %7122 = vmatpush.bf16.msra.mxu0 %v4806
        %7123 = vmatmul.bf16.gmra.mxu0 %v501
        %v7124 = vpop.f32.mrf.mxu0
        %v7125 = vadd.f32 %v7112, %v7124
        %v7126 = vpop.f32.mrf.mxu0
        %7127 = vdwg.mxu0
        %7128 = vmatpush.bf16.msra.mxu0 %v4926
        %7129 = vmatpush.bf16.msra.mxu0 %v4918
        %7130 = vmatpush.bf16.msra.mxu0 %v4910
        %7131 = vmatpush.bf16.msra.mxu0 %v4902
        %7132 = vmatpush.bf16.msra.mxu0 %v4894
        %7133 = vmatpush.bf16.msra.mxu0 %v4886
        %7134 = vmatpush.bf16.msra.mxu0 %v4878
        %7135 = vmatpush.bf16.msra.mxu0 %v4870
        %7136 = vmatmul.bf16.gmra.mxu0 %v502
        %v7137 = vpop.f32.mrf.mxu0
        %v7138 = vadd.f32 %v7125, %v7137
        %v7139 = vpop.f32.mrf.mxu0
        %7140 = vdwg.mxu0
        %7141 = vmatpush.bf16.msra.mxu0 %v4990
        %7142 = vmatpush.bf16.msra.mxu0 %v4982
        %7143 = vmatpush.bf16.msra.mxu0 %v4974
        %7144 = vmatpush.bf16.msra.mxu0 %v4966
        %7145 = vmatpush.bf16.msra.mxu0 %v4958
        %7146 = vmatpush.bf16.msra.mxu0 %v4950
        %7147 = vmatpush.bf16.msra.mxu0 %v4942
        %7148 = vmatpush.bf16.msra.mxu0 %v4934
        %7149 = vmatmul.bf16.gmra.mxu0 %v503
        %v7150 = vpop.f32.mrf.mxu0
        %v7151 = vadd.f32 %v7138, %v7150
        %v7152 = vpop.f32.mrf.mxu0
        %7153 = vdwg.mxu0
        %7154 = vmatpush.bf16.msra.mxu0 %v5054
        %7155 = vmatpush.bf16.msra.mxu0 %v5046
        %7156 = vmatpush.bf16.msra.mxu0 %v5038
        %7157 = vmatpush.bf16.msra.mxu0 %v5030
        %7158 = vmatpush.bf16.msra.mxu0 %v5022
        %7159 = vmatpush.bf16.msra.mxu0 %v5014
        %7160 = vmatpush.bf16.msra.mxu0 %v5006
        %7161 = vmatpush.bf16.msra.mxu0 %v4998
        %7162 = vmatmul.bf16.gmra.mxu0 %v504
        %v7163 = vpop.f32.mrf.mxu0
        %v7164 = vadd.f32 %v7151, %v7163
        %v7165 = vpop.f32.mrf.mxu0
        %7166 = vdwg.mxu0
        %7167 = vmatpush.bf16.msra.mxu0 %v5118
        %7168 = vmatpush.bf16.msra.mxu0 %v5110
        %7169 = vmatpush.bf16.msra.mxu0 %v5102
        %7170 = vmatpush.bf16.msra.mxu0 %v5094
        %7171 = vmatpush.bf16.msra.mxu0 %v5086
        %7172 = vmatpush.bf16.msra.mxu0 %v5078
        %7173 = vmatpush.bf16.msra.mxu0 %v5070
        %7174 = vmatpush.bf16.msra.mxu0 %v5062
        %7175 = vmatmul.bf16.gmra.mxu0 %v505
        %v7176 = vpop.f32.mrf.mxu0
        %v7177 = vadd.f32 %v7164, %v7176
        %v7178 = vpop.f32.mrf.mxu0
        %7179 = vdwg.mxu0
        %7180 = vmatpush.bf16.msra.mxu0 %v5182
        %7181 = vmatpush.bf16.msra.mxu0 %v5174
        %7182 = vmatpush.bf16.msra.mxu0 %v5166
        %7183 = vmatpush.bf16.msra.mxu0 %v5158
        %7184 = vmatpush.bf16.msra.mxu0 %v5150
        %7185 = vmatpush.bf16.msra.mxu0 %v5142
        %7186 = vmatpush.bf16.msra.mxu0 %v5134
        %7187 = vmatpush.bf16.msra.mxu0 %v5126
        %7188 = vmatmul.bf16.gmra.mxu0 %v506
        %v7189 = vpop.f32.mrf.mxu0
        %v7190 = vadd.f32 %v7177, %v7189
        %v7191 = vpop.f32.mrf.mxu0
        %7192 = vdwg.mxu0
        %7193 = vmatpush.bf16.msra.mxu0 %v5246
        %7194 = vmatpush.bf16.msra.mxu0 %v5238
        %7195 = vmatpush.bf16.msra.mxu0 %v5230
        %7196 = vmatpush.bf16.msra.mxu0 %v5222
        %7197 = vmatpush.bf16.msra.mxu0 %v5214
        %7198 = vmatpush.bf16.msra.mxu0 %v5206
        %7199 = vmatpush.bf16.msra.mxu0 %v5198
        %7200 = vmatpush.bf16.msra.mxu0 %v5190
        %7201 = vmatmul.bf16.gmra.mxu0 %v507
        %v7202 = vpop.f32.mrf.mxu0
        %v7203 = vadd.f32 %v7190, %v7202
        %v7204 = vpop.f32.mrf.mxu0
        %7205 = vdwg.mxu0
        %7206 = vmatpush.bf16.msra.mxu0 %v5310
        %7207 = vmatpush.bf16.msra.mxu0 %v5302
        %7208 = vmatpush.bf16.msra.mxu0 %v5294
        %7209 = vmatpush.bf16.msra.mxu0 %v5286
        %7210 = vmatpush.bf16.msra.mxu0 %v5278
        %7211 = vmatpush.bf16.msra.mxu0 %v5270
        %7212 = vmatpush.bf16.msra.mxu0 %v5262
        %7213 = vmatpush.bf16.msra.mxu0 %v5254
        %7214 = vmatmul.bf16.gmra.mxu0 %v508
        %v7215 = vpop.f32.mrf.mxu0
        %v7216 = vadd.f32 %v7203, %v7215
        %v7217 = vpop.f32.mrf.mxu0
        %7218 = vdwg.mxu0
        %7219 = vmatpush.bf16.msra.mxu0 %v5374
        %7220 = vmatpush.bf16.msra.mxu0 %v5366
        %7221 = vmatpush.bf16.msra.mxu0 %v5358
        %7222 = vmatpush.bf16.msra.mxu0 %v5350
        %7223 = vmatpush.bf16.msra.mxu0 %v5342
        %7224 = vmatpush.bf16.msra.mxu0 %v5334
        %7225 = vmatpush.bf16.msra.mxu0 %v5326
        %7226 = vmatpush.bf16.msra.mxu0 %v5318
        %7227 = vmatmul.bf16.gmra.mxu0 %v509
        %v7228 = vpop.f32.mrf.mxu0
        %v7229 = vadd.f32 %v7216, %v7228
        %v7230 = vpop.f32.mrf.mxu0
        %7231 = vdwg.mxu0
        %7232 = vmatpush.bf16.msra.mxu0 %v5438
        %7233 = vmatpush.bf16.msra.mxu0 %v5430
        %7234 = vmatpush.bf16.msra.mxu0 %v5422
        %7235 = vmatpush.bf16.msra.mxu0 %v5414
        %7236 = vmatpush.bf16.msra.mxu0 %v5406
        %7237 = vmatpush.bf16.msra.mxu0 %v5398
        %7238 = vmatpush.bf16.msra.mxu0 %v5390
        %7239 = vmatpush.bf16.msra.mxu0 %v5382
        %7240 = vmatmul.bf16.gmra.mxu0 %v510
        %v7241 = vpop.f32.mrf.mxu0
        %v7242 = vadd.f32 %v7229, %v7241
        %v7243 = vpop.f32.mrf.mxu0
        %7244 = vdwg.mxu0
        %7245 = vmatpush.bf16.msra.mxu0 %v5502
        %7246 = vmatpush.bf16.msra.mxu0 %v5494
        %7247 = vmatpush.bf16.msra.mxu0 %v5486
        %7248 = vmatpush.bf16.msra.mxu0 %v5478
        %7249 = vmatpush.bf16.msra.mxu0 %v5470
        %7250 = vmatpush.bf16.msra.mxu0 %v5462
        %7251 = vmatpush.bf16.msra.mxu0 %v5454
        %7252 = vmatpush.bf16.msra.mxu0 %v5446
        %7253 = vmatmul.bf16.gmra.mxu0 %v511
        %v7254 = vpop.f32.mrf.mxu0
        %v7255 = vadd.f32 %v7242, %v7254
        %v7256 = vpop.f32.mrf.mxu0
        %7257 = vdwg.mxu0
        %7258 = vmatpush.bf16.msra.mxu0 %v5566
        %7259 = vmatpush.bf16.msra.mxu0 %v5558
        %7260 = vmatpush.bf16.msra.mxu0 %v5550
        %7261 = vmatpush.bf16.msra.mxu0 %v5542
        %7262 = vmatpush.bf16.msra.mxu0 %v5534
        %7263 = vmatpush.bf16.msra.mxu0 %v5526
        %7264 = vmatpush.bf16.msra.mxu0 %v5518
        %7265 = vmatpush.bf16.msra.mxu0 %v5510
        %7266 = vmatmul.bf16.gmra.mxu0 %v512
        %v7267 = vpop.f32.mrf.mxu0
        %v7268 = vadd.f32 %v7255, %v7267
        %v7269 = vpop.f32.mrf.mxu0
        %7270 = vdwg.mxu0
        %7271 = vmatpush.bf16.msra.mxu0 %v5630
        %7272 = vmatpush.bf16.msra.mxu0 %v5622
        %7273 = vmatpush.bf16.msra.mxu0 %v5614
        %7274 = vmatpush.bf16.msra.mxu0 %v5606
        %7275 = vmatpush.bf16.msra.mxu0 %v5598
        %7276 = vmatpush.bf16.msra.mxu0 %v5590
        %7277 = vmatpush.bf16.msra.mxu0 %v5582
        %7278 = vmatpush.bf16.msra.mxu0 %v5574
        %7279 = vmatmul.bf16.gmra.mxu0 %v513
        %v7280 = vpop.f32.mrf.mxu0
        %v7281 = vadd.f32 %v7268, %v7280
        %v7282 = vpop.f32.mrf.mxu0
        %7283 = vdwg.mxu0
        %7284 = vmatpush.bf16.msra.mxu0 %v4671
        %7285 = vmatpush.bf16.msra.mxu0 %v4663
        %7286 = vmatpush.bf16.msra.mxu0 %v4655
        %7287 = vmatpush.bf16.msra.mxu0 %v4647
        %7288 = vmatpush.bf16.msra.mxu0 %v4639
        %7289 = vmatpush.bf16.msra.mxu0 %v4631
        %7290 = vmatpush.bf16.msra.mxu0 %v4623
        %7291 = vmatpush.bf16.msra.mxu0 %v4615
        %7292 = vmatmul.bf16.gmra.mxu0 %v498
        %v7293 = vpop.f32.mrf.mxu0
        %v7294 = vadd.f32 0.0, %v7293
        %v7295 = vpop.f32.mrf.mxu0
        %7296 = vdwg.mxu0
        %7297 = vmatpush.bf16.msra.mxu0 %v4735
        %7298 = vmatpush.bf16.msra.mxu0 %v4727
        %7299 = vmatpush.bf16.msra.mxu0 %v4719
        %7300 = vmatpush.bf16.msra.mxu0 %v4711
        %7301 = vmatpush.bf16.msra.mxu0 %v4703
        %7302 = vmatpush.bf16.msra.mxu0 %v4695
        %7303 = vmatpush.bf16.msra.mxu0 %v4687
        %7304 = vmatpush.bf16.msra.mxu0 %v4679
        %7305 = vmatmul.bf16.gmra.mxu0 %v499
        %v7306 = vpop.f32.mrf.mxu0
        %v7307 = vadd.f32 %v7294, %v7306
        %v7308 = vpop.f32.mrf.mxu0
        %7309 = vdwg.mxu0
        %7310 = vmatpush.bf16.msra.mxu0 %v4799
        %7311 = vmatpush.bf16.msra.mxu0 %v4791
        %7312 = vmatpush.bf16.msra.mxu0 %v4783
        %7313 = vmatpush.bf16.msra.mxu0 %v4775
        %7314 = vmatpush.bf16.msra.mxu0 %v4767
        %7315 = vmatpush.bf16.msra.mxu0 %v4759
        %7316 = vmatpush.bf16.msra.mxu0 %v4751
        %7317 = vmatpush.bf16.msra.mxu0 %v4743
        %7318 = vmatmul.bf16.gmra.mxu0 %v500
        %v7319 = vpop.f32.mrf.mxu0
        %v7320 = vadd.f32 %v7307, %v7319
        %v7321 = vpop.f32.mrf.mxu0
        %7322 = vdwg.mxu0
        %7323 = vmatpush.bf16.msra.mxu0 %v4863
        %7324 = vmatpush.bf16.msra.mxu0 %v4855
        %7325 = vmatpush.bf16.msra.mxu0 %v4847
        %7326 = vmatpush.bf16.msra.mxu0 %v4839
        %7327 = vmatpush.bf16.msra.mxu0 %v4831
        %7328 = vmatpush.bf16.msra.mxu0 %v4823
        %7329 = vmatpush.bf16.msra.mxu0 %v4815
        %7330 = vmatpush.bf16.msra.mxu0 %v4807
        %7331 = vmatmul.bf16.gmra.mxu0 %v501
        %v7332 = vpop.f32.mrf.mxu0
        %v7333 = vadd.f32 %v7320, %v7332
        %v7334 = vpop.f32.mrf.mxu0
        %7335 = vdwg.mxu0
        %7336 = vmatpush.bf16.msra.mxu0 %v4927
        %7337 = vmatpush.bf16.msra.mxu0 %v4919
        %7338 = vmatpush.bf16.msra.mxu0 %v4911
        %7339 = vmatpush.bf16.msra.mxu0 %v4903
        %7340 = vmatpush.bf16.msra.mxu0 %v4895
        %7341 = vmatpush.bf16.msra.mxu0 %v4887
        %7342 = vmatpush.bf16.msra.mxu0 %v4879
        %7343 = vmatpush.bf16.msra.mxu0 %v4871
        %7344 = vmatmul.bf16.gmra.mxu0 %v502
        %v7345 = vpop.f32.mrf.mxu0
        %v7346 = vadd.f32 %v7333, %v7345
        %v7347 = vpop.f32.mrf.mxu0
        %7348 = vdwg.mxu0
        %7349 = vmatpush.bf16.msra.mxu0 %v4991
        %7350 = vmatpush.bf16.msra.mxu0 %v4983
        %7351 = vmatpush.bf16.msra.mxu0 %v4975
        %7352 = vmatpush.bf16.msra.mxu0 %v4967
        %7353 = vmatpush.bf16.msra.mxu0 %v4959
        %7354 = vmatpush.bf16.msra.mxu0 %v4951
        %7355 = vmatpush.bf16.msra.mxu0 %v4943
        %7356 = vmatpush.bf16.msra.mxu0 %v4935
        %7357 = vmatmul.bf16.gmra.mxu0 %v503
        %v7358 = vpop.f32.mrf.mxu0
        %v7359 = vadd.f32 %v7346, %v7358
        %v7360 = vpop.f32.mrf.mxu0
        %7361 = vdwg.mxu0
        %7362 = vmatpush.bf16.msra.mxu0 %v5055
        %7363 = vmatpush.bf16.msra.mxu0 %v5047
        %7364 = vmatpush.bf16.msra.mxu0 %v5039
        %7365 = vmatpush.bf16.msra.mxu0 %v5031
        %7366 = vmatpush.bf16.msra.mxu0 %v5023
        %7367 = vmatpush.bf16.msra.mxu0 %v5015
        %7368 = vmatpush.bf16.msra.mxu0 %v5007
        %7369 = vmatpush.bf16.msra.mxu0 %v4999
        %7370 = vmatmul.bf16.gmra.mxu0 %v504
        %v7371 = vpop.f32.mrf.mxu0
        %v7372 = vadd.f32 %v7359, %v7371
        %v7373 = vpop.f32.mrf.mxu0
        %7374 = vdwg.mxu0
        %7375 = vmatpush.bf16.msra.mxu0 %v5119
        %7376 = vmatpush.bf16.msra.mxu0 %v5111
        %7377 = vmatpush.bf16.msra.mxu0 %v5103
        %7378 = vmatpush.bf16.msra.mxu0 %v5095
        %7379 = vmatpush.bf16.msra.mxu0 %v5087
        %7380 = vmatpush.bf16.msra.mxu0 %v5079
        %7381 = vmatpush.bf16.msra.mxu0 %v5071
        %7382 = vmatpush.bf16.msra.mxu0 %v5063
        %7383 = vmatmul.bf16.gmra.mxu0 %v505
        %v7384 = vpop.f32.mrf.mxu0
        %v7385 = vadd.f32 %v7372, %v7384
        %v7386 = vpop.f32.mrf.mxu0
        %7387 = vdwg.mxu0
        %7388 = vmatpush.bf16.msra.mxu0 %v5183
        %7389 = vmatpush.bf16.msra.mxu0 %v5175
        %7390 = vmatpush.bf16.msra.mxu0 %v5167
        %7391 = vmatpush.bf16.msra.mxu0 %v5159
        %7392 = vmatpush.bf16.msra.mxu0 %v5151
        %7393 = vmatpush.bf16.msra.mxu0 %v5143
        %7394 = vmatpush.bf16.msra.mxu0 %v5135
        %7395 = vmatpush.bf16.msra.mxu0 %v5127
        %7396 = vmatmul.bf16.gmra.mxu0 %v506
        %v7397 = vpop.f32.mrf.mxu0
        %v7398 = vadd.f32 %v7385, %v7397
        %v7399 = vpop.f32.mrf.mxu0
        %7400 = vdwg.mxu0
        %7401 = vmatpush.bf16.msra.mxu0 %v5247
        %7402 = vmatpush.bf16.msra.mxu0 %v5239
        %7403 = vmatpush.bf16.msra.mxu0 %v5231
        %7404 = vmatpush.bf16.msra.mxu0 %v5223
        %7405 = vmatpush.bf16.msra.mxu0 %v5215
        %7406 = vmatpush.bf16.msra.mxu0 %v5207
        %7407 = vmatpush.bf16.msra.mxu0 %v5199
        %7408 = vmatpush.bf16.msra.mxu0 %v5191
        %7409 = vmatmul.bf16.gmra.mxu0 %v507
        %v7410 = vpop.f32.mrf.mxu0
        %v7411 = vadd.f32 %v7398, %v7410
        %v7412 = vpop.f32.mrf.mxu0
        %7413 = vdwg.mxu0
        %7414 = vmatpush.bf16.msra.mxu0 %v5311
        %7415 = vmatpush.bf16.msra.mxu0 %v5303
        %7416 = vmatpush.bf16.msra.mxu0 %v5295
        %7417 = vmatpush.bf16.msra.mxu0 %v5287
        %7418 = vmatpush.bf16.msra.mxu0 %v5279
        %7419 = vmatpush.bf16.msra.mxu0 %v5271
        %7420 = vmatpush.bf16.msra.mxu0 %v5263
        %7421 = vmatpush.bf16.msra.mxu0 %v5255
        %7422 = vmatmul.bf16.gmra.mxu0 %v508
        %v7423 = vpop.f32.mrf.mxu0
        %v7424 = vadd.f32 %v7411, %v7423
        %v7425 = vpop.f32.mrf.mxu0
        %7426 = vdwg.mxu0
        %7427 = vmatpush.bf16.msra.mxu0 %v5375
        %7428 = vmatpush.bf16.msra.mxu0 %v5367
        %7429 = vmatpush.bf16.msra.mxu0 %v5359
        %7430 = vmatpush.bf16.msra.mxu0 %v5351
        %7431 = vmatpush.bf16.msra.mxu0 %v5343
        %7432 = vmatpush.bf16.msra.mxu0 %v5335
        %7433 = vmatpush.bf16.msra.mxu0 %v5327
        %7434 = vmatpush.bf16.msra.mxu0 %v5319
        %7435 = vmatmul.bf16.gmra.mxu0 %v509
        %v7436 = vpop.f32.mrf.mxu0
        %v7437 = vadd.f32 %v7424, %v7436
        %v7438 = vpop.f32.mrf.mxu0
        %7439 = vdwg.mxu0
        %7440 = vmatpush.bf16.msra.mxu0 %v5439
        %7441 = vmatpush.bf16.msra.mxu0 %v5431
        %7442 = vmatpush.bf16.msra.mxu0 %v5423
        %7443 = vmatpush.bf16.msra.mxu0 %v5415
        %7444 = vmatpush.bf16.msra.mxu0 %v5407
        %7445 = vmatpush.bf16.msra.mxu0 %v5399
        %7446 = vmatpush.bf16.msra.mxu0 %v5391
        %7447 = vmatpush.bf16.msra.mxu0 %v5383
        %7448 = vmatmul.bf16.gmra.mxu0 %v510
        %v7449 = vpop.f32.mrf.mxu0
        %v7450 = vadd.f32 %v7437, %v7449
        %v7451 = vpop.f32.mrf.mxu0
        %7452 = vdwg.mxu0
        %7453 = vmatpush.bf16.msra.mxu0 %v5503
        %7454 = vmatpush.bf16.msra.mxu0 %v5495
        %7455 = vmatpush.bf16.msra.mxu0 %v5487
        %7456 = vmatpush.bf16.msra.mxu0 %v5479
        %7457 = vmatpush.bf16.msra.mxu0 %v5471
        %7458 = vmatpush.bf16.msra.mxu0 %v5463
        %7459 = vmatpush.bf16.msra.mxu0 %v5455
        %7460 = vmatpush.bf16.msra.mxu0 %v5447
        %7461 = vmatmul.bf16.gmra.mxu0 %v511
        %v7462 = vpop.f32.mrf.mxu0
        %v7463 = vadd.f32 %v7450, %v7462
        %v7464 = vpop.f32.mrf.mxu0
        %7465 = vdwg.mxu0
        %7466 = vmatpush.bf16.msra.mxu0 %v5567
        %7467 = vmatpush.bf16.msra.mxu0 %v5559
        %7468 = vmatpush.bf16.msra.mxu0 %v5551
        %7469 = vmatpush.bf16.msra.mxu0 %v5543
        %7470 = vmatpush.bf16.msra.mxu0 %v5535
        %7471 = vmatpush.bf16.msra.mxu0 %v5527
        %7472 = vmatpush.bf16.msra.mxu0 %v5519
        %7473 = vmatpush.bf16.msra.mxu0 %v5511
        %7474 = vmatmul.bf16.gmra.mxu0 %v512
        %v7475 = vpop.f32.mrf.mxu0
        %v7476 = vadd.f32 %v7463, %v7475
        %v7477 = vpop.f32.mrf.mxu0
        %7478 = vdwg.mxu0
        %7479 = vmatpush.bf16.msra.mxu0 %v5631
        %7480 = vmatpush.bf16.msra.mxu0 %v5623
        %7481 = vmatpush.bf16.msra.mxu0 %v5615
        %7482 = vmatpush.bf16.msra.mxu0 %v5607
        %7483 = vmatpush.bf16.msra.mxu0 %v5599
        %7484 = vmatpush.bf16.msra.mxu0 %v5591
        %7485 = vmatpush.bf16.msra.mxu0 %v5583
        %7486 = vmatpush.bf16.msra.mxu0 %v5575
        %7487 = vmatmul.bf16.gmra.mxu0 %v513
        %v7488 = vpop.f32.mrf.mxu0
        %v7489 = vadd.f32 %v7476, %v7488
        %v7490 = vpop.f32.mrf.mxu0
        %7491 = vdwg.mxu0
        %7492 = vmatpush.bf16.msra.mxu0 %v4672
        %7493 = vmatpush.bf16.msra.mxu0 %v4664
        %7494 = vmatpush.bf16.msra.mxu0 %v4656
        %7495 = vmatpush.bf16.msra.mxu0 %v4648
        %7496 = vmatpush.bf16.msra.mxu0 %v4640
        %7497 = vmatpush.bf16.msra.mxu0 %v4632
        %7498 = vmatpush.bf16.msra.mxu0 %v4624
        %7499 = vmatpush.bf16.msra.mxu0 %v4616
        %7500 = vmatmul.bf16.gmra.mxu0 %v498
        %v7501 = vpop.f32.mrf.mxu0
        %v7502 = vadd.f32 0.0, %v7501
        %v7503 = vpop.f32.mrf.mxu0
        %7504 = vdwg.mxu0
        %7505 = vmatpush.bf16.msra.mxu0 %v4736
        %7506 = vmatpush.bf16.msra.mxu0 %v4728
        %7507 = vmatpush.bf16.msra.mxu0 %v4720
        %7508 = vmatpush.bf16.msra.mxu0 %v4712
        %7509 = vmatpush.bf16.msra.mxu0 %v4704
        %7510 = vmatpush.bf16.msra.mxu0 %v4696
        %7511 = vmatpush.bf16.msra.mxu0 %v4688
        %7512 = vmatpush.bf16.msra.mxu0 %v4680
        %7513 = vmatmul.bf16.gmra.mxu0 %v499
        %v7514 = vpop.f32.mrf.mxu0
        %v7515 = vadd.f32 %v7502, %v7514
        %v7516 = vpop.f32.mrf.mxu0
        %7517 = vdwg.mxu0
        %7518 = vmatpush.bf16.msra.mxu0 %v4800
        %7519 = vmatpush.bf16.msra.mxu0 %v4792
        %7520 = vmatpush.bf16.msra.mxu0 %v4784
        %7521 = vmatpush.bf16.msra.mxu0 %v4776
        %7522 = vmatpush.bf16.msra.mxu0 %v4768
        %7523 = vmatpush.bf16.msra.mxu0 %v4760
        %7524 = vmatpush.bf16.msra.mxu0 %v4752
        %7525 = vmatpush.bf16.msra.mxu0 %v4744
        %7526 = vmatmul.bf16.gmra.mxu0 %v500
        %v7527 = vpop.f32.mrf.mxu0
        %v7528 = vadd.f32 %v7515, %v7527
        %v7529 = vpop.f32.mrf.mxu0
        %7530 = vdwg.mxu0
        %7531 = vmatpush.bf16.msra.mxu0 %v4864
        %7532 = vmatpush.bf16.msra.mxu0 %v4856
        %7533 = vmatpush.bf16.msra.mxu0 %v4848
        %7534 = vmatpush.bf16.msra.mxu0 %v4840
        %7535 = vmatpush.bf16.msra.mxu0 %v4832
        %7536 = vmatpush.bf16.msra.mxu0 %v4824
        %7537 = vmatpush.bf16.msra.mxu0 %v4816
        %7538 = vmatpush.bf16.msra.mxu0 %v4808
        %7539 = vmatmul.bf16.gmra.mxu0 %v501
        %v7540 = vpop.f32.mrf.mxu0
        %v7541 = vadd.f32 %v7528, %v7540
        %v7542 = vpop.f32.mrf.mxu0
        %7543 = vdwg.mxu0
        %7544 = vmatpush.bf16.msra.mxu0 %v4928
        %7545 = vmatpush.bf16.msra.mxu0 %v4920
        %7546 = vmatpush.bf16.msra.mxu0 %v4912
        %7547 = vmatpush.bf16.msra.mxu0 %v4904
        %7548 = vmatpush.bf16.msra.mxu0 %v4896
        %7549 = vmatpush.bf16.msra.mxu0 %v4888
        %7550 = vmatpush.bf16.msra.mxu0 %v4880
        %7551 = vmatpush.bf16.msra.mxu0 %v4872
        %7552 = vmatmul.bf16.gmra.mxu0 %v502
        %v7553 = vpop.f32.mrf.mxu0
        %v7554 = vadd.f32 %v7541, %v7553
        %v7555 = vpop.f32.mrf.mxu0
        %7556 = vdwg.mxu0
        %7557 = vmatpush.bf16.msra.mxu0 %v4992
        %7558 = vmatpush.bf16.msra.mxu0 %v4984
        %7559 = vmatpush.bf16.msra.mxu0 %v4976
        %7560 = vmatpush.bf16.msra.mxu0 %v4968
        %7561 = vmatpush.bf16.msra.mxu0 %v4960
        %7562 = vmatpush.bf16.msra.mxu0 %v4952
        %7563 = vmatpush.bf16.msra.mxu0 %v4944
        %7564 = vmatpush.bf16.msra.mxu0 %v4936
        %7565 = vmatmul.bf16.gmra.mxu0 %v503
        %v7566 = vpop.f32.mrf.mxu0
        %v7567 = vadd.f32 %v7554, %v7566
        %v7568 = vpop.f32.mrf.mxu0
        %7569 = vdwg.mxu0
        %7570 = vmatpush.bf16.msra.mxu0 %v5056
        %7571 = vmatpush.bf16.msra.mxu0 %v5048
        %7572 = vmatpush.bf16.msra.mxu0 %v5040
        %7573 = vmatpush.bf16.msra.mxu0 %v5032
        %7574 = vmatpush.bf16.msra.mxu0 %v5024
        %7575 = vmatpush.bf16.msra.mxu0 %v5016
        %7576 = vmatpush.bf16.msra.mxu0 %v5008
        %7577 = vmatpush.bf16.msra.mxu0 %v5000
        %7578 = vmatmul.bf16.gmra.mxu0 %v504
        %v7579 = vpop.f32.mrf.mxu0
        %v7580 = vadd.f32 %v7567, %v7579
        %v7581 = vpop.f32.mrf.mxu0
        %7582 = vdwg.mxu0
        %7583 = vmatpush.bf16.msra.mxu0 %v5120
        %7584 = vmatpush.bf16.msra.mxu0 %v5112
        %7585 = vmatpush.bf16.msra.mxu0 %v5104
        %7586 = vmatpush.bf16.msra.mxu0 %v5096
        %7587 = vmatpush.bf16.msra.mxu0 %v5088
        %7588 = vmatpush.bf16.msra.mxu0 %v5080
        %7589 = vmatpush.bf16.msra.mxu0 %v5072
        %7590 = vmatpush.bf16.msra.mxu0 %v5064
        %7591 = vmatmul.bf16.gmra.mxu0 %v505
        %v7592 = vpop.f32.mrf.mxu0
        %v7593 = vadd.f32 %v7580, %v7592
        %v7594 = vpop.f32.mrf.mxu0
        %7595 = vdwg.mxu0
        %7596 = vmatpush.bf16.msra.mxu0 %v5184
        %7597 = vmatpush.bf16.msra.mxu0 %v5176
        %7598 = vmatpush.bf16.msra.mxu0 %v5168
        %7599 = vmatpush.bf16.msra.mxu0 %v5160
        %7600 = vmatpush.bf16.msra.mxu0 %v5152
        %7601 = vmatpush.bf16.msra.mxu0 %v5144
        %7602 = vmatpush.bf16.msra.mxu0 %v5136
        %7603 = vmatpush.bf16.msra.mxu0 %v5128
        %7604 = vmatmul.bf16.gmra.mxu0 %v506
        %v7605 = vpop.f32.mrf.mxu0
        %v7606 = vadd.f32 %v7593, %v7605
        %v7607 = vpop.f32.mrf.mxu0
        %7608 = vdwg.mxu0
        %7609 = vmatpush.bf16.msra.mxu0 %v5248
        %7610 = vmatpush.bf16.msra.mxu0 %v5240
        %7611 = vmatpush.bf16.msra.mxu0 %v5232
        %7612 = vmatpush.bf16.msra.mxu0 %v5224
        %7613 = vmatpush.bf16.msra.mxu0 %v5216
        %7614 = vmatpush.bf16.msra.mxu0 %v5208
        %7615 = vmatpush.bf16.msra.mxu0 %v5200
        %7616 = vmatpush.bf16.msra.mxu0 %v5192
        %7617 = vmatmul.bf16.gmra.mxu0 %v507
        %v7618 = vpop.f32.mrf.mxu0
        %v7619 = vadd.f32 %v7606, %v7618
        %v7620 = vpop.f32.mrf.mxu0
        %7621 = vdwg.mxu0
        %7622 = vmatpush.bf16.msra.mxu0 %v5312
        %7623 = vmatpush.bf16.msra.mxu0 %v5304
        %7624 = vmatpush.bf16.msra.mxu0 %v5296
        %7625 = vmatpush.bf16.msra.mxu0 %v5288
        %7626 = vmatpush.bf16.msra.mxu0 %v5280
        %7627 = vmatpush.bf16.msra.mxu0 %v5272
        %7628 = vmatpush.bf16.msra.mxu0 %v5264
        %7629 = vmatpush.bf16.msra.mxu0 %v5256
        %7630 = vmatmul.bf16.gmra.mxu0 %v508
        %v7631 = vpop.f32.mrf.mxu0
        %v7632 = vadd.f32 %v7619, %v7631
        %v7633 = vpop.f32.mrf.mxu0
        %7634 = vdwg.mxu0
        %7635 = vmatpush.bf16.msra.mxu0 %v5376
        %7636 = vmatpush.bf16.msra.mxu0 %v5368
        %7637 = vmatpush.bf16.msra.mxu0 %v5360
        %7638 = vmatpush.bf16.msra.mxu0 %v5352
        %7639 = vmatpush.bf16.msra.mxu0 %v5344
        %7640 = vmatpush.bf16.msra.mxu0 %v5336
        %7641 = vmatpush.bf16.msra.mxu0 %v5328
        %7642 = vmatpush.bf16.msra.mxu0 %v5320
        %7643 = vmatmul.bf16.gmra.mxu0 %v509
        %v7644 = vpop.f32.mrf.mxu0
        %v7645 = vadd.f32 %v7632, %v7644
        %v7646 = vpop.f32.mrf.mxu0
        %7647 = vdwg.mxu0
        %7648 = vmatpush.bf16.msra.mxu0 %v5440
        %7649 = vmatpush.bf16.msra.mxu0 %v5432
        %7650 = vmatpush.bf16.msra.mxu0 %v5424
        %7651 = vmatpush.bf16.msra.mxu0 %v5416
        %7652 = vmatpush.bf16.msra.mxu0 %v5408
        %7653 = vmatpush.bf16.msra.mxu0 %v5400
        %7654 = vmatpush.bf16.msra.mxu0 %v5392
        %7655 = vmatpush.bf16.msra.mxu0 %v5384
        %7656 = vmatmul.bf16.gmra.mxu0 %v510
        %v7657 = vpop.f32.mrf.mxu0
        %v7658 = vadd.f32 %v7645, %v7657
        %v7659 = vpop.f32.mrf.mxu0
        %7660 = vdwg.mxu0
        %7661 = vmatpush.bf16.msra.mxu0 %v5504
        %7662 = vmatpush.bf16.msra.mxu0 %v5496
        %7663 = vmatpush.bf16.msra.mxu0 %v5488
        %7664 = vmatpush.bf16.msra.mxu0 %v5480
        %7665 = vmatpush.bf16.msra.mxu0 %v5472
        %7666 = vmatpush.bf16.msra.mxu0 %v5464
        %7667 = vmatpush.bf16.msra.mxu0 %v5456
        %7668 = vmatpush.bf16.msra.mxu0 %v5448
        %7669 = vmatmul.bf16.gmra.mxu0 %v511
        %v7670 = vpop.f32.mrf.mxu0
        %v7671 = vadd.f32 %v7658, %v7670
        %v7672 = vpop.f32.mrf.mxu0
        %7673 = vdwg.mxu0
        %7674 = vmatpush.bf16.msra.mxu0 %v5568
        %7675 = vmatpush.bf16.msra.mxu0 %v5560
        %7676 = vmatpush.bf16.msra.mxu0 %v5552
        %7677 = vmatpush.bf16.msra.mxu0 %v5544
        %7678 = vmatpush.bf16.msra.mxu0 %v5536
        %7679 = vmatpush.bf16.msra.mxu0 %v5528
        %7680 = vmatpush.bf16.msra.mxu0 %v5520
        %7681 = vmatpush.bf16.msra.mxu0 %v5512
        %7682 = vmatmul.bf16.gmra.mxu0 %v512
        %v7683 = vpop.f32.mrf.mxu0
        %v7684 = vadd.f32 %v7671, %v7683
        %v7685 = vpop.f32.mrf.mxu0
        %7686 = vdwg.mxu0
        %7687 = vmatpush.bf16.msra.mxu0 %v5632
        %7688 = vmatpush.bf16.msra.mxu0 %v5624
        %7689 = vmatpush.bf16.msra.mxu0 %v5616
        %7690 = vmatpush.bf16.msra.mxu0 %v5608
        %7691 = vmatpush.bf16.msra.mxu0 %v5600
        %7692 = vmatpush.bf16.msra.mxu0 %v5592
        %7693 = vmatpush.bf16.msra.mxu0 %v5584
        %7694 = vmatpush.bf16.msra.mxu0 %v5576
        %7695 = vmatmul.bf16.gmra.mxu0 %v513
        %v7696 = vpop.f32.mrf.mxu0
        %v7697 = vadd.f32 %v7684, %v7696
        %v7698 = vpop.f32.mrf.mxu0
        %7699 = vdwg.mxu0
        %7700 = vmatpush.bf16.msra.mxu0 %v4673
        %7701 = vmatpush.bf16.msra.mxu0 %v4665
        %7702 = vmatpush.bf16.msra.mxu0 %v4657
        %7703 = vmatpush.bf16.msra.mxu0 %v4649
        %7704 = vmatpush.bf16.msra.mxu0 %v4641
        %7705 = vmatpush.bf16.msra.mxu0 %v4633
        %7706 = vmatpush.bf16.msra.mxu0 %v4625
        %7707 = vmatpush.bf16.msra.mxu0 %v4617
        %7708 = vmatmul.bf16.gmra.mxu0 %v498
        %v7709 = vpop.f32.mrf.mxu0
        %v7710 = vadd.f32 0.0, %v7709
        %v7711 = vpop.f32.mrf.mxu0
        %7712 = vdwg.mxu0
        %7713 = vmatpush.bf16.msra.mxu0 %v4737
        %7714 = vmatpush.bf16.msra.mxu0 %v4729
        %7715 = vmatpush.bf16.msra.mxu0 %v4721
        %7716 = vmatpush.bf16.msra.mxu0 %v4713
        %7717 = vmatpush.bf16.msra.mxu0 %v4705
        %7718 = vmatpush.bf16.msra.mxu0 %v4697
        %7719 = vmatpush.bf16.msra.mxu0 %v4689
        %7720 = vmatpush.bf16.msra.mxu0 %v4681
        %7721 = vmatmul.bf16.gmra.mxu0 %v499
        %v7722 = vpop.f32.mrf.mxu0
        %v7723 = vadd.f32 %v7710, %v7722
        %v7724 = vpop.f32.mrf.mxu0
        %7725 = vdwg.mxu0
        %7726 = vmatpush.bf16.msra.mxu0 %v4801
        %7727 = vmatpush.bf16.msra.mxu0 %v4793
        %7728 = vmatpush.bf16.msra.mxu0 %v4785
        %7729 = vmatpush.bf16.msra.mxu0 %v4777
        %7730 = vmatpush.bf16.msra.mxu0 %v4769
        %7731 = vmatpush.bf16.msra.mxu0 %v4761
        %7732 = vmatpush.bf16.msra.mxu0 %v4753
        %7733 = vmatpush.bf16.msra.mxu0 %v4745
        %7734 = vmatmul.bf16.gmra.mxu0 %v500
        %v7735 = vpop.f32.mrf.mxu0
        %v7736 = vadd.f32 %v7723, %v7735
        %v7737 = vpop.f32.mrf.mxu0
        %7738 = vdwg.mxu0
        %7739 = vmatpush.bf16.msra.mxu0 %v4865
        %7740 = vmatpush.bf16.msra.mxu0 %v4857
        %7741 = vmatpush.bf16.msra.mxu0 %v4849
        %7742 = vmatpush.bf16.msra.mxu0 %v4841
        %7743 = vmatpush.bf16.msra.mxu0 %v4833
        %7744 = vmatpush.bf16.msra.mxu0 %v4825
        %7745 = vmatpush.bf16.msra.mxu0 %v4817
        %7746 = vmatpush.bf16.msra.mxu0 %v4809
        %7747 = vmatmul.bf16.gmra.mxu0 %v501
        %v7748 = vpop.f32.mrf.mxu0
        %v7749 = vadd.f32 %v7736, %v7748
        %v7750 = vpop.f32.mrf.mxu0
        %7751 = vdwg.mxu0
        %7752 = vmatpush.bf16.msra.mxu0 %v4929
        %7753 = vmatpush.bf16.msra.mxu0 %v4921
        %7754 = vmatpush.bf16.msra.mxu0 %v4913
        %7755 = vmatpush.bf16.msra.mxu0 %v4905
        %7756 = vmatpush.bf16.msra.mxu0 %v4897
        %7757 = vmatpush.bf16.msra.mxu0 %v4889
        %7758 = vmatpush.bf16.msra.mxu0 %v4881
        %7759 = vmatpush.bf16.msra.mxu0 %v4873
        %7760 = vmatmul.bf16.gmra.mxu0 %v502
        %v7761 = vpop.f32.mrf.mxu0
        %v7762 = vadd.f32 %v7749, %v7761
        %v7763 = vpop.f32.mrf.mxu0
        %7764 = vdwg.mxu0
        %7765 = vmatpush.bf16.msra.mxu0 %v4993
        %7766 = vmatpush.bf16.msra.mxu0 %v4985
        %7767 = vmatpush.bf16.msra.mxu0 %v4977
        %7768 = vmatpush.bf16.msra.mxu0 %v4969
        %7769 = vmatpush.bf16.msra.mxu0 %v4961
        %7770 = vmatpush.bf16.msra.mxu0 %v4953
        %7771 = vmatpush.bf16.msra.mxu0 %v4945
        %7772 = vmatpush.bf16.msra.mxu0 %v4937
        %7773 = vmatmul.bf16.gmra.mxu0 %v503
        %v7774 = vpop.f32.mrf.mxu0
        %v7775 = vadd.f32 %v7762, %v7774
        %v7776 = vpop.f32.mrf.mxu0
        %7777 = vdwg.mxu0
        %7778 = vmatpush.bf16.msra.mxu0 %v5057
        %7779 = vmatpush.bf16.msra.mxu0 %v5049
        %7780 = vmatpush.bf16.msra.mxu0 %v5041
        %7781 = vmatpush.bf16.msra.mxu0 %v5033
        %7782 = vmatpush.bf16.msra.mxu0 %v5025
        %7783 = vmatpush.bf16.msra.mxu0 %v5017
        %7784 = vmatpush.bf16.msra.mxu0 %v5009
        %7785 = vmatpush.bf16.msra.mxu0 %v5001
        %7786 = vmatmul.bf16.gmra.mxu0 %v504
        %v7787 = vpop.f32.mrf.mxu0
        %v7788 = vadd.f32 %v7775, %v7787
        %v7789 = vpop.f32.mrf.mxu0
        %7790 = vdwg.mxu0
        %7791 = vmatpush.bf16.msra.mxu0 %v5121
        %7792 = vmatpush.bf16.msra.mxu0 %v5113
        %7793 = vmatpush.bf16.msra.mxu0 %v5105
        %7794 = vmatpush.bf16.msra.mxu0 %v5097
        %7795 = vmatpush.bf16.msra.mxu0 %v5089
        %7796 = vmatpush.bf16.msra.mxu0 %v5081
        %7797 = vmatpush.bf16.msra.mxu0 %v5073
        %7798 = vmatpush.bf16.msra.mxu0 %v5065
        %7799 = vmatmul.bf16.gmra.mxu0 %v505
        %v7800 = vpop.f32.mrf.mxu0
        %v7801 = vadd.f32 %v7788, %v7800
        %v7802 = vpop.f32.mrf.mxu0
        %7803 = vdwg.mxu0
        %7804 = vmatpush.bf16.msra.mxu0 %v5185
        %7805 = vmatpush.bf16.msra.mxu0 %v5177
        %7806 = vmatpush.bf16.msra.mxu0 %v5169
        %7807 = vmatpush.bf16.msra.mxu0 %v5161
        %7808 = vmatpush.bf16.msra.mxu0 %v5153
        %7809 = vmatpush.bf16.msra.mxu0 %v5145
        %7810 = vmatpush.bf16.msra.mxu0 %v5137
        %7811 = vmatpush.bf16.msra.mxu0 %v5129
        %7812 = vmatmul.bf16.gmra.mxu0 %v506
        %v7813 = vpop.f32.mrf.mxu0
        %v7814 = vadd.f32 %v7801, %v7813
        %v7815 = vpop.f32.mrf.mxu0
        %7816 = vdwg.mxu0
        %7817 = vmatpush.bf16.msra.mxu0 %v5249
        %7818 = vmatpush.bf16.msra.mxu0 %v5241
        %7819 = vmatpush.bf16.msra.mxu0 %v5233
        %7820 = vmatpush.bf16.msra.mxu0 %v5225
        %7821 = vmatpush.bf16.msra.mxu0 %v5217
        %7822 = vmatpush.bf16.msra.mxu0 %v5209
        %7823 = vmatpush.bf16.msra.mxu0 %v5201
        %7824 = vmatpush.bf16.msra.mxu0 %v5193
        %7825 = vmatmul.bf16.gmra.mxu0 %v507
        %v7826 = vpop.f32.mrf.mxu0
        %v7827 = vadd.f32 %v7814, %v7826
        %v7828 = vpop.f32.mrf.mxu0
        %7829 = vdwg.mxu0
        %7830 = vmatpush.bf16.msra.mxu0 %v5313
        %7831 = vmatpush.bf16.msra.mxu0 %v5305
        %7832 = vmatpush.bf16.msra.mxu0 %v5297
        %7833 = vmatpush.bf16.msra.mxu0 %v5289
        %7834 = vmatpush.bf16.msra.mxu0 %v5281
        %7835 = vmatpush.bf16.msra.mxu0 %v5273
        %7836 = vmatpush.bf16.msra.mxu0 %v5265
        %7837 = vmatpush.bf16.msra.mxu0 %v5257
        %7838 = vmatmul.bf16.gmra.mxu0 %v508
        %v7839 = vpop.f32.mrf.mxu0
        %v7840 = vadd.f32 %v7827, %v7839
        %v7841 = vpop.f32.mrf.mxu0
        %7842 = vdwg.mxu0
        %7843 = vmatpush.bf16.msra.mxu0 %v5377
        %7844 = vmatpush.bf16.msra.mxu0 %v5369
        %7845 = vmatpush.bf16.msra.mxu0 %v5361
        %7846 = vmatpush.bf16.msra.mxu0 %v5353
        %7847 = vmatpush.bf16.msra.mxu0 %v5345
        %7848 = vmatpush.bf16.msra.mxu0 %v5337
        %7849 = vmatpush.bf16.msra.mxu0 %v5329
        %7850 = vmatpush.bf16.msra.mxu0 %v5321
        %7851 = vmatmul.bf16.gmra.mxu0 %v509
        %v7852 = vpop.f32.mrf.mxu0
        %v7853 = vadd.f32 %v7840, %v7852
        %v7854 = vpop.f32.mrf.mxu0
        %7855 = vdwg.mxu0
        %7856 = vmatpush.bf16.msra.mxu0 %v5441
        %7857 = vmatpush.bf16.msra.mxu0 %v5433
        %7858 = vmatpush.bf16.msra.mxu0 %v5425
        %7859 = vmatpush.bf16.msra.mxu0 %v5417
        %7860 = vmatpush.bf16.msra.mxu0 %v5409
        %7861 = vmatpush.bf16.msra.mxu0 %v5401
        %7862 = vmatpush.bf16.msra.mxu0 %v5393
        %7863 = vmatpush.bf16.msra.mxu0 %v5385
        %7864 = vmatmul.bf16.gmra.mxu0 %v510
        %v7865 = vpop.f32.mrf.mxu0
        %v7866 = vadd.f32 %v7853, %v7865
        %v7867 = vpop.f32.mrf.mxu0
        %7868 = vdwg.mxu0
        %7869 = vmatpush.bf16.msra.mxu0 %v5505
        %7870 = vmatpush.bf16.msra.mxu0 %v5497
        %7871 = vmatpush.bf16.msra.mxu0 %v5489
        %7872 = vmatpush.bf16.msra.mxu0 %v5481
        %7873 = vmatpush.bf16.msra.mxu0 %v5473
        %7874 = vmatpush.bf16.msra.mxu0 %v5465
        %7875 = vmatpush.bf16.msra.mxu0 %v5457
        %7876 = vmatpush.bf16.msra.mxu0 %v5449
        %7877 = vmatmul.bf16.gmra.mxu0 %v511
        %v7878 = vpop.f32.mrf.mxu0
        %v7879 = vadd.f32 %v7866, %v7878
        %v7880 = vpop.f32.mrf.mxu0
        %7881 = vdwg.mxu0
        %7882 = vmatpush.bf16.msra.mxu0 %v5569
        %7883 = vmatpush.bf16.msra.mxu0 %v5561
        %7884 = vmatpush.bf16.msra.mxu0 %v5553
        %7885 = vmatpush.bf16.msra.mxu0 %v5545
        %7886 = vmatpush.bf16.msra.mxu0 %v5537
        %7887 = vmatpush.bf16.msra.mxu0 %v5529
        %7888 = vmatpush.bf16.msra.mxu0 %v5521
        %7889 = vmatpush.bf16.msra.mxu0 %v5513
        %7890 = vmatmul.bf16.gmra.mxu0 %v512
        %v7891 = vpop.f32.mrf.mxu0
        %v7892 = vadd.f32 %v7879, %v7891
        %v7893 = vpop.f32.mrf.mxu0
        %7894 = vdwg.mxu0
        %7895 = vmatpush.bf16.msra.mxu0 %v5633
        %7896 = vmatpush.bf16.msra.mxu0 %v5625
        %7897 = vmatpush.bf16.msra.mxu0 %v5617
        %7898 = vmatpush.bf16.msra.mxu0 %v5609
        %7899 = vmatpush.bf16.msra.mxu0 %v5601
        %7900 = vmatpush.bf16.msra.mxu0 %v5593
        %7901 = vmatpush.bf16.msra.mxu0 %v5585
        %7902 = vmatpush.bf16.msra.mxu0 %v5577
        %7903 = vmatmul.bf16.gmra.mxu0 %v513
        %v7904 = vpop.f32.mrf.mxu0
        %v7905 = vadd.f32 %v7892, %v7904
        %v7906 = vpop.f32.mrf.mxu0
        %7907 = vdwg.mxu0
        %7908 = vmatpush.bf16.msra.mxu0 %v4674
        %7909 = vmatpush.bf16.msra.mxu0 %v4666
        %7910 = vmatpush.bf16.msra.mxu0 %v4658
        %7911 = vmatpush.bf16.msra.mxu0 %v4650
        %7912 = vmatpush.bf16.msra.mxu0 %v4642
        %7913 = vmatpush.bf16.msra.mxu0 %v4634
        %7914 = vmatpush.bf16.msra.mxu0 %v4626
        %7915 = vmatpush.bf16.msra.mxu0 %v4618
        %7916 = vmatmul.bf16.gmra.mxu0 %v498
        %v7917 = vpop.f32.mrf.mxu0
        %v7918 = vadd.f32 0.0, %v7917
        %v7919 = vpop.f32.mrf.mxu0
        %7920 = vdwg.mxu0
        %7921 = vmatpush.bf16.msra.mxu0 %v4738
        %7922 = vmatpush.bf16.msra.mxu0 %v4730
        %7923 = vmatpush.bf16.msra.mxu0 %v4722
        %7924 = vmatpush.bf16.msra.mxu0 %v4714
        %7925 = vmatpush.bf16.msra.mxu0 %v4706
        %7926 = vmatpush.bf16.msra.mxu0 %v4698
        %7927 = vmatpush.bf16.msra.mxu0 %v4690
        %7928 = vmatpush.bf16.msra.mxu0 %v4682
        %7929 = vmatmul.bf16.gmra.mxu0 %v499
        %v7930 = vpop.f32.mrf.mxu0
        %v7931 = vadd.f32 %v7918, %v7930
        %v7932 = vpop.f32.mrf.mxu0
        %7933 = vdwg.mxu0
        %7934 = vmatpush.bf16.msra.mxu0 %v4802
        %7935 = vmatpush.bf16.msra.mxu0 %v4794
        %7936 = vmatpush.bf16.msra.mxu0 %v4786
        %7937 = vmatpush.bf16.msra.mxu0 %v4778
        %7938 = vmatpush.bf16.msra.mxu0 %v4770
        %7939 = vmatpush.bf16.msra.mxu0 %v4762
        %7940 = vmatpush.bf16.msra.mxu0 %v4754
        %7941 = vmatpush.bf16.msra.mxu0 %v4746
        %7942 = vmatmul.bf16.gmra.mxu0 %v500
        %v7943 = vpop.f32.mrf.mxu0
        %v7944 = vadd.f32 %v7931, %v7943
        %v7945 = vpop.f32.mrf.mxu0
        %7946 = vdwg.mxu0
        %7947 = vmatpush.bf16.msra.mxu0 %v4866
        %7948 = vmatpush.bf16.msra.mxu0 %v4858
        %7949 = vmatpush.bf16.msra.mxu0 %v4850
        %7950 = vmatpush.bf16.msra.mxu0 %v4842
        %7951 = vmatpush.bf16.msra.mxu0 %v4834
        %7952 = vmatpush.bf16.msra.mxu0 %v4826
        %7953 = vmatpush.bf16.msra.mxu0 %v4818
        %7954 = vmatpush.bf16.msra.mxu0 %v4810
        %7955 = vmatmul.bf16.gmra.mxu0 %v501
        %v7956 = vpop.f32.mrf.mxu0
        %v7957 = vadd.f32 %v7944, %v7956
        %v7958 = vpop.f32.mrf.mxu0
        %7959 = vdwg.mxu0
        %7960 = vmatpush.bf16.msra.mxu0 %v4930
        %7961 = vmatpush.bf16.msra.mxu0 %v4922
        %7962 = vmatpush.bf16.msra.mxu0 %v4914
        %7963 = vmatpush.bf16.msra.mxu0 %v4906
        %7964 = vmatpush.bf16.msra.mxu0 %v4898
        %7965 = vmatpush.bf16.msra.mxu0 %v4890
        %7966 = vmatpush.bf16.msra.mxu0 %v4882
        %7967 = vmatpush.bf16.msra.mxu0 %v4874
        %7968 = vmatmul.bf16.gmra.mxu0 %v502
        %v7969 = vpop.f32.mrf.mxu0
        %v7970 = vadd.f32 %v7957, %v7969
        %v7971 = vpop.f32.mrf.mxu0
        %7972 = vdwg.mxu0
        %7973 = vmatpush.bf16.msra.mxu0 %v4994
        %7974 = vmatpush.bf16.msra.mxu0 %v4986
        %7975 = vmatpush.bf16.msra.mxu0 %v4978
        %7976 = vmatpush.bf16.msra.mxu0 %v4970
        %7977 = vmatpush.bf16.msra.mxu0 %v4962
        %7978 = vmatpush.bf16.msra.mxu0 %v4954
        %7979 = vmatpush.bf16.msra.mxu0 %v4946
        %7980 = vmatpush.bf16.msra.mxu0 %v4938
        %7981 = vmatmul.bf16.gmra.mxu0 %v503
        %v7982 = vpop.f32.mrf.mxu0
        %v7983 = vadd.f32 %v7970, %v7982
        %v7984 = vpop.f32.mrf.mxu0
        %7985 = vdwg.mxu0
        %7986 = vmatpush.bf16.msra.mxu0 %v5058
        %7987 = vmatpush.bf16.msra.mxu0 %v5050
        %7988 = vmatpush.bf16.msra.mxu0 %v5042
        %7989 = vmatpush.bf16.msra.mxu0 %v5034
        %7990 = vmatpush.bf16.msra.mxu0 %v5026
        %7991 = vmatpush.bf16.msra.mxu0 %v5018
        %7992 = vmatpush.bf16.msra.mxu0 %v5010
        %7993 = vmatpush.bf16.msra.mxu0 %v5002
        %7994 = vmatmul.bf16.gmra.mxu0 %v504
        %v7995 = vpop.f32.mrf.mxu0
        %v7996 = vadd.f32 %v7983, %v7995
        %v7997 = vpop.f32.mrf.mxu0
        %7998 = vdwg.mxu0
        %7999 = vmatpush.bf16.msra.mxu0 %v5122
        %8000 = vmatpush.bf16.msra.mxu0 %v5114
        %8001 = vmatpush.bf16.msra.mxu0 %v5106
        %8002 = vmatpush.bf16.msra.mxu0 %v5098
        %8003 = vmatpush.bf16.msra.mxu0 %v5090
        %8004 = vmatpush.bf16.msra.mxu0 %v5082
        %8005 = vmatpush.bf16.msra.mxu0 %v5074
        %8006 = vmatpush.bf16.msra.mxu0 %v5066
        %8007 = vmatmul.bf16.gmra.mxu0 %v505
        %v8008 = vpop.f32.mrf.mxu0
        %v8009 = vadd.f32 %v7996, %v8008
        %v8010 = vpop.f32.mrf.mxu0
        %8011 = vdwg.mxu0
        %8012 = vmatpush.bf16.msra.mxu0 %v5186
        %8013 = vmatpush.bf16.msra.mxu0 %v5178
        %8014 = vmatpush.bf16.msra.mxu0 %v5170
        %8015 = vmatpush.bf16.msra.mxu0 %v5162
        %8016 = vmatpush.bf16.msra.mxu0 %v5154
        %8017 = vmatpush.bf16.msra.mxu0 %v5146
        %8018 = vmatpush.bf16.msra.mxu0 %v5138
        %8019 = vmatpush.bf16.msra.mxu0 %v5130
        %8020 = vmatmul.bf16.gmra.mxu0 %v506
        %v8021 = vpop.f32.mrf.mxu0
        %v8022 = vadd.f32 %v8009, %v8021
        %v8023 = vpop.f32.mrf.mxu0
        %8024 = vdwg.mxu0
        %8025 = vmatpush.bf16.msra.mxu0 %v5250
        %8026 = vmatpush.bf16.msra.mxu0 %v5242
        %8027 = vmatpush.bf16.msra.mxu0 %v5234
        %8028 = vmatpush.bf16.msra.mxu0 %v5226
        %8029 = vmatpush.bf16.msra.mxu0 %v5218
        %8030 = vmatpush.bf16.msra.mxu0 %v5210
        %8031 = vmatpush.bf16.msra.mxu0 %v5202
        %8032 = vmatpush.bf16.msra.mxu0 %v5194
        %8033 = vmatmul.bf16.gmra.mxu0 %v507
        %v8034 = vpop.f32.mrf.mxu0
        %v8035 = vadd.f32 %v8022, %v8034
        %v8036 = vpop.f32.mrf.mxu0
        %8037 = vdwg.mxu0
        %8038 = vmatpush.bf16.msra.mxu0 %v5314
        %8039 = vmatpush.bf16.msra.mxu0 %v5306
        %8040 = vmatpush.bf16.msra.mxu0 %v5298
        %8041 = vmatpush.bf16.msra.mxu0 %v5290
        %8042 = vmatpush.bf16.msra.mxu0 %v5282
        %8043 = vmatpush.bf16.msra.mxu0 %v5274
        %8044 = vmatpush.bf16.msra.mxu0 %v5266
        %8045 = vmatpush.bf16.msra.mxu0 %v5258
        %8046 = vmatmul.bf16.gmra.mxu0 %v508
        %v8047 = vpop.f32.mrf.mxu0
        %v8048 = vadd.f32 %v8035, %v8047
        %v8049 = vpop.f32.mrf.mxu0
        %8050 = vdwg.mxu0
        %8051 = vmatpush.bf16.msra.mxu0 %v5378
        %8052 = vmatpush.bf16.msra.mxu0 %v5370
        %8053 = vmatpush.bf16.msra.mxu0 %v5362
        %8054 = vmatpush.bf16.msra.mxu0 %v5354
        %8055 = vmatpush.bf16.msra.mxu0 %v5346
        %8056 = vmatpush.bf16.msra.mxu0 %v5338
        %8057 = vmatpush.bf16.msra.mxu0 %v5330
        %8058 = vmatpush.bf16.msra.mxu0 %v5322
        %8059 = vmatmul.bf16.gmra.mxu0 %v509
        %v8060 = vpop.f32.mrf.mxu0
        %v8061 = vadd.f32 %v8048, %v8060
        %v8062 = vpop.f32.mrf.mxu0
        %8063 = vdwg.mxu0
        %8064 = vmatpush.bf16.msra.mxu0 %v5442
        %8065 = vmatpush.bf16.msra.mxu0 %v5434
        %8066 = vmatpush.bf16.msra.mxu0 %v5426
        %8067 = vmatpush.bf16.msra.mxu0 %v5418
        %8068 = vmatpush.bf16.msra.mxu0 %v5410
        %8069 = vmatpush.bf16.msra.mxu0 %v5402
        %8070 = vmatpush.bf16.msra.mxu0 %v5394
        %8071 = vmatpush.bf16.msra.mxu0 %v5386
        %8072 = vmatmul.bf16.gmra.mxu0 %v510
        %v8073 = vpop.f32.mrf.mxu0
        %v8074 = vadd.f32 %v8061, %v8073
        %v8075 = vpop.f32.mrf.mxu0
        %8076 = vdwg.mxu0
        %8077 = vmatpush.bf16.msra.mxu0 %v5506
        %8078 = vmatpush.bf16.msra.mxu0 %v5498
        %8079 = vmatpush.bf16.msra.mxu0 %v5490
        %8080 = vmatpush.bf16.msra.mxu0 %v5482
        %8081 = vmatpush.bf16.msra.mxu0 %v5474
        %8082 = vmatpush.bf16.msra.mxu0 %v5466
        %8083 = vmatpush.bf16.msra.mxu0 %v5458
        %8084 = vmatpush.bf16.msra.mxu0 %v5450
        %8085 = vmatmul.bf16.gmra.mxu0 %v511
        %v8086 = vpop.f32.mrf.mxu0
        %v8087 = vadd.f32 %v8074, %v8086
        %v8088 = vpop.f32.mrf.mxu0
        %8089 = vdwg.mxu0
        %8090 = vmatpush.bf16.msra.mxu0 %v5570
        %8091 = vmatpush.bf16.msra.mxu0 %v5562
        %8092 = vmatpush.bf16.msra.mxu0 %v5554
        %8093 = vmatpush.bf16.msra.mxu0 %v5546
        %8094 = vmatpush.bf16.msra.mxu0 %v5538
        %8095 = vmatpush.bf16.msra.mxu0 %v5530
        %8096 = vmatpush.bf16.msra.mxu0 %v5522
        %8097 = vmatpush.bf16.msra.mxu0 %v5514
        %8098 = vmatmul.bf16.gmra.mxu0 %v512
        %v8099 = vpop.f32.mrf.mxu0
        %v8100 = vadd.f32 %v8087, %v8099
        %v8101 = vpop.f32.mrf.mxu0
        %8102 = vdwg.mxu0
        %8103 = vmatpush.bf16.msra.mxu0 %v5634
        %8104 = vmatpush.bf16.msra.mxu0 %v5626
        %8105 = vmatpush.bf16.msra.mxu0 %v5618
        %8106 = vmatpush.bf16.msra.mxu0 %v5610
        %8107 = vmatpush.bf16.msra.mxu0 %v5602
        %8108 = vmatpush.bf16.msra.mxu0 %v5594
        %8109 = vmatpush.bf16.msra.mxu0 %v5586
        %8110 = vmatpush.bf16.msra.mxu0 %v5578
        %8111 = vmatmul.bf16.gmra.mxu0 %v513
        %v8112 = vpop.f32.mrf.mxu0
        %v8113 = vadd.f32 %v8100, %v8112
        %v8114 = vpop.f32.mrf.mxu0
        %8115 = vdwg.mxu0
        %8116 = vmatpush.bf16.msra.mxu0 %v4675
        %8117 = vmatpush.bf16.msra.mxu0 %v4667
        %8118 = vmatpush.bf16.msra.mxu0 %v4659
        %8119 = vmatpush.bf16.msra.mxu0 %v4651
        %8120 = vmatpush.bf16.msra.mxu0 %v4643
        %8121 = vmatpush.bf16.msra.mxu0 %v4635
        %8122 = vmatpush.bf16.msra.mxu0 %v4627
        %8123 = vmatpush.bf16.msra.mxu0 %v4619
        %8124 = vmatmul.bf16.gmra.mxu0 %v498
        %v8125 = vpop.f32.mrf.mxu0
        %v8126 = vadd.f32 0.0, %v8125
        %v8127 = vpop.f32.mrf.mxu0
        %8128 = vdwg.mxu0
        %8129 = vmatpush.bf16.msra.mxu0 %v4739
        %8130 = vmatpush.bf16.msra.mxu0 %v4731
        %8131 = vmatpush.bf16.msra.mxu0 %v4723
        %8132 = vmatpush.bf16.msra.mxu0 %v4715
        %8133 = vmatpush.bf16.msra.mxu0 %v4707
        %8134 = vmatpush.bf16.msra.mxu0 %v4699
        %8135 = vmatpush.bf16.msra.mxu0 %v4691
        %8136 = vmatpush.bf16.msra.mxu0 %v4683
        %8137 = vmatmul.bf16.gmra.mxu0 %v499
        %v8138 = vpop.f32.mrf.mxu0
        %v8139 = vadd.f32 %v8126, %v8138
        %v8140 = vpop.f32.mrf.mxu0
        %8141 = vdwg.mxu0
        %8142 = vmatpush.bf16.msra.mxu0 %v4803
        %8143 = vmatpush.bf16.msra.mxu0 %v4795
        %8144 = vmatpush.bf16.msra.mxu0 %v4787
        %8145 = vmatpush.bf16.msra.mxu0 %v4779
        %8146 = vmatpush.bf16.msra.mxu0 %v4771
        %8147 = vmatpush.bf16.msra.mxu0 %v4763
        %8148 = vmatpush.bf16.msra.mxu0 %v4755
        %8149 = vmatpush.bf16.msra.mxu0 %v4747
        %8150 = vmatmul.bf16.gmra.mxu0 %v500
        %v8151 = vpop.f32.mrf.mxu0
        %v8152 = vadd.f32 %v8139, %v8151
        %v8153 = vpop.f32.mrf.mxu0
        %8154 = vdwg.mxu0
        %8155 = vmatpush.bf16.msra.mxu0 %v4867
        %8156 = vmatpush.bf16.msra.mxu0 %v4859
        %8157 = vmatpush.bf16.msra.mxu0 %v4851
        %8158 = vmatpush.bf16.msra.mxu0 %v4843
        %8159 = vmatpush.bf16.msra.mxu0 %v4835
        %8160 = vmatpush.bf16.msra.mxu0 %v4827
        %8161 = vmatpush.bf16.msra.mxu0 %v4819
        %8162 = vmatpush.bf16.msra.mxu0 %v4811
        %8163 = vmatmul.bf16.gmra.mxu0 %v501
        %v8164 = vpop.f32.mrf.mxu0
        %v8165 = vadd.f32 %v8152, %v8164
        %v8166 = vpop.f32.mrf.mxu0
        %8167 = vdwg.mxu0
        %8168 = vmatpush.bf16.msra.mxu0 %v4931
        %8169 = vmatpush.bf16.msra.mxu0 %v4923
        %8170 = vmatpush.bf16.msra.mxu0 %v4915
        %8171 = vmatpush.bf16.msra.mxu0 %v4907
        %8172 = vmatpush.bf16.msra.mxu0 %v4899
        %8173 = vmatpush.bf16.msra.mxu0 %v4891
        %8174 = vmatpush.bf16.msra.mxu0 %v4883
        %8175 = vmatpush.bf16.msra.mxu0 %v4875
        %8176 = vmatmul.bf16.gmra.mxu0 %v502
        %v8177 = vpop.f32.mrf.mxu0
        %v8178 = vadd.f32 %v8165, %v8177
        %v8179 = vpop.f32.mrf.mxu0
        %8180 = vdwg.mxu0
        %8181 = vmatpush.bf16.msra.mxu0 %v4995
        %8182 = vmatpush.bf16.msra.mxu0 %v4987
        %8183 = vmatpush.bf16.msra.mxu0 %v4979
        %8184 = vmatpush.bf16.msra.mxu0 %v4971
        %8185 = vmatpush.bf16.msra.mxu0 %v4963
        %8186 = vmatpush.bf16.msra.mxu0 %v4955
        %8187 = vmatpush.bf16.msra.mxu0 %v4947
        %8188 = vmatpush.bf16.msra.mxu0 %v4939
        %8189 = vmatmul.bf16.gmra.mxu0 %v503
        %v8190 = vpop.f32.mrf.mxu0
        %v8191 = vadd.f32 %v8178, %v8190
        %v8192 = vpop.f32.mrf.mxu0
        %8193 = vdwg.mxu0
        %8194 = vmatpush.bf16.msra.mxu0 %v5059
        %8195 = vmatpush.bf16.msra.mxu0 %v5051
        %8196 = vmatpush.bf16.msra.mxu0 %v5043
        %8197 = vmatpush.bf16.msra.mxu0 %v5035
        %8198 = vmatpush.bf16.msra.mxu0 %v5027
        %8199 = vmatpush.bf16.msra.mxu0 %v5019
        %8200 = vmatpush.bf16.msra.mxu0 %v5011
        %8201 = vmatpush.bf16.msra.mxu0 %v5003
        %8202 = vmatmul.bf16.gmra.mxu0 %v504
        %v8203 = vpop.f32.mrf.mxu0
        %v8204 = vadd.f32 %v8191, %v8203
        %v8205 = vpop.f32.mrf.mxu0
        %8206 = vdwg.mxu0
        %8207 = vmatpush.bf16.msra.mxu0 %v5123
        %8208 = vmatpush.bf16.msra.mxu0 %v5115
        %8209 = vmatpush.bf16.msra.mxu0 %v5107
        %8210 = vmatpush.bf16.msra.mxu0 %v5099
        %8211 = vmatpush.bf16.msra.mxu0 %v5091
        %8212 = vmatpush.bf16.msra.mxu0 %v5083
        %8213 = vmatpush.bf16.msra.mxu0 %v5075
        %8214 = vmatpush.bf16.msra.mxu0 %v5067
        %8215 = vmatmul.bf16.gmra.mxu0 %v505
        %v8216 = vpop.f32.mrf.mxu0
        %v8217 = vadd.f32 %v8204, %v8216
        %v8218 = vpop.f32.mrf.mxu0
        %8219 = vdwg.mxu0
        %8220 = vmatpush.bf16.msra.mxu0 %v5187
        %8221 = vmatpush.bf16.msra.mxu0 %v5179
        %8222 = vmatpush.bf16.msra.mxu0 %v5171
        %8223 = vmatpush.bf16.msra.mxu0 %v5163
        %8224 = vmatpush.bf16.msra.mxu0 %v5155
        %8225 = vmatpush.bf16.msra.mxu0 %v5147
        %8226 = vmatpush.bf16.msra.mxu0 %v5139
        %8227 = vmatpush.bf16.msra.mxu0 %v5131
        %8228 = vmatmul.bf16.gmra.mxu0 %v506
        %v8229 = vpop.f32.mrf.mxu0
        %v8230 = vadd.f32 %v8217, %v8229
        %v8231 = vpop.f32.mrf.mxu0
        %8232 = vdwg.mxu0
        %8233 = vmatpush.bf16.msra.mxu0 %v5251
        %8234 = vmatpush.bf16.msra.mxu0 %v5243
        %8235 = vmatpush.bf16.msra.mxu0 %v5235
        %8236 = vmatpush.bf16.msra.mxu0 %v5227
        %8237 = vmatpush.bf16.msra.mxu0 %v5219
        %8238 = vmatpush.bf16.msra.mxu0 %v5211
        %8239 = vmatpush.bf16.msra.mxu0 %v5203
        %8240 = vmatpush.bf16.msra.mxu0 %v5195
        %8241 = vmatmul.bf16.gmra.mxu0 %v507
        %v8242 = vpop.f32.mrf.mxu0
        %v8243 = vadd.f32 %v8230, %v8242
        %v8244 = vpop.f32.mrf.mxu0
        %8245 = vdwg.mxu0
        %8246 = vmatpush.bf16.msra.mxu0 %v5315
        %8247 = vmatpush.bf16.msra.mxu0 %v5307
        %8248 = vmatpush.bf16.msra.mxu0 %v5299
        %8249 = vmatpush.bf16.msra.mxu0 %v5291
        %8250 = vmatpush.bf16.msra.mxu0 %v5283
        %8251 = vmatpush.bf16.msra.mxu0 %v5275
        %8252 = vmatpush.bf16.msra.mxu0 %v5267
        %8253 = vmatpush.bf16.msra.mxu0 %v5259
        %8254 = vmatmul.bf16.gmra.mxu0 %v508
        %v8255 = vpop.f32.mrf.mxu0
        %v8256 = vadd.f32 %v8243, %v8255
        %v8257 = vpop.f32.mrf.mxu0
        %8258 = vdwg.mxu0
        %8259 = vmatpush.bf16.msra.mxu0 %v5379
        %8260 = vmatpush.bf16.msra.mxu0 %v5371
        %8261 = vmatpush.bf16.msra.mxu0 %v5363
        %8262 = vmatpush.bf16.msra.mxu0 %v5355
        %8263 = vmatpush.bf16.msra.mxu0 %v5347
        %8264 = vmatpush.bf16.msra.mxu0 %v5339
        %8265 = vmatpush.bf16.msra.mxu0 %v5331
        %8266 = vmatpush.bf16.msra.mxu0 %v5323
        %8267 = vmatmul.bf16.gmra.mxu0 %v509
        %v8268 = vpop.f32.mrf.mxu0
        %v8269 = vadd.f32 %v8256, %v8268
        %v8270 = vpop.f32.mrf.mxu0
        %8271 = vdwg.mxu0
        %8272 = vmatpush.bf16.msra.mxu0 %v5443
        %8273 = vmatpush.bf16.msra.mxu0 %v5435
        %8274 = vmatpush.bf16.msra.mxu0 %v5427
        %8275 = vmatpush.bf16.msra.mxu0 %v5419
        %8276 = vmatpush.bf16.msra.mxu0 %v5411
        %8277 = vmatpush.bf16.msra.mxu0 %v5403
        %8278 = vmatpush.bf16.msra.mxu0 %v5395
        %8279 = vmatpush.bf16.msra.mxu0 %v5387
        %8280 = vmatmul.bf16.gmra.mxu0 %v510
        %v8281 = vpop.f32.mrf.mxu0
        %v8282 = vadd.f32 %v8269, %v8281
        %v8283 = vpop.f32.mrf.mxu0
        %8284 = vdwg.mxu0
        %8285 = vmatpush.bf16.msra.mxu0 %v5507
        %8286 = vmatpush.bf16.msra.mxu0 %v5499
        %8287 = vmatpush.bf16.msra.mxu0 %v5491
        %8288 = vmatpush.bf16.msra.mxu0 %v5483
        %8289 = vmatpush.bf16.msra.mxu0 %v5475
        %8290 = vmatpush.bf16.msra.mxu0 %v5467
        %8291 = vmatpush.bf16.msra.mxu0 %v5459
        %8292 = vmatpush.bf16.msra.mxu0 %v5451
        %8293 = vmatmul.bf16.gmra.mxu0 %v511
        %v8294 = vpop.f32.mrf.mxu0
        %v8295 = vadd.f32 %v8282, %v8294
        %v8296 = vpop.f32.mrf.mxu0
        %8297 = vdwg.mxu0
        %8298 = vmatpush.bf16.msra.mxu0 %v5571
        %8299 = vmatpush.bf16.msra.mxu0 %v5563
        %8300 = vmatpush.bf16.msra.mxu0 %v5555
        %8301 = vmatpush.bf16.msra.mxu0 %v5547
        %8302 = vmatpush.bf16.msra.mxu0 %v5539
        %8303 = vmatpush.bf16.msra.mxu0 %v5531
        %8304 = vmatpush.bf16.msra.mxu0 %v5523
        %8305 = vmatpush.bf16.msra.mxu0 %v5515
        %8306 = vmatmul.bf16.gmra.mxu0 %v512
        %v8307 = vpop.f32.mrf.mxu0
        %v8308 = vadd.f32 %v8295, %v8307
        %v8309 = vpop.f32.mrf.mxu0
        %8310 = vdwg.mxu0
        %8311 = vmatpush.bf16.msra.mxu0 %v5635
        %8312 = vmatpush.bf16.msra.mxu0 %v5627
        %8313 = vmatpush.bf16.msra.mxu0 %v5619
        %8314 = vmatpush.bf16.msra.mxu0 %v5611
        %8315 = vmatpush.bf16.msra.mxu0 %v5603
        %8316 = vmatpush.bf16.msra.mxu0 %v5595
        %8317 = vmatpush.bf16.msra.mxu0 %v5587
        %8318 = vmatpush.bf16.msra.mxu0 %v5579
        %8319 = vmatmul.bf16.gmra.mxu0 %v513
        %v8320 = vpop.f32.mrf.mxu0
        %v8321 = vadd.f32 %v8308, %v8320
        %v8322 = vpop.f32.mrf.mxu0
        %8323 = vdwg.mxu0
        %v8332 = vrot.slane %v7073, 6
        %v8333 = vrot.slane %v7281, 4
        %v8334 = vrot.slane %v7489, 2
        %v8335 = vrot.slane %v7905, 6
        %v8336 = vrot.slane %v8113, 4
        %v8337 = vrot.slane %v8321, 2
        %vm8338 = vcmask 1041408
        %v8339 = vsel %vm8338, %v6865, %v8332
        %vm8340 = vcmask 1045508
        %v8341 = vsel %vm8340, %v8333, %v8334
        %vm8342 = vcmask 1043456
        %v8343 = vsel %vm8342, %v8339, %v8341
        %v8344 = vsel %vm8338, %v7697, %v8335
        %v8345 = vsel %vm8340, %v8336, %v8337
        %v8346 = vsel %vm8342, %v8344, %v8345
        %v8349 = vadd.f32 %v514, %v8343
        %v8350 = vadd.f32 %v515, %v8346
        %8351 = vst [vmem:[#allocation2] sm:$0xff] %v8349
        %8352 = vst [vmem:[#allocation2 + $0x8] sm:$0xff] %v8350
        %p8353 = scmp.eq.s32.totalorder %s29, 1
        // Predicated region
        $region69: #{tpu_custom_call.1} parent=43 // pred_check
          %p8354 = pneg %p8353
        $region70: #{tpu_custom_call.1} parent=43 // pred_check_branch
          %8356 = sbr.rel (%p8354) target = $region72
        $region71: #{tpu_custom_call.1} parent=43 // pred_region
          %v8357 = vld [vmem:[#allocation6] sm:$0xff]
          %v8358 = vld [vmem:[#allocation6 + $0x8] sm:$0xff]
          %v8359 = vld [vmem:[#allocation6 + $0x10] sm:$0xf]
          %v8360 = vmax.f32 %v8357, 0.0
          %v8361 = vmax.f32 %v8358, 0.0
          %v8362 = vmax.f32 %v8359, 0.0
          %8366 = vst [vmem:[#allocation1] ss:$4 sm:$0xff] %v8360
          %s8367 = scalar_lea.vmem [#allocation1], 32
          %8368 = vst [vmem:[%s8367] ss:$4 sm:$0xff] %v8361
          %v8369 = vld.sshfl [vmem:[#allocation1] sm:$0xff pattern:$0x73625140]
          %v8370 = vld.sshfl [vmem:[#allocation1 + $0x8] sm:$0xff pattern:$0x73625140]
          %v8371 = vld.sshfl [vmem:[#allocation1 + $0x10] sm:$0xff pattern:$0x73625140]
          %v8372 = vld.sshfl [vmem:[#allocation1 + $0x18] sm:$0xff pattern:$0x73625140]
          %v8373 = vld.sshfl [vmem:[#allocation1 + $0x20] sm:$0xff pattern:$0x73625140]
          %v8374 = vld.sshfl [vmem:[#allocation1 + $0x28] sm:$0xff pattern:$0x73625140]
          %v8375 = vld.sshfl [vmem:[#allocation1 + $0x30] sm:$0xff pattern:$0x73625140]
          %v8376 = vld.sshfl [vmem:[#allocation1 + $0x38] sm:$0xff pattern:$0x73625140]
          %8377 = vst [vmem:[#allocation1] ss:$4 sm:$0xff] %v8362
          %v8378 = vld.sshfl [vmem:[#allocation1] sm:$0xff pattern:$0x73625140]
          %v8379 = vld.sshfl [vmem:[#allocation1 + $0x8] sm:$0xff pattern:$0x73625140]
          %v8390 = vpack.c.bf16 %v8369, %v8369
          %v8391 = vpack.c.bf16 %v8370, %v8370
          %v8392 = vpack.c.bf16 %v8371, %v8371
          %v8393 = vpack.c.bf16 %v8372, %v8372
          %v8394 = vpack.c.bf16 %v8373, %v8373
          %v8395 = vpack.c.bf16 %v8374, %v8374
          %v8396 = vpack.c.bf16 %v8375, %v8375
          %v8397 = vpack.c.bf16 %v8376, %v8376
          %v8398 = vpack.c.bf16 %v8378, %v8378
          %v8399 = vpack.c.bf16 %v8379, %v8379
          %v8400 = vld [vmem:[#allocation2] sm:$0xff]
          %v8401 = vld [vmem:[#allocation2 + $0x8] sm:$0xff]
          %v8402 = vld [vmem:[%s372] sm:$0xff]
          %v8403 = vld [vmem:[%s372 + $0x8] sm:$0xff]
          %v8404 = vld [vmem:[%s372 + $0x10] sm:$0xff]
          %v8405 = vld [vmem:[%s372 + $0x18] sm:$0xff]
          %v8406 = vld [vmem:[%s372 + $0x20] sm:$0xff]
          %v8407 = vld [vmem:[%s372 + $0x28] sm:$0xff]
          %v8408 = vld [vmem:[%s372 + $0x30] sm:$0xff]
          %v8409 = vld [vmem:[%s372 + $0x38] sm:$0xff]
          %v8410 = vld [vmem:[%s372 + $0x40] sm:$0xff]
          %v8411 = vld [vmem:[%s372 + $0x48] sm:$0xff]
          %v8412 = vld [vmem:[%s372 + $0x50] sm:$0xff]
          %v8413 = vld [vmem:[%s372 + $0x58] sm:$0xff]
          %v8414 = vld [vmem:[%s372 + $0x60] sm:$0xff]
          %v8415 = vld [vmem:[%s372 + $0x68] sm:$0xff]
          %v8416 = vld [vmem:[%s372 + $0x70] sm:$0xff]
          %v8417 = vld [vmem:[%s372 + $0x78] sm:$0xff]
          %v8418 = vld [vmem:[%s372 + $0x80] sm:$0xff]
          %v8419 = vld [vmem:[%s372 + $0x88] sm:$0xff]
          %v8420 = vld [vmem:[%s372 + $0x90] sm:$0xff]
          %v8421 = vld [vmem:[%s372 + $0x98] sm:$0xff]
          %v8422 = vld [vmem:[%s372 + $0xa0] sm:$0xff]
          %v8423 = vld [vmem:[%s372 + $0xa8] sm:$0xff]
          %v8424 = vld [vmem:[%s372 + $0xb0] sm:$0xff]
          %v8425 = vld [vmem:[%s372 + $0xb8] sm:$0xff]
          %v8426 = vld [vmem:[%s372 + $0xc0] sm:$0xff]
          %v8427 = vld [vmem:[%s372 + $0xc8] sm:$0xff]
          %v8428 = vld [vmem:[%s372 + $0xd0] sm:$0xff]
          %v8429 = vld [vmem:[%s372 + $0xd8] sm:$0xff]
          %v8430 = vld [vmem:[%s372 + $0xe0] sm:$0xff]
          %v8431 = vld [vmem:[%s372 + $0xe8] sm:$0xff]
          %v8432 = vld [vmem:[%s372 + $0xf0] sm:$0xff]
          %v8433 = vld [vmem:[%s372 + $0xf8] sm:$0xff]
          %v8434 = vld [vmem:[%s372 + $0x100] sm:$0xff]
          %v8435 = vld [vmem:[%s372 + $0x108] sm:$0xff]
          %v8436 = vld [vmem:[%s372 + $0x110] sm:$0xff]
          %v8437 = vld [vmem:[%s372 + $0x118] sm:$0xff]
          %v8438 = vld [vmem:[%s372 + $0x120] sm:$0xff]
          %v8439 = vld [vmem:[%s372 + $0x128] sm:$0xff]
          %v8440 = vld [vmem:[%s372 + $0x130] sm:$0xff]
          %v8441 = vld [vmem:[%s372 + $0x138] sm:$0xff]
          %v8442 = vld [vmem:[%s372 + $0x140] sm:$0xff]
          %v8443 = vld [vmem:[%s372 + $0x148] sm:$0xff]
          %v8444 = vld [vmem:[%s372 + $0x150] sm:$0xff]
          %v8445 = vld [vmem:[%s372 + $0x158] sm:$0xff]
          %v8446 = vld [vmem:[%s372 + $0x160] sm:$0xff]
          %v8447 = vld [vmem:[%s372 + $0x168] sm:$0xff]
          %v8448 = vld [vmem:[%s372 + $0x170] sm:$0xff]
          %v8449 = vld [vmem:[%s372 + $0x178] sm:$0xff]
          %v8450 = vld [vmem:[%s372 + $0x180] sm:$0xff]
          %v8451 = vld [vmem:[%s372 + $0x188] sm:$0xff]
          %v8452 = vld [vmem:[%s372 + $0x190] sm:$0xff]
          %v8453 = vld [vmem:[%s372 + $0x198] sm:$0xff]
          %v8454 = vld [vmem:[%s372 + $0x1a0] sm:$0xff]
          %v8455 = vld [vmem:[%s372 + $0x1a8] sm:$0xff]
          %v8456 = vld [vmem:[%s372 + $0x1b0] sm:$0xff]
          %v8457 = vld [vmem:[%s372 + $0x1b8] sm:$0xff]
          %v8458 = vld [vmem:[%s372 + $0x1c0] sm:$0xff]
          %v8459 = vld [vmem:[%s372 + $0x1c8] sm:$0xff]
          %v8460 = vld [vmem:[%s372 + $0x1d0] sm:$0xff]
          %v8461 = vld [vmem:[%s372 + $0x1d8] sm:$0xff]
          %v8462 = vld [vmem:[%s372 + $0x1e0] sm:$0xff]
          %v8463 = vld [vmem:[%s372 + $0x1e8] sm:$0xff]
          %v8464 = vld [vmem:[%s372 + $0x1f0] sm:$0xff]
          %v8465 = vld [vmem:[%s372 + $0x1f8] sm:$0xff]
          %v8466 = vld [vmem:[%s372 + $0x200] sm:$0xff]
          %v8467 = vld [vmem:[%s372 + $0x208] sm:$0xff]
          %v8468 = vld [vmem:[%s372 + $0x210] sm:$0xff]
          %v8469 = vld [vmem:[%s372 + $0x218] sm:$0xff]
          %v8470 = vld [vmem:[%s372 + $0x220] sm:$0xff]
          %v8471 = vld [vmem:[%s372 + $0x228] sm:$0xff]
          %v8472 = vld [vmem:[%s372 + $0x230] sm:$0xff]
          %v8473 = vld [vmem:[%s372 + $0x238] sm:$0xff]
          %v8474 = vld [vmem:[%s372 + $0x240] sm:$0xff]
          %v8475 = vld [vmem:[%s372 + $0x248] sm:$0xff]
          %v8476 = vld [vmem:[%s372 + $0x250] sm:$0xff]
          %v8477 = vld [vmem:[%s372 + $0x258] sm:$0xff]
          %v8478 = vld [vmem:[%s372 + $0x260] sm:$0xff]
          %v8479 = vld [vmem:[%s372 + $0x268] sm:$0xff]
          %v8480 = vld [vmem:[%s372 + $0x270] sm:$0xff]
          %v8481 = vld [vmem:[%s372 + $0x278] sm:$0xff]
          %v8482 = vld [vmem:[%s372 + $0x280] sm:$0xff]
          %v8483 = vld [vmem:[%s372 + $0x288] sm:$0xff]
          %v8484 = vld [vmem:[%s372 + $0x290] sm:$0xff]
          %v8485 = vld [vmem:[%s372 + $0x298] sm:$0xff]
          %v8486 = vld [vmem:[%s372 + $0x2a0] sm:$0xff]
          %v8487 = vld [vmem:[%s372 + $0x2a8] sm:$0xff]
          %v8488 = vld [vmem:[%s372 + $0x2b0] sm:$0xff]
          %v8489 = vld [vmem:[%s372 + $0x2b8] sm:$0xff]
          %v8490 = vld [vmem:[%s372 + $0x2c0] sm:$0xff]
          %v8491 = vld [vmem:[%s372 + $0x2c8] sm:$0xff]
          %v8492 = vld [vmem:[%s372 + $0x2d0] sm:$0xff]
          %v8493 = vld [vmem:[%s372 + $0x2d8] sm:$0xff]
          %v8494 = vld [vmem:[%s372 + $0x2e0] sm:$0xff]
          %v8495 = vld [vmem:[%s372 + $0x2e8] sm:$0xff]
          %v8496 = vld [vmem:[%s372 + $0x2f0] sm:$0xff]
          %v8497 = vld [vmem:[%s372 + $0x2f8] sm:$0xff]
          %v8498 = vld [vmem:[%s372 + $0x300] sm:$0xff]
          %v8499 = vld [vmem:[%s372 + $0x308] sm:$0xff]
          %v8500 = vld [vmem:[%s372 + $0x310] sm:$0xff]
          %v8501 = vld [vmem:[%s372 + $0x318] sm:$0xff]
          %v8502 = vld [vmem:[%s372 + $0x320] sm:$0xff]
          %v8503 = vld [vmem:[%s372 + $0x328] sm:$0xff]
          %v8504 = vld [vmem:[%s372 + $0x330] sm:$0xff]
          %v8505 = vld [vmem:[%s372 + $0x338] sm:$0xff]
          %v8506 = vld [vmem:[%s372 + $0x340] sm:$0xff]
          %v8507 = vld [vmem:[%s372 + $0x348] sm:$0xff]
          %v8508 = vld [vmem:[%s372 + $0x350] sm:$0xff]
          %v8509 = vld [vmem:[%s372 + $0x358] sm:$0xff]
          %v8510 = vld [vmem:[%s372 + $0x360] sm:$0xff]
          %v8511 = vld [vmem:[%s372 + $0x368] sm:$0xff]
          %v8512 = vld [vmem:[%s372 + $0x370] sm:$0xff]
          %v8513 = vld [vmem:[%s372 + $0x378] sm:$0xff]
          %v8514 = vld [vmem:[%s372 + $0x380] sm:$0xff]
          %v8515 = vld [vmem:[%s372 + $0x388] sm:$0xff]
          %v8516 = vld [vmem:[%s372 + $0x390] sm:$0xff]
          %v8517 = vld [vmem:[%s372 + $0x398] sm:$0xff]
          %v8518 = vld [vmem:[%s372 + $0x3a0] sm:$0xff]
          %v8519 = vld [vmem:[%s372 + $0x3a8] sm:$0xff]
          %v8520 = vld [vmem:[%s372 + $0x3b0] sm:$0xff]
          %v8521 = vld [vmem:[%s372 + $0x3b8] sm:$0xff]
          %v8522 = vld [vmem:[%s372 + $0x3c0] sm:$0xff]
          %v8523 = vld [vmem:[%s372 + $0x3c8] sm:$0xff]
          %v8524 = vld [vmem:[%s372 + $0x3d0] sm:$0xff]
          %v8525 = vld [vmem:[%s372 + $0x3d8] sm:$0xff]
          %v8526 = vld [vmem:[%s372 + $0x3e0] sm:$0xff]
          %v8527 = vld [vmem:[%s372 + $0x3e8] sm:$0xff]
          %v8528 = vld [vmem:[%s372 + $0x3f0] sm:$0xff]
          %v8529 = vld [vmem:[%s372 + $0x3f8] sm:$0xff]
          %v8530 = vld [vmem:[%s372 + $0x400] sm:$0xff]
          %v8531 = vld [vmem:[%s372 + $0x408] sm:$0xff]
          %v8532 = vld [vmem:[%s372 + $0x410] sm:$0xff]
          %v8533 = vld [vmem:[%s372 + $0x418] sm:$0xff]
          %v8534 = vld [vmem:[%s372 + $0x420] sm:$0xff]
          %v8535 = vld [vmem:[%s372 + $0x428] sm:$0xff]
          %v8536 = vld [vmem:[%s372 + $0x430] sm:$0xff]
          %v8537 = vld [vmem:[%s372 + $0x438] sm:$0xff]
          %v8538 = vld [vmem:[%s372 + $0x440] sm:$0xff]
          %v8539 = vld [vmem:[%s372 + $0x448] sm:$0xff]
          %v8540 = vld [vmem:[%s372 + $0x450] sm:$0xff]
          %v8541 = vld [vmem:[%s372 + $0x458] sm:$0xff]
          %v8542 = vld [vmem:[%s372 + $0x460] sm:$0xff]
          %v8543 = vld [vmem:[%s372 + $0x468] sm:$0xff]
          %v8544 = vld [vmem:[%s372 + $0x470] sm:$0xff]
          %v8545 = vld [vmem:[%s372 + $0x478] sm:$0xff]
          %v8546 = vld [vmem:[%s372 + $0x480] sm:$0xff]
          %v8547 = vld [vmem:[%s372 + $0x488] sm:$0xff]
          %v8548 = vld [vmem:[%s372 + $0x490] sm:$0xff]
          %v8549 = vld [vmem:[%s372 + $0x498] sm:$0xff]
          %v8550 = vld [vmem:[%s372 + $0x4a0] sm:$0xff]
          %v8551 = vld [vmem:[%s372 + $0x4a8] sm:$0xff]
          %v8552 = vld [vmem:[%s372 + $0x4b0] sm:$0xff]
          %v8553 = vld [vmem:[%s372 + $0x4b8] sm:$0xff]
          %v8554 = vld [vmem:[%s372 + $0x4c0] sm:$0xff]
          %v8555 = vld [vmem:[%s372 + $0x4c8] sm:$0xff]
          %v8556 = vld [vmem:[%s372 + $0x4d0] sm:$0xff]
          %v8557 = vld [vmem:[%s372 + $0x4d8] sm:$0xff]
          %v8558 = vld [vmem:[%s372 + $0x4e0] sm:$0xff]
          %v8559 = vld [vmem:[%s372 + $0x4e8] sm:$0xff]
          %v8560 = vld [vmem:[%s372 + $0x4f0] sm:$0xff]
          %v8561 = vld [vmem:[%s372 + $0x4f8] sm:$0xff]
          %v8562 = vld [vmem:[%s372 + $0x500] sm:$0xff]
          %v8563 = vld [vmem:[%s372 + $0x508] sm:$0xff]
          %v8564 = vld [vmem:[%s372 + $0x510] sm:$0xff]
          %v8565 = vld [vmem:[%s372 + $0x518] sm:$0xff]
          %v8566 = vld [vmem:[%s372 + $0x520] sm:$0xff]
          %v8567 = vld [vmem:[%s372 + $0x528] sm:$0xff]
          %v8568 = vld [vmem:[%s372 + $0x530] sm:$0xff]
          %v8569 = vld [vmem:[%s372 + $0x538] sm:$0xff]
          %v8570 = vld [vmem:[%s372 + $0x540] sm:$0xff]
          %v8571 = vld [vmem:[%s372 + $0x548] sm:$0xff]
          %v8572 = vld [vmem:[%s372 + $0x550] sm:$0xff]
          %v8573 = vld [vmem:[%s372 + $0x558] sm:$0xff]
          %v8574 = vld [vmem:[%s372 + $0x560] sm:$0xff]
          %v8575 = vld [vmem:[%s372 + $0x568] sm:$0xff]
          %v8576 = vld [vmem:[%s372 + $0x570] sm:$0xff]
          %v8577 = vld [vmem:[%s372 + $0x578] sm:$0xff]
          %v8578 = vld [vmem:[%s372 + $0x580] sm:$0xff]
          %v8579 = vld [vmem:[%s372 + $0x588] sm:$0xff]
          %v8580 = vld [vmem:[%s372 + $0x590] sm:$0xff]
          %v8581 = vld [vmem:[%s372 + $0x598] sm:$0xff]
          %v8582 = vld [vmem:[%s372 + $0x5a0] sm:$0xff]
          %v8583 = vld [vmem:[%s372 + $0x5a8] sm:$0xff]
          %v8584 = vld [vmem:[%s372 + $0x5b0] sm:$0xff]
          %v8585 = vld [vmem:[%s372 + $0x5b8] sm:$0xff]
          %v8586 = vld [vmem:[%s372 + $0x5c0] sm:$0xff]
          %v8587 = vld [vmem:[%s372 + $0x5c8] sm:$0xff]
          %v8588 = vld [vmem:[%s372 + $0x5d0] sm:$0xff]
          %v8589 = vld [vmem:[%s372 + $0x5d8] sm:$0xff]
          %v8590 = vld [vmem:[%s372 + $0x5e0] sm:$0xff]
          %v8591 = vld [vmem:[%s372 + $0x5e8] sm:$0xff]
          %v8592 = vld [vmem:[%s372 + $0x5f0] sm:$0xff]
          %v8593 = vld [vmem:[%s372 + $0x5f8] sm:$0xff]
          %v8594 = vld [vmem:[%s372 + $0x600] sm:$0xff]
          %v8595 = vld [vmem:[%s372 + $0x608] sm:$0xff]
          %v8596 = vld [vmem:[%s372 + $0x610] sm:$0xff]
          %v8597 = vld [vmem:[%s372 + $0x618] sm:$0xff]
          %v8598 = vld [vmem:[%s372 + $0x620] sm:$0xff]
          %v8599 = vld [vmem:[%s372 + $0x628] sm:$0xff]
          %v8600 = vld [vmem:[%s372 + $0x630] sm:$0xff]
          %v8601 = vld [vmem:[%s372 + $0x638] sm:$0xff]
          %v8602 = vld [vmem:[%s372 + $0x640] sm:$0xff]
          %v8603 = vld [vmem:[%s372 + $0x648] sm:$0xff]
          %v8604 = vld [vmem:[%s372 + $0x650] sm:$0xff]
          %v8605 = vld [vmem:[%s372 + $0x658] sm:$0xff]
          %v8606 = vld [vmem:[%s372 + $0x660] sm:$0xff]
          %v8607 = vld [vmem:[%s372 + $0x668] sm:$0xff]
          %v8608 = vld [vmem:[%s372 + $0x670] sm:$0xff]
          %v8609 = vld [vmem:[%s372 + $0x678] sm:$0xff]
          %v8610 = vld [vmem:[%s372 + $0x680] sm:$0xff]
          %v8611 = vld [vmem:[%s372 + $0x688] sm:$0xff]
          %v8612 = vld [vmem:[%s372 + $0x690] sm:$0xff]
          %v8613 = vld [vmem:[%s372 + $0x698] sm:$0xff]
          %v8614 = vld [vmem:[%s372 + $0x6a0] sm:$0xff]
          %v8615 = vld [vmem:[%s372 + $0x6a8] sm:$0xff]
          %v8616 = vld [vmem:[%s372 + $0x6b0] sm:$0xff]
          %v8617 = vld [vmem:[%s372 + $0x6b8] sm:$0xff]
          %v8618 = vld [vmem:[%s372 + $0x6c0] sm:$0xff]
          %v8619 = vld [vmem:[%s372 + $0x6c8] sm:$0xff]
          %v8620 = vld [vmem:[%s372 + $0x6d0] sm:$0xff]
          %v8621 = vld [vmem:[%s372 + $0x6d8] sm:$0xff]
          %v8622 = vld [vmem:[%s372 + $0x6e0] sm:$0xff]
          %v8623 = vld [vmem:[%s372 + $0x6e8] sm:$0xff]
          %v8624 = vld [vmem:[%s372 + $0x6f0] sm:$0xff]
          %v8625 = vld [vmem:[%s372 + $0x6f8] sm:$0xff]
          %v8626 = vld [vmem:[%s372 + $0x700] sm:$0xff]
          %v8627 = vld [vmem:[%s372 + $0x708] sm:$0xff]
          %v8628 = vld [vmem:[%s372 + $0x710] sm:$0xff]
          %v8629 = vld [vmem:[%s372 + $0x718] sm:$0xff]
          %v8630 = vld [vmem:[%s372 + $0x720] sm:$0xff]
          %v8631 = vld [vmem:[%s372 + $0x728] sm:$0xff]
          %v8632 = vld [vmem:[%s372 + $0x730] sm:$0xff]
          %v8633 = vld [vmem:[%s372 + $0x738] sm:$0xff]
          %v8634 = vld [vmem:[%s372 + $0x740] sm:$0xff]
          %v8635 = vld [vmem:[%s372 + $0x748] sm:$0xff]
          %v8636 = vld [vmem:[%s372 + $0x750] sm:$0xff]
          %v8637 = vld [vmem:[%s372 + $0x758] sm:$0xff]
          %v8638 = vld [vmem:[%s372 + $0x760] sm:$0xff]
          %v8639 = vld [vmem:[%s372 + $0x768] sm:$0xff]
          %v8640 = vld [vmem:[%s372 + $0x770] sm:$0xff]
          %v8641 = vld [vmem:[%s372 + $0x778] sm:$0xff]
          %v8642 = vld [vmem:[%s372 + $0x780] sm:$0xff]
          %v8643 = vld [vmem:[%s372 + $0x788] sm:$0xff]
          %v8644 = vld [vmem:[%s372 + $0x790] sm:$0xff]
          %v8645 = vld [vmem:[%s372 + $0x798] sm:$0xff]
          %v8646 = vld [vmem:[%s372 + $0x7a0] sm:$0xff]
          %v8647 = vld [vmem:[%s372 + $0x7a8] sm:$0xff]
          %v8648 = vld [vmem:[%s372 + $0x7b0] sm:$0xff]
          %v8649 = vld [vmem:[%s372 + $0x7b8] sm:$0xff]
          %v8650 = vld [vmem:[%s372 + $0x7c0] sm:$0xff]
          %v8651 = vld [vmem:[%s372 + $0x7c8] sm:$0xff]
          %v8652 = vld [vmem:[%s372 + $0x7d0] sm:$0xff]
          %v8653 = vld [vmem:[%s372 + $0x7d8] sm:$0xff]
          %v8654 = vld [vmem:[%s372 + $0x7e0] sm:$0xff]
          %v8655 = vld [vmem:[%s372 + $0x7e8] sm:$0xff]
          %v8656 = vld [vmem:[%s372 + $0x7f0] sm:$0xff]
          %v8657 = vld [vmem:[%s372 + $0x7f8] sm:$0xff]
          %v8658 = vld [vmem:[%s372 + $0x800] sm:$0xff]
          %v8659 = vld [vmem:[%s372 + $0x808] sm:$0xff]
          %v8660 = vld [vmem:[%s372 + $0x810] sm:$0xff]
          %v8661 = vld [vmem:[%s372 + $0x818] sm:$0xff]
          %v8662 = vld [vmem:[%s372 + $0x820] sm:$0xff]
          %v8663 = vld [vmem:[%s372 + $0x828] sm:$0xff]
          %v8664 = vld [vmem:[%s372 + $0x830] sm:$0xff]
          %v8665 = vld [vmem:[%s372 + $0x838] sm:$0xff]
          %v8666 = vld [vmem:[%s372 + $0x840] sm:$0xff]
          %v8667 = vld [vmem:[%s372 + $0x848] sm:$0xff]
          %v8668 = vld [vmem:[%s372 + $0x850] sm:$0xff]
          %v8669 = vld [vmem:[%s372 + $0x858] sm:$0xff]
          %v8670 = vld [vmem:[%s372 + $0x860] sm:$0xff]
          %v8671 = vld [vmem:[%s372 + $0x868] sm:$0xff]
          %v8672 = vld [vmem:[%s372 + $0x870] sm:$0xff]
          %v8673 = vld [vmem:[%s372 + $0x878] sm:$0xff]
          %v8674 = vld [vmem:[%s372 + $0x880] sm:$0xff]
          %v8675 = vld [vmem:[%s372 + $0x888] sm:$0xff]
          %v8676 = vld [vmem:[%s372 + $0x890] sm:$0xff]
          %v8677 = vld [vmem:[%s372 + $0x898] sm:$0xff]
          %v8678 = vld [vmem:[%s372 + $0x8a0] sm:$0xff]
          %v8679 = vld [vmem:[%s372 + $0x8a8] sm:$0xff]
          %v8680 = vld [vmem:[%s372 + $0x8b0] sm:$0xff]
          %v8681 = vld [vmem:[%s372 + $0x8b8] sm:$0xff]
          %v8682 = vld [vmem:[%s372 + $0x8c0] sm:$0xff]
          %v8683 = vld [vmem:[%s372 + $0x8c8] sm:$0xff]
          %v8684 = vld [vmem:[%s372 + $0x8d0] sm:$0xff]
          %v8685 = vld [vmem:[%s372 + $0x8d8] sm:$0xff]
          %v8686 = vld [vmem:[%s372 + $0x8e0] sm:$0xff]
          %v8687 = vld [vmem:[%s372 + $0x8e8] sm:$0xff]
          %v8688 = vld [vmem:[%s372 + $0x8f0] sm:$0xff]
          %v8689 = vld [vmem:[%s372 + $0x8f8] sm:$0xff]
          %v8690 = vld [vmem:[%s372 + $0x900] sm:$0xff]
          %v8691 = vld [vmem:[%s372 + $0x908] sm:$0xff]
          %v8692 = vld [vmem:[%s372 + $0x910] sm:$0xff]
          %v8693 = vld [vmem:[%s372 + $0x918] sm:$0xff]
          %v8694 = vld [vmem:[%s372 + $0x920] sm:$0xff]
          %v8695 = vld [vmem:[%s372 + $0x928] sm:$0xff]
          %v8696 = vld [vmem:[%s372 + $0x930] sm:$0xff]
          %v8697 = vld [vmem:[%s372 + $0x938] sm:$0xff]
          %v8698 = vld [vmem:[%s372 + $0x940] sm:$0xff]
          %v8699 = vld [vmem:[%s372 + $0x948] sm:$0xff]
          %v8700 = vld [vmem:[%s372 + $0x950] sm:$0xff]
          %v8701 = vld [vmem:[%s372 + $0x958] sm:$0xff]
          %v8702 = vld [vmem:[%s372 + $0x960] sm:$0xff]
          %v8703 = vld [vmem:[%s372 + $0x968] sm:$0xff]
          %v8704 = vld [vmem:[%s372 + $0x970] sm:$0xff]
          %v8705 = vld [vmem:[%s372 + $0x978] sm:$0xff]
          %v8706 = vld [vmem:[%s372 + $0x980] sm:$0xff]
          %v8707 = vld [vmem:[%s372 + $0x988] sm:$0xff]
          %v8708 = vld [vmem:[%s372 + $0x990] sm:$0xff]
          %v8709 = vld [vmem:[%s372 + $0x998] sm:$0xff]
          %v8710 = vld [vmem:[%s372 + $0x9a0] sm:$0xff]
          %v8711 = vld [vmem:[%s372 + $0x9a8] sm:$0xff]
          %v8712 = vld [vmem:[%s372 + $0x9b0] sm:$0xff]
          %v8713 = vld [vmem:[%s372 + $0x9b8] sm:$0xff]
          %v8714 = vld [vmem:[%s372 + $0x9c0] sm:$0xff]
          %v8715 = vld [vmem:[%s372 + $0x9c8] sm:$0xff]
          %v8716 = vld [vmem:[%s372 + $0x9d0] sm:$0xff]
          %v8717 = vld [vmem:[%s372 + $0x9d8] sm:$0xff]
          %v8718 = vld [vmem:[%s372 + $0x9e0] sm:$0xff]
          %v8719 = vld [vmem:[%s372 + $0x9e8] sm:$0xff]
          %v8720 = vld [vmem:[%s372 + $0x9f0] sm:$0xff]
          %v8721 = vld [vmem:[%s372 + $0x9f8] sm:$0xff]
          %v8722 = vld [vmem:[%s372 + $0xa00] sm:$0xff]
          %v8723 = vld [vmem:[%s372 + $0xa08] sm:$0xff]
          %v8724 = vld [vmem:[%s372 + $0xa10] sm:$0xff]
          %v8725 = vld [vmem:[%s372 + $0xa18] sm:$0xff]
          %v8726 = vld [vmem:[%s372 + $0xa20] sm:$0xff]
          %v8727 = vld [vmem:[%s372 + $0xa28] sm:$0xff]
          %v8728 = vld [vmem:[%s372 + $0xa30] sm:$0xff]
          %v8729 = vld [vmem:[%s372 + $0xa38] sm:$0xff]
          %v8730 = vld [vmem:[%s372 + $0xa40] sm:$0xff]
          %v8731 = vld [vmem:[%s372 + $0xa48] sm:$0xff]
          %v8732 = vld [vmem:[%s372 + $0xa50] sm:$0xff]
          %v8733 = vld [vmem:[%s372 + $0xa58] sm:$0xff]
          %v8734 = vld [vmem:[%s372 + $0xa60] sm:$0xff]
          %v8735 = vld [vmem:[%s372 + $0xa68] sm:$0xff]
          %v8736 = vld [vmem:[%s372 + $0xa70] sm:$0xff]
          %v8737 = vld [vmem:[%s372 + $0xa78] sm:$0xff]
          %v8738 = vld [vmem:[%s372 + $0xa80] sm:$0xff]
          %v8739 = vld [vmem:[%s372 + $0xa88] sm:$0xff]
          %v8740 = vld [vmem:[%s372 + $0xa90] sm:$0xff]
          %v8741 = vld [vmem:[%s372 + $0xa98] sm:$0xff]
          %v8742 = vld [vmem:[%s372 + $0xaa0] sm:$0xff]
          %v8743 = vld [vmem:[%s372 + $0xaa8] sm:$0xff]
          %v8744 = vld [vmem:[%s372 + $0xab0] sm:$0xff]
          %v8745 = vld [vmem:[%s372 + $0xab8] sm:$0xff]
          %v8746 = vld [vmem:[%s372 + $0xac0] sm:$0xff]
          %v8747 = vld [vmem:[%s372 + $0xac8] sm:$0xff]
          %v8748 = vld [vmem:[%s372 + $0xad0] sm:$0xff]
          %v8749 = vld [vmem:[%s372 + $0xad8] sm:$0xff]
          %v8750 = vld [vmem:[%s372 + $0xae0] sm:$0xff]
          %v8751 = vld [vmem:[%s372 + $0xae8] sm:$0xff]
          %v8752 = vld [vmem:[%s372 + $0xaf0] sm:$0xff]
          %v8753 = vld [vmem:[%s372 + $0xaf8] sm:$0xff]
          %v8754 = vld [vmem:[%s372 + $0xb00] sm:$0xff]
          %v8755 = vld [vmem:[%s372 + $0xb08] sm:$0xff]
          %v8756 = vld [vmem:[%s372 + $0xb10] sm:$0xff]
          %v8757 = vld [vmem:[%s372 + $0xb18] sm:$0xff]
          %v8758 = vld [vmem:[%s372 + $0xb20] sm:$0xff]
          %v8759 = vld [vmem:[%s372 + $0xb28] sm:$0xff]
          %v8760 = vld [vmem:[%s372 + $0xb30] sm:$0xff]
          %v8761 = vld [vmem:[%s372 + $0xb38] sm:$0xff]
          %v8762 = vld [vmem:[%s372 + $0xb40] sm:$0xff]
          %v8763 = vld [vmem:[%s372 + $0xb48] sm:$0xff]
          %v8764 = vld [vmem:[%s372 + $0xb50] sm:$0xff]
          %v8765 = vld [vmem:[%s372 + $0xb58] sm:$0xff]
          %v8766 = vld [vmem:[%s372 + $0xb60] sm:$0xff]
          %v8767 = vld [vmem:[%s372 + $0xb68] sm:$0xff]
          %v8768 = vld [vmem:[%s372 + $0xb70] sm:$0xff]
          %v8769 = vld [vmem:[%s372 + $0xb78] sm:$0xff]
          %v8770 = vld [vmem:[%s372 + $0xb80] sm:$0xff]
          %v8771 = vld [vmem:[%s372 + $0xb88] sm:$0xff]
          %v8772 = vld [vmem:[%s372 + $0xb90] sm:$0xff]
          %v8773 = vld [vmem:[%s372 + $0xb98] sm:$0xff]
          %v8774 = vld [vmem:[%s372 + $0xba0] sm:$0xff]
          %v8775 = vld [vmem:[%s372 + $0xba8] sm:$0xff]
          %v8776 = vld [vmem:[%s372 + $0xbb0] sm:$0xff]
          %v8777 = vld [vmem:[%s372 + $0xbb8] sm:$0xff]
          %v8778 = vld [vmem:[%s372 + $0xbc0] sm:$0xff]
          %v8779 = vld [vmem:[%s372 + $0xbc8] sm:$0xff]
          %v8780 = vld [vmem:[%s372 + $0xbd0] sm:$0xff]
          %v8781 = vld [vmem:[%s372 + $0xbd8] sm:$0xff]
          %v8782 = vld [vmem:[%s372 + $0xbe0] sm:$0xff]
          %v8783 = vld [vmem:[%s372 + $0xbe8] sm:$0xff]
          %v8784 = vld [vmem:[%s372 + $0xbf0] sm:$0xff]
          %v8785 = vld [vmem:[%s372 + $0xbf8] sm:$0xff]
          %v8786 = vld [vmem:[%s372 + $0xc00] sm:$0xff]
          %v8787 = vld [vmem:[%s372 + $0xc08] sm:$0xff]
          %v8788 = vld [vmem:[%s372 + $0xc10] sm:$0xff]
          %v8789 = vld [vmem:[%s372 + $0xc18] sm:$0xff]
          %v8790 = vld [vmem:[%s372 + $0xc20] sm:$0xff]
          %v8791 = vld [vmem:[%s372 + $0xc28] sm:$0xff]
          %v8792 = vld [vmem:[%s372 + $0xc30] sm:$0xff]
          %v8793 = vld [vmem:[%s372 + $0xc38] sm:$0xff]
          %v8794 = vld [vmem:[%s372 + $0xc40] sm:$0xff]
          %v8795 = vld [vmem:[%s372 + $0xc48] sm:$0xff]
          %v8796 = vld [vmem:[%s372 + $0xc50] sm:$0xff]
          %v8797 = vld [vmem:[%s372 + $0xc58] sm:$0xff]
          %v8798 = vld [vmem:[%s372 + $0xc60] sm:$0xff]
          %v8799 = vld [vmem:[%s372 + $0xc68] sm:$0xff]
          %v8800 = vld [vmem:[%s372 + $0xc70] sm:$0xff]
          %v8801 = vld [vmem:[%s372 + $0xc78] sm:$0xff]
          %v8802 = vld [vmem:[%s372 + $0xc80] sm:$0xff]
          %v8803 = vld [vmem:[%s372 + $0xc88] sm:$0xff]
          %v8804 = vld [vmem:[%s372 + $0xc90] sm:$0xff]
          %v8805 = vld [vmem:[%s372 + $0xc98] sm:$0xff]
          %v8806 = vld [vmem:[%s372 + $0xca0] sm:$0xff]
          %v8807 = vld [vmem:[%s372 + $0xca8] sm:$0xff]
          %v8808 = vld [vmem:[%s372 + $0xcb0] sm:$0xff]
          %v8809 = vld [vmem:[%s372 + $0xcb8] sm:$0xff]
          %v8810 = vld [vmem:[%s372 + $0xcc0] sm:$0xff]
          %v8811 = vld [vmem:[%s372 + $0xcc8] sm:$0xff]
          %v8812 = vld [vmem:[%s372 + $0xcd0] sm:$0xff]
          %v8813 = vld [vmem:[%s372 + $0xcd8] sm:$0xff]
          %v8814 = vld [vmem:[%s372 + $0xce0] sm:$0xff]
          %v8815 = vld [vmem:[%s372 + $0xce8] sm:$0xff]
          %v8816 = vld [vmem:[%s372 + $0xcf0] sm:$0xff]
          %v8817 = vld [vmem:[%s372 + $0xcf8] sm:$0xff]
          %v8818 = vld [vmem:[%s372 + $0xd00] sm:$0xff]
          %v8819 = vld [vmem:[%s372 + $0xd08] sm:$0xff]
          %v8820 = vld [vmem:[%s372 + $0xd10] sm:$0xff]
          %v8821 = vld [vmem:[%s372 + $0xd18] sm:$0xff]
          %v8822 = vld [vmem:[%s372 + $0xd20] sm:$0xff]
          %v8823 = vld [vmem:[%s372 + $0xd28] sm:$0xff]
          %v8824 = vld [vmem:[%s372 + $0xd30] sm:$0xff]
          %v8825 = vld [vmem:[%s372 + $0xd38] sm:$0xff]
          %v8826 = vld [vmem:[%s372 + $0xd40] sm:$0xff]
          %v8827 = vld [vmem:[%s372 + $0xd48] sm:$0xff]
          %v8828 = vld [vmem:[%s372 + $0xd50] sm:$0xff]
          %v8829 = vld [vmem:[%s372 + $0xd58] sm:$0xff]
          %v8830 = vld [vmem:[%s372 + $0xd60] sm:$0xff]
          %v8831 = vld [vmem:[%s372 + $0xd68] sm:$0xff]
          %v8832 = vld [vmem:[%s372 + $0xd70] sm:$0xff]
          %v8833 = vld [vmem:[%s372 + $0xd78] sm:$0xff]
          %v8834 = vld [vmem:[%s372 + $0xd80] sm:$0xff]
          %v8835 = vld [vmem:[%s372 + $0xd88] sm:$0xff]
          %v8836 = vld [vmem:[%s372 + $0xd90] sm:$0xff]
          %v8837 = vld [vmem:[%s372 + $0xd98] sm:$0xff]
          %v8838 = vld [vmem:[%s372 + $0xda0] sm:$0xff]
          %v8839 = vld [vmem:[%s372 + $0xda8] sm:$0xff]
          %v8840 = vld [vmem:[%s372 + $0xdb0] sm:$0xff]
          %v8841 = vld [vmem:[%s372 + $0xdb8] sm:$0xff]
          %v8842 = vld [vmem:[%s372 + $0xdc0] sm:$0xff]
          %v8843 = vld [vmem:[%s372 + $0xdc8] sm:$0xff]
          %v8844 = vld [vmem:[%s372 + $0xdd0] sm:$0xff]
          %v8845 = vld [vmem:[%s372 + $0xdd8] sm:$0xff]
          %v8846 = vld [vmem:[%s372 + $0xde0] sm:$0xff]
          %v8847 = vld [vmem:[%s372 + $0xde8] sm:$0xff]
          %v8848 = vld [vmem:[%s372 + $0xdf0] sm:$0xff]
          %v8849 = vld [vmem:[%s372 + $0xdf8] sm:$0xff]
          %v8850 = vld [vmem:[%s372 + $0xe00] sm:$0xff]
          %v8851 = vld [vmem:[%s372 + $0xe08] sm:$0xff]
          %v8852 = vld [vmem:[%s372 + $0xe10] sm:$0xff]
          %v8853 = vld [vmem:[%s372 + $0xe18] sm:$0xff]
          %v8854 = vld [vmem:[%s372 + $0xe20] sm:$0xff]
          %v8855 = vld [vmem:[%s372 + $0xe28] sm:$0xff]
          %v8856 = vld [vmem:[%s372 + $0xe30] sm:$0xff]
          %v8857 = vld [vmem:[%s372 + $0xe38] sm:$0xff]
          %v8858 = vld [vmem:[%s372 + $0xe40] sm:$0xff]
          %v8859 = vld [vmem:[%s372 + $0xe48] sm:$0xff]
          %v8860 = vld [vmem:[%s372 + $0xe50] sm:$0xff]
          %v8861 = vld [vmem:[%s372 + $0xe58] sm:$0xff]
          %v8862 = vld [vmem:[%s372 + $0xe60] sm:$0xff]
          %v8863 = vld [vmem:[%s372 + $0xe68] sm:$0xff]
          %v8864 = vld [vmem:[%s372 + $0xe70] sm:$0xff]
          %v8865 = vld [vmem:[%s372 + $0xe78] sm:$0xff]
          %v8866 = vld [vmem:[%s372 + $0xe80] sm:$0xff]
          %v8867 = vld [vmem:[%s372 + $0xe88] sm:$0xff]
          %v8868 = vld [vmem:[%s372 + $0xe90] sm:$0xff]
          %v8869 = vld [vmem:[%s372 + $0xe98] sm:$0xff]
          %v8870 = vld [vmem:[%s372 + $0xea0] sm:$0xff]
          %v8871 = vld [vmem:[%s372 + $0xea8] sm:$0xff]
          %v8872 = vld [vmem:[%s372 + $0xeb0] sm:$0xff]
          %v8873 = vld [vmem:[%s372 + $0xeb8] sm:$0xff]
          %v8874 = vld [vmem:[%s372 + $0xec0] sm:$0xff]
          %v8875 = vld [vmem:[%s372 + $0xec8] sm:$0xff]
          %v8876 = vld [vmem:[%s372 + $0xed0] sm:$0xff]
          %v8877 = vld [vmem:[%s372 + $0xed8] sm:$0xff]
          %v8878 = vld [vmem:[%s372 + $0xee0] sm:$0xff]
          %v8879 = vld [vmem:[%s372 + $0xee8] sm:$0xff]
          %v8880 = vld [vmem:[%s372 + $0xef0] sm:$0xff]
          %v8881 = vld [vmem:[%s372 + $0xef8] sm:$0xff]
          %v8882 = vld [vmem:[%s372 + $0xf00] sm:$0xff]
          %v8883 = vld [vmem:[%s372 + $0xf08] sm:$0xff]
          %v8884 = vld [vmem:[%s372 + $0xf10] sm:$0xff]
          %v8885 = vld [vmem:[%s372 + $0xf18] sm:$0xff]
          %v8886 = vld [vmem:[%s372 + $0xf20] sm:$0xff]
          %v8887 = vld [vmem:[%s372 + $0xf28] sm:$0xff]
          %v8888 = vld [vmem:[%s372 + $0xf30] sm:$0xff]
          %v8889 = vld [vmem:[%s372 + $0xf38] sm:$0xff]
          %v8890 = vld [vmem:[%s372 + $0xf40] sm:$0xff]
          %v8891 = vld [vmem:[%s372 + $0xf48] sm:$0xff]
          %v8892 = vld [vmem:[%s372 + $0xf50] sm:$0xff]
          %v8893 = vld [vmem:[%s372 + $0xf58] sm:$0xff]
          %v8894 = vld [vmem:[%s372 + $0xf60] sm:$0xff]
          %v8895 = vld [vmem:[%s372 + $0xf68] sm:$0xff]
          %v8896 = vld [vmem:[%s372 + $0xf70] sm:$0xff]
          %v8897 = vld [vmem:[%s372 + $0xf78] sm:$0xff]
          %v8898 = vld [vmem:[%s372 + $0xf80] sm:$0xff]
          %v8899 = vld [vmem:[%s372 + $0xf88] sm:$0xff]
          %v8900 = vld [vmem:[%s372 + $0xf90] sm:$0xff]
          %v8901 = vld [vmem:[%s372 + $0xf98] sm:$0xff]
          %v8902 = vld [vmem:[%s372 + $0xfa0] sm:$0xff]
          %v8903 = vld [vmem:[%s372 + $0xfa8] sm:$0xff]
          %v8904 = vld [vmem:[%s372 + $0xfb0] sm:$0xff]
          %v8905 = vld [vmem:[%s372 + $0xfb8] sm:$0xff]
          %v8906 = vld [vmem:[%s372 + $0xfc0] sm:$0xff]
          %v8907 = vld [vmem:[%s372 + $0xfc8] sm:$0xff]
          %v8908 = vld [vmem:[%s372 + $0xfd0] sm:$0xff]
          %v8909 = vld [vmem:[%s372 + $0xfd8] sm:$0xff]
          %v8910 = vld [vmem:[%s372 + $0xfe0] sm:$0xff]
          %v8911 = vld [vmem:[%s372 + $0xfe8] sm:$0xff]
          %v8912 = vld [vmem:[%s372 + $0xff0] sm:$0xff]
          %v8913 = vld [vmem:[%s372 + $0xff8] sm:$0xff]
          %v8914 = vld [vmem:[%s372 + $0x1000] sm:$0xff]
          %v8915 = vld [vmem:[%s372 + $0x1008] sm:$0xff]
          %v8916 = vld [vmem:[%s372 + $0x1010] sm:$0xff]
          %v8917 = vld [vmem:[%s372 + $0x1018] sm:$0xff]
          %v8918 = vld [vmem:[%s372 + $0x1020] sm:$0xff]
          %v8919 = vld [vmem:[%s372 + $0x1028] sm:$0xff]
          %v8920 = vld [vmem:[%s372 + $0x1030] sm:$0xff]
          %v8921 = vld [vmem:[%s372 + $0x1038] sm:$0xff]
          %v8922 = vld [vmem:[%s372 + $0x1040] sm:$0xff]
          %v8923 = vld [vmem:[%s372 + $0x1048] sm:$0xff]
          %v8924 = vld [vmem:[%s372 + $0x1050] sm:$0xff]
          %v8925 = vld [vmem:[%s372 + $0x1058] sm:$0xff]
          %v8926 = vld [vmem:[%s372 + $0x1060] sm:$0xff]
          %v8927 = vld [vmem:[%s372 + $0x1068] sm:$0xff]
          %v8928 = vld [vmem:[%s372 + $0x1070] sm:$0xff]
          %v8929 = vld [vmem:[%s372 + $0x1078] sm:$0xff]
          %v8930 = vld [vmem:[%s372 + $0x1080] sm:$0xff]
          %v8931 = vld [vmem:[%s372 + $0x1088] sm:$0xff]
          %v8932 = vld [vmem:[%s372 + $0x1090] sm:$0xff]
          %v8933 = vld [vmem:[%s372 + $0x1098] sm:$0xff]
          %v8934 = vld [vmem:[%s372 + $0x10a0] sm:$0xff]
          %v8935 = vld [vmem:[%s372 + $0x10a8] sm:$0xff]
          %v8936 = vld [vmem:[%s372 + $0x10b0] sm:$0xff]
          %v8937 = vld [vmem:[%s372 + $0x10b8] sm:$0xff]
          %v8938 = vld [vmem:[%s372 + $0x10c0] sm:$0xff]
          %v8939 = vld [vmem:[%s372 + $0x10c8] sm:$0xff]
          %v8940 = vld [vmem:[%s372 + $0x10d0] sm:$0xff]
          %v8941 = vld [vmem:[%s372 + $0x10d8] sm:$0xff]
          %v8942 = vld [vmem:[%s372 + $0x10e0] sm:$0xff]
          %v8943 = vld [vmem:[%s372 + $0x10e8] sm:$0xff]
          %v8944 = vld [vmem:[%s372 + $0x10f0] sm:$0xff]
          %v8945 = vld [vmem:[%s372 + $0x10f8] sm:$0xff]
          %v8946 = vld [vmem:[%s372 + $0x1100] sm:$0xff]
          %v8947 = vld [vmem:[%s372 + $0x1108] sm:$0xff]
          %v8948 = vld [vmem:[%s372 + $0x1110] sm:$0xff]
          %v8949 = vld [vmem:[%s372 + $0x1118] sm:$0xff]
          %v8950 = vld [vmem:[%s372 + $0x1120] sm:$0xff]
          %v8951 = vld [vmem:[%s372 + $0x1128] sm:$0xff]
          %v8952 = vld [vmem:[%s372 + $0x1130] sm:$0xff]
          %v8953 = vld [vmem:[%s372 + $0x1138] sm:$0xff]
          %v8954 = vld [vmem:[%s372 + $0x1140] sm:$0xff]
          %v8955 = vld [vmem:[%s372 + $0x1148] sm:$0xff]
          %v8956 = vld [vmem:[%s372 + $0x1150] sm:$0xff]
          %v8957 = vld [vmem:[%s372 + $0x1158] sm:$0xff]
          %v8958 = vld [vmem:[%s372 + $0x1160] sm:$0xff]
          %v8959 = vld [vmem:[%s372 + $0x1168] sm:$0xff]
          %v8960 = vld [vmem:[%s372 + $0x1170] sm:$0xff]
          %v8961 = vld [vmem:[%s372 + $0x1178] sm:$0xff]
          %v8962 = vld [vmem:[%s372 + $0x1180] sm:$0xff]
          %v8963 = vld [vmem:[%s372 + $0x1188] sm:$0xff]
          %v8964 = vld [vmem:[%s372 + $0x1190] sm:$0xff]
          %v8965 = vld [vmem:[%s372 + $0x1198] sm:$0xff]
          %v8966 = vld [vmem:[%s372 + $0x11a0] sm:$0xff]
          %v8967 = vld [vmem:[%s372 + $0x11a8] sm:$0xff]
          %v8968 = vld [vmem:[%s372 + $0x11b0] sm:$0xff]
          %v8969 = vld [vmem:[%s372 + $0x11b8] sm:$0xff]
          %v8970 = vld [vmem:[%s372 + $0x11c0] sm:$0xff]
          %v8971 = vld [vmem:[%s372 + $0x11c8] sm:$0xff]
          %v8972 = vld [vmem:[%s372 + $0x11d0] sm:$0xff]
          %v8973 = vld [vmem:[%s372 + $0x11d8] sm:$0xff]
          %v8974 = vld [vmem:[%s372 + $0x11e0] sm:$0xff]
          %v8975 = vld [vmem:[%s372 + $0x11e8] sm:$0xff]
          %v8976 = vld [vmem:[%s372 + $0x11f0] sm:$0xff]
          %v8977 = vld [vmem:[%s372 + $0x11f8] sm:$0xff]
          %v8978 = vld [vmem:[%s372 + $0x1200] sm:$0xff]
          %v8979 = vld [vmem:[%s372 + $0x1208] sm:$0xff]
          %v8980 = vld [vmem:[%s372 + $0x1210] sm:$0xff]
          %v8981 = vld [vmem:[%s372 + $0x1218] sm:$0xff]
          %v8982 = vld [vmem:[%s372 + $0x1220] sm:$0xff]
          %v8983 = vld [vmem:[%s372 + $0x1228] sm:$0xff]
          %v8984 = vld [vmem:[%s372 + $0x1230] sm:$0xff]
          %v8985 = vld [vmem:[%s372 + $0x1238] sm:$0xff]
          %v8986 = vld [vmem:[%s372 + $0x1240] sm:$0xff]
          %v8987 = vld [vmem:[%s372 + $0x1248] sm:$0xff]
          %v8988 = vld [vmem:[%s372 + $0x1250] sm:$0xff]
          %v8989 = vld [vmem:[%s372 + $0x1258] sm:$0xff]
          %v8990 = vld [vmem:[%s372 + $0x1260] sm:$0xff]
          %v8991 = vld [vmem:[%s372 + $0x1268] sm:$0xff]
          %v8992 = vld [vmem:[%s372 + $0x1270] sm:$0xff]
          %v8993 = vld [vmem:[%s372 + $0x1278] sm:$0xff]
          %v8994 = vld [vmem:[%s372 + $0x1280] sm:$0xff]
          %v8995 = vld [vmem:[%s372 + $0x1288] sm:$0xff]
          %v8996 = vld [vmem:[%s372 + $0x1290] sm:$0xff]
          %v8997 = vld [vmem:[%s372 + $0x1298] sm:$0xff]
          %v8998 = vld [vmem:[%s372 + $0x12a0] sm:$0xff]
          %v8999 = vld [vmem:[%s372 + $0x12a8] sm:$0xff]
          %v9000 = vld [vmem:[%s372 + $0x12b0] sm:$0xff]
          %v9001 = vld [vmem:[%s372 + $0x12b8] sm:$0xff]
          %v9002 = vld [vmem:[%s372 + $0x12c0] sm:$0xff]
          %v9003 = vld [vmem:[%s372 + $0x12c8] sm:$0xff]
          %v9004 = vld [vmem:[%s372 + $0x12d0] sm:$0xff]
          %v9005 = vld [vmem:[%s372 + $0x12d8] sm:$0xff]
          %v9006 = vld [vmem:[%s372 + $0x12e0] sm:$0xff]
          %v9007 = vld [vmem:[%s372 + $0x12e8] sm:$0xff]
          %v9008 = vld [vmem:[%s372 + $0x12f0] sm:$0xff]
          %v9009 = vld [vmem:[%s372 + $0x12f8] sm:$0xff]
          %v9010 = vld [vmem:[%s372 + $0x1300] sm:$0xff]
          %v9011 = vld [vmem:[%s372 + $0x1308] sm:$0xff]
          %v9012 = vld [vmem:[%s372 + $0x1310] sm:$0xff]
          %v9013 = vld [vmem:[%s372 + $0x1318] sm:$0xff]
          %v9014 = vld [vmem:[%s372 + $0x1320] sm:$0xff]
          %v9015 = vld [vmem:[%s372 + $0x1328] sm:$0xff]
          %v9016 = vld [vmem:[%s372 + $0x1330] sm:$0xff]
          %v9017 = vld [vmem:[%s372 + $0x1338] sm:$0xff]
          %v9018 = vld [vmem:[%s372 + $0x1340] sm:$0xff]
          %v9019 = vld [vmem:[%s372 + $0x1348] sm:$0xff]
          %v9020 = vld [vmem:[%s372 + $0x1350] sm:$0xff]
          %v9021 = vld [vmem:[%s372 + $0x1358] sm:$0xff]
          %v9022 = vld [vmem:[%s372 + $0x1360] sm:$0xff]
          %v9023 = vld [vmem:[%s372 + $0x1368] sm:$0xff]
          %v9024 = vld [vmem:[%s372 + $0x1370] sm:$0xff]
          %v9025 = vld [vmem:[%s372 + $0x1378] sm:$0xff]
          %v9026 = vld [vmem:[%s372 + $0x1380] sm:$0xff]
          %v9027 = vld [vmem:[%s372 + $0x1388] sm:$0xff]
          %v9028 = vld [vmem:[%s372 + $0x1390] sm:$0xff]
          %v9029 = vld [vmem:[%s372 + $0x1398] sm:$0xff]
          %v9030 = vld [vmem:[%s372 + $0x13a0] sm:$0xff]
          %v9031 = vld [vmem:[%s372 + $0x13a8] sm:$0xff]
          %v9032 = vld [vmem:[%s372 + $0x13b0] sm:$0xff]
          %v9033 = vld [vmem:[%s372 + $0x13b8] sm:$0xff]
          %v9034 = vld [vmem:[%s372 + $0x13c0] sm:$0xff]
          %v9035 = vld [vmem:[%s372 + $0x13c8] sm:$0xff]
          %v9036 = vld [vmem:[%s372 + $0x13d0] sm:$0xff]
          %v9037 = vld [vmem:[%s372 + $0x13d8] sm:$0xff]
          %v9038 = vld [vmem:[%s372 + $0x13e0] sm:$0xff]
          %v9039 = vld [vmem:[%s372 + $0x13e8] sm:$0xff]
          %v9040 = vld [vmem:[%s372 + $0x13f0] sm:$0xff]
          %v9041 = vld [vmem:[%s372 + $0x13f8] sm:$0xff]
          %v9682 = vunpack.c.l.b16 %v8402
          %v9683 = vunpack.c.h.b16 %v8402
          %v9684 = vunpack.c.l.b16 %v8403
          %v9685 = vunpack.c.h.b16 %v8403
          %v9686 = vunpack.c.l.b16 %v8404
          %v9687 = vunpack.c.h.b16 %v8404
          %v9688 = vunpack.c.l.b16 %v8405
          %v9689 = vunpack.c.h.b16 %v8405
          %v9690 = vunpack.c.l.b16 %v8406
          %v9691 = vunpack.c.h.b16 %v8406
          %v9692 = vunpack.c.l.b16 %v8407
          %v9693 = vunpack.c.h.b16 %v8407
          %v9694 = vunpack.c.l.b16 %v8408
          %v9695 = vunpack.c.h.b16 %v8408
          %v9696 = vunpack.c.l.b16 %v8409
          %v9697 = vunpack.c.h.b16 %v8409
          %v9698 = vunpack.c.l.b16 %v8410
          %v9699 = vunpack.c.h.b16 %v8410
          %v9700 = vunpack.c.l.b16 %v8411
          %v9701 = vunpack.c.h.b16 %v8411
          %v9702 = vunpack.c.l.b16 %v8412
          %v9703 = vunpack.c.h.b16 %v8412
          %v9704 = vunpack.c.l.b16 %v8413
          %v9705 = vunpack.c.h.b16 %v8413
          %v9706 = vunpack.c.l.b16 %v8414
          %v9707 = vunpack.c.h.b16 %v8414
          %v9708 = vunpack.c.l.b16 %v8415
          %v9709 = vunpack.c.h.b16 %v8415
          %v9710 = vunpack.c.l.b16 %v8416
          %v9711 = vunpack.c.h.b16 %v8416
          %v9712 = vunpack.c.l.b16 %v8417
          %v9713 = vunpack.c.h.b16 %v8417
          %v9714 = vunpack.c.l.b16 %v8418
          %v9715 = vunpack.c.h.b16 %v8418
          %v9716 = vunpack.c.l.b16 %v8419
          %v9717 = vunpack.c.h.b16 %v8419
          %v9718 = vunpack.c.l.b16 %v8420
          %v9719 = vunpack.c.h.b16 %v8420
          %v9720 = vunpack.c.l.b16 %v8421
          %v9721 = vunpack.c.h.b16 %v8421
          %v9722 = vunpack.c.l.b16 %v8422
          %v9723 = vunpack.c.h.b16 %v8422
          %v9724 = vunpack.c.l.b16 %v8423
          %v9725 = vunpack.c.h.b16 %v8423
          %v9726 = vunpack.c.l.b16 %v8424
          %v9727 = vunpack.c.h.b16 %v8424
          %v9728 = vunpack.c.l.b16 %v8425
          %v9729 = vunpack.c.h.b16 %v8425
          %v9730 = vunpack.c.l.b16 %v8426
          %v9731 = vunpack.c.h.b16 %v8426
          %v9732 = vunpack.c.l.b16 %v8427
          %v9733 = vunpack.c.h.b16 %v8427
          %v9734 = vunpack.c.l.b16 %v8428
          %v9735 = vunpack.c.h.b16 %v8428
          %v9736 = vunpack.c.l.b16 %v8429
          %v9737 = vunpack.c.h.b16 %v8429
          %v9738 = vunpack.c.l.b16 %v8430
          %v9739 = vunpack.c.h.b16 %v8430
          %v9740 = vunpack.c.l.b16 %v8431
          %v9741 = vunpack.c.h.b16 %v8431
          %v9742 = vunpack.c.l.b16 %v8432
          %v9743 = vunpack.c.h.b16 %v8432
          %v9744 = vunpack.c.l.b16 %v8433
          %v9745 = vunpack.c.h.b16 %v8433
          %v9746 = vunpack.c.l.b16 %v8434
          %v9747 = vunpack.c.h.b16 %v8434
          %v9748 = vunpack.c.l.b16 %v8435
          %v9749 = vunpack.c.h.b16 %v8435
          %v9750 = vunpack.c.l.b16 %v8436
          %v9751 = vunpack.c.h.b16 %v8436
          %v9752 = vunpack.c.l.b16 %v8437
          %v9753 = vunpack.c.h.b16 %v8437
          %v9754 = vunpack.c.l.b16 %v8438
          %v9755 = vunpack.c.h.b16 %v8438
          %v9756 = vunpack.c.l.b16 %v8439
          %v9757 = vunpack.c.h.b16 %v8439
          %v9758 = vunpack.c.l.b16 %v8440
          %v9759 = vunpack.c.h.b16 %v8440
          %v9760 = vunpack.c.l.b16 %v8441
          %v9761 = vunpack.c.h.b16 %v8441
          %v9762 = vunpack.c.l.b16 %v8442
          %v9763 = vunpack.c.h.b16 %v8442
          %v9764 = vunpack.c.l.b16 %v8443
          %v9765 = vunpack.c.h.b16 %v8443
          %v9766 = vunpack.c.l.b16 %v8444
          %v9767 = vunpack.c.h.b16 %v8444
          %v9768 = vunpack.c.l.b16 %v8445
          %v9769 = vunpack.c.h.b16 %v8445
          %v9770 = vunpack.c.l.b16 %v8446
          %v9771 = vunpack.c.h.b16 %v8446
          %v9772 = vunpack.c.l.b16 %v8447
          %v9773 = vunpack.c.h.b16 %v8447
          %v9774 = vunpack.c.l.b16 %v8448
          %v9775 = vunpack.c.h.b16 %v8448
          %v9776 = vunpack.c.l.b16 %v8449
          %v9777 = vunpack.c.h.b16 %v8449
          %v9778 = vunpack.c.l.b16 %v8450
          %v9779 = vunpack.c.h.b16 %v8450
          %v9780 = vunpack.c.l.b16 %v8451
          %v9781 = vunpack.c.h.b16 %v8451
          %v9782 = vunpack.c.l.b16 %v8452
          %v9783 = vunpack.c.h.b16 %v8452
          %v9784 = vunpack.c.l.b16 %v8453
          %v9785 = vunpack.c.h.b16 %v8453
          %v9786 = vunpack.c.l.b16 %v8454
          %v9787 = vunpack.c.h.b16 %v8454
          %v9788 = vunpack.c.l.b16 %v8455
          %v9789 = vunpack.c.h.b16 %v8455
          %v9790 = vunpack.c.l.b16 %v8456
          %v9791 = vunpack.c.h.b16 %v8456
          %v9792 = vunpack.c.l.b16 %v8457
          %v9793 = vunpack.c.h.b16 %v8457
          %v9794 = vunpack.c.l.b16 %v8458
          %v9795 = vunpack.c.h.b16 %v8458
          %v9796 = vunpack.c.l.b16 %v8459
          %v9797 = vunpack.c.h.b16 %v8459
          %v9798 = vunpack.c.l.b16 %v8460
          %v9799 = vunpack.c.h.b16 %v8460
          %v9800 = vunpack.c.l.b16 %v8461
          %v9801 = vunpack.c.h.b16 %v8461
          %v9802 = vunpack.c.l.b16 %v8462
          %v9803 = vunpack.c.h.b16 %v8462
          %v9804 = vunpack.c.l.b16 %v8463
          %v9805 = vunpack.c.h.b16 %v8463
          %v9806 = vunpack.c.l.b16 %v8464
          %v9807 = vunpack.c.h.b16 %v8464
          %v9808 = vunpack.c.l.b16 %v8465
          %v9809 = vunpack.c.h.b16 %v8465
          %v9810 = vunpack.c.l.b16 %v8466
          %v9811 = vunpack.c.h.b16 %v8466
          %v9812 = vunpack.c.l.b16 %v8467
          %v9813 = vunpack.c.h.b16 %v8467
          %v9814 = vunpack.c.l.b16 %v8468
          %v9815 = vunpack.c.h.b16 %v8468
          %v9816 = vunpack.c.l.b16 %v8469
          %v9817 = vunpack.c.h.b16 %v8469
          %v9818 = vunpack.c.l.b16 %v8470
          %v9819 = vunpack.c.h.b16 %v8470
          %v9820 = vunpack.c.l.b16 %v8471
          %v9821 = vunpack.c.h.b16 %v8471
          %v9822 = vunpack.c.l.b16 %v8472
          %v9823 = vunpack.c.h.b16 %v8472
          %v9824 = vunpack.c.l.b16 %v8473
          %v9825 = vunpack.c.h.b16 %v8473
          %v9826 = vunpack.c.l.b16 %v8474
          %v9827 = vunpack.c.h.b16 %v8474
          %v9828 = vunpack.c.l.b16 %v8475
          %v9829 = vunpack.c.h.b16 %v8475
          %v9830 = vunpack.c.l.b16 %v8476
          %v9831 = vunpack.c.h.b16 %v8476
          %v9832 = vunpack.c.l.b16 %v8477
          %v9833 = vunpack.c.h.b16 %v8477
          %v9834 = vunpack.c.l.b16 %v8478
          %v9835 = vunpack.c.h.b16 %v8478
          %v9836 = vunpack.c.l.b16 %v8479
          %v9837 = vunpack.c.h.b16 %v8479
          %v9838 = vunpack.c.l.b16 %v8480
          %v9839 = vunpack.c.h.b16 %v8480
          %v9840 = vunpack.c.l.b16 %v8481
          %v9841 = vunpack.c.h.b16 %v8481
          %v9842 = vunpack.c.l.b16 %v8482
          %v9843 = vunpack.c.h.b16 %v8482
          %v9844 = vunpack.c.l.b16 %v8483
          %v9845 = vunpack.c.h.b16 %v8483
          %v9846 = vunpack.c.l.b16 %v8484
          %v9847 = vunpack.c.h.b16 %v8484
          %v9848 = vunpack.c.l.b16 %v8485
          %v9849 = vunpack.c.h.b16 %v8485
          %v9850 = vunpack.c.l.b16 %v8486
          %v9851 = vunpack.c.h.b16 %v8486
          %v9852 = vunpack.c.l.b16 %v8487
          %v9853 = vunpack.c.h.b16 %v8487
          %v9854 = vunpack.c.l.b16 %v8488
          %v9855 = vunpack.c.h.b16 %v8488
          %v9856 = vunpack.c.l.b16 %v8489
          %v9857 = vunpack.c.h.b16 %v8489
          %v9858 = vunpack.c.l.b16 %v8490
          %v9859 = vunpack.c.h.b16 %v8490
          %v9860 = vunpack.c.l.b16 %v8491
          %v9861 = vunpack.c.h.b16 %v8491
          %v9862 = vunpack.c.l.b16 %v8492
          %v9863 = vunpack.c.h.b16 %v8492
          %v9864 = vunpack.c.l.b16 %v8493
          %v9865 = vunpack.c.h.b16 %v8493
          %v9866 = vunpack.c.l.b16 %v8494
          %v9867 = vunpack.c.h.b16 %v8494
          %v9868 = vunpack.c.l.b16 %v8495
          %v9869 = vunpack.c.h.b16 %v8495
          %v9870 = vunpack.c.l.b16 %v8496
          %v9871 = vunpack.c.h.b16 %v8496
          %v9872 = vunpack.c.l.b16 %v8497
          %v9873 = vunpack.c.h.b16 %v8497
          %v9874 = vunpack.c.l.b16 %v8498
          %v9875 = vunpack.c.h.b16 %v8498
          %v9876 = vunpack.c.l.b16 %v8499
          %v9877 = vunpack.c.h.b16 %v8499
          %v9878 = vunpack.c.l.b16 %v8500
          %v9879 = vunpack.c.h.b16 %v8500
          %v9880 = vunpack.c.l.b16 %v8501
          %v9881 = vunpack.c.h.b16 %v8501
          %v9882 = vunpack.c.l.b16 %v8502
          %v9883 = vunpack.c.h.b16 %v8502
          %v9884 = vunpack.c.l.b16 %v8503
          %v9885 = vunpack.c.h.b16 %v8503
          %v9886 = vunpack.c.l.b16 %v8504
          %v9887 = vunpack.c.h.b16 %v8504
          %v9888 = vunpack.c.l.b16 %v8505
          %v9889 = vunpack.c.h.b16 %v8505
          %v9890 = vunpack.c.l.b16 %v8506
          %v9891 = vunpack.c.h.b16 %v8506
          %v9892 = vunpack.c.l.b16 %v8507
          %v9893 = vunpack.c.h.b16 %v8507
          %v9894 = vunpack.c.l.b16 %v8508
          %v9895 = vunpack.c.h.b16 %v8508
          %v9896 = vunpack.c.l.b16 %v8509
          %v9897 = vunpack.c.h.b16 %v8509
          %v9898 = vunpack.c.l.b16 %v8510
          %v9899 = vunpack.c.h.b16 %v8510
          %v9900 = vunpack.c.l.b16 %v8511
          %v9901 = vunpack.c.h.b16 %v8511
          %v9902 = vunpack.c.l.b16 %v8512
          %v9903 = vunpack.c.h.b16 %v8512
          %v9904 = vunpack.c.l.b16 %v8513
          %v9905 = vunpack.c.h.b16 %v8513
          %v9906 = vunpack.c.l.b16 %v8514
          %v9907 = vunpack.c.h.b16 %v8514
          %v9908 = vunpack.c.l.b16 %v8515
          %v9909 = vunpack.c.h.b16 %v8515
          %v9910 = vunpack.c.l.b16 %v8516
          %v9911 = vunpack.c.h.b16 %v8516
          %v9912 = vunpack.c.l.b16 %v8517
          %v9913 = vunpack.c.h.b16 %v8517
          %v9914 = vunpack.c.l.b16 %v8518
          %v9915 = vunpack.c.h.b16 %v8518
          %v9916 = vunpack.c.l.b16 %v8519
          %v9917 = vunpack.c.h.b16 %v8519
          %v9918 = vunpack.c.l.b16 %v8520
          %v9919 = vunpack.c.h.b16 %v8520
          %v9920 = vunpack.c.l.b16 %v8521
          %v9921 = vunpack.c.h.b16 %v8521
          %v9922 = vunpack.c.l.b16 %v8522
          %v9923 = vunpack.c.h.b16 %v8522
          %v9924 = vunpack.c.l.b16 %v8523
          %v9925 = vunpack.c.h.b16 %v8523
          %v9926 = vunpack.c.l.b16 %v8524
          %v9927 = vunpack.c.h.b16 %v8524
          %v9928 = vunpack.c.l.b16 %v8525
          %v9929 = vunpack.c.h.b16 %v8525
          %v9930 = vunpack.c.l.b16 %v8526
          %v9931 = vunpack.c.h.b16 %v8526
          %v9932 = vunpack.c.l.b16 %v8527
          %v9933 = vunpack.c.h.b16 %v8527
          %v9934 = vunpack.c.l.b16 %v8528
          %v9935 = vunpack.c.h.b16 %v8528
          %v9936 = vunpack.c.l.b16 %v8529
          %v9937 = vunpack.c.h.b16 %v8529
          %v9938 = vunpack.c.l.b16 %v8530
          %v9939 = vunpack.c.h.b16 %v8530
          %v9940 = vunpack.c.l.b16 %v8531
          %v9941 = vunpack.c.h.b16 %v8531
          %v9942 = vunpack.c.l.b16 %v8532
          %v9943 = vunpack.c.h.b16 %v8532
          %v9944 = vunpack.c.l.b16 %v8533
          %v9945 = vunpack.c.h.b16 %v8533
          %v9946 = vunpack.c.l.b16 %v8534
          %v9947 = vunpack.c.h.b16 %v8534
          %v9948 = vunpack.c.l.b16 %v8535
          %v9949 = vunpack.c.h.b16 %v8535
          %v9950 = vunpack.c.l.b16 %v8536
          %v9951 = vunpack.c.h.b16 %v8536
          %v9952 = vunpack.c.l.b16 %v8537
          %v9953 = vunpack.c.h.b16 %v8537
          %v9954 = vunpack.c.l.b16 %v8538
          %v9955 = vunpack.c.h.b16 %v8538
          %v9956 = vunpack.c.l.b16 %v8539
          %v9957 = vunpack.c.h.b16 %v8539
          %v9958 = vunpack.c.l.b16 %v8540
          %v9959 = vunpack.c.h.b16 %v8540
          %v9960 = vunpack.c.l.b16 %v8541
          %v9961 = vunpack.c.h.b16 %v8541
          %v9962 = vunpack.c.l.b16 %v8542
          %v9963 = vunpack.c.h.b16 %v8542
          %v9964 = vunpack.c.l.b16 %v8543
          %v9965 = vunpack.c.h.b16 %v8543
          %v9966 = vunpack.c.l.b16 %v8544
          %v9967 = vunpack.c.h.b16 %v8544
          %v9968 = vunpack.c.l.b16 %v8545
          %v9969 = vunpack.c.h.b16 %v8545
          %v9970 = vunpack.c.l.b16 %v8546
          %v9971 = vunpack.c.h.b16 %v8546
          %v9972 = vunpack.c.l.b16 %v8547
          %v9973 = vunpack.c.h.b16 %v8547
          %v9974 = vunpack.c.l.b16 %v8548
          %v9975 = vunpack.c.h.b16 %v8548
          %v9976 = vunpack.c.l.b16 %v8549
          %v9977 = vunpack.c.h.b16 %v8549
          %v9978 = vunpack.c.l.b16 %v8550
          %v9979 = vunpack.c.h.b16 %v8550
          %v9980 = vunpack.c.l.b16 %v8551
          %v9981 = vunpack.c.h.b16 %v8551
          %v9982 = vunpack.c.l.b16 %v8552
          %v9983 = vunpack.c.h.b16 %v8552
          %v9984 = vunpack.c.l.b16 %v8553
          %v9985 = vunpack.c.h.b16 %v8553
          %v9986 = vunpack.c.l.b16 %v8554
          %v9987 = vunpack.c.h.b16 %v8554
          %v9988 = vunpack.c.l.b16 %v8555
          %v9989 = vunpack.c.h.b16 %v8555
          %v9990 = vunpack.c.l.b16 %v8556
          %v9991 = vunpack.c.h.b16 %v8556
          %v9992 = vunpack.c.l.b16 %v8557
          %v9993 = vunpack.c.h.b16 %v8557
          %v9994 = vunpack.c.l.b16 %v8558
          %v9995 = vunpack.c.h.b16 %v8558
          %v9996 = vunpack.c.l.b16 %v8559
          %v9997 = vunpack.c.h.b16 %v8559
          %v9998 = vunpack.c.l.b16 %v8560
          %v9999 = vunpack.c.h.b16 %v8560
          %v10000 = vunpack.c.l.b16 %v8561
          %v10001 = vunpack.c.h.b16 %v8561
          %v10002 = vunpack.c.l.b16 %v8562
          %v10003 = vunpack.c.h.b16 %v8562
          %v10004 = vunpack.c.l.b16 %v8563
          %v10005 = vunpack.c.h.b16 %v8563
          %v10006 = vunpack.c.l.b16 %v8564
          %v10007 = vunpack.c.h.b16 %v8564
          %v10008 = vunpack.c.l.b16 %v8565
          %v10009 = vunpack.c.h.b16 %v8565
          %v10010 = vunpack.c.l.b16 %v8566
          %v10011 = vunpack.c.h.b16 %v8566
          %v10012 = vunpack.c.l.b16 %v8567
          %v10013 = vunpack.c.h.b16 %v8567
          %v10014 = vunpack.c.l.b16 %v8568
          %v10015 = vunpack.c.h.b16 %v8568
          %v10016 = vunpack.c.l.b16 %v8569
          %v10017 = vunpack.c.h.b16 %v8569
          %v10018 = vunpack.c.l.b16 %v8570
          %v10019 = vunpack.c.h.b16 %v8570
          %v10020 = vunpack.c.l.b16 %v8571
          %v10021 = vunpack.c.h.b16 %v8571
          %v10022 = vunpack.c.l.b16 %v8572
          %v10023 = vunpack.c.h.b16 %v8572
          %v10024 = vunpack.c.l.b16 %v8573
          %v10025 = vunpack.c.h.b16 %v8573
          %v10026 = vunpack.c.l.b16 %v8574
          %v10027 = vunpack.c.h.b16 %v8574
          %v10028 = vunpack.c.l.b16 %v8575
          %v10029 = vunpack.c.h.b16 %v8575
          %v10030 = vunpack.c.l.b16 %v8576
          %v10031 = vunpack.c.h.b16 %v8576
          %v10032 = vunpack.c.l.b16 %v8577
          %v10033 = vunpack.c.h.b16 %v8577
          %v10034 = vunpack.c.l.b16 %v8578
          %v10035 = vunpack.c.h.b16 %v8578
          %v10036 = vunpack.c.l.b16 %v8579
          %v10037 = vunpack.c.h.b16 %v8579
          %v10038 = vunpack.c.l.b16 %v8580
          %v10039 = vunpack.c.h.b16 %v8580
          %v10040 = vunpack.c.l.b16 %v8581
          %v10041 = vunpack.c.h.b16 %v8581
          %v10042 = vunpack.c.l.b16 %v8582
          %v10043 = vunpack.c.h.b16 %v8582
          %v10044 = vunpack.c.l.b16 %v8583
          %v10045 = vunpack.c.h.b16 %v8583
          %v10046 = vunpack.c.l.b16 %v8584
          %v10047 = vunpack.c.h.b16 %v8584
          %v10048 = vunpack.c.l.b16 %v8585
          %v10049 = vunpack.c.h.b16 %v8585
          %v10050 = vunpack.c.l.b16 %v8586
          %v10051 = vunpack.c.h.b16 %v8586
          %v10052 = vunpack.c.l.b16 %v8587
          %v10053 = vunpack.c.h.b16 %v8587
          %v10054 = vunpack.c.l.b16 %v8588
          %v10055 = vunpack.c.h.b16 %v8588
          %v10056 = vunpack.c.l.b16 %v8589
          %v10057 = vunpack.c.h.b16 %v8589
          %v10058 = vunpack.c.l.b16 %v8590
          %v10059 = vunpack.c.h.b16 %v8590
          %v10060 = vunpack.c.l.b16 %v8591
          %v10061 = vunpack.c.h.b16 %v8591
          %v10062 = vunpack.c.l.b16 %v8592
          %v10063 = vunpack.c.h.b16 %v8592
          %v10064 = vunpack.c.l.b16 %v8593
          %v10065 = vunpack.c.h.b16 %v8593
          %v10066 = vunpack.c.l.b16 %v8594
          %v10067 = vunpack.c.h.b16 %v8594
          %v10068 = vunpack.c.l.b16 %v8595
          %v10069 = vunpack.c.h.b16 %v8595
          %v10070 = vunpack.c.l.b16 %v8596
          %v10071 = vunpack.c.h.b16 %v8596
          %v10072 = vunpack.c.l.b16 %v8597
          %v10073 = vunpack.c.h.b16 %v8597
          %v10074 = vunpack.c.l.b16 %v8598
          %v10075 = vunpack.c.h.b16 %v8598
          %v10076 = vunpack.c.l.b16 %v8599
          %v10077 = vunpack.c.h.b16 %v8599
          %v10078 = vunpack.c.l.b16 %v8600
          %v10079 = vunpack.c.h.b16 %v8600
          %v10080 = vunpack.c.l.b16 %v8601
          %v10081 = vunpack.c.h.b16 %v8601
          %v10082 = vunpack.c.l.b16 %v8602
          %v10083 = vunpack.c.h.b16 %v8602
          %v10084 = vunpack.c.l.b16 %v8603
          %v10085 = vunpack.c.h.b16 %v8603
          %v10086 = vunpack.c.l.b16 %v8604
          %v10087 = vunpack.c.h.b16 %v8604
          %v10088 = vunpack.c.l.b16 %v8605
          %v10089 = vunpack.c.h.b16 %v8605
          %v10090 = vunpack.c.l.b16 %v8606
          %v10091 = vunpack.c.h.b16 %v8606
          %v10092 = vunpack.c.l.b16 %v8607
          %v10093 = vunpack.c.h.b16 %v8607
          %v10094 = vunpack.c.l.b16 %v8608
          %v10095 = vunpack.c.h.b16 %v8608
          %v10096 = vunpack.c.l.b16 %v8609
          %v10097 = vunpack.c.h.b16 %v8609
          %v10098 = vunpack.c.l.b16 %v8610
          %v10099 = vunpack.c.h.b16 %v8610
          %v10100 = vunpack.c.l.b16 %v8611
          %v10101 = vunpack.c.h.b16 %v8611
          %v10102 = vunpack.c.l.b16 %v8612
          %v10103 = vunpack.c.h.b16 %v8612
          %v10104 = vunpack.c.l.b16 %v8613
          %v10105 = vunpack.c.h.b16 %v8613
          %v10106 = vunpack.c.l.b16 %v8614
          %v10107 = vunpack.c.h.b16 %v8614
          %v10108 = vunpack.c.l.b16 %v8615
          %v10109 = vunpack.c.h.b16 %v8615
          %v10110 = vunpack.c.l.b16 %v8616
          %v10111 = vunpack.c.h.b16 %v8616
          %v10112 = vunpack.c.l.b16 %v8617
          %v10113 = vunpack.c.h.b16 %v8617
          %v10114 = vunpack.c.l.b16 %v8618
          %v10115 = vunpack.c.h.b16 %v8618
          %v10116 = vunpack.c.l.b16 %v8619
          %v10117 = vunpack.c.h.b16 %v8619
          %v10118 = vunpack.c.l.b16 %v8620
          %v10119 = vunpack.c.h.b16 %v8620
          %v10120 = vunpack.c.l.b16 %v8621
          %v10121 = vunpack.c.h.b16 %v8621
          %v10122 = vunpack.c.l.b16 %v8622
          %v10123 = vunpack.c.h.b16 %v8622
          %v10124 = vunpack.c.l.b16 %v8623
          %v10125 = vunpack.c.h.b16 %v8623
          %v10126 = vunpack.c.l.b16 %v8624
          %v10127 = vunpack.c.h.b16 %v8624
          %v10128 = vunpack.c.l.b16 %v8625
          %v10129 = vunpack.c.h.b16 %v8625
          %v10130 = vunpack.c.l.b16 %v8626
          %v10131 = vunpack.c.h.b16 %v8626
          %v10132 = vunpack.c.l.b16 %v8627
          %v10133 = vunpack.c.h.b16 %v8627
          %v10134 = vunpack.c.l.b16 %v8628
          %v10135 = vunpack.c.h.b16 %v8628
          %v10136 = vunpack.c.l.b16 %v8629
          %v10137 = vunpack.c.h.b16 %v8629
          %v10138 = vunpack.c.l.b16 %v8630
          %v10139 = vunpack.c.h.b16 %v8630
          %v10140 = vunpack.c.l.b16 %v8631
          %v10141 = vunpack.c.h.b16 %v8631
          %v10142 = vunpack.c.l.b16 %v8632
          %v10143 = vunpack.c.h.b16 %v8632
          %v10144 = vunpack.c.l.b16 %v8633
          %v10145 = vunpack.c.h.b16 %v8633
          %v10146 = vunpack.c.l.b16 %v8634
          %v10147 = vunpack.c.h.b16 %v8634
          %v10148 = vunpack.c.l.b16 %v8635
          %v10149 = vunpack.c.h.b16 %v8635
          %v10150 = vunpack.c.l.b16 %v8636
          %v10151 = vunpack.c.h.b16 %v8636
          %v10152 = vunpack.c.l.b16 %v8637
          %v10153 = vunpack.c.h.b16 %v8637
          %v10154 = vunpack.c.l.b16 %v8638
          %v10155 = vunpack.c.h.b16 %v8638
          %v10156 = vunpack.c.l.b16 %v8639
          %v10157 = vunpack.c.h.b16 %v8639
          %v10158 = vunpack.c.l.b16 %v8640
          %v10159 = vunpack.c.h.b16 %v8640
          %v10160 = vunpack.c.l.b16 %v8641
          %v10161 = vunpack.c.h.b16 %v8641
          %v10162 = vunpack.c.l.b16 %v8642
          %v10163 = vunpack.c.h.b16 %v8642
          %v10164 = vunpack.c.l.b16 %v8643
          %v10165 = vunpack.c.h.b16 %v8643
          %v10166 = vunpack.c.l.b16 %v8644
          %v10167 = vunpack.c.h.b16 %v8644
          %v10168 = vunpack.c.l.b16 %v8645
          %v10169 = vunpack.c.h.b16 %v8645
          %v10170 = vunpack.c.l.b16 %v8646
          %v10171 = vunpack.c.h.b16 %v8646
          %v10172 = vunpack.c.l.b16 %v8647
          %v10173 = vunpack.c.h.b16 %v8647
          %v10174 = vunpack.c.l.b16 %v8648
          %v10175 = vunpack.c.h.b16 %v8648
          %v10176 = vunpack.c.l.b16 %v8649
          %v10177 = vunpack.c.h.b16 %v8649
          %v10178 = vunpack.c.l.b16 %v8650
          %v10179 = vunpack.c.h.b16 %v8650
          %v10180 = vunpack.c.l.b16 %v8651
          %v10181 = vunpack.c.h.b16 %v8651
          %v10182 = vunpack.c.l.b16 %v8652
          %v10183 = vunpack.c.h.b16 %v8652
          %v10184 = vunpack.c.l.b16 %v8653
          %v10185 = vunpack.c.h.b16 %v8653
          %v10186 = vunpack.c.l.b16 %v8654
          %v10187 = vunpack.c.h.b16 %v8654
          %v10188 = vunpack.c.l.b16 %v8655
          %v10189 = vunpack.c.h.b16 %v8655
          %v10190 = vunpack.c.l.b16 %v8656
          %v10191 = vunpack.c.h.b16 %v8656
          %v10192 = vunpack.c.l.b16 %v8657
          %v10193 = vunpack.c.h.b16 %v8657
          %v10194 = vunpack.c.l.b16 %v8658
          %v10195 = vunpack.c.h.b16 %v8658
          %v10196 = vunpack.c.l.b16 %v8659
          %v10197 = vunpack.c.h.b16 %v8659
          %v10198 = vunpack.c.l.b16 %v8660
          %v10199 = vunpack.c.h.b16 %v8660
          %v10200 = vunpack.c.l.b16 %v8661
          %v10201 = vunpack.c.h.b16 %v8661
          %v10202 = vunpack.c.l.b16 %v8662
          %v10203 = vunpack.c.h.b16 %v8662
          %v10204 = vunpack.c.l.b16 %v8663
          %v10205 = vunpack.c.h.b16 %v8663
          %v10206 = vunpack.c.l.b16 %v8664
          %v10207 = vunpack.c.h.b16 %v8664
          %v10208 = vunpack.c.l.b16 %v8665
          %v10209 = vunpack.c.h.b16 %v8665
          %v10210 = vunpack.c.l.b16 %v8666
          %v10211 = vunpack.c.h.b16 %v8666
          %v10212 = vunpack.c.l.b16 %v8667
          %v10213 = vunpack.c.h.b16 %v8667
          %v10214 = vunpack.c.l.b16 %v8668
          %v10215 = vunpack.c.h.b16 %v8668
          %v10216 = vunpack.c.l.b16 %v8669
          %v10217 = vunpack.c.h.b16 %v8669
          %v10218 = vunpack.c.l.b16 %v8670
          %v10219 = vunpack.c.h.b16 %v8670
          %v10220 = vunpack.c.l.b16 %v8671
          %v10221 = vunpack.c.h.b16 %v8671
          %v10222 = vunpack.c.l.b16 %v8672
          %v10223 = vunpack.c.h.b16 %v8672
          %v10224 = vunpack.c.l.b16 %v8673
          %v10225 = vunpack.c.h.b16 %v8673
          %v10226 = vunpack.c.l.b16 %v8674
          %v10227 = vunpack.c.h.b16 %v8674
          %v10228 = vunpack.c.l.b16 %v8675
          %v10229 = vunpack.c.h.b16 %v8675
          %v10230 = vunpack.c.l.b16 %v8676
          %v10231 = vunpack.c.h.b16 %v8676
          %v10232 = vunpack.c.l.b16 %v8677
          %v10233 = vunpack.c.h.b16 %v8677
          %v10234 = vunpack.c.l.b16 %v8678
          %v10235 = vunpack.c.h.b16 %v8678
          %v10236 = vunpack.c.l.b16 %v8679
          %v10237 = vunpack.c.h.b16 %v8679
          %v10238 = vunpack.c.l.b16 %v8680
          %v10239 = vunpack.c.h.b16 %v8680
          %v10240 = vunpack.c.l.b16 %v8681
          %v10241 = vunpack.c.h.b16 %v8681
          %v10242 = vunpack.c.l.b16 %v8682
          %v10243 = vunpack.c.h.b16 %v8682
          %v10244 = vunpack.c.l.b16 %v8683
          %v10245 = vunpack.c.h.b16 %v8683
          %v10246 = vunpack.c.l.b16 %v8684
          %v10247 = vunpack.c.h.b16 %v8684
          %v10248 = vunpack.c.l.b16 %v8685
          %v10249 = vunpack.c.h.b16 %v8685
          %v10250 = vunpack.c.l.b16 %v8686
          %v10251 = vunpack.c.h.b16 %v8686
          %v10252 = vunpack.c.l.b16 %v8687
          %v10253 = vunpack.c.h.b16 %v8687
          %v10254 = vunpack.c.l.b16 %v8688
          %v10255 = vunpack.c.h.b16 %v8688
          %v10256 = vunpack.c.l.b16 %v8689
          %v10257 = vunpack.c.h.b16 %v8689
          %v10258 = vunpack.c.l.b16 %v8690
          %v10259 = vunpack.c.h.b16 %v8690
          %v10260 = vunpack.c.l.b16 %v8691
          %v10261 = vunpack.c.h.b16 %v8691
          %v10262 = vunpack.c.l.b16 %v8692
          %v10263 = vunpack.c.h.b16 %v8692
          %v10264 = vunpack.c.l.b16 %v8693
          %v10265 = vunpack.c.h.b16 %v8693
          %v10266 = vunpack.c.l.b16 %v8694
          %v10267 = vunpack.c.h.b16 %v8694
          %v10268 = vunpack.c.l.b16 %v8695
          %v10269 = vunpack.c.h.b16 %v8695
          %v10270 = vunpack.c.l.b16 %v8696
          %v10271 = vunpack.c.h.b16 %v8696
          %v10272 = vunpack.c.l.b16 %v8697
          %v10273 = vunpack.c.h.b16 %v8697
          %v10274 = vunpack.c.l.b16 %v8698
          %v10275 = vunpack.c.h.b16 %v8698
          %v10276 = vunpack.c.l.b16 %v8699
          %v10277 = vunpack.c.h.b16 %v8699
          %v10278 = vunpack.c.l.b16 %v8700
          %v10279 = vunpack.c.h.b16 %v8700
          %v10280 = vunpack.c.l.b16 %v8701
          %v10281 = vunpack.c.h.b16 %v8701
          %v10282 = vunpack.c.l.b16 %v8702
          %v10283 = vunpack.c.h.b16 %v8702
          %v10284 = vunpack.c.l.b16 %v8703
          %v10285 = vunpack.c.h.b16 %v8703
          %v10286 = vunpack.c.l.b16 %v8704
          %v10287 = vunpack.c.h.b16 %v8704
          %v10288 = vunpack.c.l.b16 %v8705
          %v10289 = vunpack.c.h.b16 %v8705
          %v10290 = vunpack.c.l.b16 %v8706
          %v10291 = vunpack.c.h.b16 %v8706
          %v10292 = vunpack.c.l.b16 %v8707
          %v10293 = vunpack.c.h.b16 %v8707
          %v10294 = vunpack.c.l.b16 %v8708
          %v10295 = vunpack.c.h.b16 %v8708
          %v10296 = vunpack.c.l.b16 %v8709
          %v10297 = vunpack.c.h.b16 %v8709
          %v10298 = vunpack.c.l.b16 %v8710
          %v10299 = vunpack.c.h.b16 %v8710
          %v10300 = vunpack.c.l.b16 %v8711
          %v10301 = vunpack.c.h.b16 %v8711
          %v10302 = vunpack.c.l.b16 %v8712
          %v10303 = vunpack.c.h.b16 %v8712
          %v10304 = vunpack.c.l.b16 %v8713
          %v10305 = vunpack.c.h.b16 %v8713
          %v10306 = vunpack.c.l.b16 %v8714
          %v10307 = vunpack.c.h.b16 %v8714
          %v10308 = vunpack.c.l.b16 %v8715
          %v10309 = vunpack.c.h.b16 %v8715
          %v10310 = vunpack.c.l.b16 %v8716
          %v10311 = vunpack.c.h.b16 %v8716
          %v10312 = vunpack.c.l.b16 %v8717
          %v10313 = vunpack.c.h.b16 %v8717
          %v10314 = vunpack.c.l.b16 %v8718
          %v10315 = vunpack.c.h.b16 %v8718
          %v10316 = vunpack.c.l.b16 %v8719
          %v10317 = vunpack.c.h.b16 %v8719
          %v10318 = vunpack.c.l.b16 %v8720
          %v10319 = vunpack.c.h.b16 %v8720
          %v10320 = vunpack.c.l.b16 %v8721
          %v10321 = vunpack.c.h.b16 %v8721
          %v10322 = vunpack.c.l.b16 %v8722
          %v10323 = vunpack.c.h.b16 %v8722
          %v10324 = vunpack.c.l.b16 %v8723
          %v10325 = vunpack.c.h.b16 %v8723
          %v10326 = vunpack.c.l.b16 %v8724
          %v10327 = vunpack.c.h.b16 %v8724
          %v10328 = vunpack.c.l.b16 %v8725
          %v10329 = vunpack.c.h.b16 %v8725
          %v10330 = vunpack.c.l.b16 %v8726
          %v10331 = vunpack.c.h.b16 %v8726
          %v10332 = vunpack.c.l.b16 %v8727
          %v10333 = vunpack.c.h.b16 %v8727
          %v10334 = vunpack.c.l.b16 %v8728
          %v10335 = vunpack.c.h.b16 %v8728
          %v10336 = vunpack.c.l.b16 %v8729
          %v10337 = vunpack.c.h.b16 %v8729
          %v10338 = vunpack.c.l.b16 %v8730
          %v10339 = vunpack.c.h.b16 %v8730
          %v10340 = vunpack.c.l.b16 %v8731
          %v10341 = vunpack.c.h.b16 %v8731
          %v10342 = vunpack.c.l.b16 %v8732
          %v10343 = vunpack.c.h.b16 %v8732
          %v10344 = vunpack.c.l.b16 %v8733
          %v10345 = vunpack.c.h.b16 %v8733
          %v10346 = vunpack.c.l.b16 %v8734
          %v10347 = vunpack.c.h.b16 %v8734
          %v10348 = vunpack.c.l.b16 %v8735
          %v10349 = vunpack.c.h.b16 %v8735
          %v10350 = vunpack.c.l.b16 %v8736
          %v10351 = vunpack.c.h.b16 %v8736
          %v10352 = vunpack.c.l.b16 %v8737
          %v10353 = vunpack.c.h.b16 %v8737
          %v10354 = vunpack.c.l.b16 %v8738
          %v10355 = vunpack.c.h.b16 %v8738
          %v10356 = vunpack.c.l.b16 %v8739
          %v10357 = vunpack.c.h.b16 %v8739
          %v10358 = vunpack.c.l.b16 %v8740
          %v10359 = vunpack.c.h.b16 %v8740
          %v10360 = vunpack.c.l.b16 %v8741
          %v10361 = vunpack.c.h.b16 %v8741
          %v10362 = vunpack.c.l.b16 %v8742
          %v10363 = vunpack.c.h.b16 %v8742
          %v10364 = vunpack.c.l.b16 %v8743
          %v10365 = vunpack.c.h.b16 %v8743
          %v10366 = vunpack.c.l.b16 %v8744
          %v10367 = vunpack.c.h.b16 %v8744
          %v10368 = vunpack.c.l.b16 %v8745
          %v10369 = vunpack.c.h.b16 %v8745
          %v10370 = vunpack.c.l.b16 %v8746
          %v10371 = vunpack.c.h.b16 %v8746
          %v10372 = vunpack.c.l.b16 %v8747
          %v10373 = vunpack.c.h.b16 %v8747
          %v10374 = vunpack.c.l.b16 %v8748
          %v10375 = vunpack.c.h.b16 %v8748
          %v10376 = vunpack.c.l.b16 %v8749
          %v10377 = vunpack.c.h.b16 %v8749
          %v10378 = vunpack.c.l.b16 %v8750
          %v10379 = vunpack.c.h.b16 %v8750
          %v10380 = vunpack.c.l.b16 %v8751
          %v10381 = vunpack.c.h.b16 %v8751
          %v10382 = vunpack.c.l.b16 %v8752
          %v10383 = vunpack.c.h.b16 %v8752
          %v10384 = vunpack.c.l.b16 %v8753
          %v10385 = vunpack.c.h.b16 %v8753
          %v10386 = vunpack.c.l.b16 %v8754
          %v10387 = vunpack.c.h.b16 %v8754
          %v10388 = vunpack.c.l.b16 %v8755
          %v10389 = vunpack.c.h.b16 %v8755
          %v10390 = vunpack.c.l.b16 %v8756
          %v10391 = vunpack.c.h.b16 %v8756
          %v10392 = vunpack.c.l.b16 %v8757
          %v10393 = vunpack.c.h.b16 %v8757
          %v10394 = vunpack.c.l.b16 %v8758
          %v10395 = vunpack.c.h.b16 %v8758
          %v10396 = vunpack.c.l.b16 %v8759
          %v10397 = vunpack.c.h.b16 %v8759
          %v10398 = vunpack.c.l.b16 %v8760
          %v10399 = vunpack.c.h.b16 %v8760
          %v10400 = vunpack.c.l.b16 %v8761
          %v10401 = vunpack.c.h.b16 %v8761
          %v10402 = vunpack.c.l.b16 %v8762
          %v10403 = vunpack.c.h.b16 %v8762
          %v10404 = vunpack.c.l.b16 %v8763
          %v10405 = vunpack.c.h.b16 %v8763
          %v10406 = vunpack.c.l.b16 %v8764
          %v10407 = vunpack.c.h.b16 %v8764
          %v10408 = vunpack.c.l.b16 %v8765
          %v10409 = vunpack.c.h.b16 %v8765
          %v10410 = vunpack.c.l.b16 %v8766
          %v10411 = vunpack.c.h.b16 %v8766
          %v10412 = vunpack.c.l.b16 %v8767
          %v10413 = vunpack.c.h.b16 %v8767
          %v10414 = vunpack.c.l.b16 %v8768
          %v10415 = vunpack.c.h.b16 %v8768
          %v10416 = vunpack.c.l.b16 %v8769
          %v10417 = vunpack.c.h.b16 %v8769
          %v10418 = vunpack.c.l.b16 %v8770
          %v10419 = vunpack.c.h.b16 %v8770
          %v10420 = vunpack.c.l.b16 %v8771
          %v10421 = vunpack.c.h.b16 %v8771
          %v10422 = vunpack.c.l.b16 %v8772
          %v10423 = vunpack.c.h.b16 %v8772
          %v10424 = vunpack.c.l.b16 %v8773
          %v10425 = vunpack.c.h.b16 %v8773
          %v10426 = vunpack.c.l.b16 %v8774
          %v10427 = vunpack.c.h.b16 %v8774
          %v10428 = vunpack.c.l.b16 %v8775
          %v10429 = vunpack.c.h.b16 %v8775
          %v10430 = vunpack.c.l.b16 %v8776
          %v10431 = vunpack.c.h.b16 %v8776
          %v10432 = vunpack.c.l.b16 %v8777
          %v10433 = vunpack.c.h.b16 %v8777
          %v10434 = vunpack.c.l.b16 %v8778
          %v10435 = vunpack.c.h.b16 %v8778
          %v10436 = vunpack.c.l.b16 %v8779
          %v10437 = vunpack.c.h.b16 %v8779
          %v10438 = vunpack.c.l.b16 %v8780
          %v10439 = vunpack.c.h.b16 %v8780
          %v10440 = vunpack.c.l.b16 %v8781
          %v10441 = vunpack.c.h.b16 %v8781
          %v10442 = vunpack.c.l.b16 %v8782
          %v10443 = vunpack.c.h.b16 %v8782
          %v10444 = vunpack.c.l.b16 %v8783
          %v10445 = vunpack.c.h.b16 %v8783
          %v10446 = vunpack.c.l.b16 %v8784
          %v10447 = vunpack.c.h.b16 %v8784
          %v10448 = vunpack.c.l.b16 %v8785
          %v10449 = vunpack.c.h.b16 %v8785
          %v10450 = vunpack.c.l.b16 %v8786
          %v10451 = vunpack.c.h.b16 %v8786
          %v10452 = vunpack.c.l.b16 %v8787
          %v10453 = vunpack.c.h.b16 %v8787
          %v10454 = vunpack.c.l.b16 %v8788
          %v10455 = vunpack.c.h.b16 %v8788
          %v10456 = vunpack.c.l.b16 %v8789
          %v10457 = vunpack.c.h.b16 %v8789
          %v10458 = vunpack.c.l.b16 %v8790
          %v10459 = vunpack.c.h.b16 %v8790
          %v10460 = vunpack.c.l.b16 %v8791
          %v10461 = vunpack.c.h.b16 %v8791
          %v10462 = vunpack.c.l.b16 %v8792
          %v10463 = vunpack.c.h.b16 %v8792
          %v10464 = vunpack.c.l.b16 %v8793
          %v10465 = vunpack.c.h.b16 %v8793
          %v10466 = vunpack.c.l.b16 %v8794
          %v10467 = vunpack.c.h.b16 %v8794
          %v10468 = vunpack.c.l.b16 %v8795
          %v10469 = vunpack.c.h.b16 %v8795
          %v10470 = vunpack.c.l.b16 %v8796
          %v10471 = vunpack.c.h.b16 %v8796
          %v10472 = vunpack.c.l.b16 %v8797
          %v10473 = vunpack.c.h.b16 %v8797
          %v10474 = vunpack.c.l.b16 %v8798
          %v10475 = vunpack.c.h.b16 %v8798
          %v10476 = vunpack.c.l.b16 %v8799
          %v10477 = vunpack.c.h.b16 %v8799
          %v10478 = vunpack.c.l.b16 %v8800
          %v10479 = vunpack.c.h.b16 %v8800
          %v10480 = vunpack.c.l.b16 %v8801
          %v10481 = vunpack.c.h.b16 %v8801
          %v10482 = vunpack.c.l.b16 %v8802
          %v10483 = vunpack.c.h.b16 %v8802
          %v10484 = vunpack.c.l.b16 %v8803
          %v10485 = vunpack.c.h.b16 %v8803
          %v10486 = vunpack.c.l.b16 %v8804
          %v10487 = vunpack.c.h.b16 %v8804
          %v10488 = vunpack.c.l.b16 %v8805
          %v10489 = vunpack.c.h.b16 %v8805
          %v10490 = vunpack.c.l.b16 %v8806
          %v10491 = vunpack.c.h.b16 %v8806
          %v10492 = vunpack.c.l.b16 %v8807
          %v10493 = vunpack.c.h.b16 %v8807
          %v10494 = vunpack.c.l.b16 %v8808
          %v10495 = vunpack.c.h.b16 %v8808
          %v10496 = vunpack.c.l.b16 %v8809
          %v10497 = vunpack.c.h.b16 %v8809
          %v10498 = vunpack.c.l.b16 %v8810
          %v10499 = vunpack.c.h.b16 %v8810
          %v10500 = vunpack.c.l.b16 %v8811
          %v10501 = vunpack.c.h.b16 %v8811
          %v10502 = vunpack.c.l.b16 %v8812
          %v10503 = vunpack.c.h.b16 %v8812
          %v10504 = vunpack.c.l.b16 %v8813
          %v10505 = vunpack.c.h.b16 %v8813
          %v10506 = vunpack.c.l.b16 %v8814
          %v10507 = vunpack.c.h.b16 %v8814
          %v10508 = vunpack.c.l.b16 %v8815
          %v10509 = vunpack.c.h.b16 %v8815
          %v10510 = vunpack.c.l.b16 %v8816
          %v10511 = vunpack.c.h.b16 %v8816
          %v10512 = vunpack.c.l.b16 %v8817
          %v10513 = vunpack.c.h.b16 %v8817
          %v10514 = vunpack.c.l.b16 %v8818
          %v10515 = vunpack.c.h.b16 %v8818
          %v10516 = vunpack.c.l.b16 %v8819
          %v10517 = vunpack.c.h.b16 %v8819
          %v10518 = vunpack.c.l.b16 %v8820
          %v10519 = vunpack.c.h.b16 %v8820
          %v10520 = vunpack.c.l.b16 %v8821
          %v10521 = vunpack.c.h.b16 %v8821
          %v10522 = vunpack.c.l.b16 %v8822
          %v10523 = vunpack.c.h.b16 %v8822
          %v10524 = vunpack.c.l.b16 %v8823
          %v10525 = vunpack.c.h.b16 %v8823
          %v10526 = vunpack.c.l.b16 %v8824
          %v10527 = vunpack.c.h.b16 %v8824
          %v10528 = vunpack.c.l.b16 %v8825
          %v10529 = vunpack.c.h.b16 %v8825
          %v10530 = vunpack.c.l.b16 %v8826
          %v10531 = vunpack.c.h.b16 %v8826
          %v10532 = vunpack.c.l.b16 %v8827
          %v10533 = vunpack.c.h.b16 %v8827
          %v10534 = vunpack.c.l.b16 %v8828
          %v10535 = vunpack.c.h.b16 %v8828
          %v10536 = vunpack.c.l.b16 %v8829
          %v10537 = vunpack.c.h.b16 %v8829
          %v10538 = vunpack.c.l.b16 %v8830
          %v10539 = vunpack.c.h.b16 %v8830
          %v10540 = vunpack.c.l.b16 %v8831
          %v10541 = vunpack.c.h.b16 %v8831
          %v10542 = vunpack.c.l.b16 %v8832
          %v10543 = vunpack.c.h.b16 %v8832
          %v10544 = vunpack.c.l.b16 %v8833
          %v10545 = vunpack.c.h.b16 %v8833
          %v10546 = vunpack.c.l.b16 %v8834
          %v10547 = vunpack.c.h.b16 %v8834
          %v10548 = vunpack.c.l.b16 %v8835
          %v10549 = vunpack.c.h.b16 %v8835
          %v10550 = vunpack.c.l.b16 %v8836
          %v10551 = vunpack.c.h.b16 %v8836
          %v10552 = vunpack.c.l.b16 %v8837
          %v10553 = vunpack.c.h.b16 %v8837
          %v10554 = vunpack.c.l.b16 %v8838
          %v10555 = vunpack.c.h.b16 %v8838
          %v10556 = vunpack.c.l.b16 %v8839
          %v10557 = vunpack.c.h.b16 %v8839
          %v10558 = vunpack.c.l.b16 %v8840
          %v10559 = vunpack.c.h.b16 %v8840
          %v10560 = vunpack.c.l.b16 %v8841
          %v10561 = vunpack.c.h.b16 %v8841
          %v10562 = vunpack.c.l.b16 %v8842
          %v10563 = vunpack.c.h.b16 %v8842
          %v10564 = vunpack.c.l.b16 %v8843
          %v10565 = vunpack.c.h.b16 %v8843
          %v10566 = vunpack.c.l.b16 %v8844
          %v10567 = vunpack.c.h.b16 %v8844
          %v10568 = vunpack.c.l.b16 %v8845
          %v10569 = vunpack.c.h.b16 %v8845
          %v10570 = vunpack.c.l.b16 %v8846
          %v10571 = vunpack.c.h.b16 %v8846
          %v10572 = vunpack.c.l.b16 %v8847
          %v10573 = vunpack.c.h.b16 %v8847
          %v10574 = vunpack.c.l.b16 %v8848
          %v10575 = vunpack.c.h.b16 %v8848
          %v10576 = vunpack.c.l.b16 %v8849
          %v10577 = vunpack.c.h.b16 %v8849
          %v10578 = vunpack.c.l.b16 %v8850
          %v10579 = vunpack.c.h.b16 %v8850
          %v10580 = vunpack.c.l.b16 %v8851
          %v10581 = vunpack.c.h.b16 %v8851
          %v10582 = vunpack.c.l.b16 %v8852
          %v10583 = vunpack.c.h.b16 %v8852
          %v10584 = vunpack.c.l.b16 %v8853
          %v10585 = vunpack.c.h.b16 %v8853
          %v10586 = vunpack.c.l.b16 %v8854
          %v10587 = vunpack.c.h.b16 %v8854
          %v10588 = vunpack.c.l.b16 %v8855
          %v10589 = vunpack.c.h.b16 %v8855
          %v10590 = vunpack.c.l.b16 %v8856
          %v10591 = vunpack.c.h.b16 %v8856
          %v10592 = vunpack.c.l.b16 %v8857
          %v10593 = vunpack.c.h.b16 %v8857
          %v10594 = vunpack.c.l.b16 %v8858
          %v10595 = vunpack.c.h.b16 %v8858
          %v10596 = vunpack.c.l.b16 %v8859
          %v10597 = vunpack.c.h.b16 %v8859
          %v10598 = vunpack.c.l.b16 %v8860
          %v10599 = vunpack.c.h.b16 %v8860
          %v10600 = vunpack.c.l.b16 %v8861
          %v10601 = vunpack.c.h.b16 %v8861
          %v10602 = vunpack.c.l.b16 %v8862
          %v10603 = vunpack.c.h.b16 %v8862
          %v10604 = vunpack.c.l.b16 %v8863
          %v10605 = vunpack.c.h.b16 %v8863
          %v10606 = vunpack.c.l.b16 %v8864
          %v10607 = vunpack.c.h.b16 %v8864
          %v10608 = vunpack.c.l.b16 %v8865
          %v10609 = vunpack.c.h.b16 %v8865
          %v10610 = vunpack.c.l.b16 %v8866
          %v10611 = vunpack.c.h.b16 %v8866
          %v10612 = vunpack.c.l.b16 %v8867
          %v10613 = vunpack.c.h.b16 %v8867
          %v10614 = vunpack.c.l.b16 %v8868
          %v10615 = vunpack.c.h.b16 %v8868
          %v10616 = vunpack.c.l.b16 %v8869
          %v10617 = vunpack.c.h.b16 %v8869
          %v10618 = vunpack.c.l.b16 %v8870
          %v10619 = vunpack.c.h.b16 %v8870
          %v10620 = vunpack.c.l.b16 %v8871
          %v10621 = vunpack.c.h.b16 %v8871
          %v10622 = vunpack.c.l.b16 %v8872
          %v10623 = vunpack.c.h.b16 %v8872
          %v10624 = vunpack.c.l.b16 %v8873
          %v10625 = vunpack.c.h.b16 %v8873
          %v10626 = vunpack.c.l.b16 %v8874
          %v10627 = vunpack.c.h.b16 %v8874
          %v10628 = vunpack.c.l.b16 %v8875
          %v10629 = vunpack.c.h.b16 %v8875
          %v10630 = vunpack.c.l.b16 %v8876
          %v10631 = vunpack.c.h.b16 %v8876
          %v10632 = vunpack.c.l.b16 %v8877
          %v10633 = vunpack.c.h.b16 %v8877
          %v10634 = vunpack.c.l.b16 %v8878
          %v10635 = vunpack.c.h.b16 %v8878
          %v10636 = vunpack.c.l.b16 %v8879
          %v10637 = vunpack.c.h.b16 %v8879
          %v10638 = vunpack.c.l.b16 %v8880
          %v10639 = vunpack.c.h.b16 %v8880
          %v10640 = vunpack.c.l.b16 %v8881
          %v10641 = vunpack.c.h.b16 %v8881
          %v10642 = vunpack.c.l.b16 %v8882
          %v10643 = vunpack.c.h.b16 %v8882
          %v10644 = vunpack.c.l.b16 %v8883
          %v10645 = vunpack.c.h.b16 %v8883
          %v10646 = vunpack.c.l.b16 %v8884
          %v10647 = vunpack.c.h.b16 %v8884
          %v10648 = vunpack.c.l.b16 %v8885
          %v10649 = vunpack.c.h.b16 %v8885
          %v10650 = vunpack.c.l.b16 %v8886
          %v10651 = vunpack.c.h.b16 %v8886
          %v10652 = vunpack.c.l.b16 %v8887
          %v10653 = vunpack.c.h.b16 %v8887
          %v10654 = vunpack.c.l.b16 %v8888
          %v10655 = vunpack.c.h.b16 %v8888
          %v10656 = vunpack.c.l.b16 %v8889
          %v10657 = vunpack.c.h.b16 %v8889
          %v10658 = vunpack.c.l.b16 %v8890
          %v10659 = vunpack.c.h.b16 %v8890
          %v10660 = vunpack.c.l.b16 %v8891
          %v10661 = vunpack.c.h.b16 %v8891
          %v10662 = vunpack.c.l.b16 %v8892
          %v10663 = vunpack.c.h.b16 %v8892
          %v10664 = vunpack.c.l.b16 %v8893
          %v10665 = vunpack.c.h.b16 %v8893
          %v10666 = vunpack.c.l.b16 %v8894
          %v10667 = vunpack.c.h.b16 %v8894
          %v10668 = vunpack.c.l.b16 %v8895
          %v10669 = vunpack.c.h.b16 %v8895
          %v10670 = vunpack.c.l.b16 %v8896
          %v10671 = vunpack.c.h.b16 %v8896
          %v10672 = vunpack.c.l.b16 %v8897
          %v10673 = vunpack.c.h.b16 %v8897
          %v10674 = vunpack.c.l.b16 %v8898
          %v10675 = vunpack.c.h.b16 %v8898
          %v10676 = vunpack.c.l.b16 %v8899
          %v10677 = vunpack.c.h.b16 %v8899
          %v10678 = vunpack.c.l.b16 %v8900
          %v10679 = vunpack.c.h.b16 %v8900
          %v10680 = vunpack.c.l.b16 %v8901
          %v10681 = vunpack.c.h.b16 %v8901
          %v10682 = vunpack.c.l.b16 %v8902
          %v10683 = vunpack.c.h.b16 %v8902
          %v10684 = vunpack.c.l.b16 %v8903
          %v10685 = vunpack.c.h.b16 %v8903
          %v10686 = vunpack.c.l.b16 %v8904
          %v10687 = vunpack.c.h.b16 %v8904
          %v10688 = vunpack.c.l.b16 %v8905
          %v10689 = vunpack.c.h.b16 %v8905
          %v10690 = vunpack.c.l.b16 %v8906
          %v10691 = vunpack.c.h.b16 %v8906
          %v10692 = vunpack.c.l.b16 %v8907
          %v10693 = vunpack.c.h.b16 %v8907
          %v10694 = vunpack.c.l.b16 %v8908
          %v10695 = vunpack.c.h.b16 %v8908
          %v10696 = vunpack.c.l.b16 %v8909
          %v10697 = vunpack.c.h.b16 %v8909
          %v10698 = vunpack.c.l.b16 %v8910
          %v10699 = vunpack.c.h.b16 %v8910
          %v10700 = vunpack.c.l.b16 %v8911
          %v10701 = vunpack.c.h.b16 %v8911
          %v10702 = vunpack.c.l.b16 %v8912
          %v10703 = vunpack.c.h.b16 %v8912
          %v10704 = vunpack.c.l.b16 %v8913
          %v10705 = vunpack.c.h.b16 %v8913
          %v10706 = vunpack.c.l.b16 %v8914
          %v10707 = vunpack.c.h.b16 %v8914
          %v10708 = vunpack.c.l.b16 %v8915
          %v10709 = vunpack.c.h.b16 %v8915
          %v10710 = vunpack.c.l.b16 %v8916
          %v10711 = vunpack.c.h.b16 %v8916
          %v10712 = vunpack.c.l.b16 %v8917
          %v10713 = vunpack.c.h.b16 %v8917
          %v10714 = vunpack.c.l.b16 %v8918
          %v10715 = vunpack.c.h.b16 %v8918
          %v10716 = vunpack.c.l.b16 %v8919
          %v10717 = vunpack.c.h.b16 %v8919
          %v10718 = vunpack.c.l.b16 %v8920
          %v10719 = vunpack.c.h.b16 %v8920
          %v10720 = vunpack.c.l.b16 %v8921
          %v10721 = vunpack.c.h.b16 %v8921
          %v10722 = vunpack.c.l.b16 %v8922
          %v10723 = vunpack.c.h.b16 %v8922
          %v10724 = vunpack.c.l.b16 %v8923
          %v10725 = vunpack.c.h.b16 %v8923
          %v10726 = vunpack.c.l.b16 %v8924
          %v10727 = vunpack.c.h.b16 %v8924
          %v10728 = vunpack.c.l.b16 %v8925
          %v10729 = vunpack.c.h.b16 %v8925
          %v10730 = vunpack.c.l.b16 %v8926
          %v10731 = vunpack.c.h.b16 %v8926
          %v10732 = vunpack.c.l.b16 %v8927
          %v10733 = vunpack.c.h.b16 %v8927
          %v10734 = vunpack.c.l.b16 %v8928
          %v10735 = vunpack.c.h.b16 %v8928
          %v10736 = vunpack.c.l.b16 %v8929
          %v10737 = vunpack.c.h.b16 %v8929
          %v10738 = vunpack.c.l.b16 %v8930
          %v10739 = vunpack.c.h.b16 %v8930
          %v10740 = vunpack.c.l.b16 %v8931
          %v10741 = vunpack.c.h.b16 %v8931
          %v10742 = vunpack.c.l.b16 %v8932
          %v10743 = vunpack.c.h.b16 %v8932
          %v10744 = vunpack.c.l.b16 %v8933
          %v10745 = vunpack.c.h.b16 %v8933
          %v10746 = vunpack.c.l.b16 %v8934
          %v10747 = vunpack.c.h.b16 %v8934
          %v10748 = vunpack.c.l.b16 %v8935
          %v10749 = vunpack.c.h.b16 %v8935
          %v10750 = vunpack.c.l.b16 %v8936
          %v10751 = vunpack.c.h.b16 %v8936
          %v10752 = vunpack.c.l.b16 %v8937
          %v10753 = vunpack.c.h.b16 %v8937
          %v10754 = vunpack.c.l.b16 %v8938
          %v10755 = vunpack.c.h.b16 %v8938
          %v10756 = vunpack.c.l.b16 %v8939
          %v10757 = vunpack.c.h.b16 %v8939
          %v10758 = vunpack.c.l.b16 %v8940
          %v10759 = vunpack.c.h.b16 %v8940
          %v10760 = vunpack.c.l.b16 %v8941
          %v10761 = vunpack.c.h.b16 %v8941
          %v10762 = vunpack.c.l.b16 %v8942
          %v10763 = vunpack.c.h.b16 %v8942
          %v10764 = vunpack.c.l.b16 %v8943
          %v10765 = vunpack.c.h.b16 %v8943
          %v10766 = vunpack.c.l.b16 %v8944
          %v10767 = vunpack.c.h.b16 %v8944
          %v10768 = vunpack.c.l.b16 %v8945
          %v10769 = vunpack.c.h.b16 %v8945
          %v10770 = vunpack.c.l.b16 %v8946
          %v10771 = vunpack.c.h.b16 %v8946
          %v10772 = vunpack.c.l.b16 %v8947
          %v10773 = vunpack.c.h.b16 %v8947
          %v10774 = vunpack.c.l.b16 %v8948
          %v10775 = vunpack.c.h.b16 %v8948
          %v10776 = vunpack.c.l.b16 %v8949
          %v10777 = vunpack.c.h.b16 %v8949
          %v10778 = vunpack.c.l.b16 %v8950
          %v10779 = vunpack.c.h.b16 %v8950
          %v10780 = vunpack.c.l.b16 %v8951
          %v10781 = vunpack.c.h.b16 %v8951
          %v10782 = vunpack.c.l.b16 %v8952
          %v10783 = vunpack.c.h.b16 %v8952
          %v10784 = vunpack.c.l.b16 %v8953
          %v10785 = vunpack.c.h.b16 %v8953
          %v10786 = vunpack.c.l.b16 %v8954
          %v10787 = vunpack.c.h.b16 %v8954
          %v10788 = vunpack.c.l.b16 %v8955
          %v10789 = vunpack.c.h.b16 %v8955
          %v10790 = vunpack.c.l.b16 %v8956
          %v10791 = vunpack.c.h.b16 %v8956
          %v10792 = vunpack.c.l.b16 %v8957
          %v10793 = vunpack.c.h.b16 %v8957
          %v10794 = vunpack.c.l.b16 %v8958
          %v10795 = vunpack.c.h.b16 %v8958
          %v10796 = vunpack.c.l.b16 %v8959
          %v10797 = vunpack.c.h.b16 %v8959
          %v10798 = vunpack.c.l.b16 %v8960
          %v10799 = vunpack.c.h.b16 %v8960
          %v10800 = vunpack.c.l.b16 %v8961
          %v10801 = vunpack.c.h.b16 %v8961
          %v10802 = vunpack.c.l.b16 %v8962
          %v10803 = vunpack.c.h.b16 %v8962
          %v10804 = vunpack.c.l.b16 %v8963
          %v10805 = vunpack.c.h.b16 %v8963
          %v10806 = vunpack.c.l.b16 %v8964
          %v10807 = vunpack.c.h.b16 %v8964
          %v10808 = vunpack.c.l.b16 %v8965
          %v10809 = vunpack.c.h.b16 %v8965
          %v10810 = vunpack.c.l.b16 %v8966
          %v10811 = vunpack.c.h.b16 %v8966
          %v10812 = vunpack.c.l.b16 %v8967
          %v10813 = vunpack.c.h.b16 %v8967
          %v10814 = vunpack.c.l.b16 %v8968
          %v10815 = vunpack.c.h.b16 %v8968
          %v10816 = vunpack.c.l.b16 %v8969
          %v10817 = vunpack.c.h.b16 %v8969
          %v10818 = vunpack.c.l.b16 %v8970
          %v10819 = vunpack.c.h.b16 %v8970
          %v10820 = vunpack.c.l.b16 %v8971
          %v10821 = vunpack.c.h.b16 %v8971
          %v10822 = vunpack.c.l.b16 %v8972
          %v10823 = vunpack.c.h.b16 %v8972
          %v10824 = vunpack.c.l.b16 %v8973
          %v10825 = vunpack.c.h.b16 %v8973
          %v10826 = vunpack.c.l.b16 %v8974
          %v10827 = vunpack.c.h.b16 %v8974
          %v10828 = vunpack.c.l.b16 %v8975
          %v10829 = vunpack.c.h.b16 %v8975
          %v10830 = vunpack.c.l.b16 %v8976
          %v10831 = vunpack.c.h.b16 %v8976
          %v10832 = vunpack.c.l.b16 %v8977
          %v10833 = vunpack.c.h.b16 %v8977
          %v10834 = vunpack.c.l.b16 %v8978
          %v10835 = vunpack.c.h.b16 %v8978
          %v10836 = vunpack.c.l.b16 %v8979
          %v10837 = vunpack.c.h.b16 %v8979
          %v10838 = vunpack.c.l.b16 %v8980
          %v10839 = vunpack.c.h.b16 %v8980
          %v10840 = vunpack.c.l.b16 %v8981
          %v10841 = vunpack.c.h.b16 %v8981
          %v10842 = vunpack.c.l.b16 %v8982
          %v10843 = vunpack.c.h.b16 %v8982
          %v10844 = vunpack.c.l.b16 %v8983
          %v10845 = vunpack.c.h.b16 %v8983
          %v10846 = vunpack.c.l.b16 %v8984
          %v10847 = vunpack.c.h.b16 %v8984
          %v10848 = vunpack.c.l.b16 %v8985
          %v10849 = vunpack.c.h.b16 %v8985
          %v10850 = vunpack.c.l.b16 %v8986
          %v10851 = vunpack.c.h.b16 %v8986
          %v10852 = vunpack.c.l.b16 %v8987
          %v10853 = vunpack.c.h.b16 %v8987
          %v10854 = vunpack.c.l.b16 %v8988
          %v10855 = vunpack.c.h.b16 %v8988
          %v10856 = vunpack.c.l.b16 %v8989
          %v10857 = vunpack.c.h.b16 %v8989
          %v10858 = vunpack.c.l.b16 %v8990
          %v10859 = vunpack.c.h.b16 %v8990
          %v10860 = vunpack.c.l.b16 %v8991
          %v10861 = vunpack.c.h.b16 %v8991
          %v10862 = vunpack.c.l.b16 %v8992
          %v10863 = vunpack.c.h.b16 %v8992
          %v10864 = vunpack.c.l.b16 %v8993
          %v10865 = vunpack.c.h.b16 %v8993
          %v10866 = vunpack.c.l.b16 %v8994
          %v10867 = vunpack.c.h.b16 %v8994
          %v10868 = vunpack.c.l.b16 %v8995
          %v10869 = vunpack.c.h.b16 %v8995
          %v10870 = vunpack.c.l.b16 %v8996
          %v10871 = vunpack.c.h.b16 %v8996
          %v10872 = vunpack.c.l.b16 %v8997
          %v10873 = vunpack.c.h.b16 %v8997
          %v10874 = vunpack.c.l.b16 %v8998
          %v10875 = vunpack.c.h.b16 %v8998
          %v10876 = vunpack.c.l.b16 %v8999
          %v10877 = vunpack.c.h.b16 %v8999
          %v10878 = vunpack.c.l.b16 %v9000
          %v10879 = vunpack.c.h.b16 %v9000
          %v10880 = vunpack.c.l.b16 %v9001
          %v10881 = vunpack.c.h.b16 %v9001
          %v10882 = vunpack.c.l.b16 %v9002
          %v10883 = vunpack.c.h.b16 %v9002
          %v10884 = vunpack.c.l.b16 %v9003
          %v10885 = vunpack.c.h.b16 %v9003
          %v10886 = vunpack.c.l.b16 %v9004
          %v10887 = vunpack.c.h.b16 %v9004
          %v10888 = vunpack.c.l.b16 %v9005
          %v10889 = vunpack.c.h.b16 %v9005
          %v10890 = vunpack.c.l.b16 %v9006
          %v10891 = vunpack.c.h.b16 %v9006
          %v10892 = vunpack.c.l.b16 %v9007
          %v10893 = vunpack.c.h.b16 %v9007
          %v10894 = vunpack.c.l.b16 %v9008
          %v10895 = vunpack.c.h.b16 %v9008
          %v10896 = vunpack.c.l.b16 %v9009
          %v10897 = vunpack.c.h.b16 %v9009
          %v10898 = vunpack.c.l.b16 %v9010
          %v10899 = vunpack.c.h.b16 %v9010
          %v10900 = vunpack.c.l.b16 %v9011
          %v10901 = vunpack.c.h.b16 %v9011
          %v10902 = vunpack.c.l.b16 %v9012
          %v10903 = vunpack.c.h.b16 %v9012
          %v10904 = vunpack.c.l.b16 %v9013
          %v10905 = vunpack.c.h.b16 %v9013
          %v10906 = vunpack.c.l.b16 %v9014
          %v10907 = vunpack.c.h.b16 %v9014
          %v10908 = vunpack.c.l.b16 %v9015
          %v10909 = vunpack.c.h.b16 %v9015
          %v10910 = vunpack.c.l.b16 %v9016
          %v10911 = vunpack.c.h.b16 %v9016
          %v10912 = vunpack.c.l.b16 %v9017
          %v10913 = vunpack.c.h.b16 %v9017
          %v10914 = vunpack.c.l.b16 %v9018
          %v10915 = vunpack.c.h.b16 %v9018
          %v10916 = vunpack.c.l.b16 %v9019
          %v10917 = vunpack.c.h.b16 %v9019
          %v10918 = vunpack.c.l.b16 %v9020
          %v10919 = vunpack.c.h.b16 %v9020
          %v10920 = vunpack.c.l.b16 %v9021
          %v10921 = vunpack.c.h.b16 %v9021
          %v10922 = vunpack.c.l.b16 %v9022
          %v10923 = vunpack.c.h.b16 %v9022
          %v10924 = vunpack.c.l.b16 %v9023
          %v10925 = vunpack.c.h.b16 %v9023
          %v10926 = vunpack.c.l.b16 %v9024
          %v10927 = vunpack.c.h.b16 %v9024
          %v10928 = vunpack.c.l.b16 %v9025
          %v10929 = vunpack.c.h.b16 %v9025
          %v10930 = vunpack.c.l.b16 %v9026
          %v10931 = vunpack.c.h.b16 %v9026
          %v10932 = vunpack.c.l.b16 %v9027
          %v10933 = vunpack.c.h.b16 %v9027
          %v10934 = vunpack.c.l.b16 %v9028
          %v10935 = vunpack.c.h.b16 %v9028
          %v10936 = vunpack.c.l.b16 %v9029
          %v10937 = vunpack.c.h.b16 %v9029
          %v10938 = vunpack.c.l.b16 %v9030
          %v10939 = vunpack.c.h.b16 %v9030
          %v10940 = vunpack.c.l.b16 %v9031
          %v10941 = vunpack.c.h.b16 %v9031
          %v10942 = vunpack.c.l.b16 %v9032
          %v10943 = vunpack.c.h.b16 %v9032
          %v10944 = vunpack.c.l.b16 %v9033
          %v10945 = vunpack.c.h.b16 %v9033
          %v10946 = vunpack.c.l.b16 %v9034
          %v10947 = vunpack.c.h.b16 %v9034
          %v10948 = vunpack.c.l.b16 %v9035
          %v10949 = vunpack.c.h.b16 %v9035
          %v10950 = vunpack.c.l.b16 %v9036
          %v10951 = vunpack.c.h.b16 %v9036
          %v10952 = vunpack.c.l.b16 %v9037
          %v10953 = vunpack.c.h.b16 %v9037
          %v10954 = vunpack.c.l.b16 %v9038
          %v10955 = vunpack.c.h.b16 %v9038
          %v10956 = vunpack.c.l.b16 %v9039
          %v10957 = vunpack.c.h.b16 %v9039
          %v10958 = vunpack.c.l.b16 %v9040
          %v10959 = vunpack.c.h.b16 %v9040
          %v10960 = vunpack.c.l.b16 %v9041
          %v10961 = vunpack.c.h.b16 %v9041
          %v10962 = vpack.c.b16 %v9690, %v9682
          %v10963 = vpack.c.b16 %v9691, %v9683
          %v10964 = vpack.c.b16 %v9692, %v9684
          %v10965 = vpack.c.b16 %v9693, %v9685
          %v10966 = vpack.c.b16 %v9694, %v9686
          %v10967 = vpack.c.b16 %v9695, %v9687
          %v10968 = vpack.c.b16 %v9696, %v9688
          %v10969 = vpack.c.b16 %v9697, %v9689
          %v10970 = vpack.c.b16 %v9706, %v9698
          %v10971 = vpack.c.b16 %v9707, %v9699
          %v10972 = vpack.c.b16 %v9708, %v9700
          %v10973 = vpack.c.b16 %v9709, %v9701
          %v10974 = vpack.c.b16 %v9710, %v9702
          %v10975 = vpack.c.b16 %v9711, %v9703
          %v10976 = vpack.c.b16 %v9712, %v9704
          %v10977 = vpack.c.b16 %v9713, %v9705
          %v10978 = vpack.c.b16 %v9722, %v9714
          %v10979 = vpack.c.b16 %v9723, %v9715
          %v10980 = vpack.c.b16 %v9724, %v9716
          %v10981 = vpack.c.b16 %v9725, %v9717
          %v10982 = vpack.c.b16 %v9726, %v9718
          %v10983 = vpack.c.b16 %v9727, %v9719
          %v10984 = vpack.c.b16 %v9728, %v9720
          %v10985 = vpack.c.b16 %v9729, %v9721
          %v10986 = vpack.c.b16 %v9738, %v9730
          %v10987 = vpack.c.b16 %v9739, %v9731
          %v10988 = vpack.c.b16 %v9740, %v9732
          %v10989 = vpack.c.b16 %v9741, %v9733
          %v10990 = vpack.c.b16 %v9742, %v9734
          %v10991 = vpack.c.b16 %v9743, %v9735
          %v10992 = vpack.c.b16 %v9744, %v9736
          %v10993 = vpack.c.b16 %v9745, %v9737
          %v10994 = vpack.c.b16 %v9754, %v9746
          %v10995 = vpack.c.b16 %v9755, %v9747
          %v10996 = vpack.c.b16 %v9756, %v9748
          %v10997 = vpack.c.b16 %v9757, %v9749
          %v10998 = vpack.c.b16 %v9758, %v9750
          %v10999 = vpack.c.b16 %v9759, %v9751
          %v11000 = vpack.c.b16 %v9760, %v9752
          %v11001 = vpack.c.b16 %v9761, %v9753
          %v11002 = vpack.c.b16 %v9770, %v9762
          %v11003 = vpack.c.b16 %v9771, %v9763
          %v11004 = vpack.c.b16 %v9772, %v9764
          %v11005 = vpack.c.b16 %v9773, %v9765
          %v11006 = vpack.c.b16 %v9774, %v9766
          %v11007 = vpack.c.b16 %v9775, %v9767
          %v11008 = vpack.c.b16 %v9776, %v9768
          %v11009 = vpack.c.b16 %v9777, %v9769
          %v11010 = vpack.c.b16 %v9786, %v9778
          %v11011 = vpack.c.b16 %v9787, %v9779
          %v11012 = vpack.c.b16 %v9788, %v9780
          %v11013 = vpack.c.b16 %v9789, %v9781
          %v11014 = vpack.c.b16 %v9790, %v9782
          %v11015 = vpack.c.b16 %v9791, %v9783
          %v11016 = vpack.c.b16 %v9792, %v9784
          %v11017 = vpack.c.b16 %v9793, %v9785
          %v11018 = vpack.c.b16 %v9802, %v9794
          %v11019 = vpack.c.b16 %v9803, %v9795
          %v11020 = vpack.c.b16 %v9804, %v9796
          %v11021 = vpack.c.b16 %v9805, %v9797
          %v11022 = vpack.c.b16 %v9806, %v9798
          %v11023 = vpack.c.b16 %v9807, %v9799
          %v11024 = vpack.c.b16 %v9808, %v9800
          %v11025 = vpack.c.b16 %v9809, %v9801
          %v11026 = vpack.c.b16 %v9818, %v9810
          %v11027 = vpack.c.b16 %v9819, %v9811
          %v11028 = vpack.c.b16 %v9820, %v9812
          %v11029 = vpack.c.b16 %v9821, %v9813
          %v11030 = vpack.c.b16 %v9822, %v9814
          %v11031 = vpack.c.b16 %v9823, %v9815
          %v11032 = vpack.c.b16 %v9824, %v9816
          %v11033 = vpack.c.b16 %v9825, %v9817
          %v11034 = vpack.c.b16 %v9834, %v9826
          %v11035 = vpack.c.b16 %v9835, %v9827
          %v11036 = vpack.c.b16 %v9836, %v9828
          %v11037 = vpack.c.b16 %v9837, %v9829
          %v11038 = vpack.c.b16 %v9838, %v9830
          %v11039 = vpack.c.b16 %v9839, %v9831
          %v11040 = vpack.c.b16 %v9840, %v9832
          %v11041 = vpack.c.b16 %v9841, %v9833
          %v11042 = vpack.c.b16 %v9850, %v9842
          %v11043 = vpack.c.b16 %v9851, %v9843
          %v11044 = vpack.c.b16 %v9852, %v9844
          %v11045 = vpack.c.b16 %v9853, %v9845
          %v11046 = vpack.c.b16 %v9854, %v9846
          %v11047 = vpack.c.b16 %v9855, %v9847
          %v11048 = vpack.c.b16 %v9856, %v9848
          %v11049 = vpack.c.b16 %v9857, %v9849
          %v11050 = vpack.c.b16 %v9866, %v9858
          %v11051 = vpack.c.b16 %v9867, %v9859
          %v11052 = vpack.c.b16 %v9868, %v9860
          %v11053 = vpack.c.b16 %v9869, %v9861
          %v11054 = vpack.c.b16 %v9870, %v9862
          %v11055 = vpack.c.b16 %v9871, %v9863
          %v11056 = vpack.c.b16 %v9872, %v9864
          %v11057 = vpack.c.b16 %v9873, %v9865
          %v11058 = vpack.c.b16 %v9882, %v9874
          %v11059 = vpack.c.b16 %v9883, %v9875
          %v11060 = vpack.c.b16 %v9884, %v9876
          %v11061 = vpack.c.b16 %v9885, %v9877
          %v11062 = vpack.c.b16 %v9886, %v9878
          %v11063 = vpack.c.b16 %v9887, %v9879
          %v11064 = vpack.c.b16 %v9888, %v9880
          %v11065 = vpack.c.b16 %v9889, %v9881
          %v11066 = vpack.c.b16 %v9898, %v9890
          %v11067 = vpack.c.b16 %v9899, %v9891
          %v11068 = vpack.c.b16 %v9900, %v9892
          %v11069 = vpack.c.b16 %v9901, %v9893
          %v11070 = vpack.c.b16 %v9902, %v9894
          %v11071 = vpack.c.b16 %v9903, %v9895
          %v11072 = vpack.c.b16 %v9904, %v9896
          %v11073 = vpack.c.b16 %v9905, %v9897
          %v11074 = vpack.c.b16 %v9914, %v9906
          %v11075 = vpack.c.b16 %v9915, %v9907
          %v11076 = vpack.c.b16 %v9916, %v9908
          %v11077 = vpack.c.b16 %v9917, %v9909
          %v11078 = vpack.c.b16 %v9918, %v9910
          %v11079 = vpack.c.b16 %v9919, %v9911
          %v11080 = vpack.c.b16 %v9920, %v9912
          %v11081 = vpack.c.b16 %v9921, %v9913
          %v11082 = vpack.c.b16 %v9930, %v9922
          %v11083 = vpack.c.b16 %v9931, %v9923
          %v11084 = vpack.c.b16 %v9932, %v9924
          %v11085 = vpack.c.b16 %v9933, %v9925
          %v11086 = vpack.c.b16 %v9934, %v9926
          %v11087 = vpack.c.b16 %v9935, %v9927
          %v11088 = vpack.c.b16 %v9936, %v9928
          %v11089 = vpack.c.b16 %v9937, %v9929
          %v11090 = vpack.c.b16 %v9946, %v9938
          %v11091 = vpack.c.b16 %v9947, %v9939
          %v11092 = vpack.c.b16 %v9948, %v9940
          %v11093 = vpack.c.b16 %v9949, %v9941
          %v11094 = vpack.c.b16 %v9950, %v9942
          %v11095 = vpack.c.b16 %v9951, %v9943
          %v11096 = vpack.c.b16 %v9952, %v9944
          %v11097 = vpack.c.b16 %v9953, %v9945
          %v11098 = vpack.c.b16 %v9962, %v9954
          %v11099 = vpack.c.b16 %v9963, %v9955
          %v11100 = vpack.c.b16 %v9964, %v9956
          %v11101 = vpack.c.b16 %v9965, %v9957
          %v11102 = vpack.c.b16 %v9966, %v9958
          %v11103 = vpack.c.b16 %v9967, %v9959
          %v11104 = vpack.c.b16 %v9968, %v9960
          %v11105 = vpack.c.b16 %v9969, %v9961
          %v11106 = vpack.c.b16 %v9978, %v9970
          %v11107 = vpack.c.b16 %v9979, %v9971
          %v11108 = vpack.c.b16 %v9980, %v9972
          %v11109 = vpack.c.b16 %v9981, %v9973
          %v11110 = vpack.c.b16 %v9982, %v9974
          %v11111 = vpack.c.b16 %v9983, %v9975
          %v11112 = vpack.c.b16 %v9984, %v9976
          %v11113 = vpack.c.b16 %v9985, %v9977
          %v11114 = vpack.c.b16 %v9994, %v9986
          %v11115 = vpack.c.b16 %v9995, %v9987
          %v11116 = vpack.c.b16 %v9996, %v9988
          %v11117 = vpack.c.b16 %v9997, %v9989
          %v11118 = vpack.c.b16 %v9998, %v9990
          %v11119 = vpack.c.b16 %v9999, %v9991
          %v11120 = vpack.c.b16 %v10000, %v9992
          %v11121 = vpack.c.b16 %v10001, %v9993
          %v11122 = vpack.c.b16 %v10010, %v10002
          %v11123 = vpack.c.b16 %v10011, %v10003
          %v11124 = vpack.c.b16 %v10012, %v10004
          %v11125 = vpack.c.b16 %v10013, %v10005
          %v11126 = vpack.c.b16 %v10014, %v10006
          %v11127 = vpack.c.b16 %v10015, %v10007
          %v11128 = vpack.c.b16 %v10016, %v10008
          %v11129 = vpack.c.b16 %v10017, %v10009
          %v11130 = vpack.c.b16 %v10026, %v10018
          %v11131 = vpack.c.b16 %v10027, %v10019
          %v11132 = vpack.c.b16 %v10028, %v10020
          %v11133 = vpack.c.b16 %v10029, %v10021
          %v11134 = vpack.c.b16 %v10030, %v10022
          %v11135 = vpack.c.b16 %v10031, %v10023
          %v11136 = vpack.c.b16 %v10032, %v10024
          %v11137 = vpack.c.b16 %v10033, %v10025
          %v11138 = vpack.c.b16 %v10042, %v10034
          %v11139 = vpack.c.b16 %v10043, %v10035
          %v11140 = vpack.c.b16 %v10044, %v10036
          %v11141 = vpack.c.b16 %v10045, %v10037
          %v11142 = vpack.c.b16 %v10046, %v10038
          %v11143 = vpack.c.b16 %v10047, %v10039
          %v11144 = vpack.c.b16 %v10048, %v10040
          %v11145 = vpack.c.b16 %v10049, %v10041
          %v11146 = vpack.c.b16 %v10058, %v10050
          %v11147 = vpack.c.b16 %v10059, %v10051
          %v11148 = vpack.c.b16 %v10060, %v10052
          %v11149 = vpack.c.b16 %v10061, %v10053
          %v11150 = vpack.c.b16 %v10062, %v10054
          %v11151 = vpack.c.b16 %v10063, %v10055
          %v11152 = vpack.c.b16 %v10064, %v10056
          %v11153 = vpack.c.b16 %v10065, %v10057
          %v11154 = vpack.c.b16 %v10074, %v10066
          %v11155 = vpack.c.b16 %v10075, %v10067
          %v11156 = vpack.c.b16 %v10076, %v10068
          %v11157 = vpack.c.b16 %v10077, %v10069
          %v11158 = vpack.c.b16 %v10078, %v10070
          %v11159 = vpack.c.b16 %v10079, %v10071
          %v11160 = vpack.c.b16 %v10080, %v10072
          %v11161 = vpack.c.b16 %v10081, %v10073
          %v11162 = vpack.c.b16 %v10090, %v10082
          %v11163 = vpack.c.b16 %v10091, %v10083
          %v11164 = vpack.c.b16 %v10092, %v10084
          %v11165 = vpack.c.b16 %v10093, %v10085
          %v11166 = vpack.c.b16 %v10094, %v10086
          %v11167 = vpack.c.b16 %v10095, %v10087
          %v11168 = vpack.c.b16 %v10096, %v10088
          %v11169 = vpack.c.b16 %v10097, %v10089
          %v11170 = vpack.c.b16 %v10106, %v10098
          %v11171 = vpack.c.b16 %v10107, %v10099
          %v11172 = vpack.c.b16 %v10108, %v10100
          %v11173 = vpack.c.b16 %v10109, %v10101
          %v11174 = vpack.c.b16 %v10110, %v10102
          %v11175 = vpack.c.b16 %v10111, %v10103
          %v11176 = vpack.c.b16 %v10112, %v10104
          %v11177 = vpack.c.b16 %v10113, %v10105
          %v11178 = vpack.c.b16 %v10122, %v10114
          %v11179 = vpack.c.b16 %v10123, %v10115
          %v11180 = vpack.c.b16 %v10124, %v10116
          %v11181 = vpack.c.b16 %v10125, %v10117
          %v11182 = vpack.c.b16 %v10126, %v10118
          %v11183 = vpack.c.b16 %v10127, %v10119
          %v11184 = vpack.c.b16 %v10128, %v10120
          %v11185 = vpack.c.b16 %v10129, %v10121
          %v11186 = vpack.c.b16 %v10138, %v10130
          %v11187 = vpack.c.b16 %v10139, %v10131
          %v11188 = vpack.c.b16 %v10140, %v10132
          %v11189 = vpack.c.b16 %v10141, %v10133
          %v11190 = vpack.c.b16 %v10142, %v10134
          %v11191 = vpack.c.b16 %v10143, %v10135
          %v11192 = vpack.c.b16 %v10144, %v10136
          %v11193 = vpack.c.b16 %v10145, %v10137
          %v11194 = vpack.c.b16 %v10154, %v10146
          %v11195 = vpack.c.b16 %v10155, %v10147
          %v11196 = vpack.c.b16 %v10156, %v10148
          %v11197 = vpack.c.b16 %v10157, %v10149
          %v11198 = vpack.c.b16 %v10158, %v10150
          %v11199 = vpack.c.b16 %v10159, %v10151
          %v11200 = vpack.c.b16 %v10160, %v10152
          %v11201 = vpack.c.b16 %v10161, %v10153
          %v11202 = vpack.c.b16 %v10170, %v10162
          %v11203 = vpack.c.b16 %v10171, %v10163
          %v11204 = vpack.c.b16 %v10172, %v10164
          %v11205 = vpack.c.b16 %v10173, %v10165
          %v11206 = vpack.c.b16 %v10174, %v10166
          %v11207 = vpack.c.b16 %v10175, %v10167
          %v11208 = vpack.c.b16 %v10176, %v10168
          %v11209 = vpack.c.b16 %v10177, %v10169
          %v11210 = vpack.c.b16 %v10186, %v10178
          %v11211 = vpack.c.b16 %v10187, %v10179
          %v11212 = vpack.c.b16 %v10188, %v10180
          %v11213 = vpack.c.b16 %v10189, %v10181
          %v11214 = vpack.c.b16 %v10190, %v10182
          %v11215 = vpack.c.b16 %v10191, %v10183
          %v11216 = vpack.c.b16 %v10192, %v10184
          %v11217 = vpack.c.b16 %v10193, %v10185
          %v11218 = vpack.c.b16 %v10202, %v10194
          %v11219 = vpack.c.b16 %v10203, %v10195
          %v11220 = vpack.c.b16 %v10204, %v10196
          %v11221 = vpack.c.b16 %v10205, %v10197
          %v11222 = vpack.c.b16 %v10206, %v10198
          %v11223 = vpack.c.b16 %v10207, %v10199
          %v11224 = vpack.c.b16 %v10208, %v10200
          %v11225 = vpack.c.b16 %v10209, %v10201
          %v11226 = vpack.c.b16 %v10218, %v10210
          %v11227 = vpack.c.b16 %v10219, %v10211
          %v11228 = vpack.c.b16 %v10220, %v10212
          %v11229 = vpack.c.b16 %v10221, %v10213
          %v11230 = vpack.c.b16 %v10222, %v10214
          %v11231 = vpack.c.b16 %v10223, %v10215
          %v11232 = vpack.c.b16 %v10224, %v10216
          %v11233 = vpack.c.b16 %v10225, %v10217
          %v11234 = vpack.c.b16 %v10234, %v10226
          %v11235 = vpack.c.b16 %v10235, %v10227
          %v11236 = vpack.c.b16 %v10236, %v10228
          %v11237 = vpack.c.b16 %v10237, %v10229
          %v11238 = vpack.c.b16 %v10238, %v10230
          %v11239 = vpack.c.b16 %v10239, %v10231
          %v11240 = vpack.c.b16 %v10240, %v10232
          %v11241 = vpack.c.b16 %v10241, %v10233
          %v11242 = vpack.c.b16 %v10250, %v10242
          %v11243 = vpack.c.b16 %v10251, %v10243
          %v11244 = vpack.c.b16 %v10252, %v10244
          %v11245 = vpack.c.b16 %v10253, %v10245
          %v11246 = vpack.c.b16 %v10254, %v10246
          %v11247 = vpack.c.b16 %v10255, %v10247
          %v11248 = vpack.c.b16 %v10256, %v10248
          %v11249 = vpack.c.b16 %v10257, %v10249
          %v11250 = vpack.c.b16 %v10266, %v10258
          %v11251 = vpack.c.b16 %v10267, %v10259
          %v11252 = vpack.c.b16 %v10268, %v10260
          %v11253 = vpack.c.b16 %v10269, %v10261
          %v11254 = vpack.c.b16 %v10270, %v10262
          %v11255 = vpack.c.b16 %v10271, %v10263
          %v11256 = vpack.c.b16 %v10272, %v10264
          %v11257 = vpack.c.b16 %v10273, %v10265
          %v11258 = vpack.c.b16 %v10282, %v10274
          %v11259 = vpack.c.b16 %v10283, %v10275
          %v11260 = vpack.c.b16 %v10284, %v10276
          %v11261 = vpack.c.b16 %v10285, %v10277
          %v11262 = vpack.c.b16 %v10286, %v10278
          %v11263 = vpack.c.b16 %v10287, %v10279
          %v11264 = vpack.c.b16 %v10288, %v10280
          %v11265 = vpack.c.b16 %v10289, %v10281
          %v11266 = vpack.c.b16 %v10298, %v10290
          %v11267 = vpack.c.b16 %v10299, %v10291
          %v11268 = vpack.c.b16 %v10300, %v10292
          %v11269 = vpack.c.b16 %v10301, %v10293
          %v11270 = vpack.c.b16 %v10302, %v10294
          %v11271 = vpack.c.b16 %v10303, %v10295
          %v11272 = vpack.c.b16 %v10304, %v10296
          %v11273 = vpack.c.b16 %v10305, %v10297
          %v11274 = vpack.c.b16 %v10314, %v10306
          %v11275 = vpack.c.b16 %v10315, %v10307
          %v11276 = vpack.c.b16 %v10316, %v10308
          %v11277 = vpack.c.b16 %v10317, %v10309
          %v11278 = vpack.c.b16 %v10318, %v10310
          %v11279 = vpack.c.b16 %v10319, %v10311
          %v11280 = vpack.c.b16 %v10320, %v10312
          %v11281 = vpack.c.b16 %v10321, %v10313
          %v11282 = vpack.c.b16 %v10330, %v10322
          %v11283 = vpack.c.b16 %v10331, %v10323
          %v11284 = vpack.c.b16 %v10332, %v10324
          %v11285 = vpack.c.b16 %v10333, %v10325
          %v11286 = vpack.c.b16 %v10334, %v10326
          %v11287 = vpack.c.b16 %v10335, %v10327
          %v11288 = vpack.c.b16 %v10336, %v10328
          %v11289 = vpack.c.b16 %v10337, %v10329
          %v11290 = vpack.c.b16 %v10346, %v10338
          %v11291 = vpack.c.b16 %v10347, %v10339
          %v11292 = vpack.c.b16 %v10348, %v10340
          %v11293 = vpack.c.b16 %v10349, %v10341
          %v11294 = vpack.c.b16 %v10350, %v10342
          %v11295 = vpack.c.b16 %v10351, %v10343
          %v11296 = vpack.c.b16 %v10352, %v10344
          %v11297 = vpack.c.b16 %v10353, %v10345
          %v11298 = vpack.c.b16 %v10362, %v10354
          %v11299 = vpack.c.b16 %v10363, %v10355
          %v11300 = vpack.c.b16 %v10364, %v10356
          %v11301 = vpack.c.b16 %v10365, %v10357
          %v11302 = vpack.c.b16 %v10366, %v10358
          %v11303 = vpack.c.b16 %v10367, %v10359
          %v11304 = vpack.c.b16 %v10368, %v10360
          %v11305 = vpack.c.b16 %v10369, %v10361
          %v11306 = vpack.c.b16 %v10378, %v10370
          %v11307 = vpack.c.b16 %v10379, %v10371
          %v11308 = vpack.c.b16 %v10380, %v10372
          %v11309 = vpack.c.b16 %v10381, %v10373
          %v11310 = vpack.c.b16 %v10382, %v10374
          %v11311 = vpack.c.b16 %v10383, %v10375
          %v11312 = vpack.c.b16 %v10384, %v10376
          %v11313 = vpack.c.b16 %v10385, %v10377
          %v11314 = vpack.c.b16 %v10394, %v10386
          %v11315 = vpack.c.b16 %v10395, %v10387
          %v11316 = vpack.c.b16 %v10396, %v10388
          %v11317 = vpack.c.b16 %v10397, %v10389
          %v11318 = vpack.c.b16 %v10398, %v10390
          %v11319 = vpack.c.b16 %v10399, %v10391
          %v11320 = vpack.c.b16 %v10400, %v10392
          %v11321 = vpack.c.b16 %v10401, %v10393
          %v11322 = vpack.c.b16 %v10410, %v10402
          %v11323 = vpack.c.b16 %v10411, %v10403
          %v11324 = vpack.c.b16 %v10412, %v10404
          %v11325 = vpack.c.b16 %v10413, %v10405
          %v11326 = vpack.c.b16 %v10414, %v10406
          %v11327 = vpack.c.b16 %v10415, %v10407
          %v11328 = vpack.c.b16 %v10416, %v10408
          %v11329 = vpack.c.b16 %v10417, %v10409
          %v11330 = vpack.c.b16 %v10426, %v10418
          %v11331 = vpack.c.b16 %v10427, %v10419
          %v11332 = vpack.c.b16 %v10428, %v10420
          %v11333 = vpack.c.b16 %v10429, %v10421
          %v11334 = vpack.c.b16 %v10430, %v10422
          %v11335 = vpack.c.b16 %v10431, %v10423
          %v11336 = vpack.c.b16 %v10432, %v10424
          %v11337 = vpack.c.b16 %v10433, %v10425
          %v11338 = vpack.c.b16 %v10442, %v10434
          %v11339 = vpack.c.b16 %v10443, %v10435
          %v11340 = vpack.c.b16 %v10444, %v10436
          %v11341 = vpack.c.b16 %v10445, %v10437
          %v11342 = vpack.c.b16 %v10446, %v10438
          %v11343 = vpack.c.b16 %v10447, %v10439
          %v11344 = vpack.c.b16 %v10448, %v10440
          %v11345 = vpack.c.b16 %v10449, %v10441
          %v11346 = vpack.c.b16 %v10458, %v10450
          %v11347 = vpack.c.b16 %v10459, %v10451
          %v11348 = vpack.c.b16 %v10460, %v10452
          %v11349 = vpack.c.b16 %v10461, %v10453
          %v11350 = vpack.c.b16 %v10462, %v10454
          %v11351 = vpack.c.b16 %v10463, %v10455
          %v11352 = vpack.c.b16 %v10464, %v10456
          %v11353 = vpack.c.b16 %v10465, %v10457
          %v11354 = vpack.c.b16 %v10474, %v10466
          %v11355 = vpack.c.b16 %v10475, %v10467
          %v11356 = vpack.c.b16 %v10476, %v10468
          %v11357 = vpack.c.b16 %v10477, %v10469
          %v11358 = vpack.c.b16 %v10478, %v10470
          %v11359 = vpack.c.b16 %v10479, %v10471
          %v11360 = vpack.c.b16 %v10480, %v10472
          %v11361 = vpack.c.b16 %v10481, %v10473
          %v11362 = vpack.c.b16 %v10490, %v10482
          %v11363 = vpack.c.b16 %v10491, %v10483
          %v11364 = vpack.c.b16 %v10492, %v10484
          %v11365 = vpack.c.b16 %v10493, %v10485
          %v11366 = vpack.c.b16 %v10494, %v10486
          %v11367 = vpack.c.b16 %v10495, %v10487
          %v11368 = vpack.c.b16 %v10496, %v10488
          %v11369 = vpack.c.b16 %v10497, %v10489
          %v11370 = vpack.c.b16 %v10506, %v10498
          %v11371 = vpack.c.b16 %v10507, %v10499
          %v11372 = vpack.c.b16 %v10508, %v10500
          %v11373 = vpack.c.b16 %v10509, %v10501
          %v11374 = vpack.c.b16 %v10510, %v10502
          %v11375 = vpack.c.b16 %v10511, %v10503
          %v11376 = vpack.c.b16 %v10512, %v10504
          %v11377 = vpack.c.b16 %v10513, %v10505
          %v11378 = vpack.c.b16 %v10522, %v10514
          %v11379 = vpack.c.b16 %v10523, %v10515
          %v11380 = vpack.c.b16 %v10524, %v10516
          %v11381 = vpack.c.b16 %v10525, %v10517
          %v11382 = vpack.c.b16 %v10526, %v10518
          %v11383 = vpack.c.b16 %v10527, %v10519
          %v11384 = vpack.c.b16 %v10528, %v10520
          %v11385 = vpack.c.b16 %v10529, %v10521
          %v11386 = vpack.c.b16 %v10538, %v10530
          %v11387 = vpack.c.b16 %v10539, %v10531
          %v11388 = vpack.c.b16 %v10540, %v10532
          %v11389 = vpack.c.b16 %v10541, %v10533
          %v11390 = vpack.c.b16 %v10542, %v10534
          %v11391 = vpack.c.b16 %v10543, %v10535
          %v11392 = vpack.c.b16 %v10544, %v10536
          %v11393 = vpack.c.b16 %v10545, %v10537
          %v11394 = vpack.c.b16 %v10554, %v10546
          %v11395 = vpack.c.b16 %v10555, %v10547
          %v11396 = vpack.c.b16 %v10556, %v10548
          %v11397 = vpack.c.b16 %v10557, %v10549
          %v11398 = vpack.c.b16 %v10558, %v10550
          %v11399 = vpack.c.b16 %v10559, %v10551
          %v11400 = vpack.c.b16 %v10560, %v10552
          %v11401 = vpack.c.b16 %v10561, %v10553
          %v11402 = vpack.c.b16 %v10570, %v10562
          %v11403 = vpack.c.b16 %v10571, %v10563
          %v11404 = vpack.c.b16 %v10572, %v10564
          %v11405 = vpack.c.b16 %v10573, %v10565
          %v11406 = vpack.c.b16 %v10574, %v10566
          %v11407 = vpack.c.b16 %v10575, %v10567
          %v11408 = vpack.c.b16 %v10576, %v10568
          %v11409 = vpack.c.b16 %v10577, %v10569
          %v11410 = vpack.c.b16 %v10586, %v10578
          %v11411 = vpack.c.b16 %v10587, %v10579
          %v11412 = vpack.c.b16 %v10588, %v10580
          %v11413 = vpack.c.b16 %v10589, %v10581
          %v11414 = vpack.c.b16 %v10590, %v10582
          %v11415 = vpack.c.b16 %v10591, %v10583
          %v11416 = vpack.c.b16 %v10592, %v10584
          %v11417 = vpack.c.b16 %v10593, %v10585
          %v11418 = vpack.c.b16 %v10602, %v10594
          %v11419 = vpack.c.b16 %v10603, %v10595
          %v11420 = vpack.c.b16 %v10604, %v10596
          %v11421 = vpack.c.b16 %v10605, %v10597
          %v11422 = vpack.c.b16 %v10606, %v10598
          %v11423 = vpack.c.b16 %v10607, %v10599
          %v11424 = vpack.c.b16 %v10608, %v10600
          %v11425 = vpack.c.b16 %v10609, %v10601
          %v11426 = vpack.c.b16 %v10618, %v10610
          %v11427 = vpack.c.b16 %v10619, %v10611
          %v11428 = vpack.c.b16 %v10620, %v10612
          %v11429 = vpack.c.b16 %v10621, %v10613
          %v11430 = vpack.c.b16 %v10622, %v10614
          %v11431 = vpack.c.b16 %v10623, %v10615
          %v11432 = vpack.c.b16 %v10624, %v10616
          %v11433 = vpack.c.b16 %v10625, %v10617
          %v11434 = vpack.c.b16 %v10634, %v10626
          %v11435 = vpack.c.b16 %v10635, %v10627
          %v11436 = vpack.c.b16 %v10636, %v10628
          %v11437 = vpack.c.b16 %v10637, %v10629
          %v11438 = vpack.c.b16 %v10638, %v10630
          %v11439 = vpack.c.b16 %v10639, %v10631
          %v11440 = vpack.c.b16 %v10640, %v10632
          %v11441 = vpack.c.b16 %v10641, %v10633
          %v11442 = vpack.c.b16 %v10650, %v10642
          %v11443 = vpack.c.b16 %v10651, %v10643
          %v11444 = vpack.c.b16 %v10652, %v10644
          %v11445 = vpack.c.b16 %v10653, %v10645
          %v11446 = vpack.c.b16 %v10654, %v10646
          %v11447 = vpack.c.b16 %v10655, %v10647
          %v11448 = vpack.c.b16 %v10656, %v10648
          %v11449 = vpack.c.b16 %v10657, %v10649
          %v11450 = vpack.c.b16 %v10666, %v10658
          %v11451 = vpack.c.b16 %v10667, %v10659
          %v11452 = vpack.c.b16 %v10668, %v10660
          %v11453 = vpack.c.b16 %v10669, %v10661
          %v11454 = vpack.c.b16 %v10670, %v10662
          %v11455 = vpack.c.b16 %v10671, %v10663
          %v11456 = vpack.c.b16 %v10672, %v10664
          %v11457 = vpack.c.b16 %v10673, %v10665
          %v11458 = vpack.c.b16 %v10682, %v10674
          %v11459 = vpack.c.b16 %v10683, %v10675
          %v11460 = vpack.c.b16 %v10684, %v10676
          %v11461 = vpack.c.b16 %v10685, %v10677
          %v11462 = vpack.c.b16 %v10686, %v10678
          %v11463 = vpack.c.b16 %v10687, %v10679
          %v11464 = vpack.c.b16 %v10688, %v10680
          %v11465 = vpack.c.b16 %v10689, %v10681
          %v11466 = vpack.c.b16 %v10698, %v10690
          %v11467 = vpack.c.b16 %v10699, %v10691
          %v11468 = vpack.c.b16 %v10700, %v10692
          %v11469 = vpack.c.b16 %v10701, %v10693
          %v11470 = vpack.c.b16 %v10702, %v10694
          %v11471 = vpack.c.b16 %v10703, %v10695
          %v11472 = vpack.c.b16 %v10704, %v10696
          %v11473 = vpack.c.b16 %v10705, %v10697
          %v11474 = vpack.c.b16 %v10714, %v10706
          %v11475 = vpack.c.b16 %v10715, %v10707
          %v11476 = vpack.c.b16 %v10716, %v10708
          %v11477 = vpack.c.b16 %v10717, %v10709
          %v11478 = vpack.c.b16 %v10718, %v10710
          %v11479 = vpack.c.b16 %v10719, %v10711
          %v11480 = vpack.c.b16 %v10720, %v10712
          %v11481 = vpack.c.b16 %v10721, %v10713
          %v11482 = vpack.c.b16 %v10730, %v10722
          %v11483 = vpack.c.b16 %v10731, %v10723
          %v11484 = vpack.c.b16 %v10732, %v10724
          %v11485 = vpack.c.b16 %v10733, %v10725
          %v11486 = vpack.c.b16 %v10734, %v10726
          %v11487 = vpack.c.b16 %v10735, %v10727
          %v11488 = vpack.c.b16 %v10736, %v10728
          %v11489 = vpack.c.b16 %v10737, %v10729
          %v11490 = vpack.c.b16 %v10746, %v10738
          %v11491 = vpack.c.b16 %v10747, %v10739
          %v11492 = vpack.c.b16 %v10748, %v10740
          %v11493 = vpack.c.b16 %v10749, %v10741
          %v11494 = vpack.c.b16 %v10750, %v10742
          %v11495 = vpack.c.b16 %v10751, %v10743
          %v11496 = vpack.c.b16 %v10752, %v10744
          %v11497 = vpack.c.b16 %v10753, %v10745
          %v11498 = vpack.c.b16 %v10762, %v10754
          %v11499 = vpack.c.b16 %v10763, %v10755
          %v11500 = vpack.c.b16 %v10764, %v10756
          %v11501 = vpack.c.b16 %v10765, %v10757
          %v11502 = vpack.c.b16 %v10766, %v10758
          %v11503 = vpack.c.b16 %v10767, %v10759
          %v11504 = vpack.c.b16 %v10768, %v10760
          %v11505 = vpack.c.b16 %v10769, %v10761
          %v11506 = vpack.c.b16 %v10778, %v10770
          %v11507 = vpack.c.b16 %v10779, %v10771
          %v11508 = vpack.c.b16 %v10780, %v10772
          %v11509 = vpack.c.b16 %v10781, %v10773
          %v11510 = vpack.c.b16 %v10782, %v10774
          %v11511 = vpack.c.b16 %v10783, %v10775
          %v11512 = vpack.c.b16 %v10784, %v10776
          %v11513 = vpack.c.b16 %v10785, %v10777
          %v11514 = vpack.c.b16 %v10794, %v10786
          %v11515 = vpack.c.b16 %v10795, %v10787
          %v11516 = vpack.c.b16 %v10796, %v10788
          %v11517 = vpack.c.b16 %v10797, %v10789
          %v11518 = vpack.c.b16 %v10798, %v10790
          %v11519 = vpack.c.b16 %v10799, %v10791
          %v11520 = vpack.c.b16 %v10800, %v10792
          %v11521 = vpack.c.b16 %v10801, %v10793
          %v11522 = vpack.c.b16 %v10810, %v10802
          %v11523 = vpack.c.b16 %v10811, %v10803
          %v11524 = vpack.c.b16 %v10812, %v10804
          %v11525 = vpack.c.b16 %v10813, %v10805
          %v11526 = vpack.c.b16 %v10814, %v10806
          %v11527 = vpack.c.b16 %v10815, %v10807
          %v11528 = vpack.c.b16 %v10816, %v10808
          %v11529 = vpack.c.b16 %v10817, %v10809
          %v11530 = vpack.c.b16 %v10826, %v10818
          %v11531 = vpack.c.b16 %v10827, %v10819
          %v11532 = vpack.c.b16 %v10828, %v10820
          %v11533 = vpack.c.b16 %v10829, %v10821
          %v11534 = vpack.c.b16 %v10830, %v10822
          %v11535 = vpack.c.b16 %v10831, %v10823
          %v11536 = vpack.c.b16 %v10832, %v10824
          %v11537 = vpack.c.b16 %v10833, %v10825
          %v11538 = vpack.c.b16 %v10842, %v10834
          %v11539 = vpack.c.b16 %v10843, %v10835
          %v11540 = vpack.c.b16 %v10844, %v10836
          %v11541 = vpack.c.b16 %v10845, %v10837
          %v11542 = vpack.c.b16 %v10846, %v10838
          %v11543 = vpack.c.b16 %v10847, %v10839
          %v11544 = vpack.c.b16 %v10848, %v10840
          %v11545 = vpack.c.b16 %v10849, %v10841
          %v11546 = vpack.c.b16 %v10858, %v10850
          %v11547 = vpack.c.b16 %v10859, %v10851
          %v11548 = vpack.c.b16 %v10860, %v10852
          %v11549 = vpack.c.b16 %v10861, %v10853
          %v11550 = vpack.c.b16 %v10862, %v10854
          %v11551 = vpack.c.b16 %v10863, %v10855
          %v11552 = vpack.c.b16 %v10864, %v10856
          %v11553 = vpack.c.b16 %v10865, %v10857
          %v11554 = vpack.c.b16 %v10874, %v10866
          %v11555 = vpack.c.b16 %v10875, %v10867
          %v11556 = vpack.c.b16 %v10876, %v10868
          %v11557 = vpack.c.b16 %v10877, %v10869
          %v11558 = vpack.c.b16 %v10878, %v10870
          %v11559 = vpack.c.b16 %v10879, %v10871
          %v11560 = vpack.c.b16 %v10880, %v10872
          %v11561 = vpack.c.b16 %v10881, %v10873
          %v11562 = vpack.c.b16 %v10890, %v10882
          %v11563 = vpack.c.b16 %v10891, %v10883
          %v11564 = vpack.c.b16 %v10892, %v10884
          %v11565 = vpack.c.b16 %v10893, %v10885
          %v11566 = vpack.c.b16 %v10894, %v10886
          %v11567 = vpack.c.b16 %v10895, %v10887
          %v11568 = vpack.c.b16 %v10896, %v10888
          %v11569 = vpack.c.b16 %v10897, %v10889
          %v11570 = vpack.c.b16 %v10906, %v10898
          %v11571 = vpack.c.b16 %v10907, %v10899
          %v11572 = vpack.c.b16 %v10908, %v10900
          %v11573 = vpack.c.b16 %v10909, %v10901
          %v11574 = vpack.c.b16 %v10910, %v10902
          %v11575 = vpack.c.b16 %v10911, %v10903
          %v11576 = vpack.c.b16 %v10912, %v10904
          %v11577 = vpack.c.b16 %v10913, %v10905
          %v11578 = vpack.c.b16 %v10922, %v10914
          %v11579 = vpack.c.b16 %v10923, %v10915
          %v11580 = vpack.c.b16 %v10924, %v10916
          %v11581 = vpack.c.b16 %v10925, %v10917
          %v11582 = vpack.c.b16 %v10926, %v10918
          %v11583 = vpack.c.b16 %v10927, %v10919
          %v11584 = vpack.c.b16 %v10928, %v10920
          %v11585 = vpack.c.b16 %v10929, %v10921
          %v11586 = vpack.c.b16 %v10938, %v10930
          %v11587 = vpack.c.b16 %v10939, %v10931
          %v11588 = vpack.c.b16 %v10940, %v10932
          %v11589 = vpack.c.b16 %v10941, %v10933
          %v11590 = vpack.c.b16 %v10942, %v10934
          %v11591 = vpack.c.b16 %v10943, %v10935
          %v11592 = vpack.c.b16 %v10944, %v10936
          %v11593 = vpack.c.b16 %v10945, %v10937
          %v11594 = vpack.c.b16 %v10954, %v10946
          %v11595 = vpack.c.b16 %v10955, %v10947
          %v11596 = vpack.c.b16 %v10956, %v10948
          %v11597 = vpack.c.b16 %v10957, %v10949
          %v11598 = vpack.c.b16 %v10958, %v10950
          %v11599 = vpack.c.b16 %v10959, %v10951
          %v11600 = vpack.c.b16 %v10960, %v10952
          %v11601 = vpack.c.b16 %v10961, %v10953
          %12242 = vmatpush.bf16.msra.mxu0 %v11018
          %12243 = vmatpush.bf16.msra.mxu0 %v11010
          %12244 = vmatpush.bf16.msra.mxu0 %v11002
          %12245 = vmatpush.bf16.msra.mxu0 %v10994
          %12246 = vmatpush.bf16.msra.mxu0 %v10986
          %12247 = vmatpush.bf16.msra.mxu0 %v10978
          %12248 = vmatpush.bf16.msra.mxu0 %v10970
          %12249 = vmatpush.bf16.msra.mxu0 %v10962
          %12250 = vmatmul.bf16.gmra.mxu0 %v8390
          %v12251 = vpop.f32.mrf.mxu0
          %v12252 = vadd.f32 0.0, %v12251
          %v12253 = vpop.f32.mrf.mxu0
          %12254 = vdwg.mxu0
          %12255 = vmatpush.bf16.msra.mxu0 %v11082
          %12256 = vmatpush.bf16.msra.mxu0 %v11074
          %12257 = vmatpush.bf16.msra.mxu0 %v11066
          %12258 = vmatpush.bf16.msra.mxu0 %v11058
          %12259 = vmatpush.bf16.msra.mxu0 %v11050
          %12260 = vmatpush.bf16.msra.mxu0 %v11042
          %12261 = vmatpush.bf16.msra.mxu0 %v11034
          %12262 = vmatpush.bf16.msra.mxu0 %v11026
          %12263 = vmatmul.bf16.gmra.mxu0 %v8391
          %v12264 = vpop.f32.mrf.mxu0
          %v12265 = vadd.f32 %v12252, %v12264
          %v12266 = vpop.f32.mrf.mxu0
          %12267 = vdwg.mxu0
          %12268 = vmatpush.bf16.msra.mxu0 %v11146
          %12269 = vmatpush.bf16.msra.mxu0 %v11138
          %12270 = vmatpush.bf16.msra.mxu0 %v11130
          %12271 = vmatpush.bf16.msra.mxu0 %v11122
          %12272 = vmatpush.bf16.msra.mxu0 %v11114
          %12273 = vmatpush.bf16.msra.mxu0 %v11106
          %12274 = vmatpush.bf16.msra.mxu0 %v11098
          %12275 = vmatpush.bf16.msra.mxu0 %v11090
          %12276 = vmatmul.bf16.gmra.mxu0 %v8392
          %v12277 = vpop.f32.mrf.mxu0
          %v12278 = vadd.f32 %v12265, %v12277
          %v12279 = vpop.f32.mrf.mxu0
          %12280 = vdwg.mxu0
          %12281 = vmatpush.bf16.msra.mxu0 %v11210
          %12282 = vmatpush.bf16.msra.mxu0 %v11202
          %12283 = vmatpush.bf16.msra.mxu0 %v11194
          %12284 = vmatpush.bf16.msra.mxu0 %v11186
          %12285 = vmatpush.bf16.msra.mxu0 %v11178
          %12286 = vmatpush.bf16.msra.mxu0 %v11170
          %12287 = vmatpush.bf16.msra.mxu0 %v11162
          %12288 = vmatpush.bf16.msra.mxu0 %v11154
          %12289 = vmatmul.bf16.gmra.mxu0 %v8393
          %v12290 = vpop.f32.mrf.mxu0
          %v12291 = vadd.f32 %v12278, %v12290
          %v12292 = vpop.f32.mrf.mxu0
          %12293 = vdwg.mxu0
          %12294 = vmatpush.bf16.msra.mxu0 %v11274
          %12295 = vmatpush.bf16.msra.mxu0 %v11266
          %12296 = vmatpush.bf16.msra.mxu0 %v11258
          %12297 = vmatpush.bf16.msra.mxu0 %v11250
          %12298 = vmatpush.bf16.msra.mxu0 %v11242
          %12299 = vmatpush.bf16.msra.mxu0 %v11234
          %12300 = vmatpush.bf16.msra.mxu0 %v11226
          %12301 = vmatpush.bf16.msra.mxu0 %v11218
          %12302 = vmatmul.bf16.gmra.mxu0 %v8394
          %v12303 = vpop.f32.mrf.mxu0
          %v12304 = vadd.f32 %v12291, %v12303
          %v12305 = vpop.f32.mrf.mxu0
          %12306 = vdwg.mxu0
          %12307 = vmatpush.bf16.msra.mxu0 %v11338
          %12308 = vmatpush.bf16.msra.mxu0 %v11330
          %12309 = vmatpush.bf16.msra.mxu0 %v11322
          %12310 = vmatpush.bf16.msra.mxu0 %v11314
          %12311 = vmatpush.bf16.msra.mxu0 %v11306
          %12312 = vmatpush.bf16.msra.mxu0 %v11298
          %12313 = vmatpush.bf16.msra.mxu0 %v11290
          %12314 = vmatpush.bf16.msra.mxu0 %v11282
          %12315 = vmatmul.bf16.gmra.mxu0 %v8395
          %v12316 = vpop.f32.mrf.mxu0
          %v12317 = vadd.f32 %v12304, %v12316
          %v12318 = vpop.f32.mrf.mxu0
          %12319 = vdwg.mxu0
          %12320 = vmatpush.bf16.msra.mxu0 %v11402
          %12321 = vmatpush.bf16.msra.mxu0 %v11394
          %12322 = vmatpush.bf16.msra.mxu0 %v11386
          %12323 = vmatpush.bf16.msra.mxu0 %v11378
          %12324 = vmatpush.bf16.msra.mxu0 %v11370
          %12325 = vmatpush.bf16.msra.mxu0 %v11362
          %12326 = vmatpush.bf16.msra.mxu0 %v11354
          %12327 = vmatpush.bf16.msra.mxu0 %v11346
          %12328 = vmatmul.bf16.gmra.mxu0 %v8396
          %v12329 = vpop.f32.mrf.mxu0
          %v12330 = vadd.f32 %v12317, %v12329
          %v12331 = vpop.f32.mrf.mxu0
          %12332 = vdwg.mxu0
          %12333 = vmatpush.bf16.msra.mxu0 %v11466
          %12334 = vmatpush.bf16.msra.mxu0 %v11458
          %12335 = vmatpush.bf16.msra.mxu0 %v11450
          %12336 = vmatpush.bf16.msra.mxu0 %v11442
          %12337 = vmatpush.bf16.msra.mxu0 %v11434
          %12338 = vmatpush.bf16.msra.mxu0 %v11426
          %12339 = vmatpush.bf16.msra.mxu0 %v11418
          %12340 = vmatpush.bf16.msra.mxu0 %v11410
          %12341 = vmatmul.bf16.gmra.mxu0 %v8397
          %v12342 = vpop.f32.mrf.mxu0
          %v12343 = vadd.f32 %v12330, %v12342
          %v12344 = vpop.f32.mrf.mxu0
          %12345 = vdwg.mxu0
          %12346 = vmatpush.bf16.msra.mxu0 %v11530
          %12347 = vmatpush.bf16.msra.mxu0 %v11522
          %12348 = vmatpush.bf16.msra.mxu0 %v11514
          %12349 = vmatpush.bf16.msra.mxu0 %v11506
          %12350 = vmatpush.bf16.msra.mxu0 %v11498
          %12351 = vmatpush.bf16.msra.mxu0 %v11490
          %12352 = vmatpush.bf16.msra.mxu0 %v11482
          %12353 = vmatpush.bf16.msra.mxu0 %v11474
          %12354 = vmatmul.bf16.gmra.mxu0 %v8398
          %v12355 = vpop.f32.mrf.mxu0
          %v12356 = vadd.f32 %v12343, %v12355
          %v12357 = vpop.f32.mrf.mxu0
          %12358 = vdwg.mxu0
          %12359 = vmatpush.bf16.msra.mxu0 %v11594
          %12360 = vmatpush.bf16.msra.mxu0 %v11586
          %12361 = vmatpush.bf16.msra.mxu0 %v11578
          %12362 = vmatpush.bf16.msra.mxu0 %v11570
          %12363 = vmatpush.bf16.msra.mxu0 %v11562
          %12364 = vmatpush.bf16.msra.mxu0 %v11554
          %12365 = vmatpush.bf16.msra.mxu0 %v11546
          %12366 = vmatpush.bf16.msra.mxu0 %v11538
          %12367 = vmatmul.bf16.gmra.mxu0 %v8399
          %v12368 = vpop.f32.mrf.mxu0
          %v12369 = vadd.f32 %v12356, %v12368
          %v12370 = vpop.f32.mrf.mxu0
          %12371 = vdwg.mxu0
          %12372 = vmatpush.bf16.msra.mxu0 %v11019
          %12373 = vmatpush.bf16.msra.mxu0 %v11011
          %12374 = vmatpush.bf16.msra.mxu0 %v11003
          %12375 = vmatpush.bf16.msra.mxu0 %v10995
          %12376 = vmatpush.bf16.msra.mxu0 %v10987
          %12377 = vmatpush.bf16.msra.mxu0 %v10979
          %12378 = vmatpush.bf16.msra.mxu0 %v10971
          %12379 = vmatpush.bf16.msra.mxu0 %v10963
          %12380 = vmatmul.bf16.gmra.mxu0 %v8390
          %v12381 = vpop.f32.mrf.mxu0
          %v12382 = vadd.f32 0.0, %v12381
          %v12383 = vpop.f32.mrf.mxu0
          %12384 = vdwg.mxu0
          %12385 = vmatpush.bf16.msra.mxu0 %v11083
          %12386 = vmatpush.bf16.msra.mxu0 %v11075
          %12387 = vmatpush.bf16.msra.mxu0 %v11067
          %12388 = vmatpush.bf16.msra.mxu0 %v11059
          %12389 = vmatpush.bf16.msra.mxu0 %v11051
          %12390 = vmatpush.bf16.msra.mxu0 %v11043
          %12391 = vmatpush.bf16.msra.mxu0 %v11035
          %12392 = vmatpush.bf16.msra.mxu0 %v11027
          %12393 = vmatmul.bf16.gmra.mxu0 %v8391
          %v12394 = vpop.f32.mrf.mxu0
          %v12395 = vadd.f32 %v12382, %v12394
          %v12396 = vpop.f32.mrf.mxu0
          %12397 = vdwg.mxu0
          %12398 = vmatpush.bf16.msra.mxu0 %v11147
          %12399 = vmatpush.bf16.msra.mxu0 %v11139
          %12400 = vmatpush.bf16.msra.mxu0 %v11131
          %12401 = vmatpush.bf16.msra.mxu0 %v11123
          %12402 = vmatpush.bf16.msra.mxu0 %v11115
          %12403 = vmatpush.bf16.msra.mxu0 %v11107
          %12404 = vmatpush.bf16.msra.mxu0 %v11099
          %12405 = vmatpush.bf16.msra.mxu0 %v11091
          %12406 = vmatmul.bf16.gmra.mxu0 %v8392
          %v12407 = vpop.f32.mrf.mxu0
          %v12408 = vadd.f32 %v12395, %v12407
          %v12409 = vpop.f32.mrf.mxu0
          %12410 = vdwg.mxu0
          %12411 = vmatpush.bf16.msra.mxu0 %v11211
          %12412 = vmatpush.bf16.msra.mxu0 %v11203
          %12413 = vmatpush.bf16.msra.mxu0 %v11195
          %12414 = vmatpush.bf16.msra.mxu0 %v11187
          %12415 = vmatpush.bf16.msra.mxu0 %v11179
          %12416 = vmatpush.bf16.msra.mxu0 %v11171
          %12417 = vmatpush.bf16.msra.mxu0 %v11163
          %12418 = vmatpush.bf16.msra.mxu0 %v11155
          %12419 = vmatmul.bf16.gmra.mxu0 %v8393
          %v12420 = vpop.f32.mrf.mxu0
          %v12421 = vadd.f32 %v12408, %v12420
          %v12422 = vpop.f32.mrf.mxu0
          %12423 = vdwg.mxu0
          %12424 = vmatpush.bf16.msra.mxu0 %v11275
          %12425 = vmatpush.bf16.msra.mxu0 %v11267
          %12426 = vmatpush.bf16.msra.mxu0 %v11259
          %12427 = vmatpush.bf16.msra.mxu0 %v11251
          %12428 = vmatpush.bf16.msra.mxu0 %v11243
          %12429 = vmatpush.bf16.msra.mxu0 %v11235
          %12430 = vmatpush.bf16.msra.mxu0 %v11227
          %12431 = vmatpush.bf16.msra.mxu0 %v11219
          %12432 = vmatmul.bf16.gmra.mxu0 %v8394
          %v12433 = vpop.f32.mrf.mxu0
          %v12434 = vadd.f32 %v12421, %v12433
          %v12435 = vpop.f32.mrf.mxu0
          %12436 = vdwg.mxu0
          %12437 = vmatpush.bf16.msra.mxu0 %v11339
          %12438 = vmatpush.bf16.msra.mxu0 %v11331
          %12439 = vmatpush.bf16.msra.mxu0 %v11323
          %12440 = vmatpush.bf16.msra.mxu0 %v11315
          %12441 = vmatpush.bf16.msra.mxu0 %v11307
          %12442 = vmatpush.bf16.msra.mxu0 %v11299
          %12443 = vmatpush.bf16.msra.mxu0 %v11291
          %12444 = vmatpush.bf16.msra.mxu0 %v11283
          %12445 = vmatmul.bf16.gmra.mxu0 %v8395
          %v12446 = vpop.f32.mrf.mxu0
          %v12447 = vadd.f32 %v12434, %v12446
          %v12448 = vpop.f32.mrf.mxu0
          %12449 = vdwg.mxu0
          %12450 = vmatpush.bf16.msra.mxu0 %v11403
          %12451 = vmatpush.bf16.msra.mxu0 %v11395
          %12452 = vmatpush.bf16.msra.mxu0 %v11387
          %12453 = vmatpush.bf16.msra.mxu0 %v11379
          %12454 = vmatpush.bf16.msra.mxu0 %v11371
          %12455 = vmatpush.bf16.msra.mxu0 %v11363
          %12456 = vmatpush.bf16.msra.mxu0 %v11355
          %12457 = vmatpush.bf16.msra.mxu0 %v11347
          %12458 = vmatmul.bf16.gmra.mxu0 %v8396
          %v12459 = vpop.f32.mrf.mxu0
          %v12460 = vadd.f32 %v12447, %v12459
          %v12461 = vpop.f32.mrf.mxu0
          %12462 = vdwg.mxu0
          %12463 = vmatpush.bf16.msra.mxu0 %v11467
          %12464 = vmatpush.bf16.msra.mxu0 %v11459
          %12465 = vmatpush.bf16.msra.mxu0 %v11451
          %12466 = vmatpush.bf16.msra.mxu0 %v11443
          %12467 = vmatpush.bf16.msra.mxu0 %v11435
          %12468 = vmatpush.bf16.msra.mxu0 %v11427
          %12469 = vmatpush.bf16.msra.mxu0 %v11419
          %12470 = vmatpush.bf16.msra.mxu0 %v11411
          %12471 = vmatmul.bf16.gmra.mxu0 %v8397
          %v12472 = vpop.f32.mrf.mxu0
          %v12473 = vadd.f32 %v12460, %v12472
          %v12474 = vpop.f32.mrf.mxu0
          %12475 = vdwg.mxu0
          %12476 = vmatpush.bf16.msra.mxu0 %v11531
          %12477 = vmatpush.bf16.msra.mxu0 %v11523
          %12478 = vmatpush.bf16.msra.mxu0 %v11515
          %12479 = vmatpush.bf16.msra.mxu0 %v11507
          %12480 = vmatpush.bf16.msra.mxu0 %v11499
          %12481 = vmatpush.bf16.msra.mxu0 %v11491
          %12482 = vmatpush.bf16.msra.mxu0 %v11483
          %12483 = vmatpush.bf16.msra.mxu0 %v11475
          %12484 = vmatmul.bf16.gmra.mxu0 %v8398
          %v12485 = vpop.f32.mrf.mxu0
          %v12486 = vadd.f32 %v12473, %v12485
          %v12487 = vpop.f32.mrf.mxu0
          %12488 = vdwg.mxu0
          %12489 = vmatpush.bf16.msra.mxu0 %v11595
          %12490 = vmatpush.bf16.msra.mxu0 %v11587
          %12491 = vmatpush.bf16.msra.mxu0 %v11579
          %12492 = vmatpush.bf16.msra.mxu0 %v11571
          %12493 = vmatpush.bf16.msra.mxu0 %v11563
          %12494 = vmatpush.bf16.msra.mxu0 %v11555
          %12495 = vmatpush.bf16.msra.mxu0 %v11547
          %12496 = vmatpush.bf16.msra.mxu0 %v11539
          %12497 = vmatmul.bf16.gmra.mxu0 %v8399
          %v12498 = vpop.f32.mrf.mxu0
          %v12499 = vadd.f32 %v12486, %v12498
          %v12500 = vpop.f32.mrf.mxu0
          %12501 = vdwg.mxu0
          %12502 = vmatpush.bf16.msra.mxu0 %v11020
          %12503 = vmatpush.bf16.msra.mxu0 %v11012
          %12504 = vmatpush.bf16.msra.mxu0 %v11004
          %12505 = vmatpush.bf16.msra.mxu0 %v10996
          %12506 = vmatpush.bf16.msra.mxu0 %v10988
          %12507 = vmatpush.bf16.msra.mxu0 %v10980
          %12508 = vmatpush.bf16.msra.mxu0 %v10972
          %12509 = vmatpush.bf16.msra.mxu0 %v10964
          %12510 = vmatmul.bf16.gmra.mxu0 %v8390
          %v12511 = vpop.f32.mrf.mxu0
          %v12512 = vadd.f32 0.0, %v12511
          %v12513 = vpop.f32.mrf.mxu0
          %12514 = vdwg.mxu0
          %12515 = vmatpush.bf16.msra.mxu0 %v11084
          %12516 = vmatpush.bf16.msra.mxu0 %v11076
          %12517 = vmatpush.bf16.msra.mxu0 %v11068
          %12518 = vmatpush.bf16.msra.mxu0 %v11060
          %12519 = vmatpush.bf16.msra.mxu0 %v11052
          %12520 = vmatpush.bf16.msra.mxu0 %v11044
          %12521 = vmatpush.bf16.msra.mxu0 %v11036
          %12522 = vmatpush.bf16.msra.mxu0 %v11028
          %12523 = vmatmul.bf16.gmra.mxu0 %v8391
          %v12524 = vpop.f32.mrf.mxu0
          %v12525 = vadd.f32 %v12512, %v12524
          %v12526 = vpop.f32.mrf.mxu0
          %12527 = vdwg.mxu0
          %12528 = vmatpush.bf16.msra.mxu0 %v11148
          %12529 = vmatpush.bf16.msra.mxu0 %v11140
          %12530 = vmatpush.bf16.msra.mxu0 %v11132
          %12531 = vmatpush.bf16.msra.mxu0 %v11124
          %12532 = vmatpush.bf16.msra.mxu0 %v11116
          %12533 = vmatpush.bf16.msra.mxu0 %v11108
          %12534 = vmatpush.bf16.msra.mxu0 %v11100
          %12535 = vmatpush.bf16.msra.mxu0 %v11092
          %12536 = vmatmul.bf16.gmra.mxu0 %v8392
          %v12537 = vpop.f32.mrf.mxu0
          %v12538 = vadd.f32 %v12525, %v12537
          %v12539 = vpop.f32.mrf.mxu0
          %12540 = vdwg.mxu0
          %12541 = vmatpush.bf16.msra.mxu0 %v11212
          %12542 = vmatpush.bf16.msra.mxu0 %v11204
          %12543 = vmatpush.bf16.msra.mxu0 %v11196
          %12544 = vmatpush.bf16.msra.mxu0 %v11188
          %12545 = vmatpush.bf16.msra.mxu0 %v11180
          %12546 = vmatpush.bf16.msra.mxu0 %v11172
          %12547 = vmatpush.bf16.msra.mxu0 %v11164
          %12548 = vmatpush.bf16.msra.mxu0 %v11156
          %12549 = vmatmul.bf16.gmra.mxu0 %v8393
          %v12550 = vpop.f32.mrf.mxu0
          %v12551 = vadd.f32 %v12538, %v12550
          %v12552 = vpop.f32.mrf.mxu0
          %12553 = vdwg.mxu0
          %12554 = vmatpush.bf16.msra.mxu0 %v11276
          %12555 = vmatpush.bf16.msra.mxu0 %v11268
          %12556 = vmatpush.bf16.msra.mxu0 %v11260
          %12557 = vmatpush.bf16.msra.mxu0 %v11252
          %12558 = vmatpush.bf16.msra.mxu0 %v11244
          %12559 = vmatpush.bf16.msra.mxu0 %v11236
          %12560 = vmatpush.bf16.msra.mxu0 %v11228
          %12561 = vmatpush.bf16.msra.mxu0 %v11220
          %12562 = vmatmul.bf16.gmra.mxu0 %v8394
          %v12563 = vpop.f32.mrf.mxu0
          %v12564 = vadd.f32 %v12551, %v12563
          %v12565 = vpop.f32.mrf.mxu0
          %12566 = vdwg.mxu0
          %12567 = vmatpush.bf16.msra.mxu0 %v11340
          %12568 = vmatpush.bf16.msra.mxu0 %v11332
          %12569 = vmatpush.bf16.msra.mxu0 %v11324
          %12570 = vmatpush.bf16.msra.mxu0 %v11316
          %12571 = vmatpush.bf16.msra.mxu0 %v11308
          %12572 = vmatpush.bf16.msra.mxu0 %v11300
          %12573 = vmatpush.bf16.msra.mxu0 %v11292
          %12574 = vmatpush.bf16.msra.mxu0 %v11284
          %12575 = vmatmul.bf16.gmra.mxu0 %v8395
          %v12576 = vpop.f32.mrf.mxu0
          %v12577 = vadd.f32 %v12564, %v12576
          %v12578 = vpop.f32.mrf.mxu0
          %12579 = vdwg.mxu0
          %12580 = vmatpush.bf16.msra.mxu0 %v11404
          %12581 = vmatpush.bf16.msra.mxu0 %v11396
          %12582 = vmatpush.bf16.msra.mxu0 %v11388
          %12583 = vmatpush.bf16.msra.mxu0 %v11380
          %12584 = vmatpush.bf16.msra.mxu0 %v11372
          %12585 = vmatpush.bf16.msra.mxu0 %v11364
          %12586 = vmatpush.bf16.msra.mxu0 %v11356
          %12587 = vmatpush.bf16.msra.mxu0 %v11348
          %12588 = vmatmul.bf16.gmra.mxu0 %v8396
          %v12589 = vpop.f32.mrf.mxu0
          %v12590 = vadd.f32 %v12577, %v12589
          %v12591 = vpop.f32.mrf.mxu0
          %12592 = vdwg.mxu0
          %12593 = vmatpush.bf16.msra.mxu0 %v11468
          %12594 = vmatpush.bf16.msra.mxu0 %v11460
          %12595 = vmatpush.bf16.msra.mxu0 %v11452
          %12596 = vmatpush.bf16.msra.mxu0 %v11444
          %12597 = vmatpush.bf16.msra.mxu0 %v11436
          %12598 = vmatpush.bf16.msra.mxu0 %v11428
          %12599 = vmatpush.bf16.msra.mxu0 %v11420
          %12600 = vmatpush.bf16.msra.mxu0 %v11412
          %12601 = vmatmul.bf16.gmra.mxu0 %v8397
          %v12602 = vpop.f32.mrf.mxu0
          %v12603 = vadd.f32 %v12590, %v12602
          %v12604 = vpop.f32.mrf.mxu0
          %12605 = vdwg.mxu0
          %12606 = vmatpush.bf16.msra.mxu0 %v11532
          %12607 = vmatpush.bf16.msra.mxu0 %v11524
          %12608 = vmatpush.bf16.msra.mxu0 %v11516
          %12609 = vmatpush.bf16.msra.mxu0 %v11508
          %12610 = vmatpush.bf16.msra.mxu0 %v11500
          %12611 = vmatpush.bf16.msra.mxu0 %v11492
          %12612 = vmatpush.bf16.msra.mxu0 %v11484
          %12613 = vmatpush.bf16.msra.mxu0 %v11476
          %12614 = vmatmul.bf16.gmra.mxu0 %v8398
          %v12615 = vpop.f32.mrf.mxu0
          %v12616 = vadd.f32 %v12603, %v12615
          %v12617 = vpop.f32.mrf.mxu0
          %12618 = vdwg.mxu0
          %12619 = vmatpush.bf16.msra.mxu0 %v11596
          %12620 = vmatpush.bf16.msra.mxu0 %v11588
          %12621 = vmatpush.bf16.msra.mxu0 %v11580
          %12622 = vmatpush.bf16.msra.mxu0 %v11572
          %12623 = vmatpush.bf16.msra.mxu0 %v11564
          %12624 = vmatpush.bf16.msra.mxu0 %v11556
          %12625 = vmatpush.bf16.msra.mxu0 %v11548
          %12626 = vmatpush.bf16.msra.mxu0 %v11540
          %12627 = vmatmul.bf16.gmra.mxu0 %v8399
          %v12628 = vpop.f32.mrf.mxu0
          %v12629 = vadd.f32 %v12616, %v12628
          %v12630 = vpop.f32.mrf.mxu0
          %12631 = vdwg.mxu0
          %12632 = vmatpush.bf16.msra.mxu0 %v11021
          %12633 = vmatpush.bf16.msra.mxu0 %v11013
          %12634 = vmatpush.bf16.msra.mxu0 %v11005
          %12635 = vmatpush.bf16.msra.mxu0 %v10997
          %12636 = vmatpush.bf16.msra.mxu0 %v10989
          %12637 = vmatpush.bf16.msra.mxu0 %v10981
          %12638 = vmatpush.bf16.msra.mxu0 %v10973
          %12639 = vmatpush.bf16.msra.mxu0 %v10965
          %12640 = vmatmul.bf16.gmra.mxu0 %v8390
          %v12641 = vpop.f32.mrf.mxu0
          %v12642 = vadd.f32 0.0, %v12641
          %v12643 = vpop.f32.mrf.mxu0
          %12644 = vdwg.mxu0
          %12645 = vmatpush.bf16.msra.mxu0 %v11085
          %12646 = vmatpush.bf16.msra.mxu0 %v11077
          %12647 = vmatpush.bf16.msra.mxu0 %v11069
          %12648 = vmatpush.bf16.msra.mxu0 %v11061
          %12649 = vmatpush.bf16.msra.mxu0 %v11053
          %12650 = vmatpush.bf16.msra.mxu0 %v11045
          %12651 = vmatpush.bf16.msra.mxu0 %v11037
          %12652 = vmatpush.bf16.msra.mxu0 %v11029
          %12653 = vmatmul.bf16.gmra.mxu0 %v8391
          %v12654 = vpop.f32.mrf.mxu0
          %v12655 = vadd.f32 %v12642, %v12654
          %v12656 = vpop.f32.mrf.mxu0
          %12657 = vdwg.mxu0
          %12658 = vmatpush.bf16.msra.mxu0 %v11149
          %12659 = vmatpush.bf16.msra.mxu0 %v11141
          %12660 = vmatpush.bf16.msra.mxu0 %v11133
          %12661 = vmatpush.bf16.msra.mxu0 %v11125
          %12662 = vmatpush.bf16.msra.mxu0 %v11117
          %12663 = vmatpush.bf16.msra.mxu0 %v11109
          %12664 = vmatpush.bf16.msra.mxu0 %v11101
          %12665 = vmatpush.bf16.msra.mxu0 %v11093
          %12666 = vmatmul.bf16.gmra.mxu0 %v8392
          %v12667 = vpop.f32.mrf.mxu0
          %v12668 = vadd.f32 %v12655, %v12667
          %v12669 = vpop.f32.mrf.mxu0
          %12670 = vdwg.mxu0
          %12671 = vmatpush.bf16.msra.mxu0 %v11213
          %12672 = vmatpush.bf16.msra.mxu0 %v11205
          %12673 = vmatpush.bf16.msra.mxu0 %v11197
          %12674 = vmatpush.bf16.msra.mxu0 %v11189
          %12675 = vmatpush.bf16.msra.mxu0 %v11181
          %12676 = vmatpush.bf16.msra.mxu0 %v11173
          %12677 = vmatpush.bf16.msra.mxu0 %v11165
          %12678 = vmatpush.bf16.msra.mxu0 %v11157
          %12679 = vmatmul.bf16.gmra.mxu0 %v8393
          %v12680 = vpop.f32.mrf.mxu0
          %v12681 = vadd.f32 %v12668, %v12680
          %v12682 = vpop.f32.mrf.mxu0
          %12683 = vdwg.mxu0
          %12684 = vmatpush.bf16.msra.mxu0 %v11277
          %12685 = vmatpush.bf16.msra.mxu0 %v11269
          %12686 = vmatpush.bf16.msra.mxu0 %v11261
          %12687 = vmatpush.bf16.msra.mxu0 %v11253
          %12688 = vmatpush.bf16.msra.mxu0 %v11245
          %12689 = vmatpush.bf16.msra.mxu0 %v11237
          %12690 = vmatpush.bf16.msra.mxu0 %v11229
          %12691 = vmatpush.bf16.msra.mxu0 %v11221
          %12692 = vmatmul.bf16.gmra.mxu0 %v8394
          %v12693 = vpop.f32.mrf.mxu0
          %v12694 = vadd.f32 %v12681, %v12693
          %v12695 = vpop.f32.mrf.mxu0
          %12696 = vdwg.mxu0
          %12697 = vmatpush.bf16.msra.mxu0 %v11341
          %12698 = vmatpush.bf16.msra.mxu0 %v11333
          %12699 = vmatpush.bf16.msra.mxu0 %v11325
          %12700 = vmatpush.bf16.msra.mxu0 %v11317
          %12701 = vmatpush.bf16.msra.mxu0 %v11309
          %12702 = vmatpush.bf16.msra.mxu0 %v11301
          %12703 = vmatpush.bf16.msra.mxu0 %v11293
          %12704 = vmatpush.bf16.msra.mxu0 %v11285
          %12705 = vmatmul.bf16.gmra.mxu0 %v8395
          %v12706 = vpop.f32.mrf.mxu0
          %v12707 = vadd.f32 %v12694, %v12706
          %v12708 = vpop.f32.mrf.mxu0
          %12709 = vdwg.mxu0
          %12710 = vmatpush.bf16.msra.mxu0 %v11405
          %12711 = vmatpush.bf16.msra.mxu0 %v11397
          %12712 = vmatpush.bf16.msra.mxu0 %v11389
          %12713 = vmatpush.bf16.msra.mxu0 %v11381
          %12714 = vmatpush.bf16.msra.mxu0 %v11373
          %12715 = vmatpush.bf16.msra.mxu0 %v11365
          %12716 = vmatpush.bf16.msra.mxu0 %v11357
          %12717 = vmatpush.bf16.msra.mxu0 %v11349
          %12718 = vmatmul.bf16.gmra.mxu0 %v8396
          %v12719 = vpop.f32.mrf.mxu0
          %v12720 = vadd.f32 %v12707, %v12719
          %v12721 = vpop.f32.mrf.mxu0
          %12722 = vdwg.mxu0
          %12723 = vmatpush.bf16.msra.mxu0 %v11469
          %12724 = vmatpush.bf16.msra.mxu0 %v11461
          %12725 = vmatpush.bf16.msra.mxu0 %v11453
          %12726 = vmatpush.bf16.msra.mxu0 %v11445
          %12727 = vmatpush.bf16.msra.mxu0 %v11437
          %12728 = vmatpush.bf16.msra.mxu0 %v11429
          %12729 = vmatpush.bf16.msra.mxu0 %v11421
          %12730 = vmatpush.bf16.msra.mxu0 %v11413
          %12731 = vmatmul.bf16.gmra.mxu0 %v8397
          %v12732 = vpop.f32.mrf.mxu0
          %v12733 = vadd.f32 %v12720, %v12732
          %v12734 = vpop.f32.mrf.mxu0
          %12735 = vdwg.mxu0
          %12736 = vmatpush.bf16.msra.mxu0 %v11533
          %12737 = vmatpush.bf16.msra.mxu0 %v11525
          %12738 = vmatpush.bf16.msra.mxu0 %v11517
          %12739 = vmatpush.bf16.msra.mxu0 %v11509
          %12740 = vmatpush.bf16.msra.mxu0 %v11501
          %12741 = vmatpush.bf16.msra.mxu0 %v11493
          %12742 = vmatpush.bf16.msra.mxu0 %v11485
          %12743 = vmatpush.bf16.msra.mxu0 %v11477
          %12744 = vmatmul.bf16.gmra.mxu0 %v8398
          %v12745 = vpop.f32.mrf.mxu0
          %v12746 = vadd.f32 %v12733, %v12745
          %v12747 = vpop.f32.mrf.mxu0
          %12748 = vdwg.mxu0
          %12749 = vmatpush.bf16.msra.mxu0 %v11597
          %12750 = vmatpush.bf16.msra.mxu0 %v11589
          %12751 = vmatpush.bf16.msra.mxu0 %v11581
          %12752 = vmatpush.bf16.msra.mxu0 %v11573
          %12753 = vmatpush.bf16.msra.mxu0 %v11565
          %12754 = vmatpush.bf16.msra.mxu0 %v11557
          %12755 = vmatpush.bf16.msra.mxu0 %v11549
          %12756 = vmatpush.bf16.msra.mxu0 %v11541
          %12757 = vmatmul.bf16.gmra.mxu0 %v8399
          %v12758 = vpop.f32.mrf.mxu0
          %v12759 = vadd.f32 %v12746, %v12758
          %v12760 = vpop.f32.mrf.mxu0
          %12761 = vdwg.mxu0
          %12762 = vmatpush.bf16.msra.mxu0 %v11022
          %12763 = vmatpush.bf16.msra.mxu0 %v11014
          %12764 = vmatpush.bf16.msra.mxu0 %v11006
          %12765 = vmatpush.bf16.msra.mxu0 %v10998
          %12766 = vmatpush.bf16.msra.mxu0 %v10990
          %12767 = vmatpush.bf16.msra.mxu0 %v10982
          %12768 = vmatpush.bf16.msra.mxu0 %v10974
          %12769 = vmatpush.bf16.msra.mxu0 %v10966
          %12770 = vmatmul.bf16.gmra.mxu0 %v8390
          %v12771 = vpop.f32.mrf.mxu0
          %v12772 = vadd.f32 0.0, %v12771
          %v12773 = vpop.f32.mrf.mxu0
          %12774 = vdwg.mxu0
          %12775 = vmatpush.bf16.msra.mxu0 %v11086
          %12776 = vmatpush.bf16.msra.mxu0 %v11078
          %12777 = vmatpush.bf16.msra.mxu0 %v11070
          %12778 = vmatpush.bf16.msra.mxu0 %v11062
          %12779 = vmatpush.bf16.msra.mxu0 %v11054
          %12780 = vmatpush.bf16.msra.mxu0 %v11046
          %12781 = vmatpush.bf16.msra.mxu0 %v11038
          %12782 = vmatpush.bf16.msra.mxu0 %v11030
          %12783 = vmatmul.bf16.gmra.mxu0 %v8391
          %v12784 = vpop.f32.mrf.mxu0
          %v12785 = vadd.f32 %v12772, %v12784
          %v12786 = vpop.f32.mrf.mxu0
          %12787 = vdwg.mxu0
          %12788 = vmatpush.bf16.msra.mxu0 %v11150
          %12789 = vmatpush.bf16.msra.mxu0 %v11142
          %12790 = vmatpush.bf16.msra.mxu0 %v11134
          %12791 = vmatpush.bf16.msra.mxu0 %v11126
          %12792 = vmatpush.bf16.msra.mxu0 %v11118
          %12793 = vmatpush.bf16.msra.mxu0 %v11110
          %12794 = vmatpush.bf16.msra.mxu0 %v11102
          %12795 = vmatpush.bf16.msra.mxu0 %v11094
          %12796 = vmatmul.bf16.gmra.mxu0 %v8392
          %v12797 = vpop.f32.mrf.mxu0
          %v12798 = vadd.f32 %v12785, %v12797
          %v12799 = vpop.f32.mrf.mxu0
          %12800 = vdwg.mxu0
          %12801 = vmatpush.bf16.msra.mxu0 %v11214
          %12802 = vmatpush.bf16.msra.mxu0 %v11206
          %12803 = vmatpush.bf16.msra.mxu0 %v11198
          %12804 = vmatpush.bf16.msra.mxu0 %v11190
          %12805 = vmatpush.bf16.msra.mxu0 %v11182
          %12806 = vmatpush.bf16.msra.mxu0 %v11174
          %12807 = vmatpush.bf16.msra.mxu0 %v11166
          %12808 = vmatpush.bf16.msra.mxu0 %v11158
          %12809 = vmatmul.bf16.gmra.mxu0 %v8393
          %v12810 = vpop.f32.mrf.mxu0
          %v12811 = vadd.f32 %v12798, %v12810
          %v12812 = vpop.f32.mrf.mxu0
          %12813 = vdwg.mxu0
          %12814 = vmatpush.bf16.msra.mxu0 %v11278
          %12815 = vmatpush.bf16.msra.mxu0 %v11270
          %12816 = vmatpush.bf16.msra.mxu0 %v11262
          %12817 = vmatpush.bf16.msra.mxu0 %v11254
          %12818 = vmatpush.bf16.msra.mxu0 %v11246
          %12819 = vmatpush.bf16.msra.mxu0 %v11238
          %12820 = vmatpush.bf16.msra.mxu0 %v11230
          %12821 = vmatpush.bf16.msra.mxu0 %v11222
          %12822 = vmatmul.bf16.gmra.mxu0 %v8394
          %v12823 = vpop.f32.mrf.mxu0
          %v12824 = vadd.f32 %v12811, %v12823
          %v12825 = vpop.f32.mrf.mxu0
          %12826 = vdwg.mxu0
          %12827 = vmatpush.bf16.msra.mxu0 %v11342
          %12828 = vmatpush.bf16.msra.mxu0 %v11334
          %12829 = vmatpush.bf16.msra.mxu0 %v11326
          %12830 = vmatpush.bf16.msra.mxu0 %v11318
          %12831 = vmatpush.bf16.msra.mxu0 %v11310
          %12832 = vmatpush.bf16.msra.mxu0 %v11302
          %12833 = vmatpush.bf16.msra.mxu0 %v11294
          %12834 = vmatpush.bf16.msra.mxu0 %v11286
          %12835 = vmatmul.bf16.gmra.mxu0 %v8395
          %v12836 = vpop.f32.mrf.mxu0
          %v12837 = vadd.f32 %v12824, %v12836
          %v12838 = vpop.f32.mrf.mxu0
          %12839 = vdwg.mxu0
          %12840 = vmatpush.bf16.msra.mxu0 %v11406
          %12841 = vmatpush.bf16.msra.mxu0 %v11398
          %12842 = vmatpush.bf16.msra.mxu0 %v11390
          %12843 = vmatpush.bf16.msra.mxu0 %v11382
          %12844 = vmatpush.bf16.msra.mxu0 %v11374
          %12845 = vmatpush.bf16.msra.mxu0 %v11366
          %12846 = vmatpush.bf16.msra.mxu0 %v11358
          %12847 = vmatpush.bf16.msra.mxu0 %v11350
          %12848 = vmatmul.bf16.gmra.mxu0 %v8396
          %v12849 = vpop.f32.mrf.mxu0
          %v12850 = vadd.f32 %v12837, %v12849
          %v12851 = vpop.f32.mrf.mxu0
          %12852 = vdwg.mxu0
          %12853 = vmatpush.bf16.msra.mxu0 %v11470
          %12854 = vmatpush.bf16.msra.mxu0 %v11462
          %12855 = vmatpush.bf16.msra.mxu0 %v11454
          %12856 = vmatpush.bf16.msra.mxu0 %v11446
          %12857 = vmatpush.bf16.msra.mxu0 %v11438
          %12858 = vmatpush.bf16.msra.mxu0 %v11430
          %12859 = vmatpush.bf16.msra.mxu0 %v11422
          %12860 = vmatpush.bf16.msra.mxu0 %v11414
          %12861 = vmatmul.bf16.gmra.mxu0 %v8397
          %v12862 = vpop.f32.mrf.mxu0
          %v12863 = vadd.f32 %v12850, %v12862
          %v12864 = vpop.f32.mrf.mxu0
          %12865 = vdwg.mxu0
          %12866 = vmatpush.bf16.msra.mxu0 %v11534
          %12867 = vmatpush.bf16.msra.mxu0 %v11526
          %12868 = vmatpush.bf16.msra.mxu0 %v11518
          %12869 = vmatpush.bf16.msra.mxu0 %v11510
          %12870 = vmatpush.bf16.msra.mxu0 %v11502
          %12871 = vmatpush.bf16.msra.mxu0 %v11494
          %12872 = vmatpush.bf16.msra.mxu0 %v11486
          %12873 = vmatpush.bf16.msra.mxu0 %v11478
          %12874 = vmatmul.bf16.gmra.mxu0 %v8398
          %v12875 = vpop.f32.mrf.mxu0
          %v12876 = vadd.f32 %v12863, %v12875
          %v12877 = vpop.f32.mrf.mxu0
          %12878 = vdwg.mxu0
          %12879 = vmatpush.bf16.msra.mxu0 %v11598
          %12880 = vmatpush.bf16.msra.mxu0 %v11590
          %12881 = vmatpush.bf16.msra.mxu0 %v11582
          %12882 = vmatpush.bf16.msra.mxu0 %v11574
          %12883 = vmatpush.bf16.msra.mxu0 %v11566
          %12884 = vmatpush.bf16.msra.mxu0 %v11558
          %12885 = vmatpush.bf16.msra.mxu0 %v11550
          %12886 = vmatpush.bf16.msra.mxu0 %v11542
          %12887 = vmatmul.bf16.gmra.mxu0 %v8399
          %v12888 = vpop.f32.mrf.mxu0
          %v12889 = vadd.f32 %v12876, %v12888
          %v12890 = vpop.f32.mrf.mxu0
          %12891 = vdwg.mxu0
          %12892 = vmatpush.bf16.msra.mxu0 %v11023
          %12893 = vmatpush.bf16.msra.mxu0 %v11015
          %12894 = vmatpush.bf16.msra.mxu0 %v11007
          %12895 = vmatpush.bf16.msra.mxu0 %v10999
          %12896 = vmatpush.bf16.msra.mxu0 %v10991
          %12897 = vmatpush.bf16.msra.mxu0 %v10983
          %12898 = vmatpush.bf16.msra.mxu0 %v10975
          %12899 = vmatpush.bf16.msra.mxu0 %v10967
          %12900 = vmatmul.bf16.gmra.mxu0 %v8390
          %v12901 = vpop.f32.mrf.mxu0
          %v12902 = vadd.f32 0.0, %v12901
          %v12903 = vpop.f32.mrf.mxu0
          %12904 = vdwg.mxu0
          %12905 = vmatpush.bf16.msra.mxu0 %v11087
          %12906 = vmatpush.bf16.msra.mxu0 %v11079
          %12907 = vmatpush.bf16.msra.mxu0 %v11071
          %12908 = vmatpush.bf16.msra.mxu0 %v11063
          %12909 = vmatpush.bf16.msra.mxu0 %v11055
          %12910 = vmatpush.bf16.msra.mxu0 %v11047
          %12911 = vmatpush.bf16.msra.mxu0 %v11039
          %12912 = vmatpush.bf16.msra.mxu0 %v11031
          %12913 = vmatmul.bf16.gmra.mxu0 %v8391
          %v12914 = vpop.f32.mrf.mxu0
          %v12915 = vadd.f32 %v12902, %v12914
          %v12916 = vpop.f32.mrf.mxu0
          %12917 = vdwg.mxu0
          %12918 = vmatpush.bf16.msra.mxu0 %v11151
          %12919 = vmatpush.bf16.msra.mxu0 %v11143
          %12920 = vmatpush.bf16.msra.mxu0 %v11135
          %12921 = vmatpush.bf16.msra.mxu0 %v11127
          %12922 = vmatpush.bf16.msra.mxu0 %v11119
          %12923 = vmatpush.bf16.msra.mxu0 %v11111
          %12924 = vmatpush.bf16.msra.mxu0 %v11103
          %12925 = vmatpush.bf16.msra.mxu0 %v11095
          %12926 = vmatmul.bf16.gmra.mxu0 %v8392
          %v12927 = vpop.f32.mrf.mxu0
          %v12928 = vadd.f32 %v12915, %v12927
          %v12929 = vpop.f32.mrf.mxu0
          %12930 = vdwg.mxu0
          %12931 = vmatpush.bf16.msra.mxu0 %v11215
          %12932 = vmatpush.bf16.msra.mxu0 %v11207
          %12933 = vmatpush.bf16.msra.mxu0 %v11199
          %12934 = vmatpush.bf16.msra.mxu0 %v11191
          %12935 = vmatpush.bf16.msra.mxu0 %v11183
          %12936 = vmatpush.bf16.msra.mxu0 %v11175
          %12937 = vmatpush.bf16.msra.mxu0 %v11167
          %12938 = vmatpush.bf16.msra.mxu0 %v11159
          %12939 = vmatmul.bf16.gmra.mxu0 %v8393
          %v12940 = vpop.f32.mrf.mxu0
          %v12941 = vadd.f32 %v12928, %v12940
          %v12942 = vpop.f32.mrf.mxu0
          %12943 = vdwg.mxu0
          %12944 = vmatpush.bf16.msra.mxu0 %v11279
          %12945 = vmatpush.bf16.msra.mxu0 %v11271
          %12946 = vmatpush.bf16.msra.mxu0 %v11263
          %12947 = vmatpush.bf16.msra.mxu0 %v11255
          %12948 = vmatpush.bf16.msra.mxu0 %v11247
          %12949 = vmatpush.bf16.msra.mxu0 %v11239
          %12950 = vmatpush.bf16.msra.mxu0 %v11231
          %12951 = vmatpush.bf16.msra.mxu0 %v11223
          %12952 = vmatmul.bf16.gmra.mxu0 %v8394
          %v12953 = vpop.f32.mrf.mxu0
          %v12954 = vadd.f32 %v12941, %v12953
          %v12955 = vpop.f32.mrf.mxu0
          %12956 = vdwg.mxu0
          %12957 = vmatpush.bf16.msra.mxu0 %v11343
          %12958 = vmatpush.bf16.msra.mxu0 %v11335
          %12959 = vmatpush.bf16.msra.mxu0 %v11327
          %12960 = vmatpush.bf16.msra.mxu0 %v11319
          %12961 = vmatpush.bf16.msra.mxu0 %v11311
          %12962 = vmatpush.bf16.msra.mxu0 %v11303
          %12963 = vmatpush.bf16.msra.mxu0 %v11295
          %12964 = vmatpush.bf16.msra.mxu0 %v11287
          %12965 = vmatmul.bf16.gmra.mxu0 %v8395
          %v12966 = vpop.f32.mrf.mxu0
          %v12967 = vadd.f32 %v12954, %v12966
          %v12968 = vpop.f32.mrf.mxu0
          %12969 = vdwg.mxu0
          %12970 = vmatpush.bf16.msra.mxu0 %v11407
          %12971 = vmatpush.bf16.msra.mxu0 %v11399
          %12972 = vmatpush.bf16.msra.mxu0 %v11391
          %12973 = vmatpush.bf16.msra.mxu0 %v11383
          %12974 = vmatpush.bf16.msra.mxu0 %v11375
          %12975 = vmatpush.bf16.msra.mxu0 %v11367
          %12976 = vmatpush.bf16.msra.mxu0 %v11359
          %12977 = vmatpush.bf16.msra.mxu0 %v11351
          %12978 = vmatmul.bf16.gmra.mxu0 %v8396
          %v12979 = vpop.f32.mrf.mxu0
          %v12980 = vadd.f32 %v12967, %v12979
          %v12981 = vpop.f32.mrf.mxu0
          %12982 = vdwg.mxu0
          %12983 = vmatpush.bf16.msra.mxu0 %v11471
          %12984 = vmatpush.bf16.msra.mxu0 %v11463
          %12985 = vmatpush.bf16.msra.mxu0 %v11455
          %12986 = vmatpush.bf16.msra.mxu0 %v11447
          %12987 = vmatpush.bf16.msra.mxu0 %v11439
          %12988 = vmatpush.bf16.msra.mxu0 %v11431
          %12989 = vmatpush.bf16.msra.mxu0 %v11423
          %12990 = vmatpush.bf16.msra.mxu0 %v11415
          %12991 = vmatmul.bf16.gmra.mxu0 %v8397
          %v12992 = vpop.f32.mrf.mxu0
          %v12993 = vadd.f32 %v12980, %v12992
          %v12994 = vpop.f32.mrf.mxu0
          %12995 = vdwg.mxu0
          %12996 = vmatpush.bf16.msra.mxu0 %v11535
          %12997 = vmatpush.bf16.msra.mxu0 %v11527
          %12998 = vmatpush.bf16.msra.mxu0 %v11519
          %12999 = vmatpush.bf16.msra.mxu0 %v11511
          %13000 = vmatpush.bf16.msra.mxu0 %v11503
          %13001 = vmatpush.bf16.msra.mxu0 %v11495
          %13002 = vmatpush.bf16.msra.mxu0 %v11487
          %13003 = vmatpush.bf16.msra.mxu0 %v11479
          %13004 = vmatmul.bf16.gmra.mxu0 %v8398
          %v13005 = vpop.f32.mrf.mxu0
          %v13006 = vadd.f32 %v12993, %v13005
          %v13007 = vpop.f32.mrf.mxu0
          %13008 = vdwg.mxu0
          %13009 = vmatpush.bf16.msra.mxu0 %v11599
          %13010 = vmatpush.bf16.msra.mxu0 %v11591
          %13011 = vmatpush.bf16.msra.mxu0 %v11583
          %13012 = vmatpush.bf16.msra.mxu0 %v11575
          %13013 = vmatpush.bf16.msra.mxu0 %v11567
          %13014 = vmatpush.bf16.msra.mxu0 %v11559
          %13015 = vmatpush.bf16.msra.mxu0 %v11551
          %13016 = vmatpush.bf16.msra.mxu0 %v11543
          %13017 = vmatmul.bf16.gmra.mxu0 %v8399
          %v13018 = vpop.f32.mrf.mxu0
          %v13019 = vadd.f32 %v13006, %v13018
          %v13020 = vpop.f32.mrf.mxu0
          %13021 = vdwg.mxu0
          %13022 = vmatpush.bf16.msra.mxu0 %v11024
          %13023 = vmatpush.bf16.msra.mxu0 %v11016
          %13024 = vmatpush.bf16.msra.mxu0 %v11008
          %13025 = vmatpush.bf16.msra.mxu0 %v11000
          %13026 = vmatpush.bf16.msra.mxu0 %v10992
          %13027 = vmatpush.bf16.msra.mxu0 %v10984
          %13028 = vmatpush.bf16.msra.mxu0 %v10976
          %13029 = vmatpush.bf16.msra.mxu0 %v10968
          %13030 = vmatmul.bf16.gmra.mxu0 %v8390
          %v13031 = vpop.f32.mrf.mxu0
          %v13032 = vadd.f32 0.0, %v13031
          %v13033 = vpop.f32.mrf.mxu0
          %13034 = vdwg.mxu0
          %13035 = vmatpush.bf16.msra.mxu0 %v11088
          %13036 = vmatpush.bf16.msra.mxu0 %v11080
          %13037 = vmatpush.bf16.msra.mxu0 %v11072
          %13038 = vmatpush.bf16.msra.mxu0 %v11064
          %13039 = vmatpush.bf16.msra.mxu0 %v11056
          %13040 = vmatpush.bf16.msra.mxu0 %v11048
          %13041 = vmatpush.bf16.msra.mxu0 %v11040
          %13042 = vmatpush.bf16.msra.mxu0 %v11032
          %13043 = vmatmul.bf16.gmra.mxu0 %v8391
          %v13044 = vpop.f32.mrf.mxu0
          %v13045 = vadd.f32 %v13032, %v13044
          %v13046 = vpop.f32.mrf.mxu0
          %13047 = vdwg.mxu0
          %13048 = vmatpush.bf16.msra.mxu0 %v11152
          %13049 = vmatpush.bf16.msra.mxu0 %v11144
          %13050 = vmatpush.bf16.msra.mxu0 %v11136
          %13051 = vmatpush.bf16.msra.mxu0 %v11128
          %13052 = vmatpush.bf16.msra.mxu0 %v11120
          %13053 = vmatpush.bf16.msra.mxu0 %v11112
          %13054 = vmatpush.bf16.msra.mxu0 %v11104
          %13055 = vmatpush.bf16.msra.mxu0 %v11096
          %13056 = vmatmul.bf16.gmra.mxu0 %v8392
          %v13057 = vpop.f32.mrf.mxu0
          %v13058 = vadd.f32 %v13045, %v13057
          %v13059 = vpop.f32.mrf.mxu0
          %13060 = vdwg.mxu0
          %13061 = vmatpush.bf16.msra.mxu0 %v11216
          %13062 = vmatpush.bf16.msra.mxu0 %v11208
          %13063 = vmatpush.bf16.msra.mxu0 %v11200
          %13064 = vmatpush.bf16.msra.mxu0 %v11192
          %13065 = vmatpush.bf16.msra.mxu0 %v11184
          %13066 = vmatpush.bf16.msra.mxu0 %v11176
          %13067 = vmatpush.bf16.msra.mxu0 %v11168
          %13068 = vmatpush.bf16.msra.mxu0 %v11160
          %13069 = vmatmul.bf16.gmra.mxu0 %v8393
          %v13070 = vpop.f32.mrf.mxu0
          %v13071 = vadd.f32 %v13058, %v13070
          %v13072 = vpop.f32.mrf.mxu0
          %13073 = vdwg.mxu0
          %13074 = vmatpush.bf16.msra.mxu0 %v11280
          %13075 = vmatpush.bf16.msra.mxu0 %v11272
          %13076 = vmatpush.bf16.msra.mxu0 %v11264
          %13077 = vmatpush.bf16.msra.mxu0 %v11256
          %13078 = vmatpush.bf16.msra.mxu0 %v11248
          %13079 = vmatpush.bf16.msra.mxu0 %v11240
          %13080 = vmatpush.bf16.msra.mxu0 %v11232
          %13081 = vmatpush.bf16.msra.mxu0 %v11224
          %13082 = vmatmul.bf16.gmra.mxu0 %v8394
          %v13083 = vpop.f32.mrf.mxu0
          %v13084 = vadd.f32 %v13071, %v13083
          %v13085 = vpop.f32.mrf.mxu0
          %13086 = vdwg.mxu0
          %13087 = vmatpush.bf16.msra.mxu0 %v11344
          %13088 = vmatpush.bf16.msra.mxu0 %v11336
          %13089 = vmatpush.bf16.msra.mxu0 %v11328
          %13090 = vmatpush.bf16.msra.mxu0 %v11320
          %13091 = vmatpush.bf16.msra.mxu0 %v11312
          %13092 = vmatpush.bf16.msra.mxu0 %v11304
          %13093 = vmatpush.bf16.msra.mxu0 %v11296
          %13094 = vmatpush.bf16.msra.mxu0 %v11288
          %13095 = vmatmul.bf16.gmra.mxu0 %v8395
          %v13096 = vpop.f32.mrf.mxu0
          %v13097 = vadd.f32 %v13084, %v13096
          %v13098 = vpop.f32.mrf.mxu0
          %13099 = vdwg.mxu0
          %13100 = vmatpush.bf16.msra.mxu0 %v11408
          %13101 = vmatpush.bf16.msra.mxu0 %v11400
          %13102 = vmatpush.bf16.msra.mxu0 %v11392
          %13103 = vmatpush.bf16.msra.mxu0 %v11384
          %13104 = vmatpush.bf16.msra.mxu0 %v11376
          %13105 = vmatpush.bf16.msra.mxu0 %v11368
          %13106 = vmatpush.bf16.msra.mxu0 %v11360
          %13107 = vmatpush.bf16.msra.mxu0 %v11352
          %13108 = vmatmul.bf16.gmra.mxu0 %v8396
          %v13109 = vpop.f32.mrf.mxu0
          %v13110 = vadd.f32 %v13097, %v13109
          %v13111 = vpop.f32.mrf.mxu0
          %13112 = vdwg.mxu0
          %13113 = vmatpush.bf16.msra.mxu0 %v11472
          %13114 = vmatpush.bf16.msra.mxu0 %v11464
          %13115 = vmatpush.bf16.msra.mxu0 %v11456
          %13116 = vmatpush.bf16.msra.mxu0 %v11448
          %13117 = vmatpush.bf16.msra.mxu0 %v11440
          %13118 = vmatpush.bf16.msra.mxu0 %v11432
          %13119 = vmatpush.bf16.msra.mxu0 %v11424
          %13120 = vmatpush.bf16.msra.mxu0 %v11416
          %13121 = vmatmul.bf16.gmra.mxu0 %v8397
          %v13122 = vpop.f32.mrf.mxu0
          %v13123 = vadd.f32 %v13110, %v13122
          %v13124 = vpop.f32.mrf.mxu0
          %13125 = vdwg.mxu0
          %13126 = vmatpush.bf16.msra.mxu0 %v11536
          %13127 = vmatpush.bf16.msra.mxu0 %v11528
          %13128 = vmatpush.bf16.msra.mxu0 %v11520
          %13129 = vmatpush.bf16.msra.mxu0 %v11512
          %13130 = vmatpush.bf16.msra.mxu0 %v11504
          %13131 = vmatpush.bf16.msra.mxu0 %v11496
          %13132 = vmatpush.bf16.msra.mxu0 %v11488
          %13133 = vmatpush.bf16.msra.mxu0 %v11480
          %13134 = vmatmul.bf16.gmra.mxu0 %v8398
          %v13135 = vpop.f32.mrf.mxu0
          %v13136 = vadd.f32 %v13123, %v13135
          %v13137 = vpop.f32.mrf.mxu0
          %13138 = vdwg.mxu0
          %13139 = vmatpush.bf16.msra.mxu0 %v11600
          %13140 = vmatpush.bf16.msra.mxu0 %v11592
          %13141 = vmatpush.bf16.msra.mxu0 %v11584
          %13142 = vmatpush.bf16.msra.mxu0 %v11576
          %13143 = vmatpush.bf16.msra.mxu0 %v11568
          %13144 = vmatpush.bf16.msra.mxu0 %v11560
          %13145 = vmatpush.bf16.msra.mxu0 %v11552
          %13146 = vmatpush.bf16.msra.mxu0 %v11544
          %13147 = vmatmul.bf16.gmra.mxu0 %v8399
          %v13148 = vpop.f32.mrf.mxu0
          %v13149 = vadd.f32 %v13136, %v13148
          %v13150 = vpop.f32.mrf.mxu0
          %13151 = vdwg.mxu0
          %13152 = vmatpush.bf16.msra.mxu0 %v11025
          %13153 = vmatpush.bf16.msra.mxu0 %v11017
          %13154 = vmatpush.bf16.msra.mxu0 %v11009
          %13155 = vmatpush.bf16.msra.mxu0 %v11001
          %13156 = vmatpush.bf16.msra.mxu0 %v10993
          %13157 = vmatpush.bf16.msra.mxu0 %v10985
          %13158 = vmatpush.bf16.msra.mxu0 %v10977
          %13159 = vmatpush.bf16.msra.mxu0 %v10969
          %13160 = vmatmul.bf16.gmra.mxu0 %v8390
          %v13161 = vpop.f32.mrf.mxu0
          %v13162 = vadd.f32 0.0, %v13161
          %v13163 = vpop.f32.mrf.mxu0
          %13164 = vdwg.mxu0
          %13165 = vmatpush.bf16.msra.mxu0 %v11089
          %13166 = vmatpush.bf16.msra.mxu0 %v11081
          %13167 = vmatpush.bf16.msra.mxu0 %v11073
          %13168 = vmatpush.bf16.msra.mxu0 %v11065
          %13169 = vmatpush.bf16.msra.mxu0 %v11057
          %13170 = vmatpush.bf16.msra.mxu0 %v11049
          %13171 = vmatpush.bf16.msra.mxu0 %v11041
          %13172 = vmatpush.bf16.msra.mxu0 %v11033
          %13173 = vmatmul.bf16.gmra.mxu0 %v8391
          %v13174 = vpop.f32.mrf.mxu0
          %v13175 = vadd.f32 %v13162, %v13174
          %v13176 = vpop.f32.mrf.mxu0
          %13177 = vdwg.mxu0
          %13178 = vmatpush.bf16.msra.mxu0 %v11153
          %13179 = vmatpush.bf16.msra.mxu0 %v11145
          %13180 = vmatpush.bf16.msra.mxu0 %v11137
          %13181 = vmatpush.bf16.msra.mxu0 %v11129
          %13182 = vmatpush.bf16.msra.mxu0 %v11121
          %13183 = vmatpush.bf16.msra.mxu0 %v11113
          %13184 = vmatpush.bf16.msra.mxu0 %v11105
          %13185 = vmatpush.bf16.msra.mxu0 %v11097
          %13186 = vmatmul.bf16.gmra.mxu0 %v8392
          %v13187 = vpop.f32.mrf.mxu0
          %v13188 = vadd.f32 %v13175, %v13187
          %v13189 = vpop.f32.mrf.mxu0
          %13190 = vdwg.mxu0
          %13191 = vmatpush.bf16.msra.mxu0 %v11217
          %13192 = vmatpush.bf16.msra.mxu0 %v11209
          %13193 = vmatpush.bf16.msra.mxu0 %v11201
          %13194 = vmatpush.bf16.msra.mxu0 %v11193
          %13195 = vmatpush.bf16.msra.mxu0 %v11185
          %13196 = vmatpush.bf16.msra.mxu0 %v11177
          %13197 = vmatpush.bf16.msra.mxu0 %v11169
          %13198 = vmatpush.bf16.msra.mxu0 %v11161
          %13199 = vmatmul.bf16.gmra.mxu0 %v8393
          %v13200 = vpop.f32.mrf.mxu0
          %v13201 = vadd.f32 %v13188, %v13200
          %v13202 = vpop.f32.mrf.mxu0
          %13203 = vdwg.mxu0
          %13204 = vmatpush.bf16.msra.mxu0 %v11281
          %13205 = vmatpush.bf16.msra.mxu0 %v11273
          %13206 = vmatpush.bf16.msra.mxu0 %v11265
          %13207 = vmatpush.bf16.msra.mxu0 %v11257
          %13208 = vmatpush.bf16.msra.mxu0 %v11249
          %13209 = vmatpush.bf16.msra.mxu0 %v11241
          %13210 = vmatpush.bf16.msra.mxu0 %v11233
          %13211 = vmatpush.bf16.msra.mxu0 %v11225
          %13212 = vmatmul.bf16.gmra.mxu0 %v8394
          %v13213 = vpop.f32.mrf.mxu0
          %v13214 = vadd.f32 %v13201, %v13213
          %v13215 = vpop.f32.mrf.mxu0
          %13216 = vdwg.mxu0
          %13217 = vmatpush.bf16.msra.mxu0 %v11345
          %13218 = vmatpush.bf16.msra.mxu0 %v11337
          %13219 = vmatpush.bf16.msra.mxu0 %v11329
          %13220 = vmatpush.bf16.msra.mxu0 %v11321
          %13221 = vmatpush.bf16.msra.mxu0 %v11313
          %13222 = vmatpush.bf16.msra.mxu0 %v11305
          %13223 = vmatpush.bf16.msra.mxu0 %v11297
          %13224 = vmatpush.bf16.msra.mxu0 %v11289
          %13225 = vmatmul.bf16.gmra.mxu0 %v8395
          %v13226 = vpop.f32.mrf.mxu0
          %v13227 = vadd.f32 %v13214, %v13226
          %v13228 = vpop.f32.mrf.mxu0
          %13229 = vdwg.mxu0
          %13230 = vmatpush.bf16.msra.mxu0 %v11409
          %13231 = vmatpush.bf16.msra.mxu0 %v11401
          %13232 = vmatpush.bf16.msra.mxu0 %v11393
          %13233 = vmatpush.bf16.msra.mxu0 %v11385
          %13234 = vmatpush.bf16.msra.mxu0 %v11377
          %13235 = vmatpush.bf16.msra.mxu0 %v11369
          %13236 = vmatpush.bf16.msra.mxu0 %v11361
          %13237 = vmatpush.bf16.msra.mxu0 %v11353
          %13238 = vmatmul.bf16.gmra.mxu0 %v8396
          %v13239 = vpop.f32.mrf.mxu0
          %v13240 = vadd.f32 %v13227, %v13239
          %v13241 = vpop.f32.mrf.mxu0
          %13242 = vdwg.mxu0
          %13243 = vmatpush.bf16.msra.mxu0 %v11473
          %13244 = vmatpush.bf16.msra.mxu0 %v11465
          %13245 = vmatpush.bf16.msra.mxu0 %v11457
          %13246 = vmatpush.bf16.msra.mxu0 %v11449
          %13247 = vmatpush.bf16.msra.mxu0 %v11441
          %13248 = vmatpush.bf16.msra.mxu0 %v11433
          %13249 = vmatpush.bf16.msra.mxu0 %v11425
          %13250 = vmatpush.bf16.msra.mxu0 %v11417
          %13251 = vmatmul.bf16.gmra.mxu0 %v8397
          %v13252 = vpop.f32.mrf.mxu0
          %v13253 = vadd.f32 %v13240, %v13252
          %v13254 = vpop.f32.mrf.mxu0
          %13255 = vdwg.mxu0
          %13256 = vmatpush.bf16.msra.mxu0 %v11537
          %13257 = vmatpush.bf16.msra.mxu0 %v11529
          %13258 = vmatpush.bf16.msra.mxu0 %v11521
          %13259 = vmatpush.bf16.msra.mxu0 %v11513
          %13260 = vmatpush.bf16.msra.mxu0 %v11505
          %13261 = vmatpush.bf16.msra.mxu0 %v11497
          %13262 = vmatpush.bf16.msra.mxu0 %v11489
          %13263 = vmatpush.bf16.msra.mxu0 %v11481
          %13264 = vmatmul.bf16.gmra.mxu0 %v8398
          %v13265 = vpop.f32.mrf.mxu0
          %v13266 = vadd.f32 %v13253, %v13265
          %v13267 = vpop.f32.mrf.mxu0
          %13268 = vdwg.mxu0
          %13269 = vmatpush.bf16.msra.mxu0 %v11601
          %13270 = vmatpush.bf16.msra.mxu0 %v11593
          %13271 = vmatpush.bf16.msra.mxu0 %v11585
          %13272 = vmatpush.bf16.msra.mxu0 %v11577
          %13273 = vmatpush.bf16.msra.mxu0 %v11569
          %13274 = vmatpush.bf16.msra.mxu0 %v11561
          %13275 = vmatpush.bf16.msra.mxu0 %v11553
          %13276 = vmatpush.bf16.msra.mxu0 %v11545
          %13277 = vmatmul.bf16.gmra.mxu0 %v8399
          %v13278 = vpop.f32.mrf.mxu0
          %v13279 = vadd.f32 %v13266, %v13278
          %v13280 = vpop.f32.mrf.mxu0
          %13281 = vdwg.mxu0
          %v13290 = vrot.slane %v12499, 6
          %v13291 = vrot.slane %v12629, 4
          %v13292 = vrot.slane %v12759, 2
          %v13293 = vrot.slane %v13019, 6
          %v13294 = vrot.slane %v13149, 4
          %v13295 = vrot.slane %v13279, 2
          %v13296 = vsel %vm8338, %v12369, %v13290
          %v13297 = vsel %vm8340, %v13291, %v13292
          %v13298 = vsel %vm8342, %v13296, %v13297
          %v13299 = vsel %vm8338, %v12889, %v13293
          %v13300 = vsel %vm8340, %v13294, %v13295
          %v13301 = vsel %vm8342, %v13299, %v13300
          %v13304 = vadd.f32 %v8400, %v13298
          %v13305 = vadd.f32 %v8401, %v13301
          %v13306 = vld [vmem:[%s382] sm:$0xff]
          %v13308 = vperm.slane %v13306, 0
          %v13309 = vperm.slane %v13306, 1
          %v13310 = vperm.slane %v13306, 2
          %v13311 = vperm.slane %v13306, 3
          %v13312 = vperm.slane %v13306, 4
          %v13313 = vperm.slane %v13306, 5
          %v13314 = vperm.slane %v13306, 6
          %v13315 = vperm.slane %v13306, 7
          %v13316 = vrot.slane %v13309, 6
          %v13317 = vrot.slane %v13310, 4
          %v13318 = vrot.slane %v13311, 2
          %v13319 = vrot.slane %v13313, 6
          %v13320 = vrot.slane %v13314, 4
          %v13321 = vrot.slane %v13315, 2
          %v13322 = vsel %vm8338, %v13308, %v13316
          %v13323 = vsel %vm8340, %v13317, %v13318
          %v13324 = vsel %vm8342, %v13322, %v13323
          %v13325 = vsel %vm8338, %v13312, %v13319
          %v13326 = vsel %vm8340, %v13320, %v13321
          %v13327 = vsel %vm8342, %v13325, %v13326
          %v13330 = vadd.f32 %v13304, %v13324
          %v13331 = vadd.f32 %v13305, %v13327
          %v13332 = vmax.f32 %v13330, 0.0
          %v13333 = vmax.f32 %v13331, 0.0
          %v13334 = vld [vmem:[%s441] sm:$0xff]
          %v13335 = vld [vmem:[%s441 + $0x8] sm:$0xff]
          %v13336 = vld [vmem:[%s441 + $0x10] sm:$0xff]
          %v13337 = vld [vmem:[%s441 + $0x18] sm:$0xff]
          %v13338 = vld [vmem:[%s441 + $0x20] sm:$0xff]
          %v13339 = vld [vmem:[%s441 + $0x28] sm:$0xff]
          %v13340 = vld [vmem:[%s441 + $0x30] sm:$0xff]
          %v13341 = vld [vmem:[%s441 + $0x38] sm:$0xff]
          %v13342 = vld [vmem:[%s441 + $0x40] sm:$0xff]
          %v13343 = vld [vmem:[%s441 + $0x48] sm:$0xff]
          %v13344 = vld [vmem:[%s441 + $0x50] sm:$0xff]
          %v13345 = vld [vmem:[%s441 + $0x58] sm:$0xff]
          %v13346 = vld [vmem:[%s441 + $0x60] sm:$0xff]
          %v13347 = vld [vmem:[%s441 + $0x68] sm:$0xff]
          %v13348 = vld [vmem:[%s441 + $0x70] sm:$0xff]
          %v13349 = vld [vmem:[%s441 + $0x78] sm:$0xff]
          %v13350 = vld [vmem:[%s441 + $0x80] sm:$0xff]
          %v13351 = vld [vmem:[%s441 + $0x88] sm:$0xff]
          %v13352 = vld [vmem:[%s441 + $0x90] sm:$0xff]
          %v13353 = vld [vmem:[%s441 + $0x98] sm:$0xff]
          %v13354 = vld [vmem:[%s441 + $0xa0] sm:$0xff]
          %v13355 = vld [vmem:[%s441 + $0xa8] sm:$0xff]
          %v13356 = vld [vmem:[%s441 + $0xb0] sm:$0xff]
          %v13357 = vld [vmem:[%s441 + $0xb8] sm:$0xff]
          %v13358 = vld [vmem:[%s441 + $0xc0] sm:$0xff]
          %v13359 = vld [vmem:[%s441 + $0xc8] sm:$0xff]
          %v13360 = vld [vmem:[%s441 + $0xd0] sm:$0xff]
          %v13361 = vld [vmem:[%s441 + $0xd8] sm:$0xff]
          %v13362 = vld [vmem:[%s441 + $0xe0] sm:$0xff]
          %v13363 = vld [vmem:[%s441 + $0xe8] sm:$0xff]
          %v13364 = vld [vmem:[%s441 + $0xf0] sm:$0xff]
          %v13365 = vld [vmem:[%s441 + $0xf8] sm:$0xff]
          %v13366 = vld [vmem:[%s441 + $0x100] sm:$0xff]
          %v13367 = vld [vmem:[%s441 + $0x108] sm:$0xff]
          %v13368 = vld [vmem:[%s441 + $0x110] sm:$0xff]
          %v13369 = vld [vmem:[%s441 + $0x118] sm:$0xff]
          %v13370 = vld [vmem:[%s441 + $0x120] sm:$0xff]
          %v13371 = vld [vmem:[%s441 + $0x128] sm:$0xff]
          %v13372 = vld [vmem:[%s441 + $0x130] sm:$0xff]
          %v13373 = vld [vmem:[%s441 + $0x138] sm:$0xff]
          %v13374 = vld [vmem:[%s441 + $0x140] sm:$0xff]
          %v13375 = vld [vmem:[%s441 + $0x148] sm:$0xff]
          %v13376 = vld [vmem:[%s441 + $0x150] sm:$0xff]
          %v13377 = vld [vmem:[%s441 + $0x158] sm:$0xff]
          %v13378 = vld [vmem:[%s441 + $0x160] sm:$0xff]
          %v13379 = vld [vmem:[%s441 + $0x168] sm:$0xff]
          %v13380 = vld [vmem:[%s441 + $0x170] sm:$0xff]
          %v13381 = vld [vmem:[%s441 + $0x178] sm:$0xff]
          %v13382 = vld [vmem:[%s441 + $0x180] sm:$0xff]
          %v13383 = vld [vmem:[%s441 + $0x188] sm:$0xff]
          %v13384 = vld [vmem:[%s441 + $0x190] sm:$0xff]
          %v13385 = vld [vmem:[%s441 + $0x198] sm:$0xff]
          %v13386 = vld [vmem:[%s441 + $0x1a0] sm:$0xff]
          %v13387 = vld [vmem:[%s441 + $0x1a8] sm:$0xff]
          %v13388 = vld [vmem:[%s441 + $0x1b0] sm:$0xff]
          %v13389 = vld [vmem:[%s441 + $0x1b8] sm:$0xff]
          %v13390 = vld [vmem:[%s441 + $0x1c0] sm:$0xff]
          %v13391 = vld [vmem:[%s441 + $0x1c8] sm:$0xff]
          %v13392 = vld [vmem:[%s441 + $0x1d0] sm:$0xff]
          %v13393 = vld [vmem:[%s441 + $0x1d8] sm:$0xff]
          %v13394 = vld [vmem:[%s441 + $0x1e0] sm:$0xff]
          %v13395 = vld [vmem:[%s441 + $0x1e8] sm:$0xff]
          %v13396 = vld [vmem:[%s441 + $0x1f0] sm:$0xff]
          %v13397 = vld [vmem:[%s441 + $0x1f8] sm:$0xff]
          %v13398 = vld [vmem:[%s441 + $0x200] sm:$0xff]
          %v13399 = vld [vmem:[%s441 + $0x208] sm:$0xff]
          %v13400 = vld [vmem:[%s441 + $0x210] sm:$0xff]
          %v13401 = vld [vmem:[%s441 + $0x218] sm:$0xff]
          %v13402 = vld [vmem:[%s441 + $0x220] sm:$0xff]
          %v13403 = vld [vmem:[%s441 + $0x228] sm:$0xff]
          %v13404 = vld [vmem:[%s441 + $0x230] sm:$0xff]
          %v13405 = vld [vmem:[%s441 + $0x238] sm:$0xff]
          %v13406 = vld [vmem:[%s441 + $0x240] sm:$0xff]
          %v13407 = vld [vmem:[%s441 + $0x248] sm:$0xff]
          %v13408 = vld [vmem:[%s441 + $0x250] sm:$0xff]
          %v13409 = vld [vmem:[%s441 + $0x258] sm:$0xff]
          %v13410 = vld [vmem:[%s441 + $0x260] sm:$0xff]
          %v13411 = vld [vmem:[%s441 + $0x268] sm:$0xff]
          %v13412 = vld [vmem:[%s441 + $0x270] sm:$0xff]
          %v13413 = vld [vmem:[%s441 + $0x278] sm:$0xff]
          %v13414 = vld [vmem:[%s441 + $0x280] sm:$0xff]
          %v13415 = vld [vmem:[%s441 + $0x288] sm:$0xff]
          %v13416 = vld [vmem:[%s441 + $0x290] sm:$0xff]
          %v13417 = vld [vmem:[%s441 + $0x298] sm:$0xff]
          %v13418 = vld [vmem:[%s441 + $0x2a0] sm:$0xff]
          %v13419 = vld [vmem:[%s441 + $0x2a8] sm:$0xff]
          %v13420 = vld [vmem:[%s441 + $0x2b0] sm:$0xff]
          %v13421 = vld [vmem:[%s441 + $0x2b8] sm:$0xff]
          %v13422 = vld [vmem:[%s441 + $0x2c0] sm:$0xff]
          %v13423 = vld [vmem:[%s441 + $0x2c8] sm:$0xff]
          %v13424 = vld [vmem:[%s441 + $0x2d0] sm:$0xff]
          %v13425 = vld [vmem:[%s441 + $0x2d8] sm:$0xff]
          %v13426 = vld [vmem:[%s441 + $0x2e0] sm:$0xff]
          %v13427 = vld [vmem:[%s441 + $0x2e8] sm:$0xff]
          %v13428 = vld [vmem:[%s441 + $0x2f0] sm:$0xff]
          %v13429 = vld [vmem:[%s441 + $0x2f8] sm:$0xff]
          %v13430 = vld [vmem:[%s441 + $0x300] sm:$0xff]
          %v13431 = vld [vmem:[%s441 + $0x308] sm:$0xff]
          %v13432 = vld [vmem:[%s441 + $0x310] sm:$0xff]
          %v13433 = vld [vmem:[%s441 + $0x318] sm:$0xff]
          %v13434 = vld [vmem:[%s441 + $0x320] sm:$0xff]
          %v13435 = vld [vmem:[%s441 + $0x328] sm:$0xff]
          %v13436 = vld [vmem:[%s441 + $0x330] sm:$0xff]
          %v13437 = vld [vmem:[%s441 + $0x338] sm:$0xff]
          %v13438 = vld [vmem:[%s441 + $0x340] sm:$0xff]
          %v13439 = vld [vmem:[%s441 + $0x348] sm:$0xff]
          %v13440 = vld [vmem:[%s441 + $0x350] sm:$0xff]
          %v13441 = vld [vmem:[%s441 + $0x358] sm:$0xff]
          %v13442 = vld [vmem:[%s441 + $0x360] sm:$0xff]
          %v13443 = vld [vmem:[%s441 + $0x368] sm:$0xff]
          %v13444 = vld [vmem:[%s441 + $0x370] sm:$0xff]
          %v13445 = vld [vmem:[%s441 + $0x378] sm:$0xff]
          %v13446 = vld [vmem:[%s441 + $0x380] sm:$0xff]
          %v13447 = vld [vmem:[%s441 + $0x388] sm:$0xff]
          %v13448 = vld [vmem:[%s441 + $0x390] sm:$0xff]
          %v13449 = vld [vmem:[%s441 + $0x398] sm:$0xff]
          %v13450 = vld [vmem:[%s441 + $0x3a0] sm:$0xff]
          %v13451 = vld [vmem:[%s441 + $0x3a8] sm:$0xff]
          %v13452 = vld [vmem:[%s441 + $0x3b0] sm:$0xff]
          %v13453 = vld [vmem:[%s441 + $0x3b8] sm:$0xff]
          %v13454 = vld [vmem:[%s441 + $0x3c0] sm:$0xff]
          %v13455 = vld [vmem:[%s441 + $0x3c8] sm:$0xff]
          %v13456 = vld [vmem:[%s441 + $0x3d0] sm:$0xff]
          %v13457 = vld [vmem:[%s441 + $0x3d8] sm:$0xff]
          %v13458 = vld [vmem:[%s441 + $0x3e0] sm:$0xff]
          %v13459 = vld [vmem:[%s441 + $0x3e8] sm:$0xff]
          %v13460 = vld [vmem:[%s441 + $0x3f0] sm:$0xff]
          %v13461 = vld [vmem:[%s441 + $0x3f8] sm:$0xff]
          %13464 = vst [vmem:[#allocation1] ss:$4 sm:$0xff] %v13332
          %s13465 = scalar_lea.vmem [#allocation1], 32
          %13466 = vst [vmem:[%s13465] ss:$4 sm:$0xff] %v13333
          %v13467 = vld.sshfl [vmem:[#allocation1] sm:$0xff pattern:$0x73625140]
          %v13468 = vld.sshfl [vmem:[#allocation1 + $0x8] sm:$0xff pattern:$0x73625140]
          %v13469 = vld.sshfl [vmem:[#allocation1 + $0x10] sm:$0xff pattern:$0x73625140]
          %v13470 = vld.sshfl [vmem:[#allocation1 + $0x18] sm:$0xff pattern:$0x73625140]
          %v13471 = vld.sshfl [vmem:[#allocation1 + $0x20] sm:$0xff pattern:$0x73625140]
          %v13472 = vld.sshfl [vmem:[#allocation1 + $0x28] sm:$0xff pattern:$0x73625140]
          %v13473 = vld.sshfl [vmem:[#allocation1 + $0x30] sm:$0xff pattern:$0x73625140]
          %v13474 = vld.sshfl [vmem:[#allocation1 + $0x38] sm:$0xff pattern:$0x73625140]
          %13483 = vmatpush.msra.mxu0 %v13349
          %13484 = vmatpush.msra.mxu0 %v13348
          %13485 = vmatpush.msra.mxu0 %v13347
          %13486 = vmatpush.msra.mxu0 %v13346
          %13487 = vmatpush.msra.mxu0 %v13345
          %13488 = vmatpush.msra.mxu0 %v13344
          %13489 = vmatpush.msra.mxu0 %v13343
          %13490 = vmatpush.msra.mxu0 %v13342
          %13491 = vmatpush.msra.mxu0 %v13341
          %13492 = vmatpush.msra.mxu0 %v13340
          %13493 = vmatpush.msra.mxu0 %v13339
          %13494 = vmatpush.msra.mxu0 %v13338
          %13495 = vmatpush.msra.mxu0 %v13337
          %13496 = vmatpush.msra.mxu0 %v13336
          %13497 = vmatpush.msra.mxu0 %v13335
          %13498 = vmatpush.msra.mxu0 %v13334
          %13499 = vmatmul.f32.gmra.mxu0 %v13467
          %v13500 = vpop.f32.mrf.mxu0
          %v13501 = vadd.f32 0.0, %v13500
          %13502 = vdwg.mxu0
          %13503 = vmatpush.msra.mxu0 %v13365
          %13504 = vmatpush.msra.mxu0 %v13364
          %13505 = vmatpush.msra.mxu0 %v13363
          %13506 = vmatpush.msra.mxu0 %v13362
          %13507 = vmatpush.msra.mxu0 %v13361
          %13508 = vmatpush.msra.mxu0 %v13360
          %13509 = vmatpush.msra.mxu0 %v13359
          %13510 = vmatpush.msra.mxu0 %v13358
          %13511 = vmatpush.msra.mxu0 %v13357
          %13512 = vmatpush.msra.mxu0 %v13356
          %13513 = vmatpush.msra.mxu0 %v13355
          %13514 = vmatpush.msra.mxu0 %v13354
          %13515 = vmatpush.msra.mxu0 %v13353
          %13516 = vmatpush.msra.mxu0 %v13352
          %13517 = vmatpush.msra.mxu0 %v13351
          %13518 = vmatpush.msra.mxu0 %v13350
          %13519 = vmatmul.f32.gmra.mxu0 %v13468
          %v13520 = vpop.f32.mrf.mxu0
          %v13521 = vadd.f32 %v13501, %v13520
          %13522 = vdwg.mxu0
          %13523 = vmatpush.msra.mxu0 %v13381
          %13524 = vmatpush.msra.mxu0 %v13380
          %13525 = vmatpush.msra.mxu0 %v13379
          %13526 = vmatpush.msra.mxu0 %v13378
          %13527 = vmatpush.msra.mxu0 %v13377
          %13528 = vmatpush.msra.mxu0 %v13376
          %13529 = vmatpush.msra.mxu0 %v13375
          %13530 = vmatpush.msra.mxu0 %v13374
          %13531 = vmatpush.msra.mxu0 %v13373
          %13532 = vmatpush.msra.mxu0 %v13372
          %13533 = vmatpush.msra.mxu0 %v13371
          %13534 = vmatpush.msra.mxu0 %v13370
          %13535 = vmatpush.msra.mxu0 %v13369
          %13536 = vmatpush.msra.mxu0 %v13368
          %13537 = vmatpush.msra.mxu0 %v13367
          %13538 = vmatpush.msra.mxu0 %v13366
          %13539 = vmatmul.f32.gmra.mxu0 %v13469
          %v13540 = vpop.f32.mrf.mxu0
          %v13541 = vadd.f32 %v13521, %v13540
          %13542 = vdwg.mxu0
          %13543 = vmatpush.msra.mxu0 %v13397
          %13544 = vmatpush.msra.mxu0 %v13396
          %13545 = vmatpush.msra.mxu0 %v13395
          %13546 = vmatpush.msra.mxu0 %v13394
          %13547 = vmatpush.msra.mxu0 %v13393
          %13548 = vmatpush.msra.mxu0 %v13392
          %13549 = vmatpush.msra.mxu0 %v13391
          %13550 = vmatpush.msra.mxu0 %v13390
          %13551 = vmatpush.msra.mxu0 %v13389
          %13552 = vmatpush.msra.mxu0 %v13388
          %13553 = vmatpush.msra.mxu0 %v13387
          %13554 = vmatpush.msra.mxu0 %v13386
          %13555 = vmatpush.msra.mxu0 %v13385
          %13556 = vmatpush.msra.mxu0 %v13384
          %13557 = vmatpush.msra.mxu0 %v13383
          %13558 = vmatpush.msra.mxu0 %v13382
          %13559 = vmatmul.f32.gmra.mxu0 %v13470
          %v13560 = vpop.f32.mrf.mxu0
          %v13561 = vadd.f32 %v13541, %v13560
          %13562 = vdwg.mxu0
          %13563 = vmatpush.msra.mxu0 %v13413
          %13564 = vmatpush.msra.mxu0 %v13412
          %13565 = vmatpush.msra.mxu0 %v13411
          %13566 = vmatpush.msra.mxu0 %v13410
          %13567 = vmatpush.msra.mxu0 %v13409
          %13568 = vmatpush.msra.mxu0 %v13408
          %13569 = vmatpush.msra.mxu0 %v13407
          %13570 = vmatpush.msra.mxu0 %v13406
          %13571 = vmatpush.msra.mxu0 %v13405
          %13572 = vmatpush.msra.mxu0 %v13404
          %13573 = vmatpush.msra.mxu0 %v13403
          %13574 = vmatpush.msra.mxu0 %v13402
          %13575 = vmatpush.msra.mxu0 %v13401
          %13576 = vmatpush.msra.mxu0 %v13400
          %13577 = vmatpush.msra.mxu0 %v13399
          %13578 = vmatpush.msra.mxu0 %v13398
          %13579 = vmatmul.f32.gmra.mxu0 %v13471
          %v13580 = vpop.f32.mrf.mxu0
          %v13581 = vadd.f32 %v13561, %v13580
          %13582 = vdwg.mxu0
          %13583 = vmatpush.msra.mxu0 %v13429
          %13584 = vmatpush.msra.mxu0 %v13428
          %13585 = vmatpush.msra.mxu0 %v13427
          %13586 = vmatpush.msra.mxu0 %v13426
          %13587 = vmatpush.msra.mxu0 %v13425
          %13588 = vmatpush.msra.mxu0 %v13424
          %13589 = vmatpush.msra.mxu0 %v13423
          %13590 = vmatpush.msra.mxu0 %v13422
          %13591 = vmatpush.msra.mxu0 %v13421
          %13592 = vmatpush.msra.mxu0 %v13420
          %13593 = vmatpush.msra.mxu0 %v13419
          %13594 = vmatpush.msra.mxu0 %v13418
          %13595 = vmatpush.msra.mxu0 %v13417
          %13596 = vmatpush.msra.mxu0 %v13416
          %13597 = vmatpush.msra.mxu0 %v13415
          %13598 = vmatpush.msra.mxu0 %v13414
          %13599 = vmatmul.f32.gmra.mxu0 %v13472
          %v13600 = vpop.f32.mrf.mxu0
          %v13601 = vadd.f32 %v13581, %v13600
          %13602 = vdwg.mxu0
          %13603 = vmatpush.msra.mxu0 %v13445
          %13604 = vmatpush.msra.mxu0 %v13444
          %13605 = vmatpush.msra.mxu0 %v13443
          %13606 = vmatpush.msra.mxu0 %v13442
          %13607 = vmatpush.msra.mxu0 %v13441
          %13608 = vmatpush.msra.mxu0 %v13440
          %13609 = vmatpush.msra.mxu0 %v13439
          %13610 = vmatpush.msra.mxu0 %v13438
          %13611 = vmatpush.msra.mxu0 %v13437
          %13612 = vmatpush.msra.mxu0 %v13436
          %13613 = vmatpush.msra.mxu0 %v13435
          %13614 = vmatpush.msra.mxu0 %v13434
          %13615 = vmatpush.msra.mxu0 %v13433
          %13616 = vmatpush.msra.mxu0 %v13432
          %13617 = vmatpush.msra.mxu0 %v13431
          %13618 = vmatpush.msra.mxu0 %v13430
          %13619 = vmatmul.f32.gmra.mxu0 %v13473
          %v13620 = vpop.f32.mrf.mxu0
          %v13621 = vadd.f32 %v13601, %v13620
          %13622 = vdwg.mxu0
          %13623 = vmatpush.msra.mxu0 %v13461
          %13624 = vmatpush.msra.mxu0 %v13460
          %13625 = vmatpush.msra.mxu0 %v13459
          %13626 = vmatpush.msra.mxu0 %v13458
          %13627 = vmatpush.msra.mxu0 %v13457
          %13628 = vmatpush.msra.mxu0 %v13456
          %13629 = vmatpush.msra.mxu0 %v13455
          %13630 = vmatpush.msra.mxu0 %v13454
          %13631 = vmatpush.msra.mxu0 %v13453
          %13632 = vmatpush.msra.mxu0 %v13452
          %13633 = vmatpush.msra.mxu0 %v13451
          %13634 = vmatpush.msra.mxu0 %v13450
          %13635 = vmatpush.msra.mxu0 %v13449
          %13636 = vmatpush.msra.mxu0 %v13448
          %13637 = vmatpush.msra.mxu0 %v13447
          %13638 = vmatpush.msra.mxu0 %v13446
          %13639 = vmatmul.f32.gmra.mxu0 %v13474
          %v13640 = vpop.f32.mrf.mxu0
          %v13641 = vadd.f32 %v13621, %v13640
          %13642 = vdwg.mxu0
          %vm13643 = vcmask 91136
          %13644 = vst.msk [vmem:[%s431] sm:$0x3] %vm13643, %v13641
        $region72: #{tpu_custom_call.1} parent=43 // pred_fallthru
          _
        %s13645 = sand.u32 %s197, 1
        %s13646 = scalar_lea.sflag [#allocation5], %s13645
        %s13647 = sand.u32 %s197, 1
        %s13648 = smul.addr %s13647, 2
        %s13649 = scalar_lea.vmem [#allocation11], %s13648
        // Predicated region
        $region73: #{tpu_custom_call.1} parent=43 // pred_check
          %p13650 = pneg %p207
        $region74: #{tpu_custom_call.1} parent=43 // pred_check_branch
          %13652 = sbr.rel (%p13650) target = $region76
        $region75: #{tpu_custom_call.1} parent=43 // pred_region
          %13654 = vsyncadd %s13646, 0
          %s13655 = smul.addr %s28, 2
          %s13656 = scalar_lea.hbm %s6, %s13655
          %s13658 = sshll.u32 %s13649, 4
          %s13659 = int_to_ptr.vmem [resolvable:$true] %s13658
          %s13660 = sshll.u32 %s13656, 4
          %s13661 = int_to_ptr.hbm [resolvable:$true] %s13660
          %13663 = dma.vmem_to_hbm [thread:$0]  %s13659, 32, %s13661, %s13646
        $region76: #{tpu_custom_call.1} parent=43 // pred_fallthru
          _
      $region44: #{tpu_custom_call.1} parent=5 // pred_fallthru
        _
      %p13664 = scmp.le.s32.totalorder 2, %s19
      // Predicated region
      $region77: #{tpu_custom_call.1} parent=5 // pred_check
        %p13665 = pneg %p13664
      $region78: #{tpu_custom_call.1} parent=5 // pred_check_branch
        %13667 = sbr.rel (%p13665) target = $region80
      $region79: #{tpu_custom_call.1} parent=5 // pred_region
        %s13668 = ssub.s32 %s19, 2
        // Predicated region
        $region81: #{tpu_custom_call.1} parent=79 // pred_check
          %p13669 = pneg %p213
        $region82: #{tpu_custom_call.1} parent=79 // pred_check_branch
          %13671 = sbr.rel (%p13669) target = $region84
        $region83: #{tpu_custom_call.1} parent=79 // pred_region
          %s13672 = sand.u32 %s198, 1
          %s13673 = scalar_lea.sflag [#allocation5], %s13672
          %s13674 = sand.u32 %s198, 1
          %s13675 = smul.addr %s13674, 2
          %s13676 = scalar_lea.vmem [#allocation11], %s13675
          %13678 = dma.done %s13673, 32
        $region84: #{tpu_custom_call.1} parent=79 // pred_fallthru
          _
      $region80: #{tpu_custom_call.1} parent=5 // pred_fallthru
        _
    $region6: #{tpu_custom_call.1} parent=1 // loop_footer
      %s23 = sadd.s32 1, %s19
    $region7: #{tpu_custom_call.1} parent=1 // loop_footer_branch
      %18 = sbr.rel target = $region3
    $region8: #{tpu_custom_call.1} parent=1 // loop_exit
      _
    %13679 = vsyncpa [#allocation4], 1
    %s13680 = scalar_lea.sflag [#allocation4], 1
    %13681 = vsyncpa %s13680, 1
    %13682 = vsyncpa [#allocation7], 1
    %13683 = vsyncpa [#allocation5], 1
    %s13684 = scalar_lea.sflag [#allocation5], 1
    %13685 = vsyncpa %s13684, 1

</llo_original>
